<compile_context>
chip_gen: v6e
topology: v6e:2x2x1
jax: 0.10.0
libtpu: 0.0.40
codegen_flags: <defaults>
</compile_context>

<pallas_src>
import jax
import jax.numpy as jnp
from jax.experimental import pallas as pl
from jax.experimental.pallas import tpu as pltpu

BN_EPS = 1e-5
INIT_DIM = 64
PLANES = (64, 128, 256, 512)
LAYERS = (1, 1, 1, 1)              # BasicBlock, expansion = 1

_CP = pltpu.CompilerParams(dimension_semantics=("arbitrary",))


# ----------------------------------------------------------------------------
# In-kernel helpers
# ----------------------------------------------------------------------------

def _bn(y, eps=BN_EPS):
    """Training-mode BatchNorm (gamma=1, beta=0), single pass (sum + sumsq)."""
    m = y.shape[0]
    s = jnp.sum(y, axis=0, keepdims=True)
    ss = jnp.sum(y * y, axis=0, keepdims=True)
    mean = s * (1.0 / m)
    var = jnp.maximum(ss * (1.0 / m) - mean * mean, 0.0)   # biased, clamped >=0
    return (y - mean) * jax.lax.rsqrt(var + eps)


# ----------------------------------------------------------------------------
# Pallas kernels (whole-array blocks, grid=(1,); every matmul here is tiny so
# each kernel is single-shot with its BN / residual / ReLU / pool epilogue)
# ----------------------------------------------------------------------------

def _conv1_pool_kernel(a_ref, w_ref, o_ref):
    """conv1 + bn1 + relu + 2x2x2 avg-pool.  Patch rows are ordered
    pool-sibling-major (row = j*Q + q, j in [0,8)), so the pool is 8 static
    contiguous row-slab adds on the VMEM-resident activation."""
    y = _bn(jnp.dot(a_ref[...], w_ref[...], preferred_element_type=jnp.float32))
    y = jnp.maximum(y, 0.0)
    q = o_ref.shape[0]
    acc = y[0:q]
    for j in range(1, 8):
        acc = acc + y[j * q:(j + 1) * q]
    o_ref[...] = (acc * 0.125).astype(o_ref.dtype)


def _conv_bn_relu_kernel(a_ref, w_ref, o_ref):
    """conv + bn + relu."""
    y = _bn(jnp.dot(a_ref[...], w_ref[...], preferred_element_type=jnp.float32))
    o_ref[...] = jnp.maximum(y, 0.0).astype(o_ref.dtype)


def _conv_bn_dsres_kernel(a_ref, w_ref, ad_ref, wd_ref, o_ref):
    """conv2 + bn2 + (downsample-conv + bn) + add + relu."""
    y = _bn(jnp.dot(a_ref[...], w_ref[...], preferred_element_type=jnp.float32))
    r = _bn(jnp.dot(ad_ref[...], wd_ref[...], preferred_element_type=jnp.float32))
    o_ref[...] = jnp.maximum(y + r, 0.0).astype(o_ref.dtype)


def _tail_kernel(x_ref, w1d2_ref, w22_ref, w1d3_ref, w23_ref,
                 w1d4_ref, w24_ref, w5_ref, wf_ref, bf_ref, o_ref):
    """layers 2-4 (BasicBlocks, spatial collapsed to 1^3) + conv5/bn5/relu +
    global max pool (identity over the single voxel) + final Linear, all as one
    VMEM-resident chain of M=2 MXU matmuls.  Each block's conv1 and downsample
    conv share one matmul via a concatenated [w1 | wd] weight; per-column BN is
    unaffected by the concatenation."""

    def block(xin, w1d_ref, w2_ref):
        planes = w2_ref.shape[0]
        hr = _bn(jnp.dot(xin, w1d_ref[...], preferred_element_type=jnp.float32))
        h = jnp.maximum(hr[:, :planes], 0.0).astype(jnp.bfloat16)   # bn1 + relu
        res = hr[:, planes:]                                        # bn_d(ds(x))
        y = _bn(jnp.dot(h, w2_ref[...], preferred_element_type=jnp.float32))
        return jnp.maximum(y + res, 0.0).astype(jnp.bfloat16)

    h = x_ref[...]
    h = block(h, w1d2_ref, w22_ref)      # layer2
    h = block(h, w1d3_ref, w23_ref)      # layer3
    h = block(h, w1d4_ref, w24_ref)      # layer4
    h = jnp.maximum(_bn(jnp.dot(h, w5_ref[...],
                                preferred_element_type=jnp.float32)), 0.0)
    # MinkowskiGlobalMaxPooling over the single remaining voxel == identity.
    y = jnp.dot(h.astype(jnp.bfloat16), wf_ref[...],
                preferred_element_type=jnp.float32)
    o_ref[...] = (y + bf_ref[...]).astype(o_ref.dtype)


# ----------------------------------------------------------------------------
# pallas_call wrappers (whole-array blocks, grid=(1,))
# ----------------------------------------------------------------------------

def _fs(shape):
    return pl.BlockSpec(shape, lambda i: (0,) * len(shape))


def conv1_bn_relu_pool(a, w, m_pool):
    assert a.shape[0] == 8 * m_pool
    n_out = w.shape[1]
    return pl.pallas_call(
        _conv1_pool_kernel,
        out_shape=jax.ShapeDtypeStruct((m_pool, n_out), jnp.bfloat16),
        grid=(1,),
        in_specs=[_fs(a.shape), _fs(w.shape)],
        out_specs=_fs((m_pool, n_out)),
        compiler_params=_CP,
    )(a, w)


def conv_bn_relu(a, w):
    m, n_out = a.shape[0], w.shape[1]
    return pl.pallas_call(
        _conv_bn_relu_kernel,
        out_shape=jax.ShapeDtypeStruct((m, n_out), jnp.bfloat16),
        grid=(1,),
        in_specs=[_fs(a.shape), _fs(w.shape)],
        out_specs=_fs((m, n_out)),
        compiler_params=_CP,
    )(a, w)


def conv_bn_dsres(a, w, ad, wd):
    m, n_out = a.shape[0], w.shape[1]
    return pl.pallas_call(
        _conv_bn_dsres_kernel,
        out_shape=jax.ShapeDtypeStruct((m, n_out), jnp.bfloat16),
        grid=(1,),
        in_specs=[_fs(a.shape), _fs(w.shape), _fs(ad.shape), _fs(wd.shape)],
        out_specs=_fs((m, n_out)),
        compiler_params=_CP,
    )(a, w, ad, wd)


def tail_fused(x2d, w):
    n = x2d.shape[0]
    n_out = w['final_w'].shape[1]
    ins = (x2d, w['t2_w1d'], w['t2_w2'], w['t3_w1d'], w['t3_w2'],
           w['t4_w1d'], w['t4_w2'], w['conv5'], w['final_w'], w['final_b'])
    return pl.pallas_call(
        _tail_kernel,
        out_shape=jax.ShapeDtypeStruct((n, n_out), jnp.float32),
        grid=(1,),
        in_specs=[_fs(t.shape) for t in ins],
        out_specs=_fs((n, n_out)),
        compiler_params=_CP,
    )(*ins)


# ----------------------------------------------------------------------------
# Plain-JAX glue: tap-pruned im2col for Minkowski conv on a dense grid
# ----------------------------------------------------------------------------

def _conv_plan(spatial, k, s):
    """Valid (non-structurally-zero) taps of a centered odd kernel on a dense
    grid, and output spatial extents (Minkowski stride semantics)."""
    p = k // 2
    outs = tuple((d - 1) // s + 1 for d in spatial)

    def valid(dim, do):
        return [any(0 <= o * s + t - p < dim for o in range(do)) for t in range(k)]

    v = [valid(d, do) for d, do in zip(spatial, outs)]
    taps = [(dz, dy, dx)
            for dz in range(k) if v[0][dz]
            for dy in range(k) if v[1][dy]
            for dx in range(k) if v[2][dx]]
    return taps, outs


def _im2col(x, k, s, taps, out_sp):
    """Tap-pruned im2col on a channels-last bf16 grid -> (M, T*C)."""
    n, d, h, wdim, c = x.shape
    do, ho, wo = out_sp
    p = k // 2
    xp = jnp.pad(x, ((0, 0), (p, p), (p, p), (p, p), (0, 0))) if p else x
    cols = [xp[:, dz:dz + (do - 1) * s + 1:s,
               dy:dy + (ho - 1) * s + 1:s,
               dx:dx + (wo - 1) * s + 1:s, :] for (dz, dy, dx) in taps]
    patches = cols[0] if len(cols) == 1 else jnp.concatenate(cols, axis=-1)
    return patches.reshape(n * do * ho * wo, len(taps) * c)


def _conv1_pool_patches(x, taps, out_sp):
    """im2col for conv1 (k=5, s=2) with rows regrouped pool-sibling-major:
    row = ((a*2+b)*2+c)*Q + q where (a,b,c) is the 2x2x2 pool tap and q runs
    over (n, zp, yp, xp) of the pooled grid.  Lets the avg-pool be fused into
    the conv1 kernel epilogue as 8 contiguous row-slab adds."""
    n, d, h, wdim, c = x.shape
    do, ho, wo = out_sp
    k_cols = len(taps) * c
    p, s = 2, 2
    xp = jnp.pad(x, ((0, 0), (p, p), (p, p), (p, p), (0, 0)))
    cols = [xp[:, dz:dz + (do - 1) * s + 1:s,
               dy:dy + (ho - 1) * s + 1:s,
               dx:dx + (wo - 1) * s + 1:s, :] for (dz, dy, dx) in taps]
    patches = jnp.concatenate(cols, axis=-1)                # (n, do, ho, wo, T*C)
    patches = patches.reshape(n, do // 2, 2, ho // 2, 2, wo // 2, 2, k_cols)
    patches = patches.transpose(2, 4, 6, 0, 1, 3, 5, 7)     # pool-tap major
    return patches.reshape(8 * n * (do // 2) * (ho // 2) * (wo // 2), k_cols)


def _plan_all(spatial):
    """Static per-stage tap/shape plan (pure Python on static shapes)."""
    plan = {}
    plan['c1_taps'], c1_sp = _conv_plan(spatial, 5, 2)
    assert all(d % 2 == 0 for d in c1_sp), "2x2x2 avg-pool needs even conv1 output"
    plan['c1_sp'] = c1_sp
    pool_sp = tuple(d // 2 for d in c1_sp)
    plan['pool_sp'] = pool_sp
    plan['l1c1_taps'], l1_sp = _conv_plan(pool_sp, 3, 2)
    plan['l1_sp'] = l1_sp
    plan['l1c2_taps'], l1c2_sp = _conv_plan(l1_sp, 3, 1)
    assert l1c2_sp == l1_sp
    plan['l2c1_taps'], l2_sp = _conv_plan(l1_sp, 3, 2)
    # The fused tail kernel requires the spatial extent to collapse to 1^3 at
    # layer2's strided conv (true for 16^3 inputs: 16 -> 8 -> 4 -> 2 -> 1).
    assert l2_sp == (1, 1, 1), "fused tail kernel needs layer2 output spatial 1^3"
    return plan


# ----------------------------------------------------------------------------
# Parameters: init + static one-time prep (hoisted out of the jitted forward)
# ----------------------------------------------------------------------------

def _kaiming_conv(key, kvol, cin, cout):
    # kaiming_normal_, mode='fan_out', nonlinearity='relu' on (kvol, cin, cout)
    std = (2.0 / (kvol * cout)) ** 0.5
    w = std * jax.random.normal(key, (kvol * cin, cout), jnp.float32)
    return w.astype(jnp.bfloat16)


def init_params(key, in_channels, out_channels):
    keys = iter(jax.random.split(key, 64))
    p = {'conv1': _kaiming_conv(next(keys), 5 ** 3, in_channels, INIT_DIM)}
    inplanes = INIT_DIM
    for li, planes in enumerate(PLANES):
        blocks = []
        for bi in range(LAYERS[li]):
            stride = 2 if bi == 0 else 1
            blk = {'conv1': _kaiming_conv(next(keys), 27, inplanes, planes),
                   'conv2': _kaiming_conv(next(keys), 27, planes, planes)}
            if stride != 1 or inplanes != planes:
                blk['ds'] = _kaiming_conv(next(keys), 1, inplanes, planes)
            blocks.append(blk)
            inplanes = planes
        p[f'layer{li + 1}'] = blocks
    p['conv5'] = _kaiming_conv(next(keys), 27, inplanes, inplanes)
    p['final_w'] = ((1.0 / inplanes ** 0.5) * jax.random.normal(
        next(keys), (inplanes, out_channels), jnp.float32)).astype(jnp.bfloat16)
    p['final_b'] = jnp.zeros((out_channels,), jnp.float32)
    return p


def _tap_id(tap, k):
    dz, dy, dx = tap
    return (dz * k + dy) * k + dx


def _prune(w, taps, k, cin):
    """Keep only weight rows of valid taps (static; dropped rows only ever
    multiply zero padding, so this is exact)."""
    kvol = k ** 3
    ids = [_tap_id(t, k) for t in taps]
    if ids == list(range(kvol)):
        return w
    return jnp.concatenate([w[t * cin:(t + 1) * cin] for t in ids], axis=0)


def _center(w, cin):
    """Center tap (id 13) of a 3^3 kernel."""
    return w[13 * cin:14 * cin]


def prepare_params(params, in_spatial):
    """One-time static weight prep: tap pruning, center-tap slicing,
    [conv1 | downsample] concatenation, downsample K zero-padding."""
    plan = _plan_all(in_spatial)
    for li in range(4):
        assert len(params[f'layer{li + 1}']) == 1, "this variant fuses 1 block/layer"
    cin = params['conv1'].shape[0] // (5 ** 3)

    w = {}
    w['conv1'] = _prune(params['conv1'], plan['c1_taps'], 5, cin)

    l1 = params['layer1'][0]
    w['l1_w1'] = _prune(l1['conv1'], plan['l1c1_taps'], 3, INIT_DIM)
    w['l1_w2'] = _prune(l1['conv2'], plan['l1c2_taps'], 3, PLANES[0])
    w['l1_wd'] = l1['ds']

    # layer2: conv1's patches are exactly the flattened layer1 output
    # (K = prod(l1_sp)*64); the 1x1 stride-2 downsample only sees spatial
    # position (0,0,0), i.e. the first 64 columns, so its weight is zero-padded
    # to the same K and fused into the same matmul (per-column BN unaffected).
    l2 = params['layer2'][0]
    k2 = len(plan['l2c1_taps']) * PLANES[0]
    w1_l2 = _prune(l2['conv1'], plan['l2c1_taps'], 3, PLANES[0])
    wd_l2 = jnp.zeros((k2, PLANES[1]), jnp.bfloat16).at[:PLANES[0]].set(l2['ds'])
    w['t2_w1d'] = jnp.concatenate([w1_l2, wd_l2], axis=1)
    w['t2_w2'] = _center(l2['conv2'], PLANES[1])

    # layers 3/4: spatial is 1^3, so conv1 == its center tap and the downsample
    # sees the same input -> one matmul with [w1 | wd] concatenated along N.
    l3 = params['layer3'][0]
    w['t3_w1d'] = jnp.concatenate([_center(l3['conv1'], PLANES[1]), l3['ds']], axis=1)
    w['t3_w2'] = _center(l3['conv2'], PLANES[2])
    l4 = params['layer4'][0]
    w['t4_w1d'] = jnp.concatenate([_center(l4['conv1'], PLANES[2]), l4['ds']], axis=1)
    w['t4_w2'] = _center(l4['conv2'], PLANES[3])

    # conv5 (k=3, s=3) on spatial 1^3 -> center tap only.
    w['conv5'] = _center(params['conv5'], PLANES[3])
    w['final_w'] = params['final_w']
    w['final_b'] = params['final_b'].reshape(1, -1).astype(jnp.float32)
    return w


# ----------------------------------------------------------------------------
# Forward: 4 pallas_call launches
# ----------------------------------------------------------------------------

def forward(w, x):
    """`w` is the prepared-parameter dict; `x` is a dense channels-last voxel
    grid (N, D, H, W, Cin), float32."""
    n, d, hdim, wdim, _ = x.shape
    plan = _plan_all((d, hdim, wdim))          # static (trace-time) plan
    xb = x.astype(jnp.bfloat16)                # cast BEFORE pad/slice glue

    # conv1 (k5 s2) + bn1 + relu + avg-pool(2,2,2): one fused pallas_call
    a = _conv1_pool_patches(xb, plan['c1_taps'], plan['c1_sp'])
    pool_sp = plan['pool_sp']
    m_pool = n * pool_sp[0] * pool_sp[1] * pool_sp[2]
    h = conv1_bn_relu_pool(a, w['conv1'], m_pool)
    h = h.reshape(n, *pool_sp, INIT_DIM)

    # layer1 (BasicBlock 64->64, stride 2): conv1+bn+relu, then
    # conv2+bn2 + downsample-conv+bn + add + relu (two fused pallas_calls;
    # the conv1->conv2 intermediate needs a host-side 27-tap re-gather).
    l1_sp = plan['l1_sp']
    a1 = _im2col(h, 3, 2, plan['l1c1_taps'], l1_sp)
    h1 = conv_bn_relu(a1, w['l1_w1'])
    a2 = _im2col(h1.reshape(n, *l1_sp, PLANES[0]), 3, 1, plan['l1c2_taps'], l1_sp)
    ad = h[:, ::2, ::2, ::2, :].reshape(-1, INIT_DIM)
    h1o = conv_bn_dsres(a2, w['l1_w2'], ad, w['l1_wd'])

    # layers 2-4 + conv5/bn5/relu + global max pool + final Linear: one call.
    # layer2's conv1 patches equal the flattened layer1 output (its valid taps
    # cover every remaining voxel), so this reshape is free.
    x_tail = h1o.reshape(n, -1)
    return tail_fused(x_tail, w)


# ----------------------------------------------------------------------------

if __name__ == "__main__":
    key = jax.random.PRNGKey(0)
    kx, kp = jax.random.split(key)
    in_channels, out_channels = 4, 10
    # NCDHW [2, 4, 16, 16, 16] in PyTorch terms; here channels-last NDHWC.
    x = jax.random.normal(kx, (2, 16, 16, 16, in_channels), jnp.float32)
    params = init_params(kp, in_channels, out_channels)
    prepped = prepare_params(params, (16, 16, 16))   # static weight prep, once

    fwd = jax.jit(forward)
    y = fwd(prepped, x)
    jax.block_until_ready(y)
    assert y.shape == (2, out_channels)
    assert bool(jnp.all(jnp.isfinite(y)))
    print("KERNEL_OK")
</pallas_src>

<mosaic_0001>
module attributes {stable_mosaic.version = 11 : i64} {
  func.func @_conv1_pool_kernel(%arg0: i32, %arg1: memref<1024x500xbf16, #tpu.memory_space<vmem>>, %arg2: memref<500x64xbf16, #tpu.memory_space<vmem>>, %arg3: memref<128x64xbf16, #tpu.memory_space<vmem>>) attributes {dimension_semantics = [#tpu.dimension_semantics<arbitrary>], iteration_bounds = array<i64: 1>, scalar_prefetch = 0 : i64, scratch_operands = 0 : i64, tpu.core_type = #tpu.core_type<tc>, window_params = [{pipeline_mode = #tpu.pipeline_mode<synchronous>, transform_indices = @transform_0, window_bounds = array<i64: 1024, 500>}, {pipeline_mode = #tpu.pipeline_mode<synchronous>, transform_indices = @transform_1, window_bounds = array<i64: 500, 64>}, {pipeline_mode = #tpu.pipeline_mode<synchronous>, transform_indices = @transform_2, window_bounds = array<i64: 128, 64>}]} {
    %c0 = arith.constant 0 : index
    %c0_0 = arith.constant 0 : index
    %0 = vector.load %arg1[%c0, %c0_0] : memref<1024x500xbf16, #tpu.memory_space<vmem>>, vector<1024x500xbf16>
    %c0_1 = arith.constant 0 : index
    %c0_2 = arith.constant 0 : index
    %1 = vector.load %arg2[%c0_1, %c0_2] : memref<500x64xbf16, #tpu.memory_space<vmem>>, vector<500x64xbf16>
    %cst = arith.constant dense<0.000000e+00> : vector<1024x64xf32>
    %2 = tpu.matmul %0, %1, %cst {dimension_numbers = #tpu.dot_dimension_numbers<[1], [0], [0], [1], [0, 0, 1, 1], [], []>} : vector<1024x500xbf16>, vector<500x64xbf16>, vector<1024x64xf32> -> vector<1024x64xf32>
    %cst_3 = arith.constant dense<0.000000e+00> : vector<64xf32>
    %3 = vector.multi_reduction <add>, %2, %cst_3 [0] : vector<1024x64xf32> to vector<64xf32>
    %4 = vector.shape_cast %3 : vector<64xf32> to vector<1x64xf32>
    %5 = arith.mulf %2, %2 : vector<1024x64xf32>
    %cst_4 = arith.constant dense<0.000000e+00> : vector<64xf32>
    %6 = vector.multi_reduction <add>, %5, %cst_4 [0] : vector<1024x64xf32> to vector<64xf32>
    %7 = vector.shape_cast %6 : vector<64xf32> to vector<1x64xf32>
    %cst_5 = arith.constant 9.765625E-4 : f32
    %8 = vector.broadcast %cst_5 : f32 to vector<1x64xf32>
    %9 = arith.mulf %4, %8 : vector<1x64xf32>
    %cst_6 = arith.constant 9.765625E-4 : f32
    %10 = vector.broadcast %cst_6 : f32 to vector<1x64xf32>
    %11 = arith.mulf %7, %10 : vector<1x64xf32>
    %12 = arith.mulf %9, %9 : vector<1x64xf32>
    %13 = arith.subf %11, %12 : vector<1x64xf32>
    %cst_7 = arith.constant 0.000000e+00 : f32
    %14 = vector.broadcast %cst_7 : f32 to vector<1x64xf32>
    %15 = arith.maximumf %13, %14 : vector<1x64xf32>
    %16 = vector.broadcast %9 : vector<1x64xf32> to vector<1024x64xf32>
    %17 = arith.subf %2, %16 : vector<1024x64xf32>
    %cst_8 = arith.constant 9.99999974E-6 : f32
    %18 = vector.broadcast %cst_8 : f32 to vector<1x64xf32>
    %19 = arith.addf %15, %18 : vector<1x64xf32>
    %20 = math.rsqrt %19 : vector<1x64xf32>
    %21 = vector.broadcast %20 : vector<1x64xf32> to vector<1024x64xf32>
    %22 = arith.mulf %17, %21 : vector<1024x64xf32>
    %cst_9 = arith.constant 0.000000e+00 : f32
    %23 = vector.broadcast %cst_9 : f32 to vector<1024x64xf32>
    %24 = arith.maximumf %22, %23 : vector<1024x64xf32>
    %25 = vector.extract_strided_slice %24 {offsets = [0, 0], sizes = [128, 64], strides = [1, 1]} : vector<1024x64xf32> to vector<128x64xf32>
    %26 = vector.extract_strided_slice %24 {offsets = [128, 0], sizes = [128, 64], strides = [1, 1]} : vector<1024x64xf32> to vector<128x64xf32>
    %27 = arith.addf %25, %26 : vector<128x64xf32>
    %28 = vector.extract_strided_slice %24 {offsets = [256, 0], sizes = [128, 64], strides = [1, 1]} : vector<1024x64xf32> to vector<128x64xf32>
    %29 = arith.addf %27, %28 : vector<128x64xf32>
    %30 = vector.extract_strided_slice %24 {offsets = [384, 0], sizes = [128, 64], strides = [1, 1]} : vector<1024x64xf32> to vector<128x64xf32>
    %31 = arith.addf %29, %30 : vector<128x64xf32>
    %32 = vector.extract_strided_slice %24 {offsets = [512, 0], sizes = [128, 64], strides = [1, 1]} : vector<1024x64xf32> to vector<128x64xf32>
    %33 = arith.addf %31, %32 : vector<128x64xf32>
    %34 = vector.extract_strided_slice %24 {offsets = [640, 0], sizes = [128, 64], strides = [1, 1]} : vector<1024x64xf32> to vector<128x64xf32>
    %35 = arith.addf %33, %34 : vector<128x64xf32>
    %36 = vector.extract_strided_slice %24 {offsets = [768, 0], sizes = [128, 64], strides = [1, 1]} : vector<1024x64xf32> to vector<128x64xf32>
    %37 = arith.addf %35, %36 : vector<128x64xf32>
    %38 = vector.extract_strided_slice %24 {offsets = [896, 0], sizes = [128, 64], strides = [1, 1]} : vector<1024x64xf32> to vector<128x64xf32>
    %39 = arith.addf %37, %38 : vector<128x64xf32>
    %cst_10 = arith.constant 1.250000e-01 : f32
    %40 = vector.broadcast %cst_10 : f32 to vector<128x64xf32>
    %41 = arith.mulf %39, %40 : vector<128x64xf32>
    %42 = arith.truncf %41 : vector<128x64xf32> to vector<128x64xbf16>
    %c0_11 = arith.constant 0 : index
    %c0_12 = arith.constant 0 : index
    %43 = vector.load %arg3[%c0_11, %c0_12] : memref<128x64xbf16, #tpu.memory_space<vmem>>, vector<128x64xbf16>
    tpu.vector_store %arg3[%c0_11, %c0_12], %42 {strides = array<i32>} : memref<128x64xbf16, #tpu.memory_space<vmem>>, vector<128x64xbf16>,
    return
  }
  func.func @transform_0(%arg0: i32) -> (i32, i32) {
    %c0_i32 = arith.constant 0 : i32
    %c0_i32_0 = arith.constant 0 : i32
    %c0_i32_1 = arith.constant 0 : i32
    return %c0_i32, %c0_i32_0 : i32, i32
  }
  func.func @transform_1(%arg0: i32) -> (i32, i32) {
    %c0_i32 = arith.constant 0 : i32
    %c0_i32_0 = arith.constant 0 : i32
    %c0_i32_1 = arith.constant 0 : i32
    return %c0_i32, %c0_i32_0 : i32, i32
  }
  func.func @transform_2(%arg0: i32) -> (i32, i32) {
    %c0_i32 = arith.constant 0 : i32
    %c0_i32_0 = arith.constant 0 : i32
    %c0_i32_1 = arith.constant 0 : i32
    return %c0_i32, %c0_i32_0 : i32, i32
  }
}

module attributes {stable_mosaic.version = 11 : i64} {
  func.func @_conv_bn_relu_kernel(%arg0: i32, %arg1: memref<16x1728xbf16, #tpu.memory_space<vmem>>, %arg2: memref<1728x64xbf16, #tpu.memory_space<vmem>>, %arg3: memref<16x64xbf16, #tpu.memory_space<vmem>>) attributes {dimension_semantics = [#tpu.dimension_semantics<arbitrary>], iteration_bounds = array<i64: 1>, scalar_prefetch = 0 : i64, scratch_operands = 0 : i64, tpu.core_type = #tpu.core_type<tc>, window_params = [{pipeline_mode = #tpu.pipeline_mode<synchronous>, transform_indices = @transform_0, window_bounds = array<i64: 16, 1728>}, {pipeline_mode = #tpu.pipeline_mode<synchronous>, transform_indices = @transform_1, window_bounds = array<i64: 1728, 64>}, {pipeline_mode = #tpu.pipeline_mode<synchronous>, transform_indices = @transform_2, window_bounds = array<i64: 16, 64>}]} {
    %c0 = arith.constant 0 : index
    %c0_0 = arith.constant 0 : index
    %0 = vector.load %arg1[%c0, %c0_0] : memref<16x1728xbf16, #tpu.memory_space<vmem>>, vector<16x1728xbf16>
    %c0_1 = arith.constant 0 : index
    %c0_2 = arith.constant 0 : index
    %1 = vector.load %arg2[%c0_1, %c0_2] : memref<1728x64xbf16, #tpu.memory_space<vmem>>, vector<1728x64xbf16>
    %cst = arith.constant dense<0.000000e+00> : vector<16x64xf32>
    %2 = tpu.matmul %0, %1, %cst {dimension_numbers = #tpu.dot_dimension_numbers<[1], [0], [0], [1], [0, 0, 1, 1], [], []>} : vector<16x1728xbf16>, vector<1728x64xbf16>, vector<16x64xf32> -> vector<16x64xf32>
    %cst_3 = arith.constant dense<0.000000e+00> : vector<64xf32>
    %3 = vector.multi_reduction <add>, %2, %cst_3 [0] : vector<16x64xf32> to vector<64xf32>
    %4 = vector.shape_cast %3 : vector<64xf32> to vector<1x64xf32>
    %5 = arith.mulf %2, %2 : vector<16x64xf32>
    %cst_4 = arith.constant dense<0.000000e+00> : vector<64xf32>
    %6 = vector.multi_reduction <add>, %5, %cst_4 [0] : vector<16x64xf32> to vector<64xf32>
    %7 = vector.shape_cast %6 : vector<64xf32> to vector<1x64xf32>
    %cst_5 = arith.constant 6.250000e-02 : f32
    %8 = vector.broadcast %cst_5 : f32 to vector<1x64xf32>
    %9 = arith.mulf %4, %8 : vector<1x64xf32>
    %cst_6 = arith.constant 6.250000e-02 : f32
    %10 = vector.broadcast %cst_6 : f32 to vector<1x64xf32>
    %11 = arith.mulf %7, %10 : vector<1x64xf32>
    %12 = arith.mulf %9, %9 : vector<1x64xf32>
    %13 = arith.subf %11, %12 : vector<1x64xf32>
    %cst_7 = arith.constant 0.000000e+00 : f32
    %14 = vector.broadcast %cst_7 : f32 to vector<1x64xf32>
    %15 = arith.maximumf %13, %14 : vector<1x64xf32>
    %16 = vector.broadcast %9 : vector<1x64xf32> to vector<16x64xf32>
    %17 = arith.subf %2, %16 : vector<16x64xf32>
    %cst_8 = arith.constant 9.99999974E-6 : f32
    %18 = vector.broadcast %cst_8 : f32 to vector<1x64xf32>
    %19 = arith.addf %15, %18 : vector<1x64xf32>
    %20 = math.rsqrt %19 : vector<1x64xf32>
    %21 = vector.broadcast %20 : vector<1x64xf32> to vector<16x64xf32>
    %22 = arith.mulf %17, %21 : vector<16x64xf32>
    %cst_9 = arith.constant 0.000000e+00 : f32
    %23 = vector.broadcast %cst_9 : f32 to vector<16x64xf32>
    %24 = arith.maximumf %22, %23 : vector<16x64xf32>
    %25 = arith.truncf %24 : vector<16x64xf32> to vector<16x64xbf16>
    %c0_10 = arith.constant 0 : index
    %c0_11 = arith.constant 0 : index
    %26 = vector.load %arg3[%c0_10, %c0_11] : memref<16x64xbf16, #tpu.memory_space<vmem>>, vector<16x64xbf16>
    tpu.vector_store %arg3[%c0_10, %c0_11], %25 {strides = array<i32>} : memref<16x64xbf16, #tpu.memory_space<vmem>>, vector<16x64xbf16>,
    return
  }
  func.func @transform_0(%arg0: i32) -> (i32, i32) {
    %c0_i32 = arith.constant 0 : i32
    %c0_i32_0 = arith.constant 0 : i32
    %c0_i32_1 = arith.constant 0 : i32
    return %c0_i32, %c0_i32_0 : i32, i32
  }
  func.func @transform_1(%arg0: i32) -> (i32, i32) {
    %c0_i32 = arith.constant 0 : i32
    %c0_i32_0 = arith.constant 0 : i32
    %c0_i32_1 = arith.constant 0 : i32
    return %c0_i32, %c0_i32_0 : i32, i32
  }
  func.func @transform_2(%arg0: i32) -> (i32, i32) {
    %c0_i32 = arith.constant 0 : i32
    %c0_i32_0 = arith.constant 0 : i32
    %c0_i32_1 = arith.constant 0 : i32
    return %c0_i32, %c0_i32_0 : i32, i32
  }
}

module attributes {stable_mosaic.version = 11 : i64} {
  func.func @_conv_bn_dsres_kernel(%arg0: i32, %arg1: memref<16x1728xbf16, #tpu.memory_space<vmem>>, %arg2: memref<1728x64xbf16, #tpu.memory_space<vmem>>, %arg3: memref<16x64xbf16, #tpu.memory_space<vmem>>, %arg4: memref<64x64xbf16, #tpu.memory_space<vmem>>, %arg5: memref<16x64xbf16, #tpu.memory_space<vmem>>) attributes {dimension_semantics = [#tpu.dimension_semantics<arbitrary>], iteration_bounds = array<i64: 1>, scalar_prefetch = 0 : i64, scratch_operands = 0 : i64, tpu.core_type = #tpu.core_type<tc>, window_params = [{pipeline_mode = #tpu.pipeline_mode<synchronous>, transform_indices = @transform_0, window_bounds = array<i64: 16, 1728>}, {pipeline_mode = #tpu.pipeline_mode<synchronous>, transform_indices = @transform_1, window_bounds = array<i64: 1728, 64>}, {pipeline_mode = #tpu.pipeline_mode<synchronous>, transform_indices = @transform_2, window_bounds = array<i64: 16, 64>}, {pipeline_mode = #tpu.pipeline_mode<synchronous>, transform_indices = @transform_3, window_bounds = array<i64: 64, 64>}, {pipeline_mode = #tpu.pipeline_mode<synchronous>, transform_indices = @transform_4, window_bounds = array<i64: 16, 64>}]} {
    %c0 = arith.constant 0 : index
    %c0_0 = arith.constant 0 : index
    %0 = vector.load %arg1[%c0, %c0_0] : memref<16x1728xbf16, #tpu.memory_space<vmem>>, vector<16x1728xbf16>
    %c0_1 = arith.constant 0 : index
    %c0_2 = arith.constant 0 : index
    %1 = vector.load %arg2[%c0_1, %c0_2] : memref<1728x64xbf16, #tpu.memory_space<vmem>>, vector<1728x64xbf16>
    %cst = arith.constant dense<0.000000e+00> : vector<16x64xf32>
    %2 = tpu.matmul %0, %1, %cst {dimension_numbers = #tpu.dot_dimension_numbers<[1], [0], [0], [1], [0, 0, 1, 1], [], []>} : vector<16x1728xbf16>, vector<1728x64xbf16>, vector<16x64xf32> -> vector<16x64xf32>
    %cst_3 = arith.constant dense<0.000000e+00> : vector<64xf32>
    %3 = vector.multi_reduction <add>, %2, %cst_3 [0] : vector<16x64xf32> to vector<64xf32>
    %4 = vector.shape_cast %3 : vector<64xf32> to vector<1x64xf32>
    %5 = arith.mulf %2, %2 : vector<16x64xf32>
    %cst_4 = arith.constant dense<0.000000e+00> : vector<64xf32>
    %6 = vector.multi_reduction <add>, %5, %cst_4 [0] : vector<16x64xf32> to vector<64xf32>
    %7 = vector.shape_cast %6 : vector<64xf32> to vector<1x64xf32>
    %cst_5 = arith.constant 6.250000e-02 : f32
    %8 = vector.broadcast %cst_5 : f32 to vector<1x64xf32>
    %9 = arith.mulf %4, %8 : vector<1x64xf32>
    %cst_6 = arith.constant 6.250000e-02 : f32
    %10 = vector.broadcast %cst_6 : f32 to vector<1x64xf32>
    %11 = arith.mulf %7, %10 : vector<1x64xf32>
    %12 = arith.mulf %9, %9 : vector<1x64xf32>
    %13 = arith.subf %11, %12 : vector<1x64xf32>
    %cst_7 = arith.constant 0.000000e+00 : f32
    %14 = vector.broadcast %cst_7 : f32 to vector<1x64xf32>
    %15 = arith.maximumf %13, %14 : vector<1x64xf32>
    %16 = vector.broadcast %9 : vector<1x64xf32> to vector<16x64xf32>
    %17 = arith.subf %2, %16 : vector<16x64xf32>
    %cst_8 = arith.constant 9.99999974E-6 : f32
    %18 = vector.broadcast %cst_8 : f32 to vector<1x64xf32>
    %19 = arith.addf %15, %18 : vector<1x64xf32>
    %20 = math.rsqrt %19 : vector<1x64xf32>
    %21 = vector.broadcast %20 : vector<1x64xf32> to vector<16x64xf32>
    %22 = arith.mulf %17, %21 : vector<16x64xf32>
    %c0_9 = arith.constant 0 : index
    %c0_10 = arith.constant 0 : index
    %23 = vector.load %arg3[%c0_9, %c0_10] : memref<16x64xbf16, #tpu.memory_space<vmem>>, vector<16x64xbf16>
    %c0_11 = arith.constant 0 : index
    %c0_12 = arith.constant 0 : index
    %24 = vector.load %arg4[%c0_11, %c0_12] : memref<64x64xbf16, #tpu.memory_space<vmem>>, vector<64x64xbf16>
    %cst_13 = arith.constant dense<0.000000e+00> : vector<16x64xf32>
    %25 = tpu.matmul %23, %24, %cst_13 {dimension_numbers = #tpu.dot_dimension_numbers<[1], [0], [0], [1], [0, 0, 1, 1], [], []>} : vector<16x64xbf16>, vector<64x64xbf16>, vector<16x64xf32> -> vector<16x64xf32>
    %cst_14 = arith.constant dense<0.000000e+00> : vector<64xf32>
    %26 = vector.multi_reduction <add>, %25, %cst_14 [0] : vector<16x64xf32> to vector<64xf32>
    %27 = vector.shape_cast %26 : vector<64xf32> to vector<1x64xf32>
    %28 = arith.mulf %25, %25 : vector<16x64xf32>
    %cst_15 = arith.constant dense<0.000000e+00> : vector<64xf32>
    %29 = vector.multi_reduction <add>, %28, %cst_15 [0] : vector<16x64xf32> to vector<64xf32>
    %30 = vector.shape_cast %29 : vector<64xf32> to vector<1x64xf32>
    %cst_16 = arith.constant 6.250000e-02 : f32
    %31 = vector.broadcast %cst_16 : f32 to vector<1x64xf32>
    %32 = arith.mulf %27, %31 : vector<1x64xf32>
    %cst_17 = arith.constant 6.250000e-02 : f32
    %33 = vector.broadcast %cst_17 : f32 to vector<1x64xf32>
    %34 = arith.mulf %30, %33 : vector<1x64xf32>
    %35 = arith.mulf %32, %32 : vector<1x64xf32>
    %36 = arith.subf %34, %35 : vector<1x64xf32>
    %cst_18 = arith.constant 0.000000e+00 : f32
    %37 = vector.broadcast %cst_18 : f32 to vector<1x64xf32>
    %38 = arith.maximumf %36, %37 : vector<1x64xf32>
    %39 = vector.broadcast %32 : vector<1x64xf32> to vector<16x64xf32>
    %40 = arith.subf %25, %39 : vector<16x64xf32>
    %cst_19 = arith.constant 9.99999974E-6 : f32
    %41 = vector.broadcast %cst_19 : f32 to vector<1x64xf32>
    %42 = arith.addf %38, %41 : vector<1x64xf32>
    %43 = math.rsqrt %42 : vector<1x64xf32>
    %44 = vector.broadcast %43 : vector<1x64xf32> to vector<16x64xf32>
    %45 = arith.mulf %40, %44 : vector<16x64xf32>
    %46 = arith.addf %22, %45 : vector<16x64xf32>
    %cst_20 = arith.constant 0.000000e+00 : f32
    %47 = vector.broadcast %cst_20 : f32 to vector<16x64xf32>
    %48 = arith.maximumf %46, %47 : vector<16x64xf32>
    %49 = arith.truncf %48 : vector<16x64xf32> to vector<16x64xbf16>
    %c0_21 = arith.constant 0 : index
    %c0_22 = arith.constant 0 : index
    %50 = vector.load %arg5[%c0_21, %c0_22] : memref<16x64xbf16, #tpu.memory_space<vmem>>, vector<16x64xbf16>
    tpu.vector_store %arg5[%c0_21, %c0_22], %49 {strides = array<i32>} : memref<16x64xbf16, #tpu.memory_space<vmem>>, vector<16x64xbf16>,
    return
  }
  func.func @transform_0(%arg0: i32) -> (i32, i32) {
    %c0_i32 = arith.constant 0 : i32
    %c0_i32_0 = arith.constant 0 : i32
    %c0_i32_1 = arith.constant 0 : i32
    return %c0_i32, %c0_i32_0 : i32, i32
  }
  func.func @transform_1(%arg0: i32) -> (i32, i32) {
    %c0_i32 = arith.constant 0 : i32
    %c0_i32_0 = arith.constant 0 : i32
    %c0_i32_1 = arith.constant 0 : i32
    return %c0_i32, %c0_i32_0 : i32, i32
  }
  func.func @transform_2(%arg0: i32) -> (i32, i32) {
    %c0_i32 = arith.constant 0 : i32
    %c0_i32_0 = arith.constant 0 : i32
    %c0_i32_1 = arith.constant 0 : i32
    return %c0_i32, %c0_i32_0 : i32, i32
  }
  func.func @transform_3(%arg0: i32) -> (i32, i32) {
    %c0_i32 = arith.constant 0 : i32
    %c0_i32_0 = arith.constant 0 : i32
    %c0_i32_1 = arith.constant 0 : i32
    return %c0_i32, %c0_i32_0 : i32, i32
  }
  func.func @transform_4(%arg0: i32) -> (i32, i32) {
    %c0_i32 = arith.constant 0 : i32
    %c0_i32_0 = arith.constant 0 : i32
    %c0_i32_1 = arith.constant 0 : i32
    return %c0_i32, %c0_i32_0 : i32, i32
  }
}

module attributes {stable_mosaic.version = 11 : i64} {
  func.func @_tail_kernel(%arg0: i32, %arg1: memref<2x512xbf16, #tpu.memory_space<vmem>>, %arg2: memref<512x256xbf16, #tpu.memory_space<vmem>>, %arg3: memref<128x128xbf16, #tpu.memory_space<vmem>>, %arg4: memref<128x512xbf16, #tpu.memory_space<vmem>>, %arg5: memref<256x256xbf16, #tpu.memory_space<vmem>>, %arg6: memref<256x1024xbf16, #tpu.memory_space<vmem>>, %arg7: memref<512x512xbf16, #tpu.memory_space<vmem>>, %arg8: memref<512x512xbf16, #tpu.memory_space<vmem>>, %arg9: memref<512x10xbf16, #tpu.memory_space<vmem>>, %arg10: memref<1x10xf32, #tpu.memory_space<vmem>>, %arg11: memref<2x10xf32, #tpu.memory_space<vmem>>) attributes {dimension_semantics = [#tpu.dimension_semantics<arbitrary>], iteration_bounds = array<i64: 1>, scalar_prefetch = 0 : i64, scratch_operands = 0 : i64, tpu.core_type = #tpu.core_type<tc>, window_params = [{pipeline_mode = #tpu.pipeline_mode<synchronous>, transform_indices = @transform_0, window_bounds = array<i64: 2, 512>}, {pipeline_mode = #tpu.pipeline_mode<synchronous>, transform_indices = @transform_1, window_bounds = array<i64: 512, 256>}, {pipeline_mode = #tpu.pipeline_mode<synchronous>, transform_indices = @transform_2, window_bounds = array<i64: 128, 128>}, {pipeline_mode = #tpu.pipeline_mode<synchronous>, transform_indices = @transform_3, window_bounds = array<i64: 128, 512>}, {pipeline_mode = #tpu.pipeline_mode<synchronous>, transform_indices = @transform_4, window_bounds = array<i64: 256, 256>}, {pipeline_mode = #tpu.pipeline_mode<synchronous>, transform_indices = @transform_5, window_bounds = array<i64: 256, 1024>}, {pipeline_mode = #tpu.pipeline_mode<synchronous>, transform_indices = @transform_6, window_bounds = array<i64: 512, 512>}, {pipeline_mode = #tpu.pipeline_mode<synchronous>, transform_indices = @transform_7, window_bounds = array<i64: 512, 512>}, {pipeline_mode = #tpu.pipeline_mode<synchronous>, transform_indices = @transform_8, window_bounds = array<i64: 512, 10>}, {pipeline_mode = #tpu.pipeline_mode<synchronous>, transform_indices = @transform_9, window_bounds = array<i64: 1, 10>}, {pipeline_mode = #tpu.pipeline_mode<synchronous>, transform_indices = @transform_10, window_bounds = array<i64: 2, 10>}]} {
    %c0 = arith.constant 0 : index
    %c0_0 = arith.constant 0 : index
    %0 = vector.load %arg1[%c0, %c0_0] : memref<2x512xbf16, #tpu.memory_space<vmem>>, vector<2x512xbf16>
    %c0_1 = arith.constant 0 : index
    %c0_2 = arith.constant 0 : index
    %1 = vector.load %arg2[%c0_1, %c0_2] : memref<512x256xbf16, #tpu.memory_space<vmem>>, vector<512x256xbf16>
    %cst = arith.constant dense<0.000000e+00> : vector<2x256xf32>
    %2 = tpu.matmul %0, %1, %cst {dimension_numbers = #tpu.dot_dimension_numbers<[1], [0], [0], [1], [0, 0, 1, 1], [], []>} : vector<2x512xbf16>, vector<512x256xbf16>, vector<2x256xf32> -> vector<2x256xf32>
    %cst_3 = arith.constant dense<0.000000e+00> : vector<256xf32>
    %3 = vector.multi_reduction <add>, %2, %cst_3 [0] : vector<2x256xf32> to vector<256xf32>
    %4 = vector.shape_cast %3 : vector<256xf32> to vector<1x256xf32>
    %5 = arith.mulf %2, %2 : vector<2x256xf32>
    %cst_4 = arith.constant dense<0.000000e+00> : vector<256xf32>
    %6 = vector.multi_reduction <add>, %5, %cst_4 [0] : vector<2x256xf32> to vector<256xf32>
    %7 = vector.shape_cast %6 : vector<256xf32> to vector<1x256xf32>
    %cst_5 = arith.constant 5.000000e-01 : f32
    %8 = vector.broadcast %cst_5 : f32 to vector<1x256xf32>
    %9 = arith.mulf %4, %8 : vector<1x256xf32>
    %cst_6 = arith.constant 5.000000e-01 : f32
    %10 = vector.broadcast %cst_6 : f32 to vector<1x256xf32>
    %11 = arith.mulf %7, %10 : vector<1x256xf32>
    %12 = arith.mulf %9, %9 : vector<1x256xf32>
    %13 = arith.subf %11, %12 : vector<1x256xf32>
    %cst_7 = arith.constant 0.000000e+00 : f32
    %14 = vector.broadcast %cst_7 : f32 to vector<1x256xf32>
    %15 = arith.maximumf %13, %14 : vector<1x256xf32>
    %16 = vector.broadcast %9 : vector<1x256xf32> to vector<2x256xf32>
    %17 = arith.subf %2, %16 : vector<2x256xf32>
    %cst_8 = arith.constant 9.99999974E-6 : f32
    %18 = vector.broadcast %cst_8 : f32 to vector<1x256xf32>
    %19 = arith.addf %15, %18 : vector<1x256xf32>
    %20 = math.rsqrt %19 : vector<1x256xf32>
    %21 = vector.broadcast %20 : vector<1x256xf32> to vector<2x256xf32>
    %22 = arith.mulf %17, %21 : vector<2x256xf32>
    %23 = vector.extract_strided_slice %22 {offsets = [0, 0], sizes = [2, 128], strides = [1, 1]} : vector<2x256xf32> to vector<2x128xf32>
    %cst_9 = arith.constant 0.000000e+00 : f32
    %24 = vector.broadcast %cst_9 : f32 to vector<2x128xf32>
    %25 = arith.maximumf %23, %24 : vector<2x128xf32>
    %26 = arith.truncf %25 : vector<2x128xf32> to vector<2x128xbf16>
    %27 = vector.extract_strided_slice %22 {offsets = [0, 128], sizes = [2, 128], strides = [1, 1]} : vector<2x256xf32> to vector<2x128xf32>
    %c0_10 = arith.constant 0 : index
    %c0_11 = arith.constant 0 : index
    %28 = vector.load %arg3[%c0_10, %c0_11] : memref<128x128xbf16, #tpu.memory_space<vmem>>, vector<128x128xbf16>
    %cst_12 = arith.constant dense<0.000000e+00> : vector<2x128xf32>
    %29 = tpu.matmul %26, %28, %cst_12 {dimension_numbers = #tpu.dot_dimension_numbers<[1], [0], [0], [1], [0, 0, 1, 1], [], []>} : vector<2x128xbf16>, vector<128x128xbf16>, vector<2x128xf32> -> vector<2x128xf32>
    %cst_13 = arith.constant dense<0.000000e+00> : vector<128xf32>
    %30 = vector.multi_reduction <add>, %29, %cst_13 [0] : vector<2x128xf32> to vector<128xf32>
    %31 = vector.shape_cast %30 : vector<128xf32> to vector<1x128xf32>
    %32 = arith.mulf %29, %29 : vector<2x128xf32>
    %cst_14 = arith.constant dense<0.000000e+00> : vector<128xf32>
    %33 = vector.multi_reduction <add>, %32, %cst_14 [0] : vector<2x128xf32> to vector<128xf32>
    %34 = vector.shape_cast %33 : vector<128xf32> to vector<1x128xf32>
    %cst_15 = arith.constant 5.000000e-01 : f32
    %35 = vector.broadcast %cst_15 : f32 to vector<1x128xf32>
    %36 = arith.mulf %31, %35 : vector<1x128xf32>
    %cst_16 = arith.constant 5.000000e-01 : f32
    %37 = vector.broadcast %cst_16 : f32 to vector<1x128xf32>
    %38 = arith.mulf %34, %37 : vector<1x128xf32>
    %39 = arith.mulf %36, %36 : vector<1x128xf32>
    %40 = arith.subf %38, %39 : vector<1x128xf32>
    %cst_17 = arith.constant 0.000000e+00 : f32
    %41 = vector.broadcast %cst_17 : f32 to vector<1x128xf32>
    %42 = arith.maximumf %40, %41 : vector<1x128xf32>
    %43 = vector.broadcast %36 : vector<1x128xf32> to vector<2x128xf32>
    %44 = arith.subf %29, %43 : vector<2x128xf32>
    %cst_18 = arith.constant 9.99999974E-6 : f32
    %45 = vector.broadcast %cst_18 : f32 to vector<1x128xf32>
    %46 = arith.addf %42, %45 : vector<1x128xf32>
    %47 = math.rsqrt %46 : vector<1x128xf32>
    %48 = vector.broadcast %47 : vector<1x128xf32> to vector<2x128xf32>
    %49 = arith.mulf %44, %48 : vector<2x128xf32>
    %50 = arith.addf %49, %27 : vector<2x128xf32>
    %cst_19 = arith.constant 0.000000e+00 : f32
    %51 = vector.broadcast %cst_19 : f32 to vector<2x128xf32>
    %52 = arith.maximumf %50, %51 : vector<2x128xf32>
    %53 = arith.truncf %52 : vector<2x128xf32> to vector<2x128xbf16>
    %c0_20 = arith.constant 0 : index
    %c0_21 = arith.constant 0 : index
    %54 = vector.load %arg4[%c0_20, %c0_21] : memref<128x512xbf16, #tpu.memory_space<vmem>>, vector<128x512xbf16>
    %cst_22 = arith.constant dense<0.000000e+00> : vector<2x512xf32>
    %55 = tpu.matmul %53, %54, %cst_22 {dimension_numbers = #tpu.dot_dimension_numbers<[1], [0], [0], [1], [0, 0, 1, 1], [], []>} : vector<2x128xbf16>, vector<128x512xbf16>, vector<2x512xf32> -> vector<2x512xf32>
    %cst_23 = arith.constant dense<0.000000e+00> : vector<512xf32>
    %56 = vector.multi_reduction <add>, %55, %cst_23 [0] : vector<2x512xf32> to vector<512xf32>
    %57 = vector.shape_cast %56 : vector<512xf32> to vector<1x512xf32>
    %58 = arith.mulf %55, %55 : vector<2x512xf32>
    %cst_24 = arith.constant dense<0.000000e+00> : vector<512xf32>
    %59 = vector.multi_reduction <add>, %58, %cst_24 [0] : vector<2x512xf32> to vector<512xf32>
    %60 = vector.shape_cast %59 : vector<512xf32> to vector<1x512xf32>
    %cst_25 = arith.constant 5.000000e-01 : f32
    %61 = vector.broadcast %cst_25 : f32 to vector<1x512xf32>
    %62 = arith.mulf %57, %61 : vector<1x512xf32>
    %cst_26 = arith.constant 5.000000e-01 : f32
    %63 = vector.broadcast %cst_26 : f32 to vector<1x512xf32>
    %64 = arith.mulf %60, %63 : vector<1x512xf32>
    %65 = arith.mulf %62, %62 : vector<1x512xf32>
    %66 = arith.subf %64, %65 : vector<1x512xf32>
    %cst_27 = arith.constant 0.000000e+00 : f32
    %67 = vector.broadcast %cst_27 : f32 to vector<1x512xf32>
    %68 = arith.maximumf %66, %67 : vector<1x512xf32>
    %69 = vector.broadcast %62 : vector<1x512xf32> to vector<2x512xf32>
    %70 = arith.subf %55, %69 : vector<2x512xf32>
    %cst_28 = arith.constant 9.99999974E-6 : f32
    %71 = vector.broadcast %cst_28 : f32 to vector<1x512xf32>
    %72 = arith.addf %68, %71 : vector<1x512xf32>
    %73 = math.rsqrt %72 : vector<1x512xf32>
    %74 = vector.broadcast %73 : vector<1x512xf32> to vector<2x512xf32>
    %75 = arith.mulf %70, %74 : vector<2x512xf32>
    %76 = vector.extract_strided_slice %75 {offsets = [0, 0], sizes = [2, 256], strides = [1, 1]} : vector<2x512xf32> to vector<2x256xf32>
    %cst_29 = arith.constant 0.000000e+00 : f32
    %77 = vector.broadcast %cst_29 : f32 to vector<2x256xf32>
    %78 = arith.maximumf %76, %77 : vector<2x256xf32>
    %79 = arith.truncf %78 : vector<2x256xf32> to vector<2x256xbf16>
    %80 = vector.extract_strided_slice %75 {offsets = [0, 256], sizes = [2, 256], strides = [1, 1]} : vector<2x512xf32> to vector<2x256xf32>
    %c0_30 = arith.constant 0 : index
    %c0_31 = arith.constant 0 : index
    %81 = vector.load %arg5[%c0_30, %c0_31] : memref<256x256xbf16, #tpu.memory_space<vmem>>, vector<256x256xbf16>
    %cst_32 = arith.constant dense<0.000000e+00> : vector<2x256xf32>
    %82 = tpu.matmul %79, %81, %cst_32 {dimension_numbers = #tpu.dot_dimension_numbers<[1], [0], [0], [1], [0, 0, 1, 1], [], []>} : vector<2x256xbf16>, vector<256x256xbf16>, vector<2x256xf32> -> vector<2x256xf32>
    %cst_33 = arith.constant dense<0.000000e+00> : vector<256xf32>
    %83 = vector.multi_reduction <add>, %82, %cst_33 [0] : vector<2x256xf32> to vector<256xf32>
    %84 = vector.shape_cast %83 : vector<256xf32> to vector<1x256xf32>
    %85 = arith.mulf %82, %82 : vector<2x256xf32>
    %cst_34 = arith.constant dense<0.000000e+00> : vector<256xf32>
    %86 = vector.multi_reduction <add>, %85, %cst_34 [0] : vector<2x256xf32> to vector<256xf32>
    %87 = vector.shape_cast %86 : vector<256xf32> to vector<1x256xf32>
    %cst_35 = arith.constant 5.000000e-01 : f32
    %88 = vector.broadcast %cst_35 : f32 to vector<1x256xf32>
    %89 = arith.mulf %84, %88 : vector<1x256xf32>
    %cst_36 = arith.constant 5.000000e-01 : f32
    %90 = vector.broadcast %cst_36 : f32 to vector<1x256xf32>
    %91 = arith.mulf %87, %90 : vector<1x256xf32>
    %92 = arith.mulf %89, %89 : vector<1x256xf32>
    %93 = arith.subf %91, %92 : vector<1x256xf32>
    %cst_37 = arith.constant 0.000000e+00 : f32
    %94 = vector.broadcast %cst_37 : f32 to vector<1x256xf32>
    %95 = arith.maximumf %93, %94 : vector<1x256xf32>
    %96 = vector.broadcast %89 : vector<1x256xf32> to vector<2x256xf32>
    %97 = arith.subf %82, %96 : vector<2x256xf32>
    %cst_38 = arith.constant 9.99999974E-6 : f32
    %98 = vector.broadcast %cst_38 : f32 to vector<1x256xf32>
    %99 = arith.addf %95, %98 : vector<1x256xf32>
    %100 = math.rsqrt %99 : vector<1x256xf32>
    %101 = vector.broadcast %100 : vector<1x256xf32> to vector<2x256xf32>
    %102 = arith.mulf %97, %101 : vector<2x256xf32>
    %103 = arith.addf %102, %80 : vector<2x256xf32>
    %cst_39 = arith.constant 0.000000e+00 : f32
    %104 = vector.broadcast %cst_39 : f32 to vector<2x256xf32>
    %105 = arith.maximumf %103, %104 : vector<2x256xf32>
    %106 = arith.truncf %105 : vector<2x256xf32> to vector<2x256xbf16>
    %c0_40 = arith.constant 0 : index
    %c0_41 = arith.constant 0 : index
    %107 = vector.load %arg6[%c0_40, %c0_41] : memref<256x1024xbf16, #tpu.memory_space<vmem>>, vector<256x1024xbf16>
    %cst_42 = arith.constant dense<0.000000e+00> : vector<2x1024xf32>
    %108 = tpu.matmul %106, %107, %cst_42 {dimension_numbers = #tpu.dot_dimension_numbers<[1], [0], [0], [1], [0, 0, 1, 1], [], []>} : vector<2x256xbf16>, vector<256x1024xbf16>, vector<2x1024xf32> -> vector<2x1024xf32>
    %cst_43 = arith.constant dense<0.000000e+00> : vector<1024xf32>
    %109 = vector.multi_reduction <add>, %108, %cst_43 [0] : vector<2x1024xf32> to vector<1024xf32>
    %110 = vector.shape_cast %109 : vector<1024xf32> to vector<1x1024xf32>
    %111 = arith.mulf %108, %108 : vector<2x1024xf32>
    %cst_44 = arith.constant dense<0.000000e+00> : vector<1024xf32>
    %112 = vector.multi_reduction <add>, %111, %cst_44 [0] : vector<2x1024xf32> to vector<1024xf32>
    %113 = vector.shape_cast %112 : vector<1024xf32> to vector<1x1024xf32>
    %cst_45 = arith.constant 5.000000e-01 : f32
    %114 = vector.broadcast %cst_45 : f32 to vector<1x1024xf32>
    %115 = arith.mulf %110, %114 : vector<1x1024xf32>
    %cst_46 = arith.constant 5.000000e-01 : f32
    %116 = vector.broadcast %cst_46 : f32 to vector<1x1024xf32>
    %117 = arith.mulf %113, %116 : vector<1x1024xf32>
    %118 = arith.mulf %115, %115 : vector<1x1024xf32>
    %119 = arith.subf %117, %118 : vector<1x1024xf32>
    %cst_47 = arith.constant 0.000000e+00 : f32
    %120 = vector.broadcast %cst_47 : f32 to vector<1x1024xf32>
    %121 = arith.maximumf %119, %120 : vector<1x1024xf32>
    %122 = vector.broadcast %115 : vector<1x1024xf32> to vector<2x1024xf32>
    %123 = arith.subf %108, %122 : vector<2x1024xf32>
    %cst_48 = arith.constant 9.99999974E-6 : f32
    %124 = vector.broadcast %cst_48 : f32 to vector<1x1024xf32>
    %125 = arith.addf %121, %124 : vector<1x1024xf32>
    %126 = math.rsqrt %125 : vector<1x1024xf32>
    %127 = vector.broadcast %126 : vector<1x1024xf32> to vector<2x1024xf32>
    %128 = arith.mulf %123, %127 : vector<2x1024xf32>
    %129 = vector.extract_strided_slice %128 {offsets = [0, 0], sizes = [2, 512], strides = [1, 1]} : vector<2x1024xf32> to vector<2x512xf32>
    %cst_49 = arith.constant 0.000000e+00 : f32
    %130 = vector.broadcast %cst_49 : f32 to vector<2x512xf32>
    %131 = arith.maximumf %129, %130 : vector<2x512xf32>
    %132 = arith.truncf %131 : vector<2x512xf32> to vector<2x512xbf16>
    %133 = vector.extract_strided_slice %128 {offsets = [0, 512], sizes = [2, 512], strides = [1, 1]} : vector<2x1024xf32> to vector<2x512xf32>
    %c0_50 = arith.constant 0 : index
    %c0_51 = arith.constant 0 : index
    %134 = vector.load %arg7[%c0_50, %c0_51] : memref<512x512xbf16, #tpu.memory_space<vmem>>, vector<512x512xbf16>
    %cst_52 = arith.constant dense<0.000000e+00> : vector<2x512xf32>
    %135 = tpu.matmul %132, %134, %cst_52 {dimension_numbers = #tpu.dot_dimension_numbers<[1], [0], [0], [1], [0, 0, 1, 1], [], []>} : vector<2x512xbf16>, vector<512x512xbf16>, vector<2x512xf32> -> vector<2x512xf32>
    %cst_53 = arith.constant dense<0.000000e+00> : vector<512xf32>
    %136 = vector.multi_reduction <add>, %135, %cst_53 [0] : vector<2x512xf32> to vector<512xf32>
    %137 = vector.shape_cast %136 : vector<512xf32> to vector<1x512xf32>
    %138 = arith.mulf %135, %135 : vector<2x512xf32>
    %cst_54 = arith.constant dense<0.000000e+00> : vector<512xf32>
    %139 = vector.multi_reduction <add>, %138, %cst_54 [0] : vector<2x512xf32> to vector<512xf32>
    %140 = vector.shape_cast %139 : vector<512xf32> to vector<1x512xf32>
    %cst_55 = arith.constant 5.000000e-01 : f32
    %141 = vector.broadcast %cst_55 : f32 to vector<1x512xf32>
    %142 = arith.mulf %137, %141 : vector<1x512xf32>
    %cst_56 = arith.constant 5.000000e-01 : f32
    %143 = vector.broadcast %cst_56 : f32 to vector<1x512xf32>
    %144 = arith.mulf %140, %143 : vector<1x512xf32>
    %145 = arith.mulf %142, %142 : vector<1x512xf32>
    %146 = arith.subf %144, %145 : vector<1x512xf32>
    %cst_57 = arith.constant 0.000000e+00 : f32
    %147 = vector.broadcast %cst_57 : f32 to vector<1x512xf32>
    %148 = arith.maximumf %146, %147 : vector<1x512xf32>
    %149 = vector.broadcast %142 : vector<1x512xf32> to vector<2x512xf32>
    %150 = arith.subf %135, %149 : vector<2x512xf32>
    %cst_58 = arith.constant 9.99999974E-6 : f32
    %151 = vector.broadcast %cst_58 : f32 to vector<1x512xf32>
    %152 = arith.addf %148, %151 : vector<1x512xf32>
    %153 = math.rsqrt %152 : vector<1x512xf32>
    %154 = vector.broadcast %153 : vector<1x512xf32> to vector<2x512xf32>
    %155 = arith.mulf %150, %154 : vector<2x512xf32>
    %156 = arith.addf %155, %133 : vector<2x512xf32>
    %cst_59 = arith.constant 0.000000e+00 : f32
    %157 = vector.broadcast %cst_59 : f32 to vector<2x512xf32>
    %158 = arith.maximumf %156, %157 : vector<2x512xf32>
    %159 = arith.truncf %158 : vector<2x512xf32> to vector<2x512xbf16>
    %c0_60 = arith.constant 0 : index
    %c0_61 = arith.constant 0 : index
    %160 = vector.load %arg8[%c0_60, %c0_61] : memref<512x512xbf16, #tpu.memory_space<vmem>>, vector<512x512xbf16>
    %cst_62 = arith.constant dense<0.000000e+00> : vector<2x512xf32>
    %161 = tpu.matmul %159, %160, %cst_62 {dimension_numbers = #tpu.dot_dimension_numbers<[1], [0], [0], [1], [0, 0, 1, 1], [], []>} : vector<2x512xbf16>, vector<512x512xbf16>, vector<2x512xf32> -> vector<2x512xf32>
    %cst_63 = arith.constant dense<0.000000e+00> : vector<512xf32>
    %162 = vector.multi_reduction <add>, %161, %cst_63 [0] : vector<2x512xf32> to vector<512xf32>
    %163 = vector.shape_cast %162 : vector<512xf32> to vector<1x512xf32>
    %164 = arith.mulf %161, %161 : vector<2x512xf32>
    %cst_64 = arith.constant dense<0.000000e+00> : vector<512xf32>
    %165 = vector.multi_reduction <add>, %164, %cst_64 [0] : vector<2x512xf32> to vector<512xf32>
    %166 = vector.shape_cast %165 : vector<512xf32> to vector<1x512xf32>
    %cst_65 = arith.constant 5.000000e-01 : f32
    %167 = vector.broadcast %cst_65 : f32 to vector<1x512xf32>
    %168 = arith.mulf %163, %167 : vector<1x512xf32>
    %cst_66 = arith.constant 5.000000e-01 : f32
    %169 = vector.broadcast %cst_66 : f32 to vector<1x512xf32>
    %170 = arith.mulf %166, %169 : vector<1x512xf32>
    %171 = arith.mulf %168, %168 : vector<1x512xf32>
    %172 = arith.subf %170, %171 : vector<1x512xf32>
    %cst_67 = arith.constant 0.000000e+00 : f32
    %173 = vector.broadcast %cst_67 : f32 to vector<1x512xf32>
    %174 = arith.maximumf %172, %173 : vector<1x512xf32>
    %175 = vector.broadcast %168 : vector<1x512xf32> to vector<2x512xf32>
    %176 = arith.subf %161, %175 : vector<2x512xf32>
    %cst_68 = arith.constant 9.99999974E-6 : f32
    %177 = vector.broadcast %cst_68 : f32 to vector<1x512xf32>
    %178 = arith.addf %174, %177 : vector<1x512xf32>
    %179 = math.rsqrt %178 : vector<1x512xf32>
    %180 = vector.broadcast %179 : vector<1x512xf32> to vector<2x512xf32>
    %181 = arith.mulf %176, %180 : vector<2x512xf32>
    %cst_69 = arith.constant 0.000000e+00 : f32
    %182 = vector.broadcast %cst_69 : f32 to vector<2x512xf32>
    %183 = arith.maximumf %181, %182 : vector<2x512xf32>
    %184 = arith.truncf %183 : vector<2x512xf32> to vector<2x512xbf16>
    %c0_70 = arith.constant 0 : index
    %c0_71 = arith.constant 0 : index
    %185 = vector.load %arg9[%c0_70, %c0_71] : memref<512x10xbf16, #tpu.memory_space<vmem>>, vector<512x10xbf16>
    %cst_72 = arith.constant dense<0.000000e+00> : vector<2x10xf32>
    %186 = tpu.matmul %184, %185, %cst_72 {dimension_numbers = #tpu.dot_dimension_numbers<[1], [0], [0], [1], [0, 0, 1, 1], [], []>} : vector<2x512xbf16>, vector<512x10xbf16>, vector<2x10xf32> -> vector<2x10xf32>
    %c0_73 = arith.constant 0 : index
    %c0_74 = arith.constant 0 : index
    %187 = vector.load %arg10[%c0_73, %c0_74] : memref<1x10xf32, #tpu.memory_space<vmem>>, vector<1x10xf32>
    %188 = vector.broadcast %187 : vector<1x10xf32> to vector<2x10xf32>
    %189 = arith.addf %186, %188 : vector<2x10xf32>
    %c0_75 = arith.constant 0 : index
    %c0_76 = arith.constant 0 : index
    %190 = vector.load %arg11[%c0_75, %c0_76] : memref<2x10xf32, #tpu.memory_space<vmem>>, vector<2x10xf32>
    tpu.vector_store %arg11[%c0_75, %c0_76], %189 {strides = array<i32>} : memref<2x10xf32, #tpu.memory_space<vmem>>, vector<2x10xf32>,
    return
  }
  func.func @transform_0(%arg0: i32) -> (i32, i32) {
    %c0_i32 = arith.constant 0 : i32
    %c0_i32_0 = arith.constant 0 : i32
    %c0_i32_1 = arith.constant 0 : i32
    return %c0_i32, %c0_i32_0 : i32, i32
  }
  func.func @transform_1(%arg0: i32) -> (i32, i32) {
    %c0_i32 = arith.constant 0 : i32
    %c0_i32_0 = arith.constant 0 : i32
    %c0_i32_1 = arith.constant 0 : i32
    return %c0_i32, %c0_i32_0 : i32, i32
  }
  func.func @transform_2(%arg0: i32) -> (i32, i32) {
    %c0_i32 = arith.constant 0 : i32
    %c0_i32_0 = arith.constant 0 : i32
    %c0_i32_1 = arith.constant 0 : i32
    return %c0_i32, %c0_i32_0 : i32, i32
  }
  func.func @transform_3(%arg0: i32) -> (i32, i32) {
    %c0_i32 = arith.constant 0 : i32
    %c0_i32_0 = arith.constant 0 : i32
    %c0_i32_1 = arith.constant 0 : i32
    return %c0_i32, %c0_i32_0 : i32, i32
  }
  func.func @transform_4(%arg0: i32) -> (i32, i32) {
    %c0_i32 = arith.constant 0 : i32
    %c0_i32_0 = arith.constant 0 : i32
    %c0_i32_1 = arith.constant 0 : i32
    return %c0_i32, %c0_i32_0 : i32, i32
  }
  func.func @transform_5(%arg0: i32) -> (i32, i32) {
    %c0_i32 = arith.constant 0 : i32
    %c0_i32_0 = arith.constant 0 : i32
    %c0_i32_1 = arith.constant 0 : i32
    return %c0_i32, %c0_i32_0 : i32, i32
  }
  func.func @transform_6(%arg0: i32) -> (i32, i32) {
    %c0_i32 = arith.constant 0 : i32
    %c0_i32_0 = arith.constant 0 : i32
    %c0_i32_1 = arith.constant 0 : i32
    return %c0_i32, %c0_i32_0 : i32, i32
  }
  func.func @transform_7(%arg0: i32) -> (i32, i32) {
    %c0_i32 = arith.constant 0 : i32
    %c0_i32_0 = arith.constant 0 : i32
    %c0_i32_1 = arith.constant 0 : i32
    return %c0_i32, %c0_i32_0 : i32, i32
  }
  func.func @transform_8(%arg0: i32) -> (i32, i32) {
    %c0_i32 = arith.constant 0 : i32
    %c0_i32_0 = arith.constant 0 : i32
    %c0_i32_1 = arith.constant 0 : i32
    return %c0_i32, %c0_i32_0 : i32, i32
  }
  func.func @transform_9(%arg0: i32) -> (i32, i32) {
    %c0_i32 = arith.constant 0 : i32
    %c0_i32_0 = arith.constant 0 : i32
    %c0_i32_1 = arith.constant 0 : i32
    return %c0_i32, %c0_i32_0 : i32, i32
  }
  func.func @transform_10(%arg0: i32) -> (i32, i32) {
    %c0_i32 = arith.constant 0 : i32
    %c0_i32_0 = arith.constant 0 : i32
    %c0_i32_1 = arith.constant 0 : i32
    return %c0_i32, %c0_i32_0 : i32, i32
  }
}

</mosaic_0001>

<llo_original>
// kernel: forward.4
$region0: #{forward.4}
  #allocation0 [shape = 'u32[]', space=smem, size = 0x4, offset = 0x4, fixed_abs, tag = 'smem constant byte address 0x4 - core index']
  #allocation1 [shape = 'u32[144,128]{1,0:T(1,128)}', space=vmem, size = 0x12000, scoped, tag = 'internal scratch']
  %s0 = inlined_call_operand.vmem [shape: bf16[1024,500], index: 0, kind: input, shape index: {}]
  %s1 = inlined_call_operand.vmem [shape: bf16[500,64], index: 1, kind: input, shape index: {}]
  %s2 = inlined_call_operand.vmem [shape: bf16[128,64], index: 2, kind: output, shape index: {}]
  %s3 = sld [smem:[#allocation0]]
  $region18: #{forward.4} parent=0
    _
  %s5 = ssub.s32 1, %s3
  %s6 = scalar_select 0, %s5, %s3
  // Predicated region
  $region2: #{forward.4} parent=0 // pred_check
    _
  $region3: #{forward.4} parent=0 // pred_check_branch
    %8 = sbr.rel (0) target = $region5
  $region4: #{forward.4} parent=0 // pred_region
    _
  $region5: #{forward.4} parent=0 // pred_fallthru
    _
  // Predicated region
  $region6: #{forward.4} parent=0 // pred_check
    _
  $region7: #{forward.4} parent=0 // pred_check_branch
    %10 = sbr.rel (0) target = $region9
  $region8: #{forward.4} parent=0 // pred_region
    _
  $region9: #{forward.4} parent=0 // pred_fallthru
    _
  %v12 = vld [vmem:[%s0] sm:$0xff]
  %v13 = vld [vmem:[%s0 + $0x8] sm:$0xff]
  %v14 = vld [vmem:[%s0 + $0x10] sm:$0xff]
  %v15 = vld [vmem:[%s0 + $0x18] sm:$0xff]
  %v16 = vld [vmem:[%s0 + $0x20] sm:$0xff]
  %v17 = vld [vmem:[%s0 + $0x28] sm:$0xff]
  %v18 = vld [vmem:[%s0 + $0x30] sm:$0xff]
  %v19 = vld [vmem:[%s0 + $0x38] sm:$0xff]
  %v20 = vld [vmem:[%s0 + $0x40] sm:$0xff]
  %v21 = vld [vmem:[%s0 + $0x48] sm:$0xff]
  %v22 = vld [vmem:[%s0 + $0x50] sm:$0xff]
  %v23 = vld [vmem:[%s0 + $0x58] sm:$0xff]
  %v24 = vld [vmem:[%s0 + $0x60] sm:$0xff]
  %v25 = vld [vmem:[%s0 + $0x68] sm:$0xff]
  %v26 = vld [vmem:[%s0 + $0x70] sm:$0xff]
  %v27 = vld [vmem:[%s0 + $0x78] sm:$0xff]
  %v28 = vld [vmem:[%s0 + $0x80] sm:$0xff]
  %v29 = vld [vmem:[%s0 + $0x88] sm:$0xff]
  %v30 = vld [vmem:[%s0 + $0x90] sm:$0xff]
  %v31 = vld [vmem:[%s0 + $0x98] sm:$0xff]
  %v32 = vld [vmem:[%s0 + $0xa0] sm:$0xff]
  %v33 = vld [vmem:[%s0 + $0xa8] sm:$0xff]
  %v34 = vld [vmem:[%s0 + $0xb0] sm:$0xff]
  %v35 = vld [vmem:[%s0 + $0xb8] sm:$0xff]
  %v36 = vld [vmem:[%s0 + $0xc0] sm:$0xff]
  %v37 = vld [vmem:[%s0 + $0xc8] sm:$0xff]
  %v38 = vld [vmem:[%s0 + $0xd0] sm:$0xff]
  %v39 = vld [vmem:[%s0 + $0xd8] sm:$0xff]
  %v40 = vld [vmem:[%s0 + $0xe0] sm:$0xff]
  %v41 = vld [vmem:[%s0 + $0xe8] sm:$0xff]
  %v42 = vld [vmem:[%s0 + $0xf0] sm:$0xff]
  %v43 = vld [vmem:[%s0 + $0xf8] sm:$0xff]
  %v44 = vld [vmem:[%s0 + $0x100] sm:$0xff]
  %v45 = vld [vmem:[%s0 + $0x108] sm:$0xff]
  %v46 = vld [vmem:[%s0 + $0x110] sm:$0xff]
  %v47 = vld [vmem:[%s0 + $0x118] sm:$0xff]
  %v48 = vld [vmem:[%s0 + $0x120] sm:$0xff]
  %v49 = vld [vmem:[%s0 + $0x128] sm:$0xff]
  %v50 = vld [vmem:[%s0 + $0x130] sm:$0xff]
  %v51 = vld [vmem:[%s0 + $0x138] sm:$0xff]
  %v52 = vld [vmem:[%s0 + $0x140] sm:$0xff]
  %v53 = vld [vmem:[%s0 + $0x148] sm:$0xff]
  %v54 = vld [vmem:[%s0 + $0x150] sm:$0xff]
  %v55 = vld [vmem:[%s0 + $0x158] sm:$0xff]
  %v56 = vld [vmem:[%s0 + $0x160] sm:$0xff]
  %v57 = vld [vmem:[%s0 + $0x168] sm:$0xff]
  %v58 = vld [vmem:[%s0 + $0x170] sm:$0xff]
  %v59 = vld [vmem:[%s0 + $0x178] sm:$0xff]
  %v60 = vld [vmem:[%s0 + $0x180] sm:$0xff]
  %v61 = vld [vmem:[%s0 + $0x188] sm:$0xff]
  %v62 = vld [vmem:[%s0 + $0x190] sm:$0xff]
  %v63 = vld [vmem:[%s0 + $0x198] sm:$0xff]
  %v64 = vld [vmem:[%s0 + $0x1a0] sm:$0xff]
  %v65 = vld [vmem:[%s0 + $0x1a8] sm:$0xff]
  %v66 = vld [vmem:[%s0 + $0x1b0] sm:$0xff]
  %v67 = vld [vmem:[%s0 + $0x1b8] sm:$0xff]
  %v68 = vld [vmem:[%s0 + $0x1c0] sm:$0xff]
  %v69 = vld [vmem:[%s0 + $0x1c8] sm:$0xff]
  %v70 = vld [vmem:[%s0 + $0x1d0] sm:$0xff]
  %v71 = vld [vmem:[%s0 + $0x1d8] sm:$0xff]
  %v72 = vld [vmem:[%s0 + $0x1e0] sm:$0xff]
  %v73 = vld [vmem:[%s0 + $0x1e8] sm:$0xff]
  %v74 = vld [vmem:[%s0 + $0x1f0] sm:$0xff]
  %v75 = vld [vmem:[%s0 + $0x1f8] sm:$0xff]
  %v76 = vld [vmem:[%s0 + $0x200] sm:$0xff]
  %v77 = vld [vmem:[%s0 + $0x208] sm:$0xff]
  %v78 = vld [vmem:[%s0 + $0x210] sm:$0xff]
  %v79 = vld [vmem:[%s0 + $0x218] sm:$0xff]
  %v80 = vld [vmem:[%s0 + $0x220] sm:$0xff]
  %v81 = vld [vmem:[%s0 + $0x228] sm:$0xff]
  %v82 = vld [vmem:[%s0 + $0x230] sm:$0xff]
  %v83 = vld [vmem:[%s0 + $0x238] sm:$0xff]
  %v84 = vld [vmem:[%s0 + $0x240] sm:$0xff]
  %v85 = vld [vmem:[%s0 + $0x248] sm:$0xff]
  %v86 = vld [vmem:[%s0 + $0x250] sm:$0xff]
  %v87 = vld [vmem:[%s0 + $0x258] sm:$0xff]
  %v88 = vld [vmem:[%s0 + $0x260] sm:$0xff]
  %v89 = vld [vmem:[%s0 + $0x268] sm:$0xff]
  %v90 = vld [vmem:[%s0 + $0x270] sm:$0xff]
  %v91 = vld [vmem:[%s0 + $0x278] sm:$0xff]
  %v92 = vld [vmem:[%s0 + $0x280] sm:$0xff]
  %v93 = vld [vmem:[%s0 + $0x288] sm:$0xff]
  %v94 = vld [vmem:[%s0 + $0x290] sm:$0xff]
  %v95 = vld [vmem:[%s0 + $0x298] sm:$0xff]
  %v96 = vld [vmem:[%s0 + $0x2a0] sm:$0xff]
  %v97 = vld [vmem:[%s0 + $0x2a8] sm:$0xff]
  %v98 = vld [vmem:[%s0 + $0x2b0] sm:$0xff]
  %v99 = vld [vmem:[%s0 + $0x2b8] sm:$0xff]
  %v100 = vld [vmem:[%s0 + $0x2c0] sm:$0xff]
  %v101 = vld [vmem:[%s0 + $0x2c8] sm:$0xff]
  %v102 = vld [vmem:[%s0 + $0x2d0] sm:$0xff]
  %v103 = vld [vmem:[%s0 + $0x2d8] sm:$0xff]
  %v104 = vld [vmem:[%s0 + $0x2e0] sm:$0xff]
  %v105 = vld [vmem:[%s0 + $0x2e8] sm:$0xff]
  %v106 = vld [vmem:[%s0 + $0x2f0] sm:$0xff]
  %v107 = vld [vmem:[%s0 + $0x2f8] sm:$0xff]
  %v108 = vld [vmem:[%s0 + $0x300] sm:$0xff]
  %v109 = vld [vmem:[%s0 + $0x308] sm:$0xff]
  %v110 = vld [vmem:[%s0 + $0x310] sm:$0xff]
  %v111 = vld [vmem:[%s0 + $0x318] sm:$0xff]
  %v112 = vld [vmem:[%s0 + $0x320] sm:$0xff]
  %v113 = vld [vmem:[%s0 + $0x328] sm:$0xff]
  %v114 = vld [vmem:[%s0 + $0x330] sm:$0xff]
  %v115 = vld [vmem:[%s0 + $0x338] sm:$0xff]
  %v116 = vld [vmem:[%s0 + $0x340] sm:$0xff]
  %v117 = vld [vmem:[%s0 + $0x348] sm:$0xff]
  %v118 = vld [vmem:[%s0 + $0x350] sm:$0xff]
  %v119 = vld [vmem:[%s0 + $0x358] sm:$0xff]
  %v120 = vld [vmem:[%s0 + $0x360] sm:$0xff]
  %v121 = vld [vmem:[%s0 + $0x368] sm:$0xff]
  %v122 = vld [vmem:[%s0 + $0x370] sm:$0xff]
  %v123 = vld [vmem:[%s0 + $0x378] sm:$0xff]
  %v124 = vld [vmem:[%s0 + $0x380] sm:$0xff]
  %v125 = vld [vmem:[%s0 + $0x388] sm:$0xff]
  %v126 = vld [vmem:[%s0 + $0x390] sm:$0xff]
  %v127 = vld [vmem:[%s0 + $0x398] sm:$0xff]
  %v128 = vld [vmem:[%s0 + $0x3a0] sm:$0xff]
  %v129 = vld [vmem:[%s0 + $0x3a8] sm:$0xff]
  %v130 = vld [vmem:[%s0 + $0x3b0] sm:$0xff]
  %v131 = vld [vmem:[%s0 + $0x3b8] sm:$0xff]
  %v132 = vld [vmem:[%s0 + $0x3c0] sm:$0xff]
  %v133 = vld [vmem:[%s0 + $0x3c8] sm:$0xff]
  %v134 = vld [vmem:[%s0 + $0x3d0] sm:$0xff]
  %v135 = vld [vmem:[%s0 + $0x3d8] sm:$0xff]
  %v136 = vld [vmem:[%s0 + $0x3e0] sm:$0xff]
  %v137 = vld [vmem:[%s0 + $0x3e8] sm:$0xff]
  %v138 = vld [vmem:[%s0 + $0x3f0] sm:$0xff]
  %v139 = vld [vmem:[%s0 + $0x3f8] sm:$0xff]
  %v140 = vld [vmem:[%s0 + $0x400] sm:$0xff]
  %v141 = vld [vmem:[%s0 + $0x408] sm:$0xff]
  %v142 = vld [vmem:[%s0 + $0x410] sm:$0xff]
  %v143 = vld [vmem:[%s0 + $0x418] sm:$0xff]
  %v144 = vld [vmem:[%s0 + $0x420] sm:$0xff]
  %v145 = vld [vmem:[%s0 + $0x428] sm:$0xff]
  %v146 = vld [vmem:[%s0 + $0x430] sm:$0xff]
  %v147 = vld [vmem:[%s0 + $0x438] sm:$0xff]
  %v148 = vld [vmem:[%s0 + $0x440] sm:$0xff]
  %v149 = vld [vmem:[%s0 + $0x448] sm:$0xff]
  %v150 = vld [vmem:[%s0 + $0x450] sm:$0xff]
  %v151 = vld [vmem:[%s0 + $0x458] sm:$0xff]
  %v152 = vld [vmem:[%s0 + $0x460] sm:$0xff]
  %v153 = vld [vmem:[%s0 + $0x468] sm:$0xff]
  %v154 = vld [vmem:[%s0 + $0x470] sm:$0xff]
  %v155 = vld [vmem:[%s0 + $0x478] sm:$0xff]
  %v156 = vld [vmem:[%s0 + $0x480] sm:$0xff]
  %v157 = vld [vmem:[%s0 + $0x488] sm:$0xff]
  %v158 = vld [vmem:[%s0 + $0x490] sm:$0xff]
  %v159 = vld [vmem:[%s0 + $0x498] sm:$0xff]
  %v160 = vld [vmem:[%s0 + $0x4a0] sm:$0xff]
  %v161 = vld [vmem:[%s0 + $0x4a8] sm:$0xff]
  %v162 = vld [vmem:[%s0 + $0x4b0] sm:$0xff]
  %v163 = vld [vmem:[%s0 + $0x4b8] sm:$0xff]
  %v164 = vld [vmem:[%s0 + $0x4c0] sm:$0xff]
  %v165 = vld [vmem:[%s0 + $0x4c8] sm:$0xff]
  %v166 = vld [vmem:[%s0 + $0x4d0] sm:$0xff]
  %v167 = vld [vmem:[%s0 + $0x4d8] sm:$0xff]
  %v168 = vld [vmem:[%s0 + $0x4e0] sm:$0xff]
  %v169 = vld [vmem:[%s0 + $0x4e8] sm:$0xff]
  %v170 = vld [vmem:[%s0 + $0x4f0] sm:$0xff]
  %v171 = vld [vmem:[%s0 + $0x4f8] sm:$0xff]
  %v172 = vld [vmem:[%s0 + $0x500] sm:$0xff]
  %v173 = vld [vmem:[%s0 + $0x508] sm:$0xff]
  %v174 = vld [vmem:[%s0 + $0x510] sm:$0xff]
  %v175 = vld [vmem:[%s0 + $0x518] sm:$0xff]
  %v176 = vld [vmem:[%s0 + $0x520] sm:$0xff]
  %v177 = vld [vmem:[%s0 + $0x528] sm:$0xff]
  %v178 = vld [vmem:[%s0 + $0x530] sm:$0xff]
  %v179 = vld [vmem:[%s0 + $0x538] sm:$0xff]
  %v180 = vld [vmem:[%s0 + $0x540] sm:$0xff]
  %v181 = vld [vmem:[%s0 + $0x548] sm:$0xff]
  %v182 = vld [vmem:[%s0 + $0x550] sm:$0xff]
  %v183 = vld [vmem:[%s0 + $0x558] sm:$0xff]
  %v184 = vld [vmem:[%s0 + $0x560] sm:$0xff]
  %v185 = vld [vmem:[%s0 + $0x568] sm:$0xff]
  %v186 = vld [vmem:[%s0 + $0x570] sm:$0xff]
  %v187 = vld [vmem:[%s0 + $0x578] sm:$0xff]
  %v188 = vld [vmem:[%s0 + $0x580] sm:$0xff]
  %v189 = vld [vmem:[%s0 + $0x588] sm:$0xff]
  %v190 = vld [vmem:[%s0 + $0x590] sm:$0xff]
  %v191 = vld [vmem:[%s0 + $0x598] sm:$0xff]
  %v192 = vld [vmem:[%s0 + $0x5a0] sm:$0xff]
  %v193 = vld [vmem:[%s0 + $0x5a8] sm:$0xff]
  %v194 = vld [vmem:[%s0 + $0x5b0] sm:$0xff]
  %v195 = vld [vmem:[%s0 + $0x5b8] sm:$0xff]
  %v196 = vld [vmem:[%s0 + $0x5c0] sm:$0xff]
  %v197 = vld [vmem:[%s0 + $0x5c8] sm:$0xff]
  %v198 = vld [vmem:[%s0 + $0x5d0] sm:$0xff]
  %v199 = vld [vmem:[%s0 + $0x5d8] sm:$0xff]
  %v200 = vld [vmem:[%s0 + $0x5e0] sm:$0xff]
  %v201 = vld [vmem:[%s0 + $0x5e8] sm:$0xff]
  %v202 = vld [vmem:[%s0 + $0x5f0] sm:$0xff]
  %v203 = vld [vmem:[%s0 + $0x5f8] sm:$0xff]
  %v204 = vld [vmem:[%s0 + $0x600] sm:$0xff]
  %v205 = vld [vmem:[%s0 + $0x608] sm:$0xff]
  %v206 = vld [vmem:[%s0 + $0x610] sm:$0xff]
  %v207 = vld [vmem:[%s0 + $0x618] sm:$0xff]
  %v208 = vld [vmem:[%s0 + $0x620] sm:$0xff]
  %v209 = vld [vmem:[%s0 + $0x628] sm:$0xff]
  %v210 = vld [vmem:[%s0 + $0x630] sm:$0xff]
  %v211 = vld [vmem:[%s0 + $0x638] sm:$0xff]
  %v212 = vld [vmem:[%s0 + $0x640] sm:$0xff]
  %v213 = vld [vmem:[%s0 + $0x648] sm:$0xff]
  %v214 = vld [vmem:[%s0 + $0x650] sm:$0xff]
  %v215 = vld [vmem:[%s0 + $0x658] sm:$0xff]
  %v216 = vld [vmem:[%s0 + $0x660] sm:$0xff]
  %v217 = vld [vmem:[%s0 + $0x668] sm:$0xff]
  %v218 = vld [vmem:[%s0 + $0x670] sm:$0xff]
  %v219 = vld [vmem:[%s0 + $0x678] sm:$0xff]
  %v220 = vld [vmem:[%s0 + $0x680] sm:$0xff]
  %v221 = vld [vmem:[%s0 + $0x688] sm:$0xff]
  %v222 = vld [vmem:[%s0 + $0x690] sm:$0xff]
  %v223 = vld [vmem:[%s0 + $0x698] sm:$0xff]
  %v224 = vld [vmem:[%s0 + $0x6a0] sm:$0xff]
  %v225 = vld [vmem:[%s0 + $0x6a8] sm:$0xff]
  %v226 = vld [vmem:[%s0 + $0x6b0] sm:$0xff]
  %v227 = vld [vmem:[%s0 + $0x6b8] sm:$0xff]
  %v228 = vld [vmem:[%s0 + $0x6c0] sm:$0xff]
  %v229 = vld [vmem:[%s0 + $0x6c8] sm:$0xff]
  %v230 = vld [vmem:[%s0 + $0x6d0] sm:$0xff]
  %v231 = vld [vmem:[%s0 + $0x6d8] sm:$0xff]
  %v232 = vld [vmem:[%s0 + $0x6e0] sm:$0xff]
  %v233 = vld [vmem:[%s0 + $0x6e8] sm:$0xff]
  %v234 = vld [vmem:[%s0 + $0x6f0] sm:$0xff]
  %v235 = vld [vmem:[%s0 + $0x6f8] sm:$0xff]
  %v236 = vld [vmem:[%s0 + $0x700] sm:$0xff]
  %v237 = vld [vmem:[%s0 + $0x708] sm:$0xff]
  %v238 = vld [vmem:[%s0 + $0x710] sm:$0xff]
  %v239 = vld [vmem:[%s0 + $0x718] sm:$0xff]
  %v240 = vld [vmem:[%s0 + $0x720] sm:$0xff]
  %v241 = vld [vmem:[%s0 + $0x728] sm:$0xff]
  %v242 = vld [vmem:[%s0 + $0x730] sm:$0xff]
  %v243 = vld [vmem:[%s0 + $0x738] sm:$0xff]
  %v244 = vld [vmem:[%s0 + $0x740] sm:$0xff]
  %v245 = vld [vmem:[%s0 + $0x748] sm:$0xff]
  %v246 = vld [vmem:[%s0 + $0x750] sm:$0xff]
  %v247 = vld [vmem:[%s0 + $0x758] sm:$0xff]
  %v248 = vld [vmem:[%s0 + $0x760] sm:$0xff]
  %v249 = vld [vmem:[%s0 + $0x768] sm:$0xff]
  %v250 = vld [vmem:[%s0 + $0x770] sm:$0xff]
  %v251 = vld [vmem:[%s0 + $0x778] sm:$0xff]
  %v252 = vld [vmem:[%s0 + $0x780] sm:$0xff]
  %v253 = vld [vmem:[%s0 + $0x788] sm:$0xff]
  %v254 = vld [vmem:[%s0 + $0x790] sm:$0xff]
  %v255 = vld [vmem:[%s0 + $0x798] sm:$0xff]
  %v256 = vld [vmem:[%s0 + $0x7a0] sm:$0xff]
  %v257 = vld [vmem:[%s0 + $0x7a8] sm:$0xff]
  %v258 = vld [vmem:[%s0 + $0x7b0] sm:$0xff]
  %v259 = vld [vmem:[%s0 + $0x7b8] sm:$0xff]
  %v260 = vld [vmem:[%s0 + $0x7c0] sm:$0xff]
  %v261 = vld [vmem:[%s0 + $0x7c8] sm:$0xff]
  %v262 = vld [vmem:[%s0 + $0x7d0] sm:$0xff]
  %v263 = vld [vmem:[%s0 + $0x7d8] sm:$0xff]
  %v264 = vld [vmem:[%s0 + $0x7e0] sm:$0xff]
  %v265 = vld [vmem:[%s0 + $0x7e8] sm:$0xff]
  %v266 = vld [vmem:[%s0 + $0x7f0] sm:$0xff]
  %v267 = vld [vmem:[%s0 + $0x7f8] sm:$0xff]
  %v268 = vld [vmem:[%s1] sm:$0xf]
  %v269 = vld [vmem:[%s1 + $0x4] sm:$0xf]
  %v270 = vld [vmem:[%s1 + $0x8] sm:$0xf]
  %v271 = vld [vmem:[%s1 + $0xc] sm:$0xf]
  %v272 = vld [vmem:[%s1 + $0x10] sm:$0xf]
  %v273 = vld [vmem:[%s1 + $0x14] sm:$0xf]
  %v274 = vld [vmem:[%s1 + $0x18] sm:$0xf]
  %v275 = vld [vmem:[%s1 + $0x1c] sm:$0xf]
  %v276 = vld [vmem:[%s1 + $0x20] sm:$0xf]
  %v277 = vld [vmem:[%s1 + $0x24] sm:$0xf]
  %v278 = vld [vmem:[%s1 + $0x28] sm:$0xf]
  %v279 = vld [vmem:[%s1 + $0x2c] sm:$0xf]
  %v280 = vld [vmem:[%s1 + $0x30] sm:$0xf]
  %v281 = vld [vmem:[%s1 + $0x34] sm:$0xf]
  %v282 = vld [vmem:[%s1 + $0x38] sm:$0xf]
  %v283 = vld [vmem:[%s1 + $0x3c] sm:$0xf]
  %v284 = vld [vmem:[%s1 + $0x40] sm:$0xf]
  %v285 = vld [vmem:[%s1 + $0x44] sm:$0xf]
  %v286 = vld [vmem:[%s1 + $0x48] sm:$0xf]
  %v287 = vld [vmem:[%s1 + $0x4c] sm:$0xf]
  %v288 = vld [vmem:[%s1 + $0x50] sm:$0xf]
  %v289 = vld [vmem:[%s1 + $0x54] sm:$0xf]
  %v290 = vld [vmem:[%s1 + $0x58] sm:$0xf]
  %v291 = vld [vmem:[%s1 + $0x5c] sm:$0xf]
  %v292 = vld [vmem:[%s1 + $0x60] sm:$0xf]
  %v293 = vld [vmem:[%s1 + $0x64] sm:$0xf]
  %v294 = vld [vmem:[%s1 + $0x68] sm:$0xf]
  %v295 = vld [vmem:[%s1 + $0x6c] sm:$0xf]
  %v296 = vld [vmem:[%s1 + $0x70] sm:$0xf]
  %v297 = vld [vmem:[%s1 + $0x74] sm:$0xf]
  %v298 = vld [vmem:[%s1 + $0x78] sm:$0xf]
  %v299 = vld [vmem:[%s1 + $0x7c] sm:$0xf]
  %v300 = vld [vmem:[%s1 + $0x80] sm:$0xf]
  %v301 = vld [vmem:[%s1 + $0x84] sm:$0xf]
  %v302 = vld [vmem:[%s1 + $0x88] sm:$0xf]
  %v303 = vld [vmem:[%s1 + $0x8c] sm:$0xf]
  %v304 = vld [vmem:[%s1 + $0x90] sm:$0xf]
  %v305 = vld [vmem:[%s1 + $0x94] sm:$0xf]
  %v306 = vld [vmem:[%s1 + $0x98] sm:$0xf]
  %v307 = vld [vmem:[%s1 + $0x9c] sm:$0xf]
  %v308 = vld [vmem:[%s1 + $0xa0] sm:$0xf]
  %v309 = vld [vmem:[%s1 + $0xa4] sm:$0xf]
  %v310 = vld [vmem:[%s1 + $0xa8] sm:$0xf]
  %v311 = vld [vmem:[%s1 + $0xac] sm:$0xf]
  %v312 = vld [vmem:[%s1 + $0xb0] sm:$0xf]
  %v313 = vld [vmem:[%s1 + $0xb4] sm:$0xf]
  %v314 = vld [vmem:[%s1 + $0xb8] sm:$0xf]
  %v315 = vld [vmem:[%s1 + $0xbc] sm:$0xf]
  %v316 = vld [vmem:[%s1 + $0xc0] sm:$0xf]
  %v317 = vld [vmem:[%s1 + $0xc4] sm:$0xf]
  %v318 = vld [vmem:[%s1 + $0xc8] sm:$0xf]
  %v319 = vld [vmem:[%s1 + $0xcc] sm:$0xf]
  %v320 = vld [vmem:[%s1 + $0xd0] sm:$0xf]
  %v321 = vld [vmem:[%s1 + $0xd4] sm:$0xf]
  %v322 = vld [vmem:[%s1 + $0xd8] sm:$0xf]
  %v323 = vld [vmem:[%s1 + $0xdc] sm:$0xf]
  %v324 = vld [vmem:[%s1 + $0xe0] sm:$0xf]
  %v325 = vld [vmem:[%s1 + $0xe4] sm:$0xf]
  %v326 = vld [vmem:[%s1 + $0xe8] sm:$0xf]
  %v327 = vld [vmem:[%s1 + $0xec] sm:$0xf]
  %v328 = vld [vmem:[%s1 + $0xf0] sm:$0xf]
  %v329 = vld [vmem:[%s1 + $0xf4] sm:$0xf]
  %v330 = vld [vmem:[%s1 + $0xf8] sm:$0x3]
  %v587 = vunpack.c.l.b16 %v12
  %v588 = vunpack.c.h.b16 %v12
  %v589 = vunpack.c.l.b16 %v13
  %v590 = vunpack.c.h.b16 %v13
  %v591 = vunpack.c.l.b16 %v14
  %v592 = vunpack.c.h.b16 %v14
  %v593 = vunpack.c.l.b16 %v15
  %v594 = vunpack.c.h.b16 %v15
  %v595 = vunpack.c.l.b16 %v16
  %v596 = vunpack.c.h.b16 %v16
  %v597 = vunpack.c.l.b16 %v17
  %v598 = vunpack.c.h.b16 %v17
  %v599 = vunpack.c.l.b16 %v18
  %v600 = vunpack.c.h.b16 %v18
  %v601 = vunpack.c.l.b16 %v19
  %v602 = vunpack.c.h.b16 %v19
  %v603 = vunpack.c.l.b16 %v20
  %v604 = vunpack.c.h.b16 %v20
  %v605 = vunpack.c.l.b16 %v21
  %v606 = vunpack.c.h.b16 %v21
  %v607 = vunpack.c.l.b16 %v22
  %v608 = vunpack.c.h.b16 %v22
  %v609 = vunpack.c.l.b16 %v23
  %v610 = vunpack.c.h.b16 %v23
  %v611 = vunpack.c.l.b16 %v24
  %v612 = vunpack.c.h.b16 %v24
  %v613 = vunpack.c.l.b16 %v25
  %v614 = vunpack.c.h.b16 %v25
  %v615 = vunpack.c.l.b16 %v26
  %v616 = vunpack.c.h.b16 %v26
  %v617 = vunpack.c.l.b16 %v27
  %v618 = vunpack.c.h.b16 %v27
  %v619 = vunpack.c.l.b16 %v28
  %v620 = vunpack.c.h.b16 %v28
  %v621 = vunpack.c.l.b16 %v29
  %v622 = vunpack.c.h.b16 %v29
  %v623 = vunpack.c.l.b16 %v30
  %v624 = vunpack.c.h.b16 %v30
  %v625 = vunpack.c.l.b16 %v31
  %v626 = vunpack.c.h.b16 %v31
  %v627 = vunpack.c.l.b16 %v32
  %v628 = vunpack.c.h.b16 %v32
  %v629 = vunpack.c.l.b16 %v33
  %v630 = vunpack.c.h.b16 %v33
  %v631 = vunpack.c.l.b16 %v34
  %v632 = vunpack.c.h.b16 %v34
  %v633 = vunpack.c.l.b16 %v35
  %v634 = vunpack.c.h.b16 %v35
  %v635 = vunpack.c.l.b16 %v36
  %v636 = vunpack.c.h.b16 %v36
  %v637 = vunpack.c.l.b16 %v37
  %v638 = vunpack.c.h.b16 %v37
  %v639 = vunpack.c.l.b16 %v38
  %v640 = vunpack.c.h.b16 %v38
  %v641 = vunpack.c.l.b16 %v39
  %v642 = vunpack.c.h.b16 %v39
  %v643 = vunpack.c.l.b16 %v40
  %v644 = vunpack.c.h.b16 %v40
  %v645 = vunpack.c.l.b16 %v41
  %v646 = vunpack.c.h.b16 %v41
  %v647 = vunpack.c.l.b16 %v42
  %v648 = vunpack.c.h.b16 %v42
  %v649 = vunpack.c.l.b16 %v43
  %v650 = vunpack.c.h.b16 %v43
  %v651 = vunpack.c.l.b16 %v44
  %v652 = vunpack.c.h.b16 %v44
  %v653 = vunpack.c.l.b16 %v45
  %v654 = vunpack.c.h.b16 %v45
  %v655 = vunpack.c.l.b16 %v46
  %v656 = vunpack.c.h.b16 %v46
  %v657 = vunpack.c.l.b16 %v47
  %v658 = vunpack.c.h.b16 %v47
  %v659 = vunpack.c.l.b16 %v48
  %v660 = vunpack.c.h.b16 %v48
  %v661 = vunpack.c.l.b16 %v49
  %v662 = vunpack.c.h.b16 %v49
  %v663 = vunpack.c.l.b16 %v50
  %v664 = vunpack.c.h.b16 %v50
  %v665 = vunpack.c.l.b16 %v51
  %v666 = vunpack.c.h.b16 %v51
  %v667 = vunpack.c.l.b16 %v52
  %v668 = vunpack.c.h.b16 %v52
  %v669 = vunpack.c.l.b16 %v53
  %v670 = vunpack.c.h.b16 %v53
  %v671 = vunpack.c.l.b16 %v54
  %v672 = vunpack.c.h.b16 %v54
  %v673 = vunpack.c.l.b16 %v55
  %v674 = vunpack.c.h.b16 %v55
  %v675 = vunpack.c.l.b16 %v56
  %v676 = vunpack.c.h.b16 %v56
  %v677 = vunpack.c.l.b16 %v57
  %v678 = vunpack.c.h.b16 %v57
  %v679 = vunpack.c.l.b16 %v58
  %v680 = vunpack.c.h.b16 %v58
  %v681 = vunpack.c.l.b16 %v59
  %v682 = vunpack.c.h.b16 %v59
  %v683 = vunpack.c.l.b16 %v60
  %v684 = vunpack.c.h.b16 %v60
  %v685 = vunpack.c.l.b16 %v61
  %v686 = vunpack.c.h.b16 %v61
  %v687 = vunpack.c.l.b16 %v62
  %v688 = vunpack.c.h.b16 %v62
  %v689 = vunpack.c.l.b16 %v63
  %v690 = vunpack.c.h.b16 %v63
  %v691 = vunpack.c.l.b16 %v64
  %v692 = vunpack.c.h.b16 %v64
  %v693 = vunpack.c.l.b16 %v65
  %v694 = vunpack.c.h.b16 %v65
  %v695 = vunpack.c.l.b16 %v66
  %v696 = vunpack.c.h.b16 %v66
  %v697 = vunpack.c.l.b16 %v67
  %v698 = vunpack.c.h.b16 %v67
  %v699 = vunpack.c.l.b16 %v68
  %v700 = vunpack.c.h.b16 %v68
  %v701 = vunpack.c.l.b16 %v69
  %v702 = vunpack.c.h.b16 %v69
  %v703 = vunpack.c.l.b16 %v70
  %v704 = vunpack.c.h.b16 %v70
  %v705 = vunpack.c.l.b16 %v71
  %v706 = vunpack.c.h.b16 %v71
  %v707 = vunpack.c.l.b16 %v72
  %v708 = vunpack.c.h.b16 %v72
  %v709 = vunpack.c.l.b16 %v73
  %v710 = vunpack.c.h.b16 %v73
  %v711 = vunpack.c.l.b16 %v74
  %v712 = vunpack.c.h.b16 %v74
  %v713 = vunpack.c.l.b16 %v75
  %v714 = vunpack.c.h.b16 %v75
  %v715 = vunpack.c.l.b16 %v76
  %v716 = vunpack.c.h.b16 %v76
  %v717 = vunpack.c.l.b16 %v77
  %v718 = vunpack.c.h.b16 %v77
  %v719 = vunpack.c.l.b16 %v78
  %v720 = vunpack.c.h.b16 %v78
  %v721 = vunpack.c.l.b16 %v79
  %v722 = vunpack.c.h.b16 %v79
  %v723 = vunpack.c.l.b16 %v80
  %v724 = vunpack.c.h.b16 %v80
  %v725 = vunpack.c.l.b16 %v81
  %v726 = vunpack.c.h.b16 %v81
  %v727 = vunpack.c.l.b16 %v82
  %v728 = vunpack.c.h.b16 %v82
  %v729 = vunpack.c.l.b16 %v83
  %v730 = vunpack.c.h.b16 %v83
  %v731 = vunpack.c.l.b16 %v84
  %v732 = vunpack.c.h.b16 %v84
  %v733 = vunpack.c.l.b16 %v85
  %v734 = vunpack.c.h.b16 %v85
  %v735 = vunpack.c.l.b16 %v86
  %v736 = vunpack.c.h.b16 %v86
  %v737 = vunpack.c.l.b16 %v87
  %v738 = vunpack.c.h.b16 %v87
  %v739 = vunpack.c.l.b16 %v88
  %v740 = vunpack.c.h.b16 %v88
  %v741 = vunpack.c.l.b16 %v89
  %v742 = vunpack.c.h.b16 %v89
  %v743 = vunpack.c.l.b16 %v90
  %v744 = vunpack.c.h.b16 %v90
  %v745 = vunpack.c.l.b16 %v91
  %v746 = vunpack.c.h.b16 %v91
  %v747 = vunpack.c.l.b16 %v92
  %v748 = vunpack.c.h.b16 %v92
  %v749 = vunpack.c.l.b16 %v93
  %v750 = vunpack.c.h.b16 %v93
  %v751 = vunpack.c.l.b16 %v94
  %v752 = vunpack.c.h.b16 %v94
  %v753 = vunpack.c.l.b16 %v95
  %v754 = vunpack.c.h.b16 %v95
  %v755 = vunpack.c.l.b16 %v96
  %v756 = vunpack.c.h.b16 %v96
  %v757 = vunpack.c.l.b16 %v97
  %v758 = vunpack.c.h.b16 %v97
  %v759 = vunpack.c.l.b16 %v98
  %v760 = vunpack.c.h.b16 %v98
  %v761 = vunpack.c.l.b16 %v99
  %v762 = vunpack.c.h.b16 %v99
  %v763 = vunpack.c.l.b16 %v100
  %v764 = vunpack.c.h.b16 %v100
  %v765 = vunpack.c.l.b16 %v101
  %v766 = vunpack.c.h.b16 %v101
  %v767 = vunpack.c.l.b16 %v102
  %v768 = vunpack.c.h.b16 %v102
  %v769 = vunpack.c.l.b16 %v103
  %v770 = vunpack.c.h.b16 %v103
  %v771 = vunpack.c.l.b16 %v104
  %v772 = vunpack.c.h.b16 %v104
  %v773 = vunpack.c.l.b16 %v105
  %v774 = vunpack.c.h.b16 %v105
  %v775 = vunpack.c.l.b16 %v106
  %v776 = vunpack.c.h.b16 %v106
  %v777 = vunpack.c.l.b16 %v107
  %v778 = vunpack.c.h.b16 %v107
  %v779 = vunpack.c.l.b16 %v108
  %v780 = vunpack.c.h.b16 %v108
  %v781 = vunpack.c.l.b16 %v109
  %v782 = vunpack.c.h.b16 %v109
  %v783 = vunpack.c.l.b16 %v110
  %v784 = vunpack.c.h.b16 %v110
  %v785 = vunpack.c.l.b16 %v111
  %v786 = vunpack.c.h.b16 %v111
  %v787 = vunpack.c.l.b16 %v112
  %v788 = vunpack.c.h.b16 %v112
  %v789 = vunpack.c.l.b16 %v113
  %v790 = vunpack.c.h.b16 %v113
  %v791 = vunpack.c.l.b16 %v114
  %v792 = vunpack.c.h.b16 %v114
  %v793 = vunpack.c.l.b16 %v115
  %v794 = vunpack.c.h.b16 %v115
  %v795 = vunpack.c.l.b16 %v116
  %v796 = vunpack.c.h.b16 %v116
  %v797 = vunpack.c.l.b16 %v117
  %v798 = vunpack.c.h.b16 %v117
  %v799 = vunpack.c.l.b16 %v118
  %v800 = vunpack.c.h.b16 %v118
  %v801 = vunpack.c.l.b16 %v119
  %v802 = vunpack.c.h.b16 %v119
  %v803 = vunpack.c.l.b16 %v120
  %v804 = vunpack.c.h.b16 %v120
  %v805 = vunpack.c.l.b16 %v121
  %v806 = vunpack.c.h.b16 %v121
  %v807 = vunpack.c.l.b16 %v122
  %v808 = vunpack.c.h.b16 %v122
  %v809 = vunpack.c.l.b16 %v123
  %v810 = vunpack.c.h.b16 %v123
  %v811 = vunpack.c.l.b16 %v124
  %v812 = vunpack.c.h.b16 %v124
  %v813 = vunpack.c.l.b16 %v125
  %v814 = vunpack.c.h.b16 %v125
  %v815 = vunpack.c.l.b16 %v126
  %v816 = vunpack.c.h.b16 %v126
  %v817 = vunpack.c.l.b16 %v127
  %v818 = vunpack.c.h.b16 %v127
  %v819 = vunpack.c.l.b16 %v128
  %v820 = vunpack.c.h.b16 %v128
  %v821 = vunpack.c.l.b16 %v129
  %v822 = vunpack.c.h.b16 %v129
  %v823 = vunpack.c.l.b16 %v130
  %v824 = vunpack.c.h.b16 %v130
  %v825 = vunpack.c.l.b16 %v131
  %v826 = vunpack.c.h.b16 %v131
  %v827 = vunpack.c.l.b16 %v132
  %v828 = vunpack.c.h.b16 %v132
  %v829 = vunpack.c.l.b16 %v133
  %v830 = vunpack.c.h.b16 %v133
  %v831 = vunpack.c.l.b16 %v134
  %v832 = vunpack.c.h.b16 %v134
  %v833 = vunpack.c.l.b16 %v135
  %v834 = vunpack.c.h.b16 %v135
  %v835 = vunpack.c.l.b16 %v136
  %v836 = vunpack.c.h.b16 %v136
  %v837 = vunpack.c.l.b16 %v137
  %v838 = vunpack.c.h.b16 %v137
  %v839 = vunpack.c.l.b16 %v138
  %v840 = vunpack.c.h.b16 %v138
  %v841 = vunpack.c.l.b16 %v139
  %v842 = vunpack.c.h.b16 %v139
  %v843 = vunpack.c.l.b16 %v140
  %v844 = vunpack.c.h.b16 %v140
  %v845 = vunpack.c.l.b16 %v141
  %v846 = vunpack.c.h.b16 %v141
  %v847 = vunpack.c.l.b16 %v142
  %v848 = vunpack.c.h.b16 %v142
  %v849 = vunpack.c.l.b16 %v143
  %v850 = vunpack.c.h.b16 %v143
  %v851 = vunpack.c.l.b16 %v144
  %v852 = vunpack.c.h.b16 %v144
  %v853 = vunpack.c.l.b16 %v145
  %v854 = vunpack.c.h.b16 %v145
  %v855 = vunpack.c.l.b16 %v146
  %v856 = vunpack.c.h.b16 %v146
  %v857 = vunpack.c.l.b16 %v147
  %v858 = vunpack.c.h.b16 %v147
  %v859 = vunpack.c.l.b16 %v148
  %v860 = vunpack.c.h.b16 %v148
  %v861 = vunpack.c.l.b16 %v149
  %v862 = vunpack.c.h.b16 %v149
  %v863 = vunpack.c.l.b16 %v150
  %v864 = vunpack.c.h.b16 %v150
  %v865 = vunpack.c.l.b16 %v151
  %v866 = vunpack.c.h.b16 %v151
  %v867 = vunpack.c.l.b16 %v152
  %v868 = vunpack.c.h.b16 %v152
  %v869 = vunpack.c.l.b16 %v153
  %v870 = vunpack.c.h.b16 %v153
  %v871 = vunpack.c.l.b16 %v154
  %v872 = vunpack.c.h.b16 %v154
  %v873 = vunpack.c.l.b16 %v155
  %v874 = vunpack.c.h.b16 %v155
  %v875 = vunpack.c.l.b16 %v156
  %v876 = vunpack.c.h.b16 %v156
  %v877 = vunpack.c.l.b16 %v157
  %v878 = vunpack.c.h.b16 %v157
  %v879 = vunpack.c.l.b16 %v158
  %v880 = vunpack.c.h.b16 %v158
  %v881 = vunpack.c.l.b16 %v159
  %v882 = vunpack.c.h.b16 %v159
  %v883 = vunpack.c.l.b16 %v160
  %v884 = vunpack.c.h.b16 %v160
  %v885 = vunpack.c.l.b16 %v161
  %v886 = vunpack.c.h.b16 %v161
  %v887 = vunpack.c.l.b16 %v162
  %v888 = vunpack.c.h.b16 %v162
  %v889 = vunpack.c.l.b16 %v163
  %v890 = vunpack.c.h.b16 %v163
  %v891 = vunpack.c.l.b16 %v164
  %v892 = vunpack.c.h.b16 %v164
  %v893 = vunpack.c.l.b16 %v165
  %v894 = vunpack.c.h.b16 %v165
  %v895 = vunpack.c.l.b16 %v166
  %v896 = vunpack.c.h.b16 %v166
  %v897 = vunpack.c.l.b16 %v167
  %v898 = vunpack.c.h.b16 %v167
  %v899 = vunpack.c.l.b16 %v168
  %v900 = vunpack.c.h.b16 %v168
  %v901 = vunpack.c.l.b16 %v169
  %v902 = vunpack.c.h.b16 %v169
  %v903 = vunpack.c.l.b16 %v170
  %v904 = vunpack.c.h.b16 %v170
  %v905 = vunpack.c.l.b16 %v171
  %v906 = vunpack.c.h.b16 %v171
  %v907 = vunpack.c.l.b16 %v172
  %v908 = vunpack.c.h.b16 %v172
  %v909 = vunpack.c.l.b16 %v173
  %v910 = vunpack.c.h.b16 %v173
  %v911 = vunpack.c.l.b16 %v174
  %v912 = vunpack.c.h.b16 %v174
  %v913 = vunpack.c.l.b16 %v175
  %v914 = vunpack.c.h.b16 %v175
  %v915 = vunpack.c.l.b16 %v176
  %v916 = vunpack.c.h.b16 %v176
  %v917 = vunpack.c.l.b16 %v177
  %v918 = vunpack.c.h.b16 %v177
  %v919 = vunpack.c.l.b16 %v178
  %v920 = vunpack.c.h.b16 %v178
  %v921 = vunpack.c.l.b16 %v179
  %v922 = vunpack.c.h.b16 %v179
  %v923 = vunpack.c.l.b16 %v180
  %v924 = vunpack.c.h.b16 %v180
  %v925 = vunpack.c.l.b16 %v181
  %v926 = vunpack.c.h.b16 %v181
  %v927 = vunpack.c.l.b16 %v182
  %v928 = vunpack.c.h.b16 %v182
  %v929 = vunpack.c.l.b16 %v183
  %v930 = vunpack.c.h.b16 %v183
  %v931 = vunpack.c.l.b16 %v184
  %v932 = vunpack.c.h.b16 %v184
  %v933 = vunpack.c.l.b16 %v185
  %v934 = vunpack.c.h.b16 %v185
  %v935 = vunpack.c.l.b16 %v186
  %v936 = vunpack.c.h.b16 %v186
  %v937 = vunpack.c.l.b16 %v187
  %v938 = vunpack.c.h.b16 %v187
  %v939 = vunpack.c.l.b16 %v188
  %v940 = vunpack.c.h.b16 %v188
  %v941 = vunpack.c.l.b16 %v189
  %v942 = vunpack.c.h.b16 %v189
  %v943 = vunpack.c.l.b16 %v190
  %v944 = vunpack.c.h.b16 %v190
  %v945 = vunpack.c.l.b16 %v191
  %v946 = vunpack.c.h.b16 %v191
  %v947 = vunpack.c.l.b16 %v192
  %v948 = vunpack.c.h.b16 %v192
  %v949 = vunpack.c.l.b16 %v193
  %v950 = vunpack.c.h.b16 %v193
  %v951 = vunpack.c.l.b16 %v194
  %v952 = vunpack.c.h.b16 %v194
  %v953 = vunpack.c.l.b16 %v195
  %v954 = vunpack.c.h.b16 %v195
  %v955 = vunpack.c.l.b16 %v196
  %v956 = vunpack.c.h.b16 %v196
  %v957 = vunpack.c.l.b16 %v197
  %v958 = vunpack.c.h.b16 %v197
  %v959 = vunpack.c.l.b16 %v198
  %v960 = vunpack.c.h.b16 %v198
  %v961 = vunpack.c.l.b16 %v199
  %v962 = vunpack.c.h.b16 %v199
  %v963 = vunpack.c.l.b16 %v200
  %v964 = vunpack.c.h.b16 %v200
  %v965 = vunpack.c.l.b16 %v201
  %v966 = vunpack.c.h.b16 %v201
  %v967 = vunpack.c.l.b16 %v202
  %v968 = vunpack.c.h.b16 %v202
  %v969 = vunpack.c.l.b16 %v203
  %v970 = vunpack.c.h.b16 %v203
  %v971 = vunpack.c.l.b16 %v204
  %v972 = vunpack.c.h.b16 %v204
  %v973 = vunpack.c.l.b16 %v205
  %v974 = vunpack.c.h.b16 %v205
  %v975 = vunpack.c.l.b16 %v206
  %v976 = vunpack.c.h.b16 %v206
  %v977 = vunpack.c.l.b16 %v207
  %v978 = vunpack.c.h.b16 %v207
  %v979 = vunpack.c.l.b16 %v208
  %v980 = vunpack.c.h.b16 %v208
  %v981 = vunpack.c.l.b16 %v209
  %v982 = vunpack.c.h.b16 %v209
  %v983 = vunpack.c.l.b16 %v210
  %v984 = vunpack.c.h.b16 %v210
  %v985 = vunpack.c.l.b16 %v211
  %v986 = vunpack.c.h.b16 %v211
  %v987 = vunpack.c.l.b16 %v212
  %v988 = vunpack.c.h.b16 %v212
  %v989 = vunpack.c.l.b16 %v213
  %v990 = vunpack.c.h.b16 %v213
  %v991 = vunpack.c.l.b16 %v214
  %v992 = vunpack.c.h.b16 %v214
  %v993 = vunpack.c.l.b16 %v215
  %v994 = vunpack.c.h.b16 %v215
  %v995 = vunpack.c.l.b16 %v216
  %v996 = vunpack.c.h.b16 %v216
  %v997 = vunpack.c.l.b16 %v217
  %v998 = vunpack.c.h.b16 %v217
  %v999 = vunpack.c.l.b16 %v218
  %v1000 = vunpack.c.h.b16 %v218
  %v1001 = vunpack.c.l.b16 %v219
  %v1002 = vunpack.c.h.b16 %v219
  %v1003 = vunpack.c.l.b16 %v220
  %v1004 = vunpack.c.h.b16 %v220
  %v1005 = vunpack.c.l.b16 %v221
  %v1006 = vunpack.c.h.b16 %v221
  %v1007 = vunpack.c.l.b16 %v222
  %v1008 = vunpack.c.h.b16 %v222
  %v1009 = vunpack.c.l.b16 %v223
  %v1010 = vunpack.c.h.b16 %v223
  %v1011 = vunpack.c.l.b16 %v224
  %v1012 = vunpack.c.h.b16 %v224
  %v1013 = vunpack.c.l.b16 %v225
  %v1014 = vunpack.c.h.b16 %v225
  %v1015 = vunpack.c.l.b16 %v226
  %v1016 = vunpack.c.h.b16 %v226
  %v1017 = vunpack.c.l.b16 %v227
  %v1018 = vunpack.c.h.b16 %v227
  %v1019 = vunpack.c.l.b16 %v228
  %v1020 = vunpack.c.h.b16 %v228
  %v1021 = vunpack.c.l.b16 %v229
  %v1022 = vunpack.c.h.b16 %v229
  %v1023 = vunpack.c.l.b16 %v230
  %v1024 = vunpack.c.h.b16 %v230
  %v1025 = vunpack.c.l.b16 %v231
  %v1026 = vunpack.c.h.b16 %v231
  %v1027 = vunpack.c.l.b16 %v232
  %v1028 = vunpack.c.h.b16 %v232
  %v1029 = vunpack.c.l.b16 %v233
  %v1030 = vunpack.c.h.b16 %v233
  %v1031 = vunpack.c.l.b16 %v234
  %v1032 = vunpack.c.h.b16 %v234
  %v1033 = vunpack.c.l.b16 %v235
  %v1034 = vunpack.c.h.b16 %v235
  %v1035 = vunpack.c.l.b16 %v236
  %v1036 = vunpack.c.h.b16 %v236
  %v1037 = vunpack.c.l.b16 %v237
  %v1038 = vunpack.c.h.b16 %v237
  %v1039 = vunpack.c.l.b16 %v238
  %v1040 = vunpack.c.h.b16 %v238
  %v1041 = vunpack.c.l.b16 %v239
  %v1042 = vunpack.c.h.b16 %v239
  %v1043 = vunpack.c.l.b16 %v240
  %v1044 = vunpack.c.h.b16 %v240
  %v1045 = vunpack.c.l.b16 %v241
  %v1046 = vunpack.c.h.b16 %v241
  %v1047 = vunpack.c.l.b16 %v242
  %v1048 = vunpack.c.h.b16 %v242
  %v1049 = vunpack.c.l.b16 %v243
  %v1050 = vunpack.c.h.b16 %v243
  %v1051 = vunpack.c.l.b16 %v244
  %v1052 = vunpack.c.h.b16 %v244
  %v1053 = vunpack.c.l.b16 %v245
  %v1054 = vunpack.c.h.b16 %v245
  %v1055 = vunpack.c.l.b16 %v246
  %v1056 = vunpack.c.h.b16 %v246
  %v1057 = vunpack.c.l.b16 %v247
  %v1058 = vunpack.c.h.b16 %v247
  %v1059 = vunpack.c.l.b16 %v248
  %v1060 = vunpack.c.h.b16 %v248
  %v1061 = vunpack.c.l.b16 %v249
  %v1062 = vunpack.c.h.b16 %v249
  %v1063 = vunpack.c.l.b16 %v250
  %v1064 = vunpack.c.h.b16 %v250
  %v1065 = vunpack.c.l.b16 %v251
  %v1066 = vunpack.c.h.b16 %v251
  %v1067 = vunpack.c.l.b16 %v252
  %v1068 = vunpack.c.h.b16 %v252
  %v1069 = vunpack.c.l.b16 %v253
  %v1070 = vunpack.c.h.b16 %v253
  %v1071 = vunpack.c.l.b16 %v254
  %v1072 = vunpack.c.h.b16 %v254
  %v1073 = vunpack.c.l.b16 %v255
  %v1074 = vunpack.c.h.b16 %v255
  %v1075 = vunpack.c.l.b16 %v256
  %v1076 = vunpack.c.h.b16 %v256
  %v1077 = vunpack.c.l.b16 %v257
  %v1078 = vunpack.c.h.b16 %v257
  %v1079 = vunpack.c.l.b16 %v258
  %v1080 = vunpack.c.h.b16 %v258
  %v1081 = vunpack.c.l.b16 %v259
  %v1082 = vunpack.c.h.b16 %v259
  %v1083 = vunpack.c.l.b16 %v260
  %v1084 = vunpack.c.h.b16 %v260
  %v1085 = vunpack.c.l.b16 %v261
  %v1086 = vunpack.c.h.b16 %v261
  %v1087 = vunpack.c.l.b16 %v262
  %v1088 = vunpack.c.h.b16 %v262
  %v1089 = vunpack.c.l.b16 %v263
  %v1090 = vunpack.c.h.b16 %v263
  %v1091 = vunpack.c.l.b16 %v264
  %v1092 = vunpack.c.h.b16 %v264
  %v1093 = vunpack.c.l.b16 %v265
  %v1094 = vunpack.c.h.b16 %v265
  %v1095 = vunpack.c.l.b16 %v266
  %v1096 = vunpack.c.h.b16 %v266
  %v1097 = vunpack.c.l.b16 %v267
  %v1098 = vunpack.c.h.b16 %v267
  %v1099 = vpack.c.b16 %v591, %v587
  %v1100 = vpack.c.b16 %v592, %v588
  %v1101 = vpack.c.b16 %v593, %v589
  %v1102 = vpack.c.b16 %v594, %v590
  %v1103 = vpack.c.b16 %v599, %v595
  %v1104 = vpack.c.b16 %v600, %v596
  %v1105 = vpack.c.b16 %v601, %v597
  %v1106 = vpack.c.b16 %v602, %v598
  %v1107 = vpack.c.b16 %v607, %v603
  %v1108 = vpack.c.b16 %v608, %v604
  %v1109 = vpack.c.b16 %v609, %v605
  %v1110 = vpack.c.b16 %v610, %v606
  %v1111 = vpack.c.b16 %v615, %v611
  %v1112 = vpack.c.b16 %v616, %v612
  %v1113 = vpack.c.b16 %v617, %v613
  %v1114 = vpack.c.b16 %v618, %v614
  %v1115 = vpack.c.b16 %v623, %v619
  %v1116 = vpack.c.b16 %v624, %v620
  %v1117 = vpack.c.b16 %v625, %v621
  %v1118 = vpack.c.b16 %v626, %v622
  %v1119 = vpack.c.b16 %v631, %v627
  %v1120 = vpack.c.b16 %v632, %v628
  %v1121 = vpack.c.b16 %v633, %v629
  %v1122 = vpack.c.b16 %v634, %v630
  %v1123 = vpack.c.b16 %v639, %v635
  %v1124 = vpack.c.b16 %v640, %v636
  %v1125 = vpack.c.b16 %v641, %v637
  %v1126 = vpack.c.b16 %v642, %v638
  %v1127 = vpack.c.b16 %v647, %v643
  %v1128 = vpack.c.b16 %v648, %v644
  %v1129 = vpack.c.b16 %v649, %v645
  %v1130 = vpack.c.b16 %v650, %v646
  %v1131 = vpack.c.b16 %v655, %v651
  %v1132 = vpack.c.b16 %v656, %v652
  %v1133 = vpack.c.b16 %v657, %v653
  %v1134 = vpack.c.b16 %v658, %v654
  %v1135 = vpack.c.b16 %v663, %v659
  %v1136 = vpack.c.b16 %v664, %v660
  %v1137 = vpack.c.b16 %v665, %v661
  %v1138 = vpack.c.b16 %v666, %v662
  %v1139 = vpack.c.b16 %v671, %v667
  %v1140 = vpack.c.b16 %v672, %v668
  %v1141 = vpack.c.b16 %v673, %v669
  %v1142 = vpack.c.b16 %v674, %v670
  %v1143 = vpack.c.b16 %v679, %v675
  %v1144 = vpack.c.b16 %v680, %v676
  %v1145 = vpack.c.b16 %v681, %v677
  %v1146 = vpack.c.b16 %v682, %v678
  %v1147 = vpack.c.b16 %v687, %v683
  %v1148 = vpack.c.b16 %v688, %v684
  %v1149 = vpack.c.b16 %v689, %v685
  %v1150 = vpack.c.b16 %v690, %v686
  %v1151 = vpack.c.b16 %v695, %v691
  %v1152 = vpack.c.b16 %v696, %v692
  %v1153 = vpack.c.b16 %v697, %v693
  %v1154 = vpack.c.b16 %v698, %v694
  %v1155 = vpack.c.b16 %v703, %v699
  %v1156 = vpack.c.b16 %v704, %v700
  %v1157 = vpack.c.b16 %v705, %v701
  %v1158 = vpack.c.b16 %v706, %v702
  %v1159 = vpack.c.b16 %v711, %v707
  %v1160 = vpack.c.b16 %v712, %v708
  %v1161 = vpack.c.b16 %v713, %v709
  %v1162 = vpack.c.b16 %v714, %v710
  %v1163 = vpack.c.b16 %v719, %v715
  %v1164 = vpack.c.b16 %v720, %v716
  %v1165 = vpack.c.b16 %v721, %v717
  %v1166 = vpack.c.b16 %v722, %v718
  %v1167 = vpack.c.b16 %v727, %v723
  %v1168 = vpack.c.b16 %v728, %v724
  %v1169 = vpack.c.b16 %v729, %v725
  %v1170 = vpack.c.b16 %v730, %v726
  %v1171 = vpack.c.b16 %v735, %v731
  %v1172 = vpack.c.b16 %v736, %v732
  %v1173 = vpack.c.b16 %v737, %v733
  %v1174 = vpack.c.b16 %v738, %v734
  %v1175 = vpack.c.b16 %v743, %v739
  %v1176 = vpack.c.b16 %v744, %v740
  %v1177 = vpack.c.b16 %v745, %v741
  %v1178 = vpack.c.b16 %v746, %v742
  %v1179 = vpack.c.b16 %v751, %v747
  %v1180 = vpack.c.b16 %v752, %v748
  %v1181 = vpack.c.b16 %v753, %v749
  %v1182 = vpack.c.b16 %v754, %v750
  %v1183 = vpack.c.b16 %v759, %v755
  %v1184 = vpack.c.b16 %v760, %v756
  %v1185 = vpack.c.b16 %v761, %v757
  %v1186 = vpack.c.b16 %v762, %v758
  %v1187 = vpack.c.b16 %v767, %v763
  %v1188 = vpack.c.b16 %v768, %v764
  %v1189 = vpack.c.b16 %v769, %v765
  %v1190 = vpack.c.b16 %v770, %v766
  %v1191 = vpack.c.b16 %v775, %v771
  %v1192 = vpack.c.b16 %v776, %v772
  %v1193 = vpack.c.b16 %v777, %v773
  %v1194 = vpack.c.b16 %v778, %v774
  %v1195 = vpack.c.b16 %v783, %v779
  %v1196 = vpack.c.b16 %v784, %v780
  %v1197 = vpack.c.b16 %v785, %v781
  %v1198 = vpack.c.b16 %v786, %v782
  %v1199 = vpack.c.b16 %v791, %v787
  %v1200 = vpack.c.b16 %v792, %v788
  %v1201 = vpack.c.b16 %v793, %v789
  %v1202 = vpack.c.b16 %v794, %v790
  %v1203 = vpack.c.b16 %v799, %v795
  %v1204 = vpack.c.b16 %v800, %v796
  %v1205 = vpack.c.b16 %v801, %v797
  %v1206 = vpack.c.b16 %v802, %v798
  %v1207 = vpack.c.b16 %v807, %v803
  %v1208 = vpack.c.b16 %v808, %v804
  %v1209 = vpack.c.b16 %v809, %v805
  %v1210 = vpack.c.b16 %v810, %v806
  %v1211 = vpack.c.b16 %v815, %v811
  %v1212 = vpack.c.b16 %v816, %v812
  %v1213 = vpack.c.b16 %v817, %v813
  %v1214 = vpack.c.b16 %v818, %v814
  %v1215 = vpack.c.b16 %v823, %v819
  %v1216 = vpack.c.b16 %v824, %v820
  %v1217 = vpack.c.b16 %v825, %v821
  %v1218 = vpack.c.b16 %v826, %v822
  %v1219 = vpack.c.b16 %v831, %v827
  %v1220 = vpack.c.b16 %v832, %v828
  %v1221 = vpack.c.b16 %v833, %v829
  %v1222 = vpack.c.b16 %v834, %v830
  %v1223 = vpack.c.b16 %v839, %v835
  %v1224 = vpack.c.b16 %v840, %v836
  %v1225 = vpack.c.b16 %v841, %v837
  %v1226 = vpack.c.b16 %v842, %v838
  %v1227 = vpack.c.b16 %v847, %v843
  %v1228 = vpack.c.b16 %v848, %v844
  %v1229 = vpack.c.b16 %v849, %v845
  %v1230 = vpack.c.b16 %v850, %v846
  %v1231 = vpack.c.b16 %v855, %v851
  %v1232 = vpack.c.b16 %v856, %v852
  %v1233 = vpack.c.b16 %v857, %v853
  %v1234 = vpack.c.b16 %v858, %v854
  %v1235 = vpack.c.b16 %v863, %v859
  %v1236 = vpack.c.b16 %v864, %v860
  %v1237 = vpack.c.b16 %v865, %v861
  %v1238 = vpack.c.b16 %v866, %v862
  %v1239 = vpack.c.b16 %v871, %v867
  %v1240 = vpack.c.b16 %v872, %v868
  %v1241 = vpack.c.b16 %v873, %v869
  %v1242 = vpack.c.b16 %v874, %v870
  %v1243 = vpack.c.b16 %v879, %v875
  %v1244 = vpack.c.b16 %v880, %v876
  %v1245 = vpack.c.b16 %v881, %v877
  %v1246 = vpack.c.b16 %v882, %v878
  %v1247 = vpack.c.b16 %v887, %v883
  %v1248 = vpack.c.b16 %v888, %v884
  %v1249 = vpack.c.b16 %v889, %v885
  %v1250 = vpack.c.b16 %v890, %v886
  %v1251 = vpack.c.b16 %v895, %v891
  %v1252 = vpack.c.b16 %v896, %v892
  %v1253 = vpack.c.b16 %v897, %v893
  %v1254 = vpack.c.b16 %v898, %v894
  %v1255 = vpack.c.b16 %v903, %v899
  %v1256 = vpack.c.b16 %v904, %v900
  %v1257 = vpack.c.b16 %v905, %v901
  %v1258 = vpack.c.b16 %v906, %v902
  %v1259 = vpack.c.b16 %v911, %v907
  %v1260 = vpack.c.b16 %v912, %v908
  %v1261 = vpack.c.b16 %v913, %v909
  %v1262 = vpack.c.b16 %v914, %v910
  %v1263 = vpack.c.b16 %v919, %v915
  %v1264 = vpack.c.b16 %v920, %v916
  %v1265 = vpack.c.b16 %v921, %v917
  %v1266 = vpack.c.b16 %v922, %v918
  %v1267 = vpack.c.b16 %v927, %v923
  %v1268 = vpack.c.b16 %v928, %v924
  %v1269 = vpack.c.b16 %v929, %v925
  %v1270 = vpack.c.b16 %v930, %v926
  %v1271 = vpack.c.b16 %v935, %v931
  %v1272 = vpack.c.b16 %v936, %v932
  %v1273 = vpack.c.b16 %v937, %v933
  %v1274 = vpack.c.b16 %v938, %v934
  %v1275 = vpack.c.b16 %v943, %v939
  %v1276 = vpack.c.b16 %v944, %v940
  %v1277 = vpack.c.b16 %v945, %v941
  %v1278 = vpack.c.b16 %v946, %v942
  %v1279 = vpack.c.b16 %v951, %v947
  %v1280 = vpack.c.b16 %v952, %v948
  %v1281 = vpack.c.b16 %v953, %v949
  %v1282 = vpack.c.b16 %v954, %v950
  %v1283 = vpack.c.b16 %v959, %v955
  %v1284 = vpack.c.b16 %v960, %v956
  %v1285 = vpack.c.b16 %v961, %v957
  %v1286 = vpack.c.b16 %v962, %v958
  %v1287 = vpack.c.b16 %v967, %v963
  %v1288 = vpack.c.b16 %v968, %v964
  %v1289 = vpack.c.b16 %v969, %v965
  %v1290 = vpack.c.b16 %v970, %v966
  %v1291 = vpack.c.b16 %v975, %v971
  %v1292 = vpack.c.b16 %v976, %v972
  %v1293 = vpack.c.b16 %v977, %v973
  %v1294 = vpack.c.b16 %v978, %v974
  %v1295 = vpack.c.b16 %v983, %v979
  %v1296 = vpack.c.b16 %v984, %v980
  %v1297 = vpack.c.b16 %v985, %v981
  %v1298 = vpack.c.b16 %v986, %v982
  %v1299 = vpack.c.b16 %v991, %v987
  %v1300 = vpack.c.b16 %v992, %v988
  %v1301 = vpack.c.b16 %v993, %v989
  %v1302 = vpack.c.b16 %v994, %v990
  %v1303 = vpack.c.b16 %v999, %v995
  %v1304 = vpack.c.b16 %v1000, %v996
  %v1305 = vpack.c.b16 %v1001, %v997
  %v1306 = vpack.c.b16 %v1002, %v998
  %v1307 = vpack.c.b16 %v1007, %v1003
  %v1308 = vpack.c.b16 %v1008, %v1004
  %v1309 = vpack.c.b16 %v1009, %v1005
  %v1310 = vpack.c.b16 %v1010, %v1006
  %v1311 = vpack.c.b16 %v1015, %v1011
  %v1312 = vpack.c.b16 %v1016, %v1012
  %v1313 = vpack.c.b16 %v1017, %v1013
  %v1314 = vpack.c.b16 %v1018, %v1014
  %v1315 = vpack.c.b16 %v1023, %v1019
  %v1316 = vpack.c.b16 %v1024, %v1020
  %v1317 = vpack.c.b16 %v1025, %v1021
  %v1318 = vpack.c.b16 %v1026, %v1022
  %v1319 = vpack.c.b16 %v1031, %v1027
  %v1320 = vpack.c.b16 %v1032, %v1028
  %v1321 = vpack.c.b16 %v1033, %v1029
  %v1322 = vpack.c.b16 %v1034, %v1030
  %v1323 = vpack.c.b16 %v1039, %v1035
  %v1324 = vpack.c.b16 %v1040, %v1036
  %v1325 = vpack.c.b16 %v1041, %v1037
  %v1326 = vpack.c.b16 %v1042, %v1038
  %v1327 = vpack.c.b16 %v1047, %v1043
  %v1328 = vpack.c.b16 %v1048, %v1044
  %v1329 = vpack.c.b16 %v1049, %v1045
  %v1330 = vpack.c.b16 %v1050, %v1046
  %v1331 = vpack.c.b16 %v1055, %v1051
  %v1332 = vpack.c.b16 %v1056, %v1052
  %v1333 = vpack.c.b16 %v1057, %v1053
  %v1334 = vpack.c.b16 %v1058, %v1054
  %v1335 = vpack.c.b16 %v1063, %v1059
  %v1336 = vpack.c.b16 %v1064, %v1060
  %v1337 = vpack.c.b16 %v1065, %v1061
  %v1338 = vpack.c.b16 %v1066, %v1062
  %v1339 = vpack.c.b16 %v1071, %v1067
  %v1340 = vpack.c.b16 %v1072, %v1068
  %v1341 = vpack.c.b16 %v1073, %v1069
  %v1342 = vpack.c.b16 %v1074, %v1070
  %v1343 = vpack.c.b16 %v1079, %v1075
  %v1344 = vpack.c.b16 %v1080, %v1076
  %v1345 = vpack.c.b16 %v1081, %v1077
  %v1346 = vpack.c.b16 %v1082, %v1078
  %v1347 = vpack.c.b16 %v1087, %v1083
  %v1348 = vpack.c.b16 %v1088, %v1084
  %v1349 = vpack.c.b16 %v1089, %v1085
  %v1350 = vpack.c.b16 %v1090, %v1086
  %v1351 = vpack.c.b16 %v1095, %v1091
  %v1352 = vpack.c.b16 %v1096, %v1092
  %v1353 = vpack.c.b16 %v1097, %v1093
  %v1354 = vpack.c.b16 %v1098, %v1094
  %v1610 = vunpack.c.l.b16 %v268
  %v1611 = vunpack.c.l.b16 %v269
  %v1612 = vunpack.c.l.b16 %v270
  %v1613 = vunpack.c.l.b16 %v271
  %v1614 = vunpack.c.l.b16 %v272
  %v1615 = vunpack.c.l.b16 %v273
  %v1616 = vunpack.c.l.b16 %v274
  %v1617 = vunpack.c.l.b16 %v275
  %v1618 = vunpack.c.l.b16 %v276
  %v1619 = vunpack.c.l.b16 %v277
  %v1620 = vunpack.c.l.b16 %v278
  %v1621 = vunpack.c.l.b16 %v279
  %v1622 = vunpack.c.l.b16 %v280
  %v1623 = vunpack.c.l.b16 %v281
  %v1624 = vunpack.c.l.b16 %v282
  %v1625 = vunpack.c.l.b16 %v283
  %v1626 = vunpack.c.l.b16 %v284
  %v1627 = vunpack.c.l.b16 %v285
  %v1628 = vunpack.c.l.b16 %v286
  %v1629 = vunpack.c.l.b16 %v287
  %v1630 = vunpack.c.l.b16 %v288
  %v1631 = vunpack.c.l.b16 %v289
  %v1632 = vunpack.c.l.b16 %v290
  %v1633 = vunpack.c.l.b16 %v291
  %v1634 = vunpack.c.l.b16 %v292
  %v1635 = vunpack.c.l.b16 %v293
  %v1636 = vunpack.c.l.b16 %v294
  %v1637 = vunpack.c.l.b16 %v295
  %v1638 = vunpack.c.l.b16 %v296
  %v1639 = vunpack.c.l.b16 %v297
  %v1640 = vunpack.c.l.b16 %v298
  %v1641 = vunpack.c.l.b16 %v299
  %v1642 = vunpack.c.l.b16 %v300
  %v1643 = vunpack.c.l.b16 %v301
  %v1644 = vunpack.c.l.b16 %v302
  %v1645 = vunpack.c.l.b16 %v303
  %v1646 = vunpack.c.l.b16 %v304
  %v1647 = vunpack.c.l.b16 %v305
  %v1648 = vunpack.c.l.b16 %v306
  %v1649 = vunpack.c.l.b16 %v307
  %v1650 = vunpack.c.l.b16 %v308
  %v1651 = vunpack.c.l.b16 %v309
  %v1652 = vunpack.c.l.b16 %v310
  %v1653 = vunpack.c.l.b16 %v311
  %v1654 = vunpack.c.l.b16 %v312
  %v1655 = vunpack.c.l.b16 %v313
  %v1656 = vunpack.c.l.b16 %v314
  %v1657 = vunpack.c.l.b16 %v315
  %v1658 = vunpack.c.l.b16 %v316
  %v1659 = vunpack.c.l.b16 %v317
  %v1660 = vunpack.c.l.b16 %v318
  %v1661 = vunpack.c.l.b16 %v319
  %v1662 = vunpack.c.l.b16 %v320
  %v1663 = vunpack.c.l.b16 %v321
  %v1664 = vunpack.c.l.b16 %v322
  %v1665 = vunpack.c.l.b16 %v323
  %v1666 = vunpack.c.l.b16 %v324
  %v1667 = vunpack.c.l.b16 %v325
  %v1668 = vunpack.c.l.b16 %v326
  %v1669 = vunpack.c.l.b16 %v327
  %v1670 = vunpack.c.l.b16 %v328
  %v1671 = vunpack.c.l.b16 %v329
  %v1672 = vunpack.c.l.b16 %v330
  %v1673 = vpack.c.b16 %v1611, %v1610
  %v1674 = vpack.c.b16 %v1613, %v1612
  %v1675 = vpack.c.b16 %v1615, %v1614
  %v1676 = vpack.c.b16 %v1617, %v1616
  %v1677 = vpack.c.b16 %v1619, %v1618
  %v1678 = vpack.c.b16 %v1621, %v1620
  %v1679 = vpack.c.b16 %v1623, %v1622
  %v1680 = vpack.c.b16 %v1625, %v1624
  %v1681 = vpack.c.b16 %v1627, %v1626
  %v1682 = vpack.c.b16 %v1629, %v1628
  %v1683 = vpack.c.b16 %v1631, %v1630
  %v1684 = vpack.c.b16 %v1633, %v1632
  %v1685 = vpack.c.b16 %v1635, %v1634
  %v1686 = vpack.c.b16 %v1637, %v1636
  %v1687 = vpack.c.b16 %v1639, %v1638
  %v1688 = vpack.c.b16 %v1641, %v1640
  %v1689 = vpack.c.b16 %v1643, %v1642
  %v1690 = vpack.c.b16 %v1645, %v1644
  %v1691 = vpack.c.b16 %v1647, %v1646
  %v1692 = vpack.c.b16 %v1649, %v1648
  %v1693 = vpack.c.b16 %v1651, %v1650
  %v1694 = vpack.c.b16 %v1653, %v1652
  %v1695 = vpack.c.b16 %v1655, %v1654
  %v1696 = vpack.c.b16 %v1657, %v1656
  %v1697 = vpack.c.b16 %v1659, %v1658
  %v1698 = vpack.c.b16 %v1661, %v1660
  %v1699 = vpack.c.b16 %v1663, %v1662
  %v1700 = vpack.c.b16 %v1665, %v1664
  %v1701 = vpack.c.b16 %v1667, %v1666
  %v1702 = vpack.c.b16 %v1669, %v1668
  %v1703 = vpack.c.b16 %v1671, %v1670
  %v1704 = vpack.c.b16 %v1672, %v1672
  %vm1736 = vcmask 949248
  %v1738 = vsel %vm1736, %v1102, 0
  %v1741 = vsel %vm1736, %v1106, 0
  %v1744 = vsel %vm1736, %v1110, 0
  %v1747 = vsel %vm1736, %v1114, 0
  %v1750 = vsel %vm1736, %v1118, 0
  %v1753 = vsel %vm1736, %v1122, 0
  %v1756 = vsel %vm1736, %v1126, 0
  %v1759 = vsel %vm1736, %v1130, 0
  %v1762 = vsel %vm1736, %v1134, 0
  %v1765 = vsel %vm1736, %v1138, 0
  %v1768 = vsel %vm1736, %v1142, 0
  %v1771 = vsel %vm1736, %v1146, 0
  %v1774 = vsel %vm1736, %v1150, 0
  %v1777 = vsel %vm1736, %v1154, 0
  %v1780 = vsel %vm1736, %v1158, 0
  %v1783 = vsel %vm1736, %v1162, 0
  %v1786 = vsel %vm1736, %v1166, 0
  %v1789 = vsel %vm1736, %v1170, 0
  %v1792 = vsel %vm1736, %v1174, 0
  %v1795 = vsel %vm1736, %v1178, 0
  %v1798 = vsel %vm1736, %v1182, 0
  %v1801 = vsel %vm1736, %v1186, 0
  %v1804 = vsel %vm1736, %v1190, 0
  %v1807 = vsel %vm1736, %v1194, 0
  %v1810 = vsel %vm1736, %v1198, 0
  %v1813 = vsel %vm1736, %v1202, 0
  %v1816 = vsel %vm1736, %v1206, 0
  %v1819 = vsel %vm1736, %v1210, 0
  %v1822 = vsel %vm1736, %v1214, 0
  %v1825 = vsel %vm1736, %v1218, 0
  %v1828 = vsel %vm1736, %v1222, 0
  %v1831 = vsel %vm1736, %v1226, 0
  %v1834 = vsel %vm1736, %v1230, 0
  %v1837 = vsel %vm1736, %v1234, 0
  %v1840 = vsel %vm1736, %v1238, 0
  %v1843 = vsel %vm1736, %v1242, 0
  %v1846 = vsel %vm1736, %v1246, 0
  %v1849 = vsel %vm1736, %v1250, 0
  %v1852 = vsel %vm1736, %v1254, 0
  %v1855 = vsel %vm1736, %v1258, 0
  %v1858 = vsel %vm1736, %v1262, 0
  %v1861 = vsel %vm1736, %v1266, 0
  %v1864 = vsel %vm1736, %v1270, 0
  %v1867 = vsel %vm1736, %v1274, 0
  %v1870 = vsel %vm1736, %v1278, 0
  %v1873 = vsel %vm1736, %v1282, 0
  %v1876 = vsel %vm1736, %v1286, 0
  %v1879 = vsel %vm1736, %v1290, 0
  %v1882 = vsel %vm1736, %v1294, 0
  %v1885 = vsel %vm1736, %v1298, 0
  %v1888 = vsel %vm1736, %v1302, 0
  %v1891 = vsel %vm1736, %v1306, 0
  %v1894 = vsel %vm1736, %v1310, 0
  %v1897 = vsel %vm1736, %v1314, 0
  %v1900 = vsel %vm1736, %v1318, 0
  %v1903 = vsel %vm1736, %v1322, 0
  %v1906 = vsel %vm1736, %v1326, 0
  %v1909 = vsel %vm1736, %v1330, 0
  %v1912 = vsel %vm1736, %v1334, 0
  %v1915 = vsel %vm1736, %v1338, 0
  %v1918 = vsel %vm1736, %v1342, 0
  %v1921 = vsel %vm1736, %v1346, 0
  %v1924 = vsel %vm1736, %v1350, 0
  %v1927 = vsel %vm1736, %v1354, 0
  %vm1929 = vcmask 1041408
  %v1931 = vsel %vm1929, %v1704, 0
  %1933 = vmatprep.subr.bf16.mxu0 0
  %1934 = vmatpush1.bf16.msra.mxu0 %v1680
  %1935 = vmatprep.subr.bf16.mxu0 0
  %1936 = vmatpush1.bf16.msra.mxu0 %v1679
  %1937 = vmatprep.subr.bf16.mxu0 0
  %1938 = vmatpush1.bf16.msra.mxu0 %v1678
  %1939 = vmatprep.subr.bf16.mxu0 0
  %1940 = vmatpush1.bf16.msra.mxu0 %v1677
  %1941 = vmatprep.subr.bf16.mxu0 0
  %1942 = vmatpush1.bf16.msra.mxu0 %v1676
  %1943 = vmatprep.subr.bf16.mxu0 0
  %1944 = vmatpush1.bf16.msra.mxu0 %v1675
  %1945 = vmatprep.subr.bf16.mxu0 0
  %1946 = vmatpush1.bf16.msra.mxu0 %v1674
  %1947 = vmatprep.subr.bf16.mxu0 0
  %1948 = vmatpush1.bf16.msra.mxu0 %v1673
  %1949 = vmatprep.subr.bf16.mxu0 0
  %1950 = vmatpush2.bf16.msra.mxu0 %v1688
  %1951 = vmatprep.subr.bf16.mxu0 0
  %1952 = vmatpush2.bf16.msra.mxu0 %v1687
  %1953 = vmatprep.subr.bf16.mxu0 0
  %1954 = vmatpush2.bf16.msra.mxu0 %v1686
  %1955 = vmatprep.subr.bf16.mxu0 0
  %1956 = vmatpush2.bf16.msra.mxu0 %v1685
  %1957 = vmatprep.subr.bf16.mxu0 0
  %1958 = vmatpush2.bf16.msra.mxu0 %v1684
  %1959 = vmatprep.subr.bf16.mxu0 0
  %1960 = vmatpush2.bf16.msra.mxu0 %v1683
  %1961 = vmatprep.subr.bf16.mxu0 0
  %1962 = vmatpush2.bf16.msra.mxu0 %v1682
  %1963 = vmatprep.subr.bf16.mxu0 0
  %1964 = vmatpush2.bf16.msra.mxu0 %v1681
  %1965 = vmatprep.mubr.bf16.mxu0 %v1100
  %1966 = vmatmul.mubr.bf16.gmra.mxu0 %v1099
  %v1967 = vpop.f32.mrf.mxu0
  %v1968 = vadd.f32 0.0, %v1967
  %v1969 = vpop.f32.mrf.mxu0
  %v1970 = vpop.f32.mrf.mxu0
  %v1971 = vadd.f32 0.0, %v1970
  %v1972 = vpop.f32.mrf.mxu0
  %1973 = vmatprep.mubr.bf16.mxu0 %v1104
  %1974 = vmatmul.mubr.bf16.gmra.mxu0 %v1103
  %v1975 = vpop.f32.mrf.mxu0
  %v1976 = vadd.f32 0.0, %v1975
  %v1977 = vpop.f32.mrf.mxu0
  %v1978 = vpop.f32.mrf.mxu0
  %v1979 = vadd.f32 0.0, %v1978
  %v1980 = vpop.f32.mrf.mxu0
  %1981 = vmatprep.mubr.bf16.mxu0 %v1108
  %1982 = vmatmul.mubr.bf16.gmra.mxu0 %v1107
  %v1983 = vpop.f32.mrf.mxu0
  %v1984 = vadd.f32 0.0, %v1983
  %v1985 = vpop.f32.mrf.mxu0
  %v1986 = vpop.f32.mrf.mxu0
  %v1987 = vadd.f32 0.0, %v1986
  %v1988 = vpop.f32.mrf.mxu0
  %1989 = vmatprep.mubr.bf16.mxu0 %v1112
  %1990 = vmatmul.mubr.bf16.gmra.mxu0 %v1111
  %v1991 = vpop.f32.mrf.mxu0
  %v1992 = vadd.f32 0.0, %v1991
  %v1993 = vpop.f32.mrf.mxu0
  %v1994 = vpop.f32.mrf.mxu0
  %v1995 = vadd.f32 0.0, %v1994
  %v1996 = vpop.f32.mrf.mxu0
  %1997 = vmatprep.mubr.bf16.mxu0 %v1116
  %1998 = vmatmul.mubr.bf16.gmra.mxu0 %v1115
  %v1999 = vpop.f32.mrf.mxu0
  %v2000 = vadd.f32 0.0, %v1999
  %v2001 = vpop.f32.mrf.mxu0
  %v2002 = vpop.f32.mrf.mxu0
  %v2003 = vadd.f32 0.0, %v2002
  %v2004 = vpop.f32.mrf.mxu0
  %2005 = vmatprep.mubr.bf16.mxu0 %v1120
  %2006 = vmatmul.mubr.bf16.gmra.mxu0 %v1119
  %v2007 = vpop.f32.mrf.mxu0
  %v2008 = vadd.f32 0.0, %v2007
  %v2009 = vpop.f32.mrf.mxu0
  %v2010 = vpop.f32.mrf.mxu0
  %v2011 = vadd.f32 0.0, %v2010
  %v2012 = vpop.f32.mrf.mxu0
  %2013 = vmatprep.mubr.bf16.mxu0 %v1124
  %2014 = vmatmul.mubr.bf16.gmra.mxu0 %v1123
  %v2015 = vpop.f32.mrf.mxu0
  %v2016 = vadd.f32 0.0, %v2015
  %v2017 = vpop.f32.mrf.mxu0
  %v2018 = vpop.f32.mrf.mxu0
  %v2019 = vadd.f32 0.0, %v2018
  %v2020 = vpop.f32.mrf.mxu0
  %2021 = vmatprep.mubr.bf16.mxu0 %v1128
  %2022 = vmatmul.mubr.bf16.gmra.mxu0 %v1127
  %v2023 = vpop.f32.mrf.mxu0
  %v2024 = vadd.f32 0.0, %v2023
  %v2025 = vpop.f32.mrf.mxu0
  %v2026 = vpop.f32.mrf.mxu0
  %v2027 = vadd.f32 0.0, %v2026
  %v2028 = vpop.f32.mrf.mxu0
  %2029 = vmatprep.mubr.bf16.mxu0 %v1132
  %2030 = vmatmul.mubr.bf16.gmra.mxu0 %v1131
  %v2031 = vpop.f32.mrf.mxu0
  %v2032 = vadd.f32 0.0, %v2031
  %v2033 = vpop.f32.mrf.mxu0
  %v2034 = vpop.f32.mrf.mxu0
  %v2035 = vadd.f32 0.0, %v2034
  %v2036 = vpop.f32.mrf.mxu0
  %2037 = vmatprep.mubr.bf16.mxu0 %v1136
  %2038 = vmatmul.mubr.bf16.gmra.mxu0 %v1135
  %v2039 = vpop.f32.mrf.mxu0
  %v2040 = vadd.f32 0.0, %v2039
  %v2041 = vpop.f32.mrf.mxu0
  %v2042 = vpop.f32.mrf.mxu0
  %v2043 = vadd.f32 0.0, %v2042
  %v2044 = vpop.f32.mrf.mxu0
  %2045 = vmatprep.mubr.bf16.mxu0 %v1140
  %2046 = vmatmul.mubr.bf16.gmra.mxu0 %v1139
  %v2047 = vpop.f32.mrf.mxu0
  %v2048 = vadd.f32 0.0, %v2047
  %v2049 = vpop.f32.mrf.mxu0
  %v2050 = vpop.f32.mrf.mxu0
  %v2051 = vadd.f32 0.0, %v2050
  %v2052 = vpop.f32.mrf.mxu0
  %2053 = vmatprep.mubr.bf16.mxu0 %v1144
  %2054 = vmatmul.mubr.bf16.gmra.mxu0 %v1143
  %v2055 = vpop.f32.mrf.mxu0
  %v2056 = vadd.f32 0.0, %v2055
  %v2057 = vpop.f32.mrf.mxu0
  %v2058 = vpop.f32.mrf.mxu0
  %v2059 = vadd.f32 0.0, %v2058
  %v2060 = vpop.f32.mrf.mxu0
  %2061 = vmatprep.mubr.bf16.mxu0 %v1148
  %2062 = vmatmul.mubr.bf16.gmra.mxu0 %v1147
  %v2063 = vpop.f32.mrf.mxu0
  %v2064 = vadd.f32 0.0, %v2063
  %v2065 = vpop.f32.mrf.mxu0
  %v2066 = vpop.f32.mrf.mxu0
  %v2067 = vadd.f32 0.0, %v2066
  %v2068 = vpop.f32.mrf.mxu0
  %2069 = vmatprep.mubr.bf16.mxu0 %v1152
  %2070 = vmatmul.mubr.bf16.gmra.mxu0 %v1151
  %v2071 = vpop.f32.mrf.mxu0
  %v2072 = vadd.f32 0.0, %v2071
  %v2073 = vpop.f32.mrf.mxu0
  %v2074 = vpop.f32.mrf.mxu0
  %v2075 = vadd.f32 0.0, %v2074
  %v2076 = vpop.f32.mrf.mxu0
  %2077 = vmatprep.mubr.bf16.mxu0 %v1156
  %2078 = vmatmul.mubr.bf16.gmra.mxu0 %v1155
  %v2079 = vpop.f32.mrf.mxu0
  %v2080 = vadd.f32 0.0, %v2079
  %v2081 = vpop.f32.mrf.mxu0
  %v2082 = vpop.f32.mrf.mxu0
  %v2083 = vadd.f32 0.0, %v2082
  %v2084 = vpop.f32.mrf.mxu0
  %2085 = vmatprep.mubr.bf16.mxu0 %v1160
  %2086 = vmatmul.mubr.bf16.gmra.mxu0 %v1159
  %v2087 = vpop.f32.mrf.mxu0
  %v2088 = vadd.f32 0.0, %v2087
  %v2089 = vpop.f32.mrf.mxu0
  %v2090 = vpop.f32.mrf.mxu0
  %v2091 = vadd.f32 0.0, %v2090
  %v2092 = vpop.f32.mrf.mxu0
  %2093 = vmatprep.mubr.bf16.mxu0 %v1164
  %2094 = vmatmul.mubr.bf16.gmra.mxu0 %v1163
  %v2095 = vpop.f32.mrf.mxu0
  %v2096 = vadd.f32 0.0, %v2095
  %v2097 = vpop.f32.mrf.mxu0
  %v2098 = vpop.f32.mrf.mxu0
  %v2099 = vadd.f32 0.0, %v2098
  %v2100 = vpop.f32.mrf.mxu0
  %2101 = vmatprep.mubr.bf16.mxu0 %v1168
  %2102 = vmatmul.mubr.bf16.gmra.mxu0 %v1167
  %v2103 = vpop.f32.mrf.mxu0
  %v2104 = vadd.f32 0.0, %v2103
  %v2105 = vpop.f32.mrf.mxu0
  %v2106 = vpop.f32.mrf.mxu0
  %v2107 = vadd.f32 0.0, %v2106
  %v2108 = vpop.f32.mrf.mxu0
  %2109 = vmatprep.mubr.bf16.mxu0 %v1172
  %2110 = vmatmul.mubr.bf16.gmra.mxu0 %v1171
  %v2111 = vpop.f32.mrf.mxu0
  %v2112 = vadd.f32 0.0, %v2111
  %v2113 = vpop.f32.mrf.mxu0
  %v2114 = vpop.f32.mrf.mxu0
  %v2115 = vadd.f32 0.0, %v2114
  %v2116 = vpop.f32.mrf.mxu0
  %2117 = vmatprep.mubr.bf16.mxu0 %v1176
  %2118 = vmatmul.mubr.bf16.gmra.mxu0 %v1175
  %v2119 = vpop.f32.mrf.mxu0
  %v2120 = vadd.f32 0.0, %v2119
  %v2121 = vpop.f32.mrf.mxu0
  %v2122 = vpop.f32.mrf.mxu0
  %v2123 = vadd.f32 0.0, %v2122
  %v2124 = vpop.f32.mrf.mxu0
  %2125 = vmatprep.mubr.bf16.mxu0 %v1180
  %2126 = vmatmul.mubr.bf16.gmra.mxu0 %v1179
  %v2127 = vpop.f32.mrf.mxu0
  %v2128 = vadd.f32 0.0, %v2127
  %v2129 = vpop.f32.mrf.mxu0
  %v2130 = vpop.f32.mrf.mxu0
  %v2131 = vadd.f32 0.0, %v2130
  %v2132 = vpop.f32.mrf.mxu0
  %2133 = vmatprep.mubr.bf16.mxu0 %v1184
  %2134 = vmatmul.mubr.bf16.gmra.mxu0 %v1183
  %v2135 = vpop.f32.mrf.mxu0
  %v2136 = vadd.f32 0.0, %v2135
  %v2137 = vpop.f32.mrf.mxu0
  %v2138 = vpop.f32.mrf.mxu0
  %v2139 = vadd.f32 0.0, %v2138
  %v2140 = vpop.f32.mrf.mxu0
  %2141 = vmatprep.mubr.bf16.mxu0 %v1188
  %2142 = vmatmul.mubr.bf16.gmra.mxu0 %v1187
  %v2143 = vpop.f32.mrf.mxu0
  %v2144 = vadd.f32 0.0, %v2143
  %v2145 = vpop.f32.mrf.mxu0
  %v2146 = vpop.f32.mrf.mxu0
  %v2147 = vadd.f32 0.0, %v2146
  %v2148 = vpop.f32.mrf.mxu0
  %2149 = vmatprep.mubr.bf16.mxu0 %v1192
  %2150 = vmatmul.mubr.bf16.gmra.mxu0 %v1191
  %v2151 = vpop.f32.mrf.mxu0
  %v2152 = vadd.f32 0.0, %v2151
  %v2153 = vpop.f32.mrf.mxu0
  %v2154 = vpop.f32.mrf.mxu0
  %v2155 = vadd.f32 0.0, %v2154
  %v2156 = vpop.f32.mrf.mxu0
  %2157 = vmatprep.mubr.bf16.mxu0 %v1196
  %2158 = vmatmul.mubr.bf16.gmra.mxu0 %v1195
  %v2159 = vpop.f32.mrf.mxu0
  %v2160 = vadd.f32 0.0, %v2159
  %v2161 = vpop.f32.mrf.mxu0
  %v2162 = vpop.f32.mrf.mxu0
  %v2163 = vadd.f32 0.0, %v2162
  %v2164 = vpop.f32.mrf.mxu0
  %2165 = vmatprep.mubr.bf16.mxu0 %v1200
  %2166 = vmatmul.mubr.bf16.gmra.mxu0 %v1199
  %v2167 = vpop.f32.mrf.mxu0
  %v2168 = vadd.f32 0.0, %v2167
  %v2169 = vpop.f32.mrf.mxu0
  %v2170 = vpop.f32.mrf.mxu0
  %v2171 = vadd.f32 0.0, %v2170
  %v2172 = vpop.f32.mrf.mxu0
  %2173 = vmatprep.mubr.bf16.mxu0 %v1204
  %2174 = vmatmul.mubr.bf16.gmra.mxu0 %v1203
  %v2175 = vpop.f32.mrf.mxu0
  %v2176 = vadd.f32 0.0, %v2175
  %v2177 = vpop.f32.mrf.mxu0
  %v2178 = vpop.f32.mrf.mxu0
  %v2179 = vadd.f32 0.0, %v2178
  %v2180 = vpop.f32.mrf.mxu0
  %2181 = vmatprep.mubr.bf16.mxu0 %v1208
  %2182 = vmatmul.mubr.bf16.gmra.mxu0 %v1207
  %v2183 = vpop.f32.mrf.mxu0
  %v2184 = vadd.f32 0.0, %v2183
  %v2185 = vpop.f32.mrf.mxu0
  %v2186 = vpop.f32.mrf.mxu0
  %v2187 = vadd.f32 0.0, %v2186
  %v2188 = vpop.f32.mrf.mxu0
  %2189 = vmatprep.mubr.bf16.mxu0 %v1212
  %2190 = vmatmul.mubr.bf16.gmra.mxu0 %v1211
  %v2191 = vpop.f32.mrf.mxu0
  %v2192 = vadd.f32 0.0, %v2191
  %v2193 = vpop.f32.mrf.mxu0
  %v2194 = vpop.f32.mrf.mxu0
  %v2195 = vadd.f32 0.0, %v2194
  %v2196 = vpop.f32.mrf.mxu0
  %2197 = vmatprep.mubr.bf16.mxu0 %v1216
  %2198 = vmatmul.mubr.bf16.gmra.mxu0 %v1215
  %v2199 = vpop.f32.mrf.mxu0
  %v2200 = vadd.f32 0.0, %v2199
  %v2201 = vpop.f32.mrf.mxu0
  %v2202 = vpop.f32.mrf.mxu0
  %v2203 = vadd.f32 0.0, %v2202
  %v2204 = vpop.f32.mrf.mxu0
  %2205 = vmatprep.mubr.bf16.mxu0 %v1220
  %2206 = vmatmul.mubr.bf16.gmra.mxu0 %v1219
  %v2207 = vpop.f32.mrf.mxu0
  %v2208 = vadd.f32 0.0, %v2207
  %v2209 = vpop.f32.mrf.mxu0
  %v2210 = vpop.f32.mrf.mxu0
  %v2211 = vadd.f32 0.0, %v2210
  %v2212 = vpop.f32.mrf.mxu0
  %2213 = vmatprep.mubr.bf16.mxu0 %v1224
  %2214 = vmatmul.mubr.bf16.gmra.mxu0 %v1223
  %v2215 = vpop.f32.mrf.mxu0
  %v2216 = vadd.f32 0.0, %v2215
  %v2217 = vpop.f32.mrf.mxu0
  %v2218 = vpop.f32.mrf.mxu0
  %v2219 = vadd.f32 0.0, %v2218
  %v2220 = vpop.f32.mrf.mxu0
  %2221 = vmatprep.mubr.bf16.mxu0 %v1228
  %2222 = vmatmul.mubr.bf16.gmra.mxu0 %v1227
  %v2223 = vpop.f32.mrf.mxu0
  %v2224 = vadd.f32 0.0, %v2223
  %v2225 = vpop.f32.mrf.mxu0
  %v2226 = vpop.f32.mrf.mxu0
  %v2227 = vadd.f32 0.0, %v2226
  %v2228 = vpop.f32.mrf.mxu0
  %2229 = vmatprep.mubr.bf16.mxu0 %v1232
  %2230 = vmatmul.mubr.bf16.gmra.mxu0 %v1231
  %v2231 = vpop.f32.mrf.mxu0
  %v2232 = vadd.f32 0.0, %v2231
  %v2233 = vpop.f32.mrf.mxu0
  %v2234 = vpop.f32.mrf.mxu0
  %v2235 = vadd.f32 0.0, %v2234
  %v2236 = vpop.f32.mrf.mxu0
  %2237 = vmatprep.mubr.bf16.mxu0 %v1236
  %2238 = vmatmul.mubr.bf16.gmra.mxu0 %v1235
  %v2239 = vpop.f32.mrf.mxu0
  %v2240 = vadd.f32 0.0, %v2239
  %v2241 = vpop.f32.mrf.mxu0
  %v2242 = vpop.f32.mrf.mxu0
  %v2243 = vadd.f32 0.0, %v2242
  %v2244 = vpop.f32.mrf.mxu0
  %2245 = vmatprep.mubr.bf16.mxu0 %v1240
  %2246 = vmatmul.mubr.bf16.gmra.mxu0 %v1239
  %v2247 = vpop.f32.mrf.mxu0
  %v2248 = vadd.f32 0.0, %v2247
  %v2249 = vpop.f32.mrf.mxu0
  %v2250 = vpop.f32.mrf.mxu0
  %v2251 = vadd.f32 0.0, %v2250
  %v2252 = vpop.f32.mrf.mxu0
  %2253 = vmatprep.mubr.bf16.mxu0 %v1244
  %2254 = vmatmul.mubr.bf16.gmra.mxu0 %v1243
  %v2255 = vpop.f32.mrf.mxu0
  %v2256 = vadd.f32 0.0, %v2255
  %v2257 = vpop.f32.mrf.mxu0
  %v2258 = vpop.f32.mrf.mxu0
  %v2259 = vadd.f32 0.0, %v2258
  %v2260 = vpop.f32.mrf.mxu0
  %2261 = vmatprep.mubr.bf16.mxu0 %v1248
  %2262 = vmatmul.mubr.bf16.gmra.mxu0 %v1247
  %v2263 = vpop.f32.mrf.mxu0
  %v2264 = vadd.f32 0.0, %v2263
  %v2265 = vpop.f32.mrf.mxu0
  %v2266 = vpop.f32.mrf.mxu0
  %v2267 = vadd.f32 0.0, %v2266
  %v2268 = vpop.f32.mrf.mxu0
  %2269 = vmatprep.mubr.bf16.mxu0 %v1252
  %2270 = vmatmul.mubr.bf16.gmra.mxu0 %v1251
  %v2271 = vpop.f32.mrf.mxu0
  %v2272 = vadd.f32 0.0, %v2271
  %v2273 = vpop.f32.mrf.mxu0
  %v2274 = vpop.f32.mrf.mxu0
  %v2275 = vadd.f32 0.0, %v2274
  %v2276 = vpop.f32.mrf.mxu0
  %2277 = vmatprep.mubr.bf16.mxu0 %v1256
  %2278 = vmatmul.mubr.bf16.gmra.mxu0 %v1255
  %v2279 = vpop.f32.mrf.mxu0
  %v2280 = vadd.f32 0.0, %v2279
  %v2281 = vpop.f32.mrf.mxu0
  %v2282 = vpop.f32.mrf.mxu0
  %v2283 = vadd.f32 0.0, %v2282
  %v2284 = vpop.f32.mrf.mxu0
  %2285 = vmatprep.mubr.bf16.mxu0 %v1260
  %2286 = vmatmul.mubr.bf16.gmra.mxu0 %v1259
  %v2287 = vpop.f32.mrf.mxu0
  %v2288 = vadd.f32 0.0, %v2287
  %v2289 = vpop.f32.mrf.mxu0
  %v2290 = vpop.f32.mrf.mxu0
  %v2291 = vadd.f32 0.0, %v2290
  %v2292 = vpop.f32.mrf.mxu0
  %2293 = vmatprep.mubr.bf16.mxu0 %v1264
  %2294 = vmatmul.mubr.bf16.gmra.mxu0 %v1263
  %v2295 = vpop.f32.mrf.mxu0
  %v2296 = vadd.f32 0.0, %v2295
  %v2297 = vpop.f32.mrf.mxu0
  %v2298 = vpop.f32.mrf.mxu0
  %v2299 = vadd.f32 0.0, %v2298
  %v2300 = vpop.f32.mrf.mxu0
  %2301 = vmatprep.mubr.bf16.mxu0 %v1268
  %2302 = vmatmul.mubr.bf16.gmra.mxu0 %v1267
  %v2303 = vpop.f32.mrf.mxu0
  %v2304 = vadd.f32 0.0, %v2303
  %v2305 = vpop.f32.mrf.mxu0
  %v2306 = vpop.f32.mrf.mxu0
  %v2307 = vadd.f32 0.0, %v2306
  %v2308 = vpop.f32.mrf.mxu0
  %2309 = vmatprep.mubr.bf16.mxu0 %v1272
  %2310 = vmatmul.mubr.bf16.gmra.mxu0 %v1271
  %v2311 = vpop.f32.mrf.mxu0
  %v2312 = vadd.f32 0.0, %v2311
  %v2313 = vpop.f32.mrf.mxu0
  %v2314 = vpop.f32.mrf.mxu0
  %v2315 = vadd.f32 0.0, %v2314
  %v2316 = vpop.f32.mrf.mxu0
  %2317 = vmatprep.mubr.bf16.mxu0 %v1276
  %2318 = vmatmul.mubr.bf16.gmra.mxu0 %v1275
  %v2319 = vpop.f32.mrf.mxu0
  %v2320 = vadd.f32 0.0, %v2319
  %v2321 = vpop.f32.mrf.mxu0
  %v2322 = vpop.f32.mrf.mxu0
  %v2323 = vadd.f32 0.0, %v2322
  %v2324 = vpop.f32.mrf.mxu0
  %2325 = vmatprep.mubr.bf16.mxu0 %v1280
  %2326 = vmatmul.mubr.bf16.gmra.mxu0 %v1279
  %v2327 = vpop.f32.mrf.mxu0
  %v2328 = vadd.f32 0.0, %v2327
  %v2329 = vpop.f32.mrf.mxu0
  %v2330 = vpop.f32.mrf.mxu0
  %v2331 = vadd.f32 0.0, %v2330
  %v2332 = vpop.f32.mrf.mxu0
  %2333 = vmatprep.mubr.bf16.mxu0 %v1284
  %2334 = vmatmul.mubr.bf16.gmra.mxu0 %v1283
  %v2335 = vpop.f32.mrf.mxu0
  %v2336 = vadd.f32 0.0, %v2335
  %v2337 = vpop.f32.mrf.mxu0
  %v2338 = vpop.f32.mrf.mxu0
  %v2339 = vadd.f32 0.0, %v2338
  %v2340 = vpop.f32.mrf.mxu0
  %2341 = vmatprep.mubr.bf16.mxu0 %v1288
  %2342 = vmatmul.mubr.bf16.gmra.mxu0 %v1287
  %v2343 = vpop.f32.mrf.mxu0
  %v2344 = vadd.f32 0.0, %v2343
  %v2345 = vpop.f32.mrf.mxu0
  %v2346 = vpop.f32.mrf.mxu0
  %v2347 = vadd.f32 0.0, %v2346
  %v2348 = vpop.f32.mrf.mxu0
  %2349 = vmatprep.mubr.bf16.mxu0 %v1292
  %2350 = vmatmul.mubr.bf16.gmra.mxu0 %v1291
  %v2351 = vpop.f32.mrf.mxu0
  %v2352 = vadd.f32 0.0, %v2351
  %v2353 = vpop.f32.mrf.mxu0
  %v2354 = vpop.f32.mrf.mxu0
  %v2355 = vadd.f32 0.0, %v2354
  %v2356 = vpop.f32.mrf.mxu0
  %2357 = vmatprep.mubr.bf16.mxu0 %v1296
  %2358 = vmatmul.mubr.bf16.gmra.mxu0 %v1295
  %v2359 = vpop.f32.mrf.mxu0
  %v2360 = vadd.f32 0.0, %v2359
  %v2361 = vpop.f32.mrf.mxu0
  %v2362 = vpop.f32.mrf.mxu0
  %v2363 = vadd.f32 0.0, %v2362
  %v2364 = vpop.f32.mrf.mxu0
  %2365 = vmatprep.mubr.bf16.mxu0 %v1300
  %2366 = vmatmul.mubr.bf16.gmra.mxu0 %v1299
  %v2367 = vpop.f32.mrf.mxu0
  %v2368 = vadd.f32 0.0, %v2367
  %v2369 = vpop.f32.mrf.mxu0
  %v2370 = vpop.f32.mrf.mxu0
  %v2371 = vadd.f32 0.0, %v2370
  %v2372 = vpop.f32.mrf.mxu0
  %2373 = vmatprep.mubr.bf16.mxu0 %v1304
  %2374 = vmatmul.mubr.bf16.gmra.mxu0 %v1303
  %v2375 = vpop.f32.mrf.mxu0
  %v2376 = vadd.f32 0.0, %v2375
  %v2377 = vpop.f32.mrf.mxu0
  %v2378 = vpop.f32.mrf.mxu0
  %v2379 = vadd.f32 0.0, %v2378
  %v2380 = vpop.f32.mrf.mxu0
  %2381 = vmatprep.mubr.bf16.mxu0 %v1308
  %2382 = vmatmul.mubr.bf16.gmra.mxu0 %v1307
  %v2383 = vpop.f32.mrf.mxu0
  %v2384 = vadd.f32 0.0, %v2383
  %v2385 = vpop.f32.mrf.mxu0
  %v2386 = vpop.f32.mrf.mxu0
  %v2387 = vadd.f32 0.0, %v2386
  %v2388 = vpop.f32.mrf.mxu0
  %2389 = vmatprep.mubr.bf16.mxu0 %v1312
  %2390 = vmatmul.mubr.bf16.gmra.mxu0 %v1311
  %v2391 = vpop.f32.mrf.mxu0
  %v2392 = vadd.f32 0.0, %v2391
  %v2393 = vpop.f32.mrf.mxu0
  %v2394 = vpop.f32.mrf.mxu0
  %v2395 = vadd.f32 0.0, %v2394
  %v2396 = vpop.f32.mrf.mxu0
  %2397 = vmatprep.mubr.bf16.mxu0 %v1316
  %2398 = vmatmul.mubr.bf16.gmra.mxu0 %v1315
  %v2399 = vpop.f32.mrf.mxu0
  %v2400 = vadd.f32 0.0, %v2399
  %v2401 = vpop.f32.mrf.mxu0
  %v2402 = vpop.f32.mrf.mxu0
  %v2403 = vadd.f32 0.0, %v2402
  %v2404 = vpop.f32.mrf.mxu0
  %2405 = vmatprep.mubr.bf16.mxu0 %v1320
  %2406 = vmatmul.mubr.bf16.gmra.mxu0 %v1319
  %v2407 = vpop.f32.mrf.mxu0
  %v2408 = vadd.f32 0.0, %v2407
  %v2409 = vpop.f32.mrf.mxu0
  %v2410 = vpop.f32.mrf.mxu0
  %v2411 = vadd.f32 0.0, %v2410
  %v2412 = vpop.f32.mrf.mxu0
  %2413 = vmatprep.mubr.bf16.mxu0 %v1324
  %2414 = vmatmul.mubr.bf16.gmra.mxu0 %v1323
  %v2415 = vpop.f32.mrf.mxu0
  %v2416 = vadd.f32 0.0, %v2415
  %v2417 = vpop.f32.mrf.mxu0
  %v2418 = vpop.f32.mrf.mxu0
  %v2419 = vadd.f32 0.0, %v2418
  %v2420 = vpop.f32.mrf.mxu0
  %2421 = vmatprep.mubr.bf16.mxu0 %v1328
  %2422 = vmatmul.mubr.bf16.gmra.mxu0 %v1327
  %v2423 = vpop.f32.mrf.mxu0
  %v2424 = vadd.f32 0.0, %v2423
  %v2425 = vpop.f32.mrf.mxu0
  %v2426 = vpop.f32.mrf.mxu0
  %v2427 = vadd.f32 0.0, %v2426
  %v2428 = vpop.f32.mrf.mxu0
  %2429 = vmatprep.mubr.bf16.mxu0 %v1332
  %2430 = vmatmul.mubr.bf16.gmra.mxu0 %v1331
  %v2431 = vpop.f32.mrf.mxu0
  %v2432 = vadd.f32 0.0, %v2431
  %v2433 = vpop.f32.mrf.mxu0
  %v2434 = vpop.f32.mrf.mxu0
  %v2435 = vadd.f32 0.0, %v2434
  %v2436 = vpop.f32.mrf.mxu0
  %2437 = vmatprep.mubr.bf16.mxu0 %v1336
  %2438 = vmatmul.mubr.bf16.gmra.mxu0 %v1335
  %v2439 = vpop.f32.mrf.mxu0
  %v2440 = vadd.f32 0.0, %v2439
  %v2441 = vpop.f32.mrf.mxu0
  %v2442 = vpop.f32.mrf.mxu0
  %v2443 = vadd.f32 0.0, %v2442
  %v2444 = vpop.f32.mrf.mxu0
  %2445 = vmatprep.mubr.bf16.mxu0 %v1340
  %2446 = vmatmul.mubr.bf16.gmra.mxu0 %v1339
  %v2447 = vpop.f32.mrf.mxu0
  %v2448 = vadd.f32 0.0, %v2447
  %v2449 = vpop.f32.mrf.mxu0
  %v2450 = vpop.f32.mrf.mxu0
  %v2451 = vadd.f32 0.0, %v2450
  %v2452 = vpop.f32.mrf.mxu0
  %2453 = vmatprep.mubr.bf16.mxu0 %v1344
  %2454 = vmatmul.mubr.bf16.gmra.mxu0 %v1343
  %v2455 = vpop.f32.mrf.mxu0
  %v2456 = vadd.f32 0.0, %v2455
  %v2457 = vpop.f32.mrf.mxu0
  %v2458 = vpop.f32.mrf.mxu0
  %v2459 = vadd.f32 0.0, %v2458
  %v2460 = vpop.f32.mrf.mxu0
  %2461 = vmatprep.mubr.bf16.mxu0 %v1348
  %2462 = vmatmul.mubr.bf16.gmra.mxu0 %v1347
  %v2463 = vpop.f32.mrf.mxu0
  %v2464 = vadd.f32 0.0, %v2463
  %v2465 = vpop.f32.mrf.mxu0
  %v2466 = vpop.f32.mrf.mxu0
  %v2467 = vadd.f32 0.0, %v2466
  %v2468 = vpop.f32.mrf.mxu0
  %2469 = vmatprep.mubr.bf16.mxu0 %v1352
  %2470 = vmatmul.mubr.bf16.gmra.mxu0 %v1351
  %v2471 = vpop.f32.mrf.mxu0
  %v2472 = vadd.f32 0.0, %v2471
  %v2473 = vpop.f32.mrf.mxu0
  %v2474 = vpop.f32.mrf.mxu0
  %v2475 = vadd.f32 0.0, %v2474
  %v2476 = vpop.f32.mrf.mxu0
  %2477 = vdwg.mxu0
  %2478 = vmatprep.subr.bf16.mxu0 0
  %2479 = vmatpush1.bf16.msra.mxu0 %v1696
  %2480 = vmatprep.subr.bf16.mxu0 0
  %2481 = vmatpush1.bf16.msra.mxu0 %v1695
  %2482 = vmatprep.subr.bf16.mxu0 0
  %2483 = vmatpush1.bf16.msra.mxu0 %v1694
  %2484 = vmatprep.subr.bf16.mxu0 0
  %2485 = vmatpush1.bf16.msra.mxu0 %v1693
  %2486 = vmatprep.subr.bf16.mxu0 0
  %2487 = vmatpush1.bf16.msra.mxu0 %v1692
  %2488 = vmatprep.subr.bf16.mxu0 0
  %2489 = vmatpush1.bf16.msra.mxu0 %v1691
  %2490 = vmatprep.subr.bf16.mxu0 0
  %2491 = vmatpush1.bf16.msra.mxu0 %v1690
  %2492 = vmatprep.subr.bf16.mxu0 0
  %2493 = vmatpush1.bf16.msra.mxu0 %v1689
  %2494 = vmatprep.subr.bf16.mxu0 0
  %2495 = vmatpush2.bf16.msra.mxu0 %v1931
  %2496 = vmatprep.subr.bf16.mxu0 0
  %2497 = vmatpush2.bf16.msra.mxu0 %v1703
  %2498 = vmatprep.subr.bf16.mxu0 0
  %2499 = vmatpush2.bf16.msra.mxu0 %v1702
  %2500 = vmatprep.subr.bf16.mxu0 0
  %2501 = vmatpush2.bf16.msra.mxu0 %v1701
  %2502 = vmatprep.subr.bf16.mxu0 0
  %2503 = vmatpush2.bf16.msra.mxu0 %v1700
  %2504 = vmatprep.subr.bf16.mxu0 0
  %2505 = vmatpush2.bf16.msra.mxu0 %v1699
  %2506 = vmatprep.subr.bf16.mxu0 0
  %2507 = vmatpush2.bf16.msra.mxu0 %v1698
  %2508 = vmatprep.subr.bf16.mxu0 0
  %2509 = vmatpush2.bf16.msra.mxu0 %v1697
  %2510 = vmatprep.mubr.bf16.mxu0 %v1738
  %2511 = vmatmul.mubr.bf16.gmra.mxu0 %v1101
  %v2512 = vpop.f32.mrf.mxu0
  %v2513 = vadd.f32 %v1968, %v2512
  %v2514 = vpop.f32.mrf.mxu0
  %v2515 = vpop.f32.mrf.mxu0
  %v2516 = vadd.f32 %v1971, %v2515
  %v2517 = vpop.f32.mrf.mxu0
  %2518 = vmatprep.mubr.bf16.mxu0 %v1741
  %2519 = vmatmul.mubr.bf16.gmra.mxu0 %v1105
  %v2520 = vpop.f32.mrf.mxu0
  %v2521 = vadd.f32 %v1976, %v2520
  %v2522 = vpop.f32.mrf.mxu0
  %v2523 = vpop.f32.mrf.mxu0
  %v2524 = vadd.f32 %v1979, %v2523
  %v2525 = vpop.f32.mrf.mxu0
  %2526 = vmatprep.mubr.bf16.mxu0 %v1744
  %2527 = vmatmul.mubr.bf16.gmra.mxu0 %v1109
  %v2528 = vpop.f32.mrf.mxu0
  %v2529 = vadd.f32 %v1984, %v2528
  %v2530 = vpop.f32.mrf.mxu0
  %v2531 = vpop.f32.mrf.mxu0
  %v2532 = vadd.f32 %v1987, %v2531
  %v2533 = vpop.f32.mrf.mxu0
  %2534 = vmatprep.mubr.bf16.mxu0 %v1747
  %2535 = vmatmul.mubr.bf16.gmra.mxu0 %v1113
  %v2536 = vpop.f32.mrf.mxu0
  %v2537 = vadd.f32 %v1992, %v2536
  %v2538 = vpop.f32.mrf.mxu0
  %v2539 = vpop.f32.mrf.mxu0
  %v2540 = vadd.f32 %v1995, %v2539
  %v2541 = vpop.f32.mrf.mxu0
  %2542 = vmatprep.mubr.bf16.mxu0 %v1750
  %2543 = vmatmul.mubr.bf16.gmra.mxu0 %v1117
  %v2544 = vpop.f32.mrf.mxu0
  %v2545 = vadd.f32 %v2000, %v2544
  %v2546 = vpop.f32.mrf.mxu0
  %v2547 = vpop.f32.mrf.mxu0
  %v2548 = vadd.f32 %v2003, %v2547
  %v2549 = vpop.f32.mrf.mxu0
  %2550 = vmatprep.mubr.bf16.mxu0 %v1753
  %2551 = vmatmul.mubr.bf16.gmra.mxu0 %v1121
  %v2552 = vpop.f32.mrf.mxu0
  %v2553 = vadd.f32 %v2008, %v2552
  %v2554 = vpop.f32.mrf.mxu0
  %v2555 = vpop.f32.mrf.mxu0
  %v2556 = vadd.f32 %v2011, %v2555
  %v2557 = vpop.f32.mrf.mxu0
  %2558 = vmatprep.mubr.bf16.mxu0 %v1756
  %2559 = vmatmul.mubr.bf16.gmra.mxu0 %v1125
  %v2560 = vpop.f32.mrf.mxu0
  %v2561 = vadd.f32 %v2016, %v2560
  %v2562 = vpop.f32.mrf.mxu0
  %v2563 = vpop.f32.mrf.mxu0
  %v2564 = vadd.f32 %v2019, %v2563
  %v2565 = vpop.f32.mrf.mxu0
  %2566 = vmatprep.mubr.bf16.mxu0 %v1759
  %2567 = vmatmul.mubr.bf16.gmra.mxu0 %v1129
  %v2568 = vpop.f32.mrf.mxu0
  %v2569 = vadd.f32 %v2024, %v2568
  %v2570 = vpop.f32.mrf.mxu0
  %v2571 = vpop.f32.mrf.mxu0
  %v2572 = vadd.f32 %v2027, %v2571
  %v2573 = vpop.f32.mrf.mxu0
  %2574 = vmatprep.mubr.bf16.mxu0 %v1762
  %2575 = vmatmul.mubr.bf16.gmra.mxu0 %v1133
  %v2576 = vpop.f32.mrf.mxu0
  %v2577 = vadd.f32 %v2032, %v2576
  %v2578 = vpop.f32.mrf.mxu0
  %v2579 = vpop.f32.mrf.mxu0
  %v2580 = vadd.f32 %v2035, %v2579
  %v2581 = vpop.f32.mrf.mxu0
  %2582 = vmatprep.mubr.bf16.mxu0 %v1765
  %2583 = vmatmul.mubr.bf16.gmra.mxu0 %v1137
  %v2584 = vpop.f32.mrf.mxu0
  %v2585 = vadd.f32 %v2040, %v2584
  %v2586 = vpop.f32.mrf.mxu0
  %v2587 = vpop.f32.mrf.mxu0
  %v2588 = vadd.f32 %v2043, %v2587
  %v2589 = vpop.f32.mrf.mxu0
  %2590 = vmatprep.mubr.bf16.mxu0 %v1768
  %2591 = vmatmul.mubr.bf16.gmra.mxu0 %v1141
  %v2592 = vpop.f32.mrf.mxu0
  %v2593 = vadd.f32 %v2048, %v2592
  %v2594 = vpop.f32.mrf.mxu0
  %v2595 = vpop.f32.mrf.mxu0
  %v2596 = vadd.f32 %v2051, %v2595
  %v2597 = vpop.f32.mrf.mxu0
  %2598 = vmatprep.mubr.bf16.mxu0 %v1771
  %2599 = vmatmul.mubr.bf16.gmra.mxu0 %v1145
  %v2600 = vpop.f32.mrf.mxu0
  %v2601 = vadd.f32 %v2056, %v2600
  %v2602 = vpop.f32.mrf.mxu0
  %v2603 = vpop.f32.mrf.mxu0
  %v2604 = vadd.f32 %v2059, %v2603
  %v2605 = vpop.f32.mrf.mxu0
  %2606 = vmatprep.mubr.bf16.mxu0 %v1774
  %2607 = vmatmul.mubr.bf16.gmra.mxu0 %v1149
  %v2608 = vpop.f32.mrf.mxu0
  %v2609 = vadd.f32 %v2064, %v2608
  %v2610 = vpop.f32.mrf.mxu0
  %v2611 = vpop.f32.mrf.mxu0
  %v2612 = vadd.f32 %v2067, %v2611
  %v2613 = vpop.f32.mrf.mxu0
  %2614 = vmatprep.mubr.bf16.mxu0 %v1777
  %2615 = vmatmul.mubr.bf16.gmra.mxu0 %v1153
  %v2616 = vpop.f32.mrf.mxu0
  %v2617 = vadd.f32 %v2072, %v2616
  %v2618 = vpop.f32.mrf.mxu0
  %v2619 = vpop.f32.mrf.mxu0
  %v2620 = vadd.f32 %v2075, %v2619
  %v2621 = vpop.f32.mrf.mxu0
  %2622 = vmatprep.mubr.bf16.mxu0 %v1780
  %2623 = vmatmul.mubr.bf16.gmra.mxu0 %v1157
  %v2624 = vpop.f32.mrf.mxu0
  %v2625 = vadd.f32 %v2080, %v2624
  %v2626 = vpop.f32.mrf.mxu0
  %v2627 = vpop.f32.mrf.mxu0
  %v2628 = vadd.f32 %v2083, %v2627
  %v2629 = vpop.f32.mrf.mxu0
  %2630 = vmatprep.mubr.bf16.mxu0 %v1783
  %2631 = vmatmul.mubr.bf16.gmra.mxu0 %v1161
  %v2632 = vpop.f32.mrf.mxu0
  %v2633 = vadd.f32 %v2088, %v2632
  %v2634 = vpop.f32.mrf.mxu0
  %v2635 = vpop.f32.mrf.mxu0
  %v2636 = vadd.f32 %v2091, %v2635
  %v2637 = vpop.f32.mrf.mxu0
  %2638 = vmatprep.mubr.bf16.mxu0 %v1786
  %2639 = vmatmul.mubr.bf16.gmra.mxu0 %v1165
  %v2640 = vpop.f32.mrf.mxu0
  %v2641 = vadd.f32 %v2096, %v2640
  %v2642 = vpop.f32.mrf.mxu0
  %v2643 = vpop.f32.mrf.mxu0
  %v2644 = vadd.f32 %v2099, %v2643
  %v2645 = vpop.f32.mrf.mxu0
  %2646 = vmatprep.mubr.bf16.mxu0 %v1789
  %2647 = vmatmul.mubr.bf16.gmra.mxu0 %v1169
  %v2648 = vpop.f32.mrf.mxu0
  %v2649 = vadd.f32 %v2104, %v2648
  %v2650 = vpop.f32.mrf.mxu0
  %v2651 = vpop.f32.mrf.mxu0
  %v2652 = vadd.f32 %v2107, %v2651
  %v2653 = vpop.f32.mrf.mxu0
  %2654 = vmatprep.mubr.bf16.mxu0 %v1792
  %2655 = vmatmul.mubr.bf16.gmra.mxu0 %v1173
  %v2656 = vpop.f32.mrf.mxu0
  %v2657 = vadd.f32 %v2112, %v2656
  %v2658 = vpop.f32.mrf.mxu0
  %v2659 = vpop.f32.mrf.mxu0
  %v2660 = vadd.f32 %v2115, %v2659
  %v2661 = vpop.f32.mrf.mxu0
  %2662 = vmatprep.mubr.bf16.mxu0 %v1795
  %2663 = vmatmul.mubr.bf16.gmra.mxu0 %v1177
  %v2664 = vpop.f32.mrf.mxu0
  %v2665 = vadd.f32 %v2120, %v2664
  %v2666 = vpop.f32.mrf.mxu0
  %v2667 = vpop.f32.mrf.mxu0
  %v2668 = vadd.f32 %v2123, %v2667
  %v2669 = vpop.f32.mrf.mxu0
  %2670 = vmatprep.mubr.bf16.mxu0 %v1798
  %2671 = vmatmul.mubr.bf16.gmra.mxu0 %v1181
  %v2672 = vpop.f32.mrf.mxu0
  %v2673 = vadd.f32 %v2128, %v2672
  %v2674 = vpop.f32.mrf.mxu0
  %v2675 = vpop.f32.mrf.mxu0
  %v2676 = vadd.f32 %v2131, %v2675
  %v2677 = vpop.f32.mrf.mxu0
  %2678 = vmatprep.mubr.bf16.mxu0 %v1801
  %2679 = vmatmul.mubr.bf16.gmra.mxu0 %v1185
  %v2680 = vpop.f32.mrf.mxu0
  %v2681 = vadd.f32 %v2136, %v2680
  %v2682 = vpop.f32.mrf.mxu0
  %v2683 = vpop.f32.mrf.mxu0
  %v2684 = vadd.f32 %v2139, %v2683
  %v2685 = vpop.f32.mrf.mxu0
  %2686 = vmatprep.mubr.bf16.mxu0 %v1804
  %2687 = vmatmul.mubr.bf16.gmra.mxu0 %v1189
  %v2688 = vpop.f32.mrf.mxu0
  %v2689 = vadd.f32 %v2144, %v2688
  %v2690 = vpop.f32.mrf.mxu0
  %v2691 = vpop.f32.mrf.mxu0
  %v2692 = vadd.f32 %v2147, %v2691
  %v2693 = vpop.f32.mrf.mxu0
  %2694 = vmatprep.mubr.bf16.mxu0 %v1807
  %2695 = vmatmul.mubr.bf16.gmra.mxu0 %v1193
  %v2696 = vpop.f32.mrf.mxu0
  %v2697 = vadd.f32 %v2152, %v2696
  %v2698 = vpop.f32.mrf.mxu0
  %v2699 = vpop.f32.mrf.mxu0
  %v2700 = vadd.f32 %v2155, %v2699
  %v2701 = vpop.f32.mrf.mxu0
  %2702 = vmatprep.mubr.bf16.mxu0 %v1810
  %2703 = vmatmul.mubr.bf16.gmra.mxu0 %v1197
  %v2704 = vpop.f32.mrf.mxu0
  %v2705 = vadd.f32 %v2160, %v2704
  %v2706 = vpop.f32.mrf.mxu0
  %v2707 = vpop.f32.mrf.mxu0
  %v2708 = vadd.f32 %v2163, %v2707
  %v2709 = vpop.f32.mrf.mxu0
  %2710 = vmatprep.mubr.bf16.mxu0 %v1813
  %2711 = vmatmul.mubr.bf16.gmra.mxu0 %v1201
  %v2712 = vpop.f32.mrf.mxu0
  %v2713 = vadd.f32 %v2168, %v2712
  %v2714 = vpop.f32.mrf.mxu0
  %v2715 = vpop.f32.mrf.mxu0
  %v2716 = vadd.f32 %v2171, %v2715
  %v2717 = vpop.f32.mrf.mxu0
  %2718 = vmatprep.mubr.bf16.mxu0 %v1816
  %2719 = vmatmul.mubr.bf16.gmra.mxu0 %v1205
  %v2720 = vpop.f32.mrf.mxu0
  %v2721 = vadd.f32 %v2176, %v2720
  %v2722 = vpop.f32.mrf.mxu0
  %v2723 = vpop.f32.mrf.mxu0
  %v2724 = vadd.f32 %v2179, %v2723
  %v2725 = vpop.f32.mrf.mxu0
  %2726 = vmatprep.mubr.bf16.mxu0 %v1819
  %2727 = vmatmul.mubr.bf16.gmra.mxu0 %v1209
  %v2728 = vpop.f32.mrf.mxu0
  %v2729 = vadd.f32 %v2184, %v2728
  %v2730 = vpop.f32.mrf.mxu0
  %v2731 = vpop.f32.mrf.mxu0
  %v2732 = vadd.f32 %v2187, %v2731
  %v2733 = vpop.f32.mrf.mxu0
  %2734 = vmatprep.mubr.bf16.mxu0 %v1822
  %2735 = vmatmul.mubr.bf16.gmra.mxu0 %v1213
  %v2736 = vpop.f32.mrf.mxu0
  %v2737 = vadd.f32 %v2192, %v2736
  %v2738 = vpop.f32.mrf.mxu0
  %v2739 = vpop.f32.mrf.mxu0
  %v2740 = vadd.f32 %v2195, %v2739
  %v2741 = vpop.f32.mrf.mxu0
  %2742 = vmatprep.mubr.bf16.mxu0 %v1825
  %2743 = vmatmul.mubr.bf16.gmra.mxu0 %v1217
  %v2744 = vpop.f32.mrf.mxu0
  %v2745 = vadd.f32 %v2200, %v2744
  %v2746 = vpop.f32.mrf.mxu0
  %v2747 = vpop.f32.mrf.mxu0
  %v2748 = vadd.f32 %v2203, %v2747
  %v2749 = vpop.f32.mrf.mxu0
  %2750 = vmatprep.mubr.bf16.mxu0 %v1828
  %2751 = vmatmul.mubr.bf16.gmra.mxu0 %v1221
  %v2752 = vpop.f32.mrf.mxu0
  %v2753 = vadd.f32 %v2208, %v2752
  %v2754 = vpop.f32.mrf.mxu0
  %v2755 = vpop.f32.mrf.mxu0
  %v2756 = vadd.f32 %v2211, %v2755
  %v2757 = vpop.f32.mrf.mxu0
  %2758 = vmatprep.mubr.bf16.mxu0 %v1831
  %2759 = vmatmul.mubr.bf16.gmra.mxu0 %v1225
  %v2760 = vpop.f32.mrf.mxu0
  %v2761 = vadd.f32 %v2216, %v2760
  %v2762 = vpop.f32.mrf.mxu0
  %v2763 = vpop.f32.mrf.mxu0
  %v2764 = vadd.f32 %v2219, %v2763
  %v2765 = vpop.f32.mrf.mxu0
  %2766 = vmatprep.mubr.bf16.mxu0 %v1834
  %2767 = vmatmul.mubr.bf16.gmra.mxu0 %v1229
  %v2768 = vpop.f32.mrf.mxu0
  %v2769 = vadd.f32 %v2224, %v2768
  %v2770 = vpop.f32.mrf.mxu0
  %v2771 = vpop.f32.mrf.mxu0
  %v2772 = vadd.f32 %v2227, %v2771
  %v2773 = vpop.f32.mrf.mxu0
  %2774 = vmatprep.mubr.bf16.mxu0 %v1837
  %2775 = vmatmul.mubr.bf16.gmra.mxu0 %v1233
  %v2776 = vpop.f32.mrf.mxu0
  %v2777 = vadd.f32 %v2232, %v2776
  %v2778 = vpop.f32.mrf.mxu0
  %v2779 = vpop.f32.mrf.mxu0
  %v2780 = vadd.f32 %v2235, %v2779
  %v2781 = vpop.f32.mrf.mxu0
  %2782 = vmatprep.mubr.bf16.mxu0 %v1840
  %2783 = vmatmul.mubr.bf16.gmra.mxu0 %v1237
  %v2784 = vpop.f32.mrf.mxu0
  %v2785 = vadd.f32 %v2240, %v2784
  %v2786 = vpop.f32.mrf.mxu0
  %v2787 = vpop.f32.mrf.mxu0
  %v2788 = vadd.f32 %v2243, %v2787
  %v2789 = vpop.f32.mrf.mxu0
  %2790 = vmatprep.mubr.bf16.mxu0 %v1843
  %2791 = vmatmul.mubr.bf16.gmra.mxu0 %v1241
  %v2792 = vpop.f32.mrf.mxu0
  %v2793 = vadd.f32 %v2248, %v2792
  %v2794 = vpop.f32.mrf.mxu0
  %v2795 = vpop.f32.mrf.mxu0
  %v2796 = vadd.f32 %v2251, %v2795
  %v2797 = vpop.f32.mrf.mxu0
  %2798 = vmatprep.mubr.bf16.mxu0 %v1846
  %2799 = vmatmul.mubr.bf16.gmra.mxu0 %v1245
  %v2800 = vpop.f32.mrf.mxu0
  %v2801 = vadd.f32 %v2256, %v2800
  %v2802 = vpop.f32.mrf.mxu0
  %v2803 = vpop.f32.mrf.mxu0
  %v2804 = vadd.f32 %v2259, %v2803
  %v2805 = vpop.f32.mrf.mxu0
  %2806 = vmatprep.mubr.bf16.mxu0 %v1849
  %2807 = vmatmul.mubr.bf16.gmra.mxu0 %v1249
  %v2808 = vpop.f32.mrf.mxu0
  %v2809 = vadd.f32 %v2264, %v2808
  %v2810 = vpop.f32.mrf.mxu0
  %v2811 = vpop.f32.mrf.mxu0
  %v2812 = vadd.f32 %v2267, %v2811
  %v2813 = vpop.f32.mrf.mxu0
  %2814 = vmatprep.mubr.bf16.mxu0 %v1852
  %2815 = vmatmul.mubr.bf16.gmra.mxu0 %v1253
  %v2816 = vpop.f32.mrf.mxu0
  %v2817 = vadd.f32 %v2272, %v2816
  %v2818 = vpop.f32.mrf.mxu0
  %v2819 = vpop.f32.mrf.mxu0
  %v2820 = vadd.f32 %v2275, %v2819
  %v2821 = vpop.f32.mrf.mxu0
  %2822 = vmatprep.mubr.bf16.mxu0 %v1855
  %2823 = vmatmul.mubr.bf16.gmra.mxu0 %v1257
  %v2824 = vpop.f32.mrf.mxu0
  %v2825 = vadd.f32 %v2280, %v2824
  %v2826 = vpop.f32.mrf.mxu0
  %v2827 = vpop.f32.mrf.mxu0
  %v2828 = vadd.f32 %v2283, %v2827
  %v2829 = vpop.f32.mrf.mxu0
  %2830 = vmatprep.mubr.bf16.mxu0 %v1858
  %2831 = vmatmul.mubr.bf16.gmra.mxu0 %v1261
  %v2832 = vpop.f32.mrf.mxu0
  %v2833 = vadd.f32 %v2288, %v2832
  %v2834 = vpop.f32.mrf.mxu0
  %v2835 = vpop.f32.mrf.mxu0
  %v2836 = vadd.f32 %v2291, %v2835
  %v2837 = vpop.f32.mrf.mxu0
  %2838 = vmatprep.mubr.bf16.mxu0 %v1861
  %2839 = vmatmul.mubr.bf16.gmra.mxu0 %v1265
  %v2840 = vpop.f32.mrf.mxu0
  %v2841 = vadd.f32 %v2296, %v2840
  %v2842 = vpop.f32.mrf.mxu0
  %v2843 = vpop.f32.mrf.mxu0
  %v2844 = vadd.f32 %v2299, %v2843
  %v2845 = vpop.f32.mrf.mxu0
  %2846 = vmatprep.mubr.bf16.mxu0 %v1864
  %2847 = vmatmul.mubr.bf16.gmra.mxu0 %v1269
  %v2848 = vpop.f32.mrf.mxu0
  %v2849 = vadd.f32 %v2304, %v2848
  %v2850 = vpop.f32.mrf.mxu0
  %v2851 = vpop.f32.mrf.mxu0
  %v2852 = vadd.f32 %v2307, %v2851
  %v2853 = vpop.f32.mrf.mxu0
  %2854 = vmatprep.mubr.bf16.mxu0 %v1867
  %2855 = vmatmul.mubr.bf16.gmra.mxu0 %v1273
  %v2856 = vpop.f32.mrf.mxu0
  %v2857 = vadd.f32 %v2312, %v2856
  %v2858 = vpop.f32.mrf.mxu0
  %v2859 = vpop.f32.mrf.mxu0
  %v2860 = vadd.f32 %v2315, %v2859
  %v2861 = vpop.f32.mrf.mxu0
  %2862 = vmatprep.mubr.bf16.mxu0 %v1870
  %2863 = vmatmul.mubr.bf16.gmra.mxu0 %v1277
  %v2864 = vpop.f32.mrf.mxu0
  %v2865 = vadd.f32 %v2320, %v2864
  %v2866 = vpop.f32.mrf.mxu0
  %v2867 = vpop.f32.mrf.mxu0
  %v2868 = vadd.f32 %v2323, %v2867
  %v2869 = vpop.f32.mrf.mxu0
  %2870 = vmatprep.mubr.bf16.mxu0 %v1873
  %2871 = vmatmul.mubr.bf16.gmra.mxu0 %v1281
  %v2872 = vpop.f32.mrf.mxu0
  %v2873 = vadd.f32 %v2328, %v2872
  %v2874 = vpop.f32.mrf.mxu0
  %v2875 = vpop.f32.mrf.mxu0
  %v2876 = vadd.f32 %v2331, %v2875
  %v2877 = vpop.f32.mrf.mxu0
  %2878 = vmatprep.mubr.bf16.mxu0 %v1876
  %2879 = vmatmul.mubr.bf16.gmra.mxu0 %v1285
  %v2880 = vpop.f32.mrf.mxu0
  %v2881 = vadd.f32 %v2336, %v2880
  %v2882 = vpop.f32.mrf.mxu0
  %v2883 = vpop.f32.mrf.mxu0
  %v2884 = vadd.f32 %v2339, %v2883
  %v2885 = vpop.f32.mrf.mxu0
  %2886 = vmatprep.mubr.bf16.mxu0 %v1879
  %2887 = vmatmul.mubr.bf16.gmra.mxu0 %v1289
  %v2888 = vpop.f32.mrf.mxu0
  %v2889 = vadd.f32 %v2344, %v2888
  %v2890 = vpop.f32.mrf.mxu0
  %v2891 = vpop.f32.mrf.mxu0
  %v2892 = vadd.f32 %v2347, %v2891
  %v2893 = vpop.f32.mrf.mxu0
  %2894 = vmatprep.mubr.bf16.mxu0 %v1882
  %2895 = vmatmul.mubr.bf16.gmra.mxu0 %v1293
  %v2896 = vpop.f32.mrf.mxu0
  %v2897 = vadd.f32 %v2352, %v2896
  %v2898 = vpop.f32.mrf.mxu0
  %v2899 = vpop.f32.mrf.mxu0
  %v2900 = vadd.f32 %v2355, %v2899
  %v2901 = vpop.f32.mrf.mxu0
  %2902 = vmatprep.mubr.bf16.mxu0 %v1885
  %2903 = vmatmul.mubr.bf16.gmra.mxu0 %v1297
  %v2904 = vpop.f32.mrf.mxu0
  %v2905 = vadd.f32 %v2360, %v2904
  %v2906 = vpop.f32.mrf.mxu0
  %v2907 = vpop.f32.mrf.mxu0
  %v2908 = vadd.f32 %v2363, %v2907
  %v2909 = vpop.f32.mrf.mxu0
  %2910 = vmatprep.mubr.bf16.mxu0 %v1888
  %2911 = vmatmul.mubr.bf16.gmra.mxu0 %v1301
  %v2912 = vpop.f32.mrf.mxu0
  %v2913 = vadd.f32 %v2368, %v2912
  %v2914 = vpop.f32.mrf.mxu0
  %v2915 = vpop.f32.mrf.mxu0
  %v2916 = vadd.f32 %v2371, %v2915
  %v2917 = vpop.f32.mrf.mxu0
  %2918 = vmatprep.mubr.bf16.mxu0 %v1891
  %2919 = vmatmul.mubr.bf16.gmra.mxu0 %v1305
  %v2920 = vpop.f32.mrf.mxu0
  %v2921 = vadd.f32 %v2376, %v2920
  %v2922 = vpop.f32.mrf.mxu0
  %v2923 = vpop.f32.mrf.mxu0
  %v2924 = vadd.f32 %v2379, %v2923
  %v2925 = vpop.f32.mrf.mxu0
  %2926 = vmatprep.mubr.bf16.mxu0 %v1894
  %2927 = vmatmul.mubr.bf16.gmra.mxu0 %v1309
  %v2928 = vpop.f32.mrf.mxu0
  %v2929 = vadd.f32 %v2384, %v2928
  %v2930 = vpop.f32.mrf.mxu0
  %v2931 = vpop.f32.mrf.mxu0
  %v2932 = vadd.f32 %v2387, %v2931
  %v2933 = vpop.f32.mrf.mxu0
  %2934 = vmatprep.mubr.bf16.mxu0 %v1897
  %2935 = vmatmul.mubr.bf16.gmra.mxu0 %v1313
  %v2936 = vpop.f32.mrf.mxu0
  %v2937 = vadd.f32 %v2392, %v2936
  %v2938 = vpop.f32.mrf.mxu0
  %v2939 = vpop.f32.mrf.mxu0
  %v2940 = vadd.f32 %v2395, %v2939
  %v2941 = vpop.f32.mrf.mxu0
  %2942 = vmatprep.mubr.bf16.mxu0 %v1900
  %2943 = vmatmul.mubr.bf16.gmra.mxu0 %v1317
  %v2944 = vpop.f32.mrf.mxu0
  %v2945 = vadd.f32 %v2400, %v2944
  %v2946 = vpop.f32.mrf.mxu0
  %v2947 = vpop.f32.mrf.mxu0
  %v2948 = vadd.f32 %v2403, %v2947
  %v2949 = vpop.f32.mrf.mxu0
  %2950 = vmatprep.mubr.bf16.mxu0 %v1903
  %2951 = vmatmul.mubr.bf16.gmra.mxu0 %v1321
  %v2952 = vpop.f32.mrf.mxu0
  %v2953 = vadd.f32 %v2408, %v2952
  %v2954 = vpop.f32.mrf.mxu0
  %v2955 = vpop.f32.mrf.mxu0
  %v2956 = vadd.f32 %v2411, %v2955
  %v2957 = vpop.f32.mrf.mxu0
  %2958 = vmatprep.mubr.bf16.mxu0 %v1906
  %2959 = vmatmul.mubr.bf16.gmra.mxu0 %v1325
  %v2960 = vpop.f32.mrf.mxu0
  %v2961 = vadd.f32 %v2416, %v2960
  %v2962 = vpop.f32.mrf.mxu0
  %v2963 = vpop.f32.mrf.mxu0
  %v2964 = vadd.f32 %v2419, %v2963
  %v2965 = vpop.f32.mrf.mxu0
  %2966 = vmatprep.mubr.bf16.mxu0 %v1909
  %2967 = vmatmul.mubr.bf16.gmra.mxu0 %v1329
  %v2968 = vpop.f32.mrf.mxu0
  %v2969 = vadd.f32 %v2424, %v2968
  %v2970 = vpop.f32.mrf.mxu0
  %v2971 = vpop.f32.mrf.mxu0
  %v2972 = vadd.f32 %v2427, %v2971
  %v2973 = vpop.f32.mrf.mxu0
  %2974 = vmatprep.mubr.bf16.mxu0 %v1912
  %2975 = vmatmul.mubr.bf16.gmra.mxu0 %v1333
  %v2976 = vpop.f32.mrf.mxu0
  %v2977 = vadd.f32 %v2432, %v2976
  %v2978 = vpop.f32.mrf.mxu0
  %v2979 = vpop.f32.mrf.mxu0
  %v2980 = vadd.f32 %v2435, %v2979
  %v2981 = vpop.f32.mrf.mxu0
  %2982 = vmatprep.mubr.bf16.mxu0 %v1915
  %2983 = vmatmul.mubr.bf16.gmra.mxu0 %v1337
  %v2984 = vpop.f32.mrf.mxu0
  %v2985 = vadd.f32 %v2440, %v2984
  %v2986 = vpop.f32.mrf.mxu0
  %v2987 = vpop.f32.mrf.mxu0
  %v2988 = vadd.f32 %v2443, %v2987
  %v2989 = vpop.f32.mrf.mxu0
  %2990 = vmatprep.mubr.bf16.mxu0 %v1918
  %2991 = vmatmul.mubr.bf16.gmra.mxu0 %v1341
  %v2992 = vpop.f32.mrf.mxu0
  %v2993 = vadd.f32 %v2448, %v2992
  %v2994 = vpop.f32.mrf.mxu0
  %v2995 = vpop.f32.mrf.mxu0
  %v2996 = vadd.f32 %v2451, %v2995
  %v2997 = vpop.f32.mrf.mxu0
  %2998 = vmatprep.mubr.bf16.mxu0 %v1921
  %2999 = vmatmul.mubr.bf16.gmra.mxu0 %v1345
  %v3000 = vpop.f32.mrf.mxu0
  %v3001 = vadd.f32 %v2456, %v3000
  %v3002 = vpop.f32.mrf.mxu0
  %v3003 = vpop.f32.mrf.mxu0
  %v3004 = vadd.f32 %v2459, %v3003
  %v3005 = vpop.f32.mrf.mxu0
  %3006 = vmatprep.mubr.bf16.mxu0 %v1924
  %3007 = vmatmul.mubr.bf16.gmra.mxu0 %v1349
  %v3008 = vpop.f32.mrf.mxu0
  %v3009 = vadd.f32 %v2464, %v3008
  %v3010 = vpop.f32.mrf.mxu0
  %v3011 = vpop.f32.mrf.mxu0
  %v3012 = vadd.f32 %v2467, %v3011
  %v3013 = vpop.f32.mrf.mxu0
  %3014 = vmatprep.mubr.bf16.mxu0 %v1927
  %3015 = vmatmul.mubr.bf16.gmra.mxu0 %v1353
  %v3016 = vpop.f32.mrf.mxu0
  %v3017 = vadd.f32 %v2472, %v3016
  %v3018 = vpop.f32.mrf.mxu0
  %v3019 = vpop.f32.mrf.mxu0
  %v3020 = vadd.f32 %v2475, %v3019
  %v3021 = vpop.f32.mrf.mxu0
  %3022 = vdwg.mxu0
  %vm3023 = vcmask 523264
  %v3024 = vsel %vm3023, %v2513, 0.0
  %v3025 = vsel %vm3023, %v2516, 0.0
  %v3026 = vadd.f32 %v3024, %v3025
  %v3027 = vsel %vm3023, %v2521, 0.0
  %v3028 = vadd.f32 %v3026, %v3027
  %v3029 = vsel %vm3023, %v2524, 0.0
  %v3030 = vadd.f32 %v3028, %v3029
  %v3031 = vsel %vm3023, %v2529, 0.0
  %v3032 = vadd.f32 %v3030, %v3031
  %v3033 = vsel %vm3023, %v2532, 0.0
  %v3034 = vadd.f32 %v3032, %v3033
  %v3035 = vsel %vm3023, %v2537, 0.0
  %v3036 = vadd.f32 %v3034, %v3035
  %v3037 = vsel %vm3023, %v2540, 0.0
  %v3038 = vadd.f32 %v3036, %v3037
  %v3039 = vsel %vm3023, %v2545, 0.0
  %v3040 = vadd.f32 %v3038, %v3039
  %v3041 = vsel %vm3023, %v2548, 0.0
  %v3042 = vadd.f32 %v3040, %v3041
  %v3043 = vsel %vm3023, %v2553, 0.0
  %v3044 = vadd.f32 %v3042, %v3043
  %v3045 = vsel %vm3023, %v2556, 0.0
  %v3046 = vadd.f32 %v3044, %v3045
  %v3047 = vsel %vm3023, %v2561, 0.0
  %v3048 = vadd.f32 %v3046, %v3047
  %v3049 = vsel %vm3023, %v2564, 0.0
  %v3050 = vadd.f32 %v3048, %v3049
  %v3051 = vsel %vm3023, %v2569, 0.0
  %v3052 = vadd.f32 %v3050, %v3051
  %v3053 = vsel %vm3023, %v2572, 0.0
  %v3054 = vadd.f32 %v3052, %v3053
  %v3055 = vsel %vm3023, %v2577, 0.0
  %v3056 = vadd.f32 %v3054, %v3055
  %v3057 = vsel %vm3023, %v2580, 0.0
  %v3058 = vadd.f32 %v3056, %v3057
  %v3059 = vsel %vm3023, %v2585, 0.0
  %v3060 = vadd.f32 %v3058, %v3059
  %v3061 = vsel %vm3023, %v2588, 0.0
  %v3062 = vadd.f32 %v3060, %v3061
  %v3063 = vsel %vm3023, %v2593, 0.0
  %v3064 = vadd.f32 %v3062, %v3063
  %v3065 = vsel %vm3023, %v2596, 0.0
  %v3066 = vadd.f32 %v3064, %v3065
  %v3067 = vsel %vm3023, %v2601, 0.0
  %v3068 = vadd.f32 %v3066, %v3067
  %v3069 = vsel %vm3023, %v2604, 0.0
  %v3070 = vadd.f32 %v3068, %v3069
  %v3071 = vsel %vm3023, %v2609, 0.0
  %v3072 = vadd.f32 %v3070, %v3071
  %v3073 = vsel %vm3023, %v2612, 0.0
  %v3074 = vadd.f32 %v3072, %v3073
  %v3075 = vsel %vm3023, %v2617, 0.0
  %v3076 = vadd.f32 %v3074, %v3075
  %v3077 = vsel %vm3023, %v2620, 0.0
  %v3078 = vadd.f32 %v3076, %v3077
  %v3079 = vsel %vm3023, %v2625, 0.0
  %v3080 = vadd.f32 %v3078, %v3079
  %v3081 = vsel %vm3023, %v2628, 0.0
  %v3082 = vadd.f32 %v3080, %v3081
  %v3083 = vsel %vm3023, %v2633, 0.0
  %v3084 = vadd.f32 %v3082, %v3083
  %v3085 = vsel %vm3023, %v2636, 0.0
  %v3086 = vadd.f32 %v3084, %v3085
  %v3087 = vsel %vm3023, %v2641, 0.0
  %v3088 = vadd.f32 %v3086, %v3087
  %v3089 = vsel %vm3023, %v2644, 0.0
  %v3090 = vadd.f32 %v3088, %v3089
  %v3091 = vsel %vm3023, %v2649, 0.0
  %v3092 = vadd.f32 %v3090, %v3091
  %v3093 = vsel %vm3023, %v2652, 0.0
  %v3094 = vadd.f32 %v3092, %v3093
  %v3095 = vsel %vm3023, %v2657, 0.0
  %v3096 = vadd.f32 %v3094, %v3095
  %v3097 = vsel %vm3023, %v2660, 0.0
  %v3098 = vadd.f32 %v3096, %v3097
  %v3099 = vsel %vm3023, %v2665, 0.0
  %v3100 = vadd.f32 %v3098, %v3099
  %v3101 = vsel %vm3023, %v2668, 0.0
  %v3102 = vadd.f32 %v3100, %v3101
  %v3103 = vsel %vm3023, %v2673, 0.0
  %v3104 = vadd.f32 %v3102, %v3103
  %v3105 = vsel %vm3023, %v2676, 0.0
  %v3106 = vadd.f32 %v3104, %v3105
  %v3107 = vsel %vm3023, %v2681, 0.0
  %v3108 = vadd.f32 %v3106, %v3107
  %v3109 = vsel %vm3023, %v2684, 0.0
  %v3110 = vadd.f32 %v3108, %v3109
  %v3111 = vsel %vm3023, %v2689, 0.0
  %v3112 = vadd.f32 %v3110, %v3111
  %v3113 = vsel %vm3023, %v2692, 0.0
  %v3114 = vadd.f32 %v3112, %v3113
  %v3115 = vsel %vm3023, %v2697, 0.0
  %v3116 = vadd.f32 %v3114, %v3115
  %v3117 = vsel %vm3023, %v2700, 0.0
  %v3118 = vadd.f32 %v3116, %v3117
  %v3119 = vsel %vm3023, %v2705, 0.0
  %v3120 = vadd.f32 %v3118, %v3119
  %v3121 = vsel %vm3023, %v2708, 0.0
  %v3122 = vadd.f32 %v3120, %v3121
  %v3123 = vsel %vm3023, %v2713, 0.0
  %v3124 = vadd.f32 %v3122, %v3123
  %v3125 = vsel %vm3023, %v2716, 0.0
  %v3126 = vadd.f32 %v3124, %v3125
  %v3127 = vsel %vm3023, %v2721, 0.0
  %v3128 = vadd.f32 %v3126, %v3127
  %v3129 = vsel %vm3023, %v2724, 0.0
  %v3130 = vadd.f32 %v3128, %v3129
  %v3131 = vsel %vm3023, %v2729, 0.0
  %v3132 = vadd.f32 %v3130, %v3131
  %v3133 = vsel %vm3023, %v2732, 0.0
  %v3134 = vadd.f32 %v3132, %v3133
  %v3135 = vsel %vm3023, %v2737, 0.0
  %v3136 = vadd.f32 %v3134, %v3135
  %v3137 = vsel %vm3023, %v2740, 0.0
  %v3138 = vadd.f32 %v3136, %v3137
  %v3139 = vsel %vm3023, %v2745, 0.0
  %v3140 = vadd.f32 %v3138, %v3139
  %v3141 = vsel %vm3023, %v2748, 0.0
  %v3142 = vadd.f32 %v3140, %v3141
  %v3143 = vsel %vm3023, %v2753, 0.0
  %v3144 = vadd.f32 %v3142, %v3143
  %v3145 = vsel %vm3023, %v2756, 0.0
  %v3146 = vadd.f32 %v3144, %v3145
  %v3147 = vsel %vm3023, %v2761, 0.0
  %v3148 = vadd.f32 %v3146, %v3147
  %v3149 = vsel %vm3023, %v2764, 0.0
  %v3150 = vadd.f32 %v3148, %v3149
  %v3151 = vsel %vm3023, %v2769, 0.0
  %v3152 = vadd.f32 %v3150, %v3151
  %v3153 = vsel %vm3023, %v2772, 0.0
  %v3154 = vadd.f32 %v3152, %v3153
  %v3155 = vsel %vm3023, %v2777, 0.0
  %v3156 = vadd.f32 %v3154, %v3155
  %v3157 = vsel %vm3023, %v2780, 0.0
  %v3158 = vadd.f32 %v3156, %v3157
  %v3159 = vsel %vm3023, %v2785, 0.0
  %v3160 = vadd.f32 %v3158, %v3159
  %v3161 = vsel %vm3023, %v2788, 0.0
  %v3162 = vadd.f32 %v3160, %v3161
  %v3163 = vsel %vm3023, %v2793, 0.0
  %v3164 = vadd.f32 %v3162, %v3163
  %v3165 = vsel %vm3023, %v2796, 0.0
  %v3166 = vadd.f32 %v3164, %v3165
  %v3167 = vsel %vm3023, %v2801, 0.0
  %v3168 = vadd.f32 %v3166, %v3167
  %v3169 = vsel %vm3023, %v2804, 0.0
  %v3170 = vadd.f32 %v3168, %v3169
  %v3171 = vsel %vm3023, %v2809, 0.0
  %v3172 = vadd.f32 %v3170, %v3171
  %v3173 = vsel %vm3023, %v2812, 0.0
  %v3174 = vadd.f32 %v3172, %v3173
  %v3175 = vsel %vm3023, %v2817, 0.0
  %v3176 = vadd.f32 %v3174, %v3175
  %v3177 = vsel %vm3023, %v2820, 0.0
  %v3178 = vadd.f32 %v3176, %v3177
  %v3179 = vsel %vm3023, %v2825, 0.0
  %v3180 = vadd.f32 %v3178, %v3179
  %v3181 = vsel %vm3023, %v2828, 0.0
  %v3182 = vadd.f32 %v3180, %v3181
  %v3183 = vsel %vm3023, %v2833, 0.0
  %v3184 = vadd.f32 %v3182, %v3183
  %v3185 = vsel %vm3023, %v2836, 0.0
  %v3186 = vadd.f32 %v3184, %v3185
  %v3187 = vsel %vm3023, %v2841, 0.0
  %v3188 = vadd.f32 %v3186, %v3187
  %v3189 = vsel %vm3023, %v2844, 0.0
  %v3190 = vadd.f32 %v3188, %v3189
  %v3191 = vsel %vm3023, %v2849, 0.0
  %v3192 = vadd.f32 %v3190, %v3191
  %v3193 = vsel %vm3023, %v2852, 0.0
  %v3194 = vadd.f32 %v3192, %v3193
  %v3195 = vsel %vm3023, %v2857, 0.0
  %v3196 = vadd.f32 %v3194, %v3195
  %v3197 = vsel %vm3023, %v2860, 0.0
  %v3198 = vadd.f32 %v3196, %v3197
  %v3199 = vsel %vm3023, %v2865, 0.0
  %v3200 = vadd.f32 %v3198, %v3199
  %v3201 = vsel %vm3023, %v2868, 0.0
  %v3202 = vadd.f32 %v3200, %v3201
  %v3203 = vsel %vm3023, %v2873, 0.0
  %v3204 = vadd.f32 %v3202, %v3203
  %v3205 = vsel %vm3023, %v2876, 0.0
  %v3206 = vadd.f32 %v3204, %v3205
  %v3207 = vsel %vm3023, %v2881, 0.0
  %v3208 = vadd.f32 %v3206, %v3207
  %v3209 = vsel %vm3023, %v2884, 0.0
  %v3210 = vadd.f32 %v3208, %v3209
  %v3211 = vsel %vm3023, %v2889, 0.0
  %v3212 = vadd.f32 %v3210, %v3211
  %v3213 = vsel %vm3023, %v2892, 0.0
  %v3214 = vadd.f32 %v3212, %v3213
  %v3215 = vsel %vm3023, %v2897, 0.0
  %v3216 = vadd.f32 %v3214, %v3215
  %v3217 = vsel %vm3023, %v2900, 0.0
  %v3218 = vadd.f32 %v3216, %v3217
  %v3219 = vsel %vm3023, %v2905, 0.0
  %v3220 = vadd.f32 %v3218, %v3219
  %v3221 = vsel %vm3023, %v2908, 0.0
  %v3222 = vadd.f32 %v3220, %v3221
  %v3223 = vsel %vm3023, %v2913, 0.0
  %v3224 = vadd.f32 %v3222, %v3223
  %v3225 = vsel %vm3023, %v2916, 0.0
  %v3226 = vadd.f32 %v3224, %v3225
  %v3227 = vsel %vm3023, %v2921, 0.0
  %v3228 = vadd.f32 %v3226, %v3227
  %v3229 = vsel %vm3023, %v2924, 0.0
  %v3230 = vadd.f32 %v3228, %v3229
  %v3231 = vsel %vm3023, %v2929, 0.0
  %v3232 = vadd.f32 %v3230, %v3231
  %v3233 = vsel %vm3023, %v2932, 0.0
  %v3234 = vadd.f32 %v3232, %v3233
  %v3235 = vsel %vm3023, %v2937, 0.0
  %v3236 = vadd.f32 %v3234, %v3235
  %v3237 = vsel %vm3023, %v2940, 0.0
  %v3238 = vadd.f32 %v3236, %v3237
  %v3239 = vsel %vm3023, %v2945, 0.0
  %v3240 = vadd.f32 %v3238, %v3239
  %v3241 = vsel %vm3023, %v2948, 0.0
  %v3242 = vadd.f32 %v3240, %v3241
  %v3243 = vsel %vm3023, %v2953, 0.0
  %v3244 = vadd.f32 %v3242, %v3243
  %v3245 = vsel %vm3023, %v2956, 0.0
  %v3246 = vadd.f32 %v3244, %v3245
  %v3247 = vsel %vm3023, %v2961, 0.0
  %v3248 = vadd.f32 %v3246, %v3247
  %v3249 = vsel %vm3023, %v2964, 0.0
  %v3250 = vadd.f32 %v3248, %v3249
  %v3251 = vsel %vm3023, %v2969, 0.0
  %v3252 = vadd.f32 %v3250, %v3251
  %v3253 = vsel %vm3023, %v2972, 0.0
  %v3254 = vadd.f32 %v3252, %v3253
  %v3255 = vsel %vm3023, %v2977, 0.0
  %v3256 = vadd.f32 %v3254, %v3255
  %v3257 = vsel %vm3023, %v2980, 0.0
  %v3258 = vadd.f32 %v3256, %v3257
  %v3259 = vsel %vm3023, %v2985, 0.0
  %v3260 = vadd.f32 %v3258, %v3259
  %v3261 = vsel %vm3023, %v2988, 0.0
  %v3262 = vadd.f32 %v3260, %v3261
  %v3263 = vsel %vm3023, %v2993, 0.0
  %v3264 = vadd.f32 %v3262, %v3263
  %v3265 = vsel %vm3023, %v2996, 0.0
  %v3266 = vadd.f32 %v3264, %v3265
  %v3267 = vsel %vm3023, %v3001, 0.0
  %v3268 = vadd.f32 %v3266, %v3267
  %v3269 = vsel %vm3023, %v3004, 0.0
  %v3270 = vadd.f32 %v3268, %v3269
  %v3271 = vsel %vm3023, %v3009, 0.0
  %v3272 = vadd.f32 %v3270, %v3271
  %v3273 = vsel %vm3023, %v3012, 0.0
  %v3274 = vadd.f32 %v3272, %v3273
  %v3275 = vsel %vm3023, %v3017, 0.0
  %v3276 = vadd.f32 %v3274, %v3275
  %v3277 = vsel %vm3023, %v3020, 0.0
  %v3278 = vadd.f32 %v3276, %v3277
  %v3279 = vrot.slane %v3278, 4
  %v3280 = vadd.f32 %v3278, %v3279
  %v3281 = vrot.slane %v3280, 2
  %v3282 = vadd.f32 %v3280, %v3281
  %v3283 = vrot.slane %v3282, 1
  %v3284 = vadd.f32 %v3282, %v3283
  %v3285 = vmul.f32 %v2513, %v2513
  %v3286 = vmul.f32 %v2516, %v2516
  %v3287 = vmul.f32 %v2521, %v2521
  %v3288 = vmul.f32 %v2524, %v2524
  %v3289 = vmul.f32 %v2529, %v2529
  %v3290 = vmul.f32 %v2532, %v2532
  %v3291 = vmul.f32 %v2537, %v2537
  %v3292 = vmul.f32 %v2540, %v2540
  %v3293 = vmul.f32 %v2545, %v2545
  %v3294 = vmul.f32 %v2548, %v2548
  %v3295 = vmul.f32 %v2553, %v2553
  %v3296 = vmul.f32 %v2556, %v2556
  %v3297 = vmul.f32 %v2561, %v2561
  %v3298 = vmul.f32 %v2564, %v2564
  %v3299 = vmul.f32 %v2569, %v2569
  %v3300 = vmul.f32 %v2572, %v2572
  %v3301 = vmul.f32 %v2577, %v2577
  %v3302 = vmul.f32 %v2580, %v2580
  %v3303 = vmul.f32 %v2585, %v2585
  %v3304 = vmul.f32 %v2588, %v2588
  %v3305 = vmul.f32 %v2593, %v2593
  %v3306 = vmul.f32 %v2596, %v2596
  %v3307 = vmul.f32 %v2601, %v2601
  %v3308 = vmul.f32 %v2604, %v2604
  %v3309 = vmul.f32 %v2609, %v2609
  %v3310 = vmul.f32 %v2612, %v2612
  %v3311 = vmul.f32 %v2617, %v2617
  %v3312 = vmul.f32 %v2620, %v2620
  %v3313 = vmul.f32 %v2625, %v2625
  %v3314 = vmul.f32 %v2628, %v2628
  %v3315 = vmul.f32 %v2633, %v2633
  %v3316 = vmul.f32 %v2636, %v2636
  %v3317 = vmul.f32 %v2641, %v2641
  %v3318 = vmul.f32 %v2644, %v2644
  %v3319 = vmul.f32 %v2649, %v2649
  %v3320 = vmul.f32 %v2652, %v2652
  %v3321 = vmul.f32 %v2657, %v2657
  %v3322 = vmul.f32 %v2660, %v2660
  %v3323 = vmul.f32 %v2665, %v2665
  %v3324 = vmul.f32 %v2668, %v2668
  %v3325 = vmul.f32 %v2673, %v2673
  %v3326 = vmul.f32 %v2676, %v2676
  %v3327 = vmul.f32 %v2681, %v2681
  %v3328 = vmul.f32 %v2684, %v2684
  %v3329 = vmul.f32 %v2689, %v2689
  %v3330 = vmul.f32 %v2692, %v2692
  %v3331 = vmul.f32 %v2697, %v2697
  %v3332 = vmul.f32 %v2700, %v2700
  %v3333 = vmul.f32 %v2705, %v2705
  %v3334 = vmul.f32 %v2708, %v2708
  %v3335 = vmul.f32 %v2713, %v2713
  %v3336 = vmul.f32 %v2716, %v2716
  %v3337 = vmul.f32 %v2721, %v2721
  %v3338 = vmul.f32 %v2724, %v2724
  %v3339 = vmul.f32 %v2729, %v2729
  %v3340 = vmul.f32 %v2732, %v2732
  %v3341 = vmul.f32 %v2737, %v2737
  %v3342 = vmul.f32 %v2740, %v2740
  %v3343 = vmul.f32 %v2745, %v2745
  %v3344 = vmul.f32 %v2748, %v2748
  %v3345 = vmul.f32 %v2753, %v2753
  %v3346 = vmul.f32 %v2756, %v2756
  %v3347 = vmul.f32 %v2761, %v2761
  %v3348 = vmul.f32 %v2764, %v2764
  %v3349 = vmul.f32 %v2769, %v2769
  %v3350 = vmul.f32 %v2772, %v2772
  %v3351 = vmul.f32 %v2777, %v2777
  %v3352 = vmul.f32 %v2780, %v2780
  %v3353 = vmul.f32 %v2785, %v2785
  %v3354 = vmul.f32 %v2788, %v2788
  %v3355 = vmul.f32 %v2793, %v2793
  %v3356 = vmul.f32 %v2796, %v2796
  %v3357 = vmul.f32 %v2801, %v2801
  %v3358 = vmul.f32 %v2804, %v2804
  %v3359 = vmul.f32 %v2809, %v2809
  %v3360 = vmul.f32 %v2812, %v2812
  %v3361 = vmul.f32 %v2817, %v2817
  %v3362 = vmul.f32 %v2820, %v2820
  %v3363 = vmul.f32 %v2825, %v2825
  %v3364 = vmul.f32 %v2828, %v2828
  %v3365 = vmul.f32 %v2833, %v2833
  %v3366 = vmul.f32 %v2836, %v2836
  %v3367 = vmul.f32 %v2841, %v2841
  %v3368 = vmul.f32 %v2844, %v2844
  %v3369 = vmul.f32 %v2849, %v2849
  %v3370 = vmul.f32 %v2852, %v2852
  %v3371 = vmul.f32 %v2857, %v2857
  %v3372 = vmul.f32 %v2860, %v2860
  %v3373 = vmul.f32 %v2865, %v2865
  %v3374 = vmul.f32 %v2868, %v2868
  %v3375 = vmul.f32 %v2873, %v2873
  %v3376 = vmul.f32 %v2876, %v2876
  %v3377 = vmul.f32 %v2881, %v2881
  %v3378 = vmul.f32 %v2884, %v2884
  %v3379 = vmul.f32 %v2889, %v2889
  %v3380 = vmul.f32 %v2892, %v2892
  %v3381 = vmul.f32 %v2897, %v2897
  %v3382 = vmul.f32 %v2900, %v2900
  %v3383 = vmul.f32 %v2905, %v2905
  %v3384 = vmul.f32 %v2908, %v2908
  %v3385 = vmul.f32 %v2913, %v2913
  %v3386 = vmul.f32 %v2916, %v2916
  %v3387 = vmul.f32 %v2921, %v2921
  %v3388 = vmul.f32 %v2924, %v2924
  %v3389 = vmul.f32 %v2929, %v2929
  %v3390 = vmul.f32 %v2932, %v2932
  %v3391 = vmul.f32 %v2937, %v2937
  %v3392 = vmul.f32 %v2940, %v2940
  %v3393 = vmul.f32 %v2945, %v2945
  %v3394 = vmul.f32 %v2948, %v2948
  %v3395 = vmul.f32 %v2953, %v2953
  %v3396 = vmul.f32 %v2956, %v2956
  %v3397 = vmul.f32 %v2961, %v2961
  %v3398 = vmul.f32 %v2964, %v2964
  %v3399 = vmul.f32 %v2969, %v2969
  %v3400 = vmul.f32 %v2972, %v2972
  %v3401 = vmul.f32 %v2977, %v2977
  %v3402 = vmul.f32 %v2980, %v2980
  %v3403 = vmul.f32 %v2985, %v2985
  %v3404 = vmul.f32 %v2988, %v2988
  %v3405 = vmul.f32 %v2993, %v2993
  %v3406 = vmul.f32 %v2996, %v2996
  %v3407 = vmul.f32 %v3001, %v3001
  %v3408 = vmul.f32 %v3004, %v3004
  %v3409 = vmul.f32 %v3009, %v3009
  %v3410 = vmul.f32 %v3012, %v3012
  %v3411 = vmul.f32 %v3017, %v3017
  %v3412 = vmul.f32 %v3020, %v3020
  %v3413 = vsel %vm3023, %v3285, 0.0
  %v3414 = vsel %vm3023, %v3286, 0.0
  %v3415 = vadd.f32 %v3413, %v3414
  %v3416 = vsel %vm3023, %v3287, 0.0
  %v3417 = vadd.f32 %v3415, %v3416
  %v3418 = vsel %vm3023, %v3288, 0.0
  %v3419 = vadd.f32 %v3417, %v3418
  %v3420 = vsel %vm3023, %v3289, 0.0
  %v3421 = vadd.f32 %v3419, %v3420
  %v3422 = vsel %vm3023, %v3290, 0.0
  %v3423 = vadd.f32 %v3421, %v3422
  %v3424 = vsel %vm3023, %v3291, 0.0
  %v3425 = vadd.f32 %v3423, %v3424
  %v3426 = vsel %vm3023, %v3292, 0.0
  %v3427 = vadd.f32 %v3425, %v3426
  %v3428 = vsel %vm3023, %v3293, 0.0
  %v3429 = vadd.f32 %v3427, %v3428
  %v3430 = vsel %vm3023, %v3294, 0.0
  %v3431 = vadd.f32 %v3429, %v3430
  %v3432 = vsel %vm3023, %v3295, 0.0
  %v3433 = vadd.f32 %v3431, %v3432
  %v3434 = vsel %vm3023, %v3296, 0.0
  %v3435 = vadd.f32 %v3433, %v3434
  %v3436 = vsel %vm3023, %v3297, 0.0
  %v3437 = vadd.f32 %v3435, %v3436
  %v3438 = vsel %vm3023, %v3298, 0.0
  %v3439 = vadd.f32 %v3437, %v3438
  %v3440 = vsel %vm3023, %v3299, 0.0
  %v3441 = vadd.f32 %v3439, %v3440
  %v3442 = vsel %vm3023, %v3300, 0.0
  %v3443 = vadd.f32 %v3441, %v3442
  %v3444 = vsel %vm3023, %v3301, 0.0
  %v3445 = vadd.f32 %v3443, %v3444
  %v3446 = vsel %vm3023, %v3302, 0.0
  %v3447 = vadd.f32 %v3445, %v3446
  %v3448 = vsel %vm3023, %v3303, 0.0
  %v3449 = vadd.f32 %v3447, %v3448
  %v3450 = vsel %vm3023, %v3304, 0.0
  %v3451 = vadd.f32 %v3449, %v3450
  %v3452 = vsel %vm3023, %v3305, 0.0
  %v3453 = vadd.f32 %v3451, %v3452
  %v3454 = vsel %vm3023, %v3306, 0.0
  %v3455 = vadd.f32 %v3453, %v3454
  %v3456 = vsel %vm3023, %v3307, 0.0
  %v3457 = vadd.f32 %v3455, %v3456
  %v3458 = vsel %vm3023, %v3308, 0.0
  %v3459 = vadd.f32 %v3457, %v3458
  %v3460 = vsel %vm3023, %v3309, 0.0
  %v3461 = vadd.f32 %v3459, %v3460
  %v3462 = vsel %vm3023, %v3310, 0.0
  %v3463 = vadd.f32 %v3461, %v3462
  %v3464 = vsel %vm3023, %v3311, 0.0
  %v3465 = vadd.f32 %v3463, %v3464
  %v3466 = vsel %vm3023, %v3312, 0.0
  %v3467 = vadd.f32 %v3465, %v3466
  %v3468 = vsel %vm3023, %v3313, 0.0
  %v3469 = vadd.f32 %v3467, %v3468
  %v3470 = vsel %vm3023, %v3314, 0.0
  %v3471 = vadd.f32 %v3469, %v3470
  %v3472 = vsel %vm3023, %v3315, 0.0
  %v3473 = vadd.f32 %v3471, %v3472
  %v3474 = vsel %vm3023, %v3316, 0.0
  %v3475 = vadd.f32 %v3473, %v3474
  %v3476 = vsel %vm3023, %v3317, 0.0
  %v3477 = vadd.f32 %v3475, %v3476
  %v3478 = vsel %vm3023, %v3318, 0.0
  %v3479 = vadd.f32 %v3477, %v3478
  %v3480 = vsel %vm3023, %v3319, 0.0
  %v3481 = vadd.f32 %v3479, %v3480
  %v3482 = vsel %vm3023, %v3320, 0.0
  %v3483 = vadd.f32 %v3481, %v3482
  %v3484 = vsel %vm3023, %v3321, 0.0
  %v3485 = vadd.f32 %v3483, %v3484
  %v3486 = vsel %vm3023, %v3322, 0.0
  %v3487 = vadd.f32 %v3485, %v3486
  %v3488 = vsel %vm3023, %v3323, 0.0
  %v3489 = vadd.f32 %v3487, %v3488
  %v3490 = vsel %vm3023, %v3324, 0.0
  %v3491 = vadd.f32 %v3489, %v3490
  %v3492 = vsel %vm3023, %v3325, 0.0
  %v3493 = vadd.f32 %v3491, %v3492
  %v3494 = vsel %vm3023, %v3326, 0.0
  %v3495 = vadd.f32 %v3493, %v3494
  %v3496 = vsel %vm3023, %v3327, 0.0
  %v3497 = vadd.f32 %v3495, %v3496
  %v3498 = vsel %vm3023, %v3328, 0.0
  %v3499 = vadd.f32 %v3497, %v3498
  %v3500 = vsel %vm3023, %v3329, 0.0
  %v3501 = vadd.f32 %v3499, %v3500
  %v3502 = vsel %vm3023, %v3330, 0.0
  %v3503 = vadd.f32 %v3501, %v3502
  %v3504 = vsel %vm3023, %v3331, 0.0
  %v3505 = vadd.f32 %v3503, %v3504
  %v3506 = vsel %vm3023, %v3332, 0.0
  %v3507 = vadd.f32 %v3505, %v3506
  %v3508 = vsel %vm3023, %v3333, 0.0
  %v3509 = vadd.f32 %v3507, %v3508
  %v3510 = vsel %vm3023, %v3334, 0.0
  %v3511 = vadd.f32 %v3509, %v3510
  %v3512 = vsel %vm3023, %v3335, 0.0
  %v3513 = vadd.f32 %v3511, %v3512
  %v3514 = vsel %vm3023, %v3336, 0.0
  %v3515 = vadd.f32 %v3513, %v3514
  %v3516 = vsel %vm3023, %v3337, 0.0
  %v3517 = vadd.f32 %v3515, %v3516
  %v3518 = vsel %vm3023, %v3338, 0.0
  %v3519 = vadd.f32 %v3517, %v3518
  %v3520 = vsel %vm3023, %v3339, 0.0
  %v3521 = vadd.f32 %v3519, %v3520
  %v3522 = vsel %vm3023, %v3340, 0.0
  %v3523 = vadd.f32 %v3521, %v3522
  %v3524 = vsel %vm3023, %v3341, 0.0
  %v3525 = vadd.f32 %v3523, %v3524
  %v3526 = vsel %vm3023, %v3342, 0.0
  %v3527 = vadd.f32 %v3525, %v3526
  %v3528 = vsel %vm3023, %v3343, 0.0
  %v3529 = vadd.f32 %v3527, %v3528
  %v3530 = vsel %vm3023, %v3344, 0.0
  %v3531 = vadd.f32 %v3529, %v3530
  %v3532 = vsel %vm3023, %v3345, 0.0
  %v3533 = vadd.f32 %v3531, %v3532
  %v3534 = vsel %vm3023, %v3346, 0.0
  %v3535 = vadd.f32 %v3533, %v3534
  %v3536 = vsel %vm3023, %v3347, 0.0
  %v3537 = vadd.f32 %v3535, %v3536
  %v3538 = vsel %vm3023, %v3348, 0.0
  %v3539 = vadd.f32 %v3537, %v3538
  %v3540 = vsel %vm3023, %v3349, 0.0
  %v3541 = vadd.f32 %v3539, %v3540
  %v3542 = vsel %vm3023, %v3350, 0.0
  %v3543 = vadd.f32 %v3541, %v3542
  %v3544 = vsel %vm3023, %v3351, 0.0
  %v3545 = vadd.f32 %v3543, %v3544
  %v3546 = vsel %vm3023, %v3352, 0.0
  %v3547 = vadd.f32 %v3545, %v3546
  %v3548 = vsel %vm3023, %v3353, 0.0
  %v3549 = vadd.f32 %v3547, %v3548
  %v3550 = vsel %vm3023, %v3354, 0.0
  %v3551 = vadd.f32 %v3549, %v3550
  %v3552 = vsel %vm3023, %v3355, 0.0
  %v3553 = vadd.f32 %v3551, %v3552
  %v3554 = vsel %vm3023, %v3356, 0.0
  %v3555 = vadd.f32 %v3553, %v3554
  %v3556 = vsel %vm3023, %v3357, 0.0
  %v3557 = vadd.f32 %v3555, %v3556
  %v3558 = vsel %vm3023, %v3358, 0.0
  %v3559 = vadd.f32 %v3557, %v3558
  %v3560 = vsel %vm3023, %v3359, 0.0
  %v3561 = vadd.f32 %v3559, %v3560
  %v3562 = vsel %vm3023, %v3360, 0.0
  %v3563 = vadd.f32 %v3561, %v3562
  %v3564 = vsel %vm3023, %v3361, 0.0
  %v3565 = vadd.f32 %v3563, %v3564
  %v3566 = vsel %vm3023, %v3362, 0.0
  %v3567 = vadd.f32 %v3565, %v3566
  %v3568 = vsel %vm3023, %v3363, 0.0
  %v3569 = vadd.f32 %v3567, %v3568
  %v3570 = vsel %vm3023, %v3364, 0.0
  %v3571 = vadd.f32 %v3569, %v3570
  %v3572 = vsel %vm3023, %v3365, 0.0
  %v3573 = vadd.f32 %v3571, %v3572
  %v3574 = vsel %vm3023, %v3366, 0.0
  %v3575 = vadd.f32 %v3573, %v3574
  %v3576 = vsel %vm3023, %v3367, 0.0
  %v3577 = vadd.f32 %v3575, %v3576
  %v3578 = vsel %vm3023, %v3368, 0.0
  %v3579 = vadd.f32 %v3577, %v3578
  %v3580 = vsel %vm3023, %v3369, 0.0
  %v3581 = vadd.f32 %v3579, %v3580
  %v3582 = vsel %vm3023, %v3370, 0.0
  %v3583 = vadd.f32 %v3581, %v3582
  %v3584 = vsel %vm3023, %v3371, 0.0
  %v3585 = vadd.f32 %v3583, %v3584
  %v3586 = vsel %vm3023, %v3372, 0.0
  %v3587 = vadd.f32 %v3585, %v3586
  %v3588 = vsel %vm3023, %v3373, 0.0
  %v3589 = vadd.f32 %v3587, %v3588
  %v3590 = vsel %vm3023, %v3374, 0.0
  %v3591 = vadd.f32 %v3589, %v3590
  %v3592 = vsel %vm3023, %v3375, 0.0
  %v3593 = vadd.f32 %v3591, %v3592
  %v3594 = vsel %vm3023, %v3376, 0.0
  %v3595 = vadd.f32 %v3593, %v3594
  %v3596 = vsel %vm3023, %v3377, 0.0
  %v3597 = vadd.f32 %v3595, %v3596
  %v3598 = vsel %vm3023, %v3378, 0.0
  %v3599 = vadd.f32 %v3597, %v3598
  %v3600 = vsel %vm3023, %v3379, 0.0
  %v3601 = vadd.f32 %v3599, %v3600
  %v3602 = vsel %vm3023, %v3380, 0.0
  %v3603 = vadd.f32 %v3601, %v3602
  %v3604 = vsel %vm3023, %v3381, 0.0
  %v3605 = vadd.f32 %v3603, %v3604
  %v3606 = vsel %vm3023, %v3382, 0.0
  %v3607 = vadd.f32 %v3605, %v3606
  %v3608 = vsel %vm3023, %v3383, 0.0
  %v3609 = vadd.f32 %v3607, %v3608
  %v3610 = vsel %vm3023, %v3384, 0.0
  %v3611 = vadd.f32 %v3609, %v3610
  %v3612 = vsel %vm3023, %v3385, 0.0
  %v3613 = vadd.f32 %v3611, %v3612
  %v3614 = vsel %vm3023, %v3386, 0.0
  %v3615 = vadd.f32 %v3613, %v3614
  %v3616 = vsel %vm3023, %v3387, 0.0
  %v3617 = vadd.f32 %v3615, %v3616
  %v3618 = vsel %vm3023, %v3388, 0.0
  %v3619 = vadd.f32 %v3617, %v3618
  %v3620 = vsel %vm3023, %v3389, 0.0
  %v3621 = vadd.f32 %v3619, %v3620
  %v3622 = vsel %vm3023, %v3390, 0.0
  %v3623 = vadd.f32 %v3621, %v3622
  %v3624 = vsel %vm3023, %v3391, 0.0
  %v3625 = vadd.f32 %v3623, %v3624
  %v3626 = vsel %vm3023, %v3392, 0.0
  %v3627 = vadd.f32 %v3625, %v3626
  %v3628 = vsel %vm3023, %v3393, 0.0
  %v3629 = vadd.f32 %v3627, %v3628
  %v3630 = vsel %vm3023, %v3394, 0.0
  %v3631 = vadd.f32 %v3629, %v3630
  %v3632 = vsel %vm3023, %v3395, 0.0
  %v3633 = vadd.f32 %v3631, %v3632
  %v3634 = vsel %vm3023, %v3396, 0.0
  %v3635 = vadd.f32 %v3633, %v3634
  %v3636 = vsel %vm3023, %v3397, 0.0
  %v3637 = vadd.f32 %v3635, %v3636
  %v3638 = vsel %vm3023, %v3398, 0.0
  %v3639 = vadd.f32 %v3637, %v3638
  %v3640 = vsel %vm3023, %v3399, 0.0
  %v3641 = vadd.f32 %v3639, %v3640
  %v3642 = vsel %vm3023, %v3400, 0.0
  %v3643 = vadd.f32 %v3641, %v3642
  %v3644 = vsel %vm3023, %v3401, 0.0
  %v3645 = vadd.f32 %v3643, %v3644
  %v3646 = vsel %vm3023, %v3402, 0.0
  %v3647 = vadd.f32 %v3645, %v3646
  %v3648 = vsel %vm3023, %v3403, 0.0
  %v3649 = vadd.f32 %v3647, %v3648
  %v3650 = vsel %vm3023, %v3404, 0.0
  %v3651 = vadd.f32 %v3649, %v3650
  %v3652 = vsel %vm3023, %v3405, 0.0
  %v3653 = vadd.f32 %v3651, %v3652
  %v3654 = vsel %vm3023, %v3406, 0.0
  %v3655 = vadd.f32 %v3653, %v3654
  %v3656 = vsel %vm3023, %v3407, 0.0
  %v3657 = vadd.f32 %v3655, %v3656
  %v3658 = vsel %vm3023, %v3408, 0.0
  %v3659 = vadd.f32 %v3657, %v3658
  %v3660 = vsel %vm3023, %v3409, 0.0
  %v3661 = vadd.f32 %v3659, %v3660
  %v3662 = vsel %vm3023, %v3410, 0.0
  %v3663 = vadd.f32 %v3661, %v3662
  %v3664 = vsel %vm3023, %v3411, 0.0
  %v3665 = vadd.f32 %v3663, %v3664
  %v3666 = vsel %vm3023, %v3412, 0.0
  %v3667 = vadd.f32 %v3665, %v3666
  %v3668 = vrot.slane %v3667, 4
  %v3669 = vadd.f32 %v3667, %v3668
  %v3670 = vrot.slane %v3669, 2
  %v3671 = vadd.f32 %v3669, %v3670
  %v3672 = vrot.slane %v3671, 1
  %v3673 = vadd.f32 %v3671, %v3672
  %v3674 = vmul.f32 %v3284, 0.0009765625
  %v3675 = vmul.f32 %v3673, 0.0009765625
  %v3676 = vmul.f32 %v3674, %v3674
  %v3677 = vsub.f32 %v3675, %v3676
  %v3678 = vmax.f32 %v3677, 0.0
  %v3679 = vsub.f32 %v2513, %v3674
  %v3680 = vsub.f32 %v2516, %v3674
  %v3681 = vsub.f32 %v2521, %v3674
  %v3682 = vsub.f32 %v2524, %v3674
  %v3683 = vsub.f32 %v2529, %v3674
  %v3684 = vsub.f32 %v2532, %v3674
  %v3685 = vsub.f32 %v2537, %v3674
  %v3686 = vsub.f32 %v2540, %v3674
  %v3687 = vsub.f32 %v2545, %v3674
  %v3688 = vsub.f32 %v2548, %v3674
  %v3689 = vsub.f32 %v2553, %v3674
  %v3690 = vsub.f32 %v2556, %v3674
  %v3691 = vsub.f32 %v2561, %v3674
  %v3692 = vsub.f32 %v2564, %v3674
  %v3693 = vsub.f32 %v2569, %v3674
  %v3694 = vsub.f32 %v2572, %v3674
  %v3695 = vsub.f32 %v2577, %v3674
  %v3696 = vsub.f32 %v2580, %v3674
  %v3697 = vsub.f32 %v2585, %v3674
  %v3698 = vsub.f32 %v2588, %v3674
  %v3699 = vsub.f32 %v2593, %v3674
  %v3700 = vsub.f32 %v2596, %v3674
  %v3701 = vsub.f32 %v2601, %v3674
  %v3702 = vsub.f32 %v2604, %v3674
  %v3703 = vsub.f32 %v2609, %v3674
  %v3704 = vsub.f32 %v2612, %v3674
  %v3705 = vsub.f32 %v2617, %v3674
  %v3706 = vsub.f32 %v2620, %v3674
  %v3707 = vsub.f32 %v2625, %v3674
  %v3708 = vsub.f32 %v2628, %v3674
  %v3709 = vsub.f32 %v2633, %v3674
  %v3710 = vsub.f32 %v2636, %v3674
  %v3711 = vsub.f32 %v2641, %v3674
  %v3712 = vsub.f32 %v2644, %v3674
  %v3713 = vsub.f32 %v2649, %v3674
  %v3714 = vsub.f32 %v2652, %v3674
  %v3715 = vsub.f32 %v2657, %v3674
  %v3716 = vsub.f32 %v2660, %v3674
  %v3717 = vsub.f32 %v2665, %v3674
  %v3718 = vsub.f32 %v2668, %v3674
  %v3719 = vsub.f32 %v2673, %v3674
  %v3720 = vsub.f32 %v2676, %v3674
  %v3721 = vsub.f32 %v2681, %v3674
  %v3722 = vsub.f32 %v2684, %v3674
  %v3723 = vsub.f32 %v2689, %v3674
  %v3724 = vsub.f32 %v2692, %v3674
  %v3725 = vsub.f32 %v2697, %v3674
  %v3726 = vsub.f32 %v2700, %v3674
  %v3727 = vsub.f32 %v2705, %v3674
  %v3728 = vsub.f32 %v2708, %v3674
  %v3729 = vsub.f32 %v2713, %v3674
  %v3730 = vsub.f32 %v2716, %v3674
  %v3731 = vsub.f32 %v2721, %v3674
  %v3732 = vsub.f32 %v2724, %v3674
  %v3733 = vsub.f32 %v2729, %v3674
  %v3734 = vsub.f32 %v2732, %v3674
  %v3735 = vsub.f32 %v2737, %v3674
  %v3736 = vsub.f32 %v2740, %v3674
  %v3737 = vsub.f32 %v2745, %v3674
  %v3738 = vsub.f32 %v2748, %v3674
  %v3739 = vsub.f32 %v2753, %v3674
  %v3740 = vsub.f32 %v2756, %v3674
  %v3741 = vsub.f32 %v2761, %v3674
  %v3742 = vsub.f32 %v2764, %v3674
  %v3743 = vsub.f32 %v2769, %v3674
  %v3744 = vsub.f32 %v2772, %v3674
  %v3745 = vsub.f32 %v2777, %v3674
  %v3746 = vsub.f32 %v2780, %v3674
  %v3747 = vsub.f32 %v2785, %v3674
  %v3748 = vsub.f32 %v2788, %v3674
  %v3749 = vsub.f32 %v2793, %v3674
  %v3750 = vsub.f32 %v2796, %v3674
  %v3751 = vsub.f32 %v2801, %v3674
  %v3752 = vsub.f32 %v2804, %v3674
  %v3753 = vsub.f32 %v2809, %v3674
  %v3754 = vsub.f32 %v2812, %v3674
  %v3755 = vsub.f32 %v2817, %v3674
  %v3756 = vsub.f32 %v2820, %v3674
  %v3757 = vsub.f32 %v2825, %v3674
  %v3758 = vsub.f32 %v2828, %v3674
  %v3759 = vsub.f32 %v2833, %v3674
  %v3760 = vsub.f32 %v2836, %v3674
  %v3761 = vsub.f32 %v2841, %v3674
  %v3762 = vsub.f32 %v2844, %v3674
  %v3763 = vsub.f32 %v2849, %v3674
  %v3764 = vsub.f32 %v2852, %v3674
  %v3765 = vsub.f32 %v2857, %v3674
  %v3766 = vsub.f32 %v2860, %v3674
  %v3767 = vsub.f32 %v2865, %v3674
  %v3768 = vsub.f32 %v2868, %v3674
  %v3769 = vsub.f32 %v2873, %v3674
  %v3770 = vsub.f32 %v2876, %v3674
  %v3771 = vsub.f32 %v2881, %v3674
  %v3772 = vsub.f32 %v2884, %v3674
  %v3773 = vsub.f32 %v2889, %v3674
  %v3774 = vsub.f32 %v2892, %v3674
  %v3775 = vsub.f32 %v2897, %v3674
  %v3776 = vsub.f32 %v2900, %v3674
  %v3777 = vsub.f32 %v2905, %v3674
  %v3778 = vsub.f32 %v2908, %v3674
  %v3779 = vsub.f32 %v2913, %v3674
  %v3780 = vsub.f32 %v2916, %v3674
  %v3781 = vsub.f32 %v2921, %v3674
  %v3782 = vsub.f32 %v2924, %v3674
  %v3783 = vsub.f32 %v2929, %v3674
  %v3784 = vsub.f32 %v2932, %v3674
  %v3785 = vsub.f32 %v2937, %v3674
  %v3786 = vsub.f32 %v2940, %v3674
  %v3787 = vsub.f32 %v2945, %v3674
  %v3788 = vsub.f32 %v2948, %v3674
  %v3789 = vsub.f32 %v2953, %v3674
  %v3790 = vsub.f32 %v2956, %v3674
  %v3791 = vsub.f32 %v2961, %v3674
  %v3792 = vsub.f32 %v2964, %v3674
  %v3793 = vsub.f32 %v2969, %v3674
  %v3794 = vsub.f32 %v2972, %v3674
  %v3795 = vsub.f32 %v2977, %v3674
  %v3796 = vsub.f32 %v2980, %v3674
  %v3797 = vsub.f32 %v2985, %v3674
  %v3798 = vsub.f32 %v2988, %v3674
  %v3799 = vsub.f32 %v2993, %v3674
  %v3800 = vsub.f32 %v2996, %v3674
  %v3801 = vsub.f32 %v3001, %v3674
  %v3802 = vsub.f32 %v3004, %v3674
  %v3803 = vsub.f32 %v3009, %v3674
  %v3804 = vsub.f32 %v3012, %v3674
  %v3805 = vsub.f32 %v3017, %v3674
  %v3806 = vsub.f32 %v3020, %v3674
  %v3807 = vadd.f32 %v3678, 1e-05
  %v3808 = vrsqrt.pop %v3807
  %v3809 = vmul.f32 %v3679, %v3808
  %v3810 = vmul.f32 %v3680, %v3808
  %v3811 = vmul.f32 %v3681, %v3808
  %v3812 = vmul.f32 %v3682, %v3808
  %v3813 = vmul.f32 %v3683, %v3808
  %v3814 = vmul.f32 %v3684, %v3808
  %v3815 = vmul.f32 %v3685, %v3808
  %v3816 = vmul.f32 %v3686, %v3808
  %v3817 = vmul.f32 %v3687, %v3808
  %v3818 = vmul.f32 %v3688, %v3808
  %v3819 = vmul.f32 %v3689, %v3808
  %v3820 = vmul.f32 %v3690, %v3808
  %v3821 = vmul.f32 %v3691, %v3808
  %v3822 = vmul.f32 %v3692, %v3808
  %v3823 = vmul.f32 %v3693, %v3808
  %v3824 = vmul.f32 %v3694, %v3808
  %v3825 = vmul.f32 %v3695, %v3808
  %v3826 = vmul.f32 %v3696, %v3808
  %v3827 = vmul.f32 %v3697, %v3808
  %v3828 = vmul.f32 %v3698, %v3808
  %v3829 = vmul.f32 %v3699, %v3808
  %v3830 = vmul.f32 %v3700, %v3808
  %v3831 = vmul.f32 %v3701, %v3808
  %v3832 = vmul.f32 %v3702, %v3808
  %v3833 = vmul.f32 %v3703, %v3808
  %v3834 = vmul.f32 %v3704, %v3808
  %v3835 = vmul.f32 %v3705, %v3808
  %v3836 = vmul.f32 %v3706, %v3808
  %v3837 = vmul.f32 %v3707, %v3808
  %v3838 = vmul.f32 %v3708, %v3808
  %v3839 = vmul.f32 %v3709, %v3808
  %v3840 = vmul.f32 %v3710, %v3808
  %v3841 = vmul.f32 %v3711, %v3808
  %v3842 = vmul.f32 %v3712, %v3808
  %v3843 = vmul.f32 %v3713, %v3808
  %v3844 = vmul.f32 %v3714, %v3808
  %v3845 = vmul.f32 %v3715, %v3808
  %v3846 = vmul.f32 %v3716, %v3808
  %v3847 = vmul.f32 %v3717, %v3808
  %v3848 = vmul.f32 %v3718, %v3808
  %v3849 = vmul.f32 %v3719, %v3808
  %v3850 = vmul.f32 %v3720, %v3808
  %v3851 = vmul.f32 %v3721, %v3808
  %v3852 = vmul.f32 %v3722, %v3808
  %v3853 = vmul.f32 %v3723, %v3808
  %v3854 = vmul.f32 %v3724, %v3808
  %v3855 = vmul.f32 %v3725, %v3808
  %v3856 = vmul.f32 %v3726, %v3808
  %v3857 = vmul.f32 %v3727, %v3808
  %v3858 = vmul.f32 %v3728, %v3808
  %v3859 = vmul.f32 %v3729, %v3808
  %v3860 = vmul.f32 %v3730, %v3808
  %v3861 = vmul.f32 %v3731, %v3808
  %v3862 = vmul.f32 %v3732, %v3808
  %v3863 = vmul.f32 %v3733, %v3808
  %v3864 = vmul.f32 %v3734, %v3808
  %v3865 = vmul.f32 %v3735, %v3808
  %v3866 = vmul.f32 %v3736, %v3808
  %v3867 = vmul.f32 %v3737, %v3808
  %v3868 = vmul.f32 %v3738, %v3808
  %v3869 = vmul.f32 %v3739, %v3808
  %v3870 = vmul.f32 %v3740, %v3808
  %v3871 = vmul.f32 %v3741, %v3808
  %v3872 = vmul.f32 %v3742, %v3808
  %v3873 = vmul.f32 %v3743, %v3808
  %v3874 = vmul.f32 %v3744, %v3808
  %v3875 = vmul.f32 %v3745, %v3808
  %v3876 = vmul.f32 %v3746, %v3808
  %v3877 = vmul.f32 %v3747, %v3808
  %v3878 = vmul.f32 %v3748, %v3808
  %v3879 = vmul.f32 %v3749, %v3808
  %v3880 = vmul.f32 %v3750, %v3808
  %v3881 = vmul.f32 %v3751, %v3808
  %v3882 = vmul.f32 %v3752, %v3808
  %v3883 = vmul.f32 %v3753, %v3808
  %v3884 = vmul.f32 %v3754, %v3808
  %v3885 = vmul.f32 %v3755, %v3808
  %v3886 = vmul.f32 %v3756, %v3808
  %v3887 = vmul.f32 %v3757, %v3808
  %v3888 = vmul.f32 %v3758, %v3808
  %v3889 = vmul.f32 %v3759, %v3808
  %v3890 = vmul.f32 %v3760, %v3808
  %v3891 = vmul.f32 %v3761, %v3808
  %v3892 = vmul.f32 %v3762, %v3808
  %v3893 = vmul.f32 %v3763, %v3808
  %v3894 = vmul.f32 %v3764, %v3808
  %v3895 = vmul.f32 %v3765, %v3808
  %v3896 = vmul.f32 %v3766, %v3808
  %v3897 = vmul.f32 %v3767, %v3808
  %v3898 = vmul.f32 %v3768, %v3808
  %v3899 = vmul.f32 %v3769, %v3808
  %v3900 = vmul.f32 %v3770, %v3808
  %v3901 = vmul.f32 %v3771, %v3808
  %v3902 = vmul.f32 %v3772, %v3808
  %v3903 = vmul.f32 %v3773, %v3808
  %v3904 = vmul.f32 %v3774, %v3808
  %v3905 = vmul.f32 %v3775, %v3808
  %v3906 = vmul.f32 %v3776, %v3808
  %v3907 = vmul.f32 %v3777, %v3808
  %v3908 = vmul.f32 %v3778, %v3808
  %v3909 = vmul.f32 %v3779, %v3808
  %v3910 = vmul.f32 %v3780, %v3808
  %v3911 = vmul.f32 %v3781, %v3808
  %v3912 = vmul.f32 %v3782, %v3808
  %v3913 = vmul.f32 %v3783, %v3808
  %v3914 = vmul.f32 %v3784, %v3808
  %v3915 = vmul.f32 %v3785, %v3808
  %v3916 = vmul.f32 %v3786, %v3808
  %v3917 = vmul.f32 %v3787, %v3808
  %v3918 = vmul.f32 %v3788, %v3808
  %v3919 = vmul.f32 %v3789, %v3808
  %v3920 = vmul.f32 %v3790, %v3808
  %v3921 = vmul.f32 %v3791, %v3808
  %v3922 = vmul.f32 %v3792, %v3808
  %v3923 = vmul.f32 %v3793, %v3808
  %v3924 = vmul.f32 %v3794, %v3808
  %v3925 = vmul.f32 %v3795, %v3808
  %v3926 = vmul.f32 %v3796, %v3808
  %v3927 = vmul.f32 %v3797, %v3808
  %v3928 = vmul.f32 %v3798, %v3808
  %v3929 = vmul.f32 %v3799, %v3808
  %v3930 = vmul.f32 %v3800, %v3808
  %v3931 = vmul.f32 %v3801, %v3808
  %v3932 = vmul.f32 %v3802, %v3808
  %v3933 = vmul.f32 %v3803, %v3808
  %v3934 = vmul.f32 %v3804, %v3808
  %v3935 = vmul.f32 %v3805, %v3808
  %v3936 = vmul.f32 %v3806, %v3808
  %v3937 = vmax.f32 %v3809, 0.0
  %v3938 = vmax.f32 %v3810, 0.0
  %v3939 = vmax.f32 %v3811, 0.0
  %v3940 = vmax.f32 %v3812, 0.0
  %v3941 = vmax.f32 %v3813, 0.0
  %v3942 = vmax.f32 %v3814, 0.0
  %v3943 = vmax.f32 %v3815, 0.0
  %v3944 = vmax.f32 %v3816, 0.0
  %v3945 = vmax.f32 %v3817, 0.0
  %v3946 = vmax.f32 %v3818, 0.0
  %v3947 = vmax.f32 %v3819, 0.0
  %v3948 = vmax.f32 %v3820, 0.0
  %v3949 = vmax.f32 %v3821, 0.0
  %v3950 = vmax.f32 %v3822, 0.0
  %v3951 = vmax.f32 %v3823, 0.0
  %v3952 = vmax.f32 %v3824, 0.0
  %v3953 = vmax.f32 %v3825, 0.0
  %v3954 = vmax.f32 %v3826, 0.0
  %v3955 = vmax.f32 %v3827, 0.0
  %v3956 = vmax.f32 %v3828, 0.0
  %v3957 = vmax.f32 %v3829, 0.0
  %v3958 = vmax.f32 %v3830, 0.0
  %v3959 = vmax.f32 %v3831, 0.0
  %v3960 = vmax.f32 %v3832, 0.0
  %v3961 = vmax.f32 %v3833, 0.0
  %v3962 = vmax.f32 %v3834, 0.0
  %v3963 = vmax.f32 %v3835, 0.0
  %v3964 = vmax.f32 %v3836, 0.0
  %v3965 = vmax.f32 %v3837, 0.0
  %v3966 = vmax.f32 %v3838, 0.0
  %v3967 = vmax.f32 %v3839, 0.0
  %v3968 = vmax.f32 %v3840, 0.0
  %v3969 = vmax.f32 %v3841, 0.0
  %v3970 = vmax.f32 %v3842, 0.0
  %v3971 = vmax.f32 %v3843, 0.0
  %v3972 = vmax.f32 %v3844, 0.0
  %v3973 = vmax.f32 %v3845, 0.0
  %v3974 = vmax.f32 %v3846, 0.0
  %v3975 = vmax.f32 %v3847, 0.0
  %v3976 = vmax.f32 %v3848, 0.0
  %v3977 = vmax.f32 %v3849, 0.0
  %v3978 = vmax.f32 %v3850, 0.0
  %v3979 = vmax.f32 %v3851, 0.0
  %v3980 = vmax.f32 %v3852, 0.0
  %v3981 = vmax.f32 %v3853, 0.0
  %v3982 = vmax.f32 %v3854, 0.0
  %v3983 = vmax.f32 %v3855, 0.0
  %v3984 = vmax.f32 %v3856, 0.0
  %v3985 = vmax.f32 %v3857, 0.0
  %v3986 = vmax.f32 %v3858, 0.0
  %v3987 = vmax.f32 %v3859, 0.0
  %v3988 = vmax.f32 %v3860, 0.0
  %v3989 = vmax.f32 %v3861, 0.0
  %v3990 = vmax.f32 %v3862, 0.0
  %v3991 = vmax.f32 %v3863, 0.0
  %v3992 = vmax.f32 %v3864, 0.0
  %v3993 = vmax.f32 %v3865, 0.0
  %v3994 = vmax.f32 %v3866, 0.0
  %v3995 = vmax.f32 %v3867, 0.0
  %v3996 = vmax.f32 %v3868, 0.0
  %v3997 = vmax.f32 %v3869, 0.0
  %v3998 = vmax.f32 %v3870, 0.0
  %v3999 = vmax.f32 %v3871, 0.0
  %v4000 = vmax.f32 %v3872, 0.0
  %v4001 = vmax.f32 %v3873, 0.0
  %v4002 = vmax.f32 %v3874, 0.0
  %v4003 = vmax.f32 %v3875, 0.0
  %v4004 = vmax.f32 %v3876, 0.0
  %v4005 = vmax.f32 %v3877, 0.0
  %v4006 = vmax.f32 %v3878, 0.0
  %v4007 = vmax.f32 %v3879, 0.0
  %v4008 = vmax.f32 %v3880, 0.0
  %v4009 = vmax.f32 %v3881, 0.0
  %v4010 = vmax.f32 %v3882, 0.0
  %v4011 = vmax.f32 %v3883, 0.0
  %v4012 = vmax.f32 %v3884, 0.0
  %v4013 = vmax.f32 %v3885, 0.0
  %v4014 = vmax.f32 %v3886, 0.0
  %v4015 = vmax.f32 %v3887, 0.0
  %v4016 = vmax.f32 %v3888, 0.0
  %v4017 = vmax.f32 %v3889, 0.0
  %v4018 = vmax.f32 %v3890, 0.0
  %v4019 = vmax.f32 %v3891, 0.0
  %v4020 = vmax.f32 %v3892, 0.0
  %v4021 = vmax.f32 %v3893, 0.0
  %v4022 = vmax.f32 %v3894, 0.0
  %v4023 = vmax.f32 %v3895, 0.0
  %v4024 = vmax.f32 %v3896, 0.0
  %v4025 = vmax.f32 %v3897, 0.0
  %v4026 = vmax.f32 %v3898, 0.0
  %v4027 = vmax.f32 %v3899, 0.0
  %v4028 = vmax.f32 %v3900, 0.0
  %v4029 = vmax.f32 %v3901, 0.0
  %v4030 = vmax.f32 %v3902, 0.0
  %v4031 = vmax.f32 %v3903, 0.0
  %v4032 = vmax.f32 %v3904, 0.0
  %v4033 = vmax.f32 %v3905, 0.0
  %v4034 = vmax.f32 %v3906, 0.0
  %v4035 = vmax.f32 %v3907, 0.0
  %v4036 = vmax.f32 %v3908, 0.0
  %v4037 = vmax.f32 %v3909, 0.0
  %v4038 = vmax.f32 %v3910, 0.0
  %v4039 = vmax.f32 %v3911, 0.0
  %v4040 = vmax.f32 %v3912, 0.0
  %v4041 = vmax.f32 %v3913, 0.0
  %v4042 = vmax.f32 %v3914, 0.0
  %v4043 = vmax.f32 %v3915, 0.0
  %v4044 = vmax.f32 %v3916, 0.0
  %v4045 = vmax.f32 %v3917, 0.0
  %v4046 = vmax.f32 %v3918, 0.0
  %v4047 = vmax.f32 %v3919, 0.0
  %v4048 = vmax.f32 %v3920, 0.0
  %v4049 = vmax.f32 %v3921, 0.0
  %v4050 = vmax.f32 %v3922, 0.0
  %v4051 = vmax.f32 %v3923, 0.0
  %v4052 = vmax.f32 %v3924, 0.0
  %v4053 = vmax.f32 %v3925, 0.0
  %v4054 = vmax.f32 %v3926, 0.0
  %v4055 = vmax.f32 %v3927, 0.0
  %v4056 = vmax.f32 %v3928, 0.0
  %v4057 = vmax.f32 %v3929, 0.0
  %v4058 = vmax.f32 %v3930, 0.0
  %v4059 = vmax.f32 %v3931, 0.0
  %v4060 = vmax.f32 %v3932, 0.0
  %v4061 = vmax.f32 %v3933, 0.0
  %v4062 = vmax.f32 %v3934, 0.0
  %v4063 = vmax.f32 %v3935, 0.0
  %v4064 = vmax.f32 %v3936, 0.0
  %v4065 = vadd.f32 %v3937, %v3953
  %v4066 = vadd.f32 %v3938, %v3954
  %v4067 = vadd.f32 %v3939, %v3955
  %v4068 = vadd.f32 %v3940, %v3956
  %v4069 = vadd.f32 %v3941, %v3957
  %v4070 = vadd.f32 %v3942, %v3958
  %v4071 = vadd.f32 %v3943, %v3959
  %v4072 = vadd.f32 %v3944, %v3960
  %v4073 = vadd.f32 %v3945, %v3961
  %v4074 = vadd.f32 %v3946, %v3962
  %v4075 = vadd.f32 %v3947, %v3963
  %v4076 = vadd.f32 %v3948, %v3964
  %v4077 = vadd.f32 %v3949, %v3965
  %v4078 = vadd.f32 %v3950, %v3966
  %v4079 = vadd.f32 %v3951, %v3967
  %v4080 = vadd.f32 %v3952, %v3968
  %v4081 = vadd.f32 %v4065, %v3969
  %v4082 = vadd.f32 %v4066, %v3970
  %v4083 = vadd.f32 %v4067, %v3971
  %v4084 = vadd.f32 %v4068, %v3972
  %v4085 = vadd.f32 %v4069, %v3973
  %v4086 = vadd.f32 %v4070, %v3974
  %v4087 = vadd.f32 %v4071, %v3975
  %v4088 = vadd.f32 %v4072, %v3976
  %v4089 = vadd.f32 %v4073, %v3977
  %v4090 = vadd.f32 %v4074, %v3978
  %v4091 = vadd.f32 %v4075, %v3979
  %v4092 = vadd.f32 %v4076, %v3980
  %v4093 = vadd.f32 %v4077, %v3981
  %v4094 = vadd.f32 %v4078, %v3982
  %v4095 = vadd.f32 %v4079, %v3983
  %v4096 = vadd.f32 %v4080, %v3984
  %v4097 = vadd.f32 %v4081, %v3985
  %v4098 = vadd.f32 %v4082, %v3986
  %v4099 = vadd.f32 %v4083, %v3987
  %v4100 = vadd.f32 %v4084, %v3988
  %v4101 = vadd.f32 %v4085, %v3989
  %v4102 = vadd.f32 %v4086, %v3990
  %v4103 = vadd.f32 %v4087, %v3991
  %v4104 = vadd.f32 %v4088, %v3992
  %v4105 = vadd.f32 %v4089, %v3993
  %v4106 = vadd.f32 %v4090, %v3994
  %v4107 = vadd.f32 %v4091, %v3995
  %v4108 = vadd.f32 %v4092, %v3996
  %v4109 = vadd.f32 %v4093, %v3997
  %v4110 = vadd.f32 %v4094, %v3998
  %v4111 = vadd.f32 %v4095, %v3999
  %v4112 = vadd.f32 %v4096, %v4000
  %v4113 = vadd.f32 %v4097, %v4001
  %v4114 = vadd.f32 %v4098, %v4002
  %v4115 = vadd.f32 %v4099, %v4003
  %v4116 = vadd.f32 %v4100, %v4004
  %v4117 = vadd.f32 %v4101, %v4005
  %v4118 = vadd.f32 %v4102, %v4006
  %v4119 = vadd.f32 %v4103, %v4007
  %v4120 = vadd.f32 %v4104, %v4008
  %v4121 = vadd.f32 %v4105, %v4009
  %v4122 = vadd.f32 %v4106, %v4010
  %v4123 = vadd.f32 %v4107, %v4011
  %v4124 = vadd.f32 %v4108, %v4012
  %v4125 = vadd.f32 %v4109, %v4013
  %v4126 = vadd.f32 %v4110, %v4014
  %v4127 = vadd.f32 %v4111, %v4015
  %v4128 = vadd.f32 %v4112, %v4016
  %v4129 = vadd.f32 %v4113, %v4017
  %v4130 = vadd.f32 %v4114, %v4018
  %v4131 = vadd.f32 %v4115, %v4019
  %v4132 = vadd.f32 %v4116, %v4020
  %v4133 = vadd.f32 %v4117, %v4021
  %v4134 = vadd.f32 %v4118, %v4022
  %v4135 = vadd.f32 %v4119, %v4023
  %v4136 = vadd.f32 %v4120, %v4024
  %v4137 = vadd.f32 %v4121, %v4025
  %v4138 = vadd.f32 %v4122, %v4026
  %v4139 = vadd.f32 %v4123, %v4027
  %v4140 = vadd.f32 %v4124, %v4028
  %v4141 = vadd.f32 %v4125, %v4029
  %v4142 = vadd.f32 %v4126, %v4030
  %v4143 = vadd.f32 %v4127, %v4031
  %v4144 = vadd.f32 %v4128, %v4032
  %v4145 = vadd.f32 %v4129, %v4033
  %v4146 = vadd.f32 %v4130, %v4034
  %v4147 = vadd.f32 %v4131, %v4035
  %v4148 = vadd.f32 %v4132, %v4036
  %v4149 = vadd.f32 %v4133, %v4037
  %v4150 = vadd.f32 %v4134, %v4038
  %v4151 = vadd.f32 %v4135, %v4039
  %v4152 = vadd.f32 %v4136, %v4040
  %v4153 = vadd.f32 %v4137, %v4041
  %v4154 = vadd.f32 %v4138, %v4042
  %v4155 = vadd.f32 %v4139, %v4043
  %v4156 = vadd.f32 %v4140, %v4044
  %v4157 = vadd.f32 %v4141, %v4045
  %v4158 = vadd.f32 %v4142, %v4046
  %v4159 = vadd.f32 %v4143, %v4047
  %v4160 = vadd.f32 %v4144, %v4048
  %v4161 = vadd.f32 %v4145, %v4049
  %v4162 = vadd.f32 %v4146, %v4050
  %v4163 = vadd.f32 %v4147, %v4051
  %v4164 = vadd.f32 %v4148, %v4052
  %v4165 = vadd.f32 %v4149, %v4053
  %v4166 = vadd.f32 %v4150, %v4054
  %v4167 = vadd.f32 %v4151, %v4055
  %v4168 = vadd.f32 %v4152, %v4056
  %v4169 = vadd.f32 %v4153, %v4057
  %v4170 = vadd.f32 %v4154, %v4058
  %v4171 = vadd.f32 %v4155, %v4059
  %v4172 = vadd.f32 %v4156, %v4060
  %v4173 = vadd.f32 %v4157, %v4061
  %v4174 = vadd.f32 %v4158, %v4062
  %v4175 = vadd.f32 %v4159, %v4063
  %v4176 = vadd.f32 %v4160, %v4064
  %v4177 = vmul.f32 %v4161, 0.125
  %v4178 = vmul.f32 %v4162, 0.125
  %v4179 = vmul.f32 %v4163, 0.125
  %v4180 = vmul.f32 %v4164, 0.125
  %v4181 = vmul.f32 %v4165, 0.125
  %v4182 = vmul.f32 %v4166, 0.125
  %v4183 = vmul.f32 %v4167, 0.125
  %v4184 = vmul.f32 %v4168, 0.125
  %v4185 = vmul.f32 %v4169, 0.125
  %v4186 = vmul.f32 %v4170, 0.125
  %v4187 = vmul.f32 %v4171, 0.125
  %v4188 = vmul.f32 %v4172, 0.125
  %v4189 = vmul.f32 %v4173, 0.125
  %v4190 = vmul.f32 %v4174, 0.125
  %v4191 = vmul.f32 %v4175, 0.125
  %v4192 = vmul.f32 %v4176, 0.125
  %v4193 = vpack.c.bf16 %v4178, %v4177
  %v4194 = vpack.c.bf16 %v4180, %v4179
  %v4195 = vpack.c.bf16 %v4182, %v4181
  %v4196 = vpack.c.bf16 %v4184, %v4183
  %v4197 = vpack.c.bf16 %v4186, %v4185
  %v4198 = vpack.c.bf16 %v4188, %v4187
  %v4199 = vpack.c.bf16 %v4190, %v4189
  %v4200 = vpack.c.bf16 %v4192, %v4191
  %v4209 = vunpack.c.l.b16 %v4193
  %v4210 = vunpack.c.h.b16 %v4193
  %v4211 = vunpack.c.l.b16 %v4194
  %v4212 = vunpack.c.h.b16 %v4194
  %v4213 = vunpack.c.l.b16 %v4195
  %v4214 = vunpack.c.h.b16 %v4195
  %v4215 = vunpack.c.l.b16 %v4196
  %v4216 = vunpack.c.h.b16 %v4196
  %v4217 = vunpack.c.l.b16 %v4197
  %v4218 = vunpack.c.h.b16 %v4197
  %v4219 = vunpack.c.l.b16 %v4198
  %v4220 = vunpack.c.h.b16 %v4198
  %v4221 = vunpack.c.l.b16 %v4199
  %v4222 = vunpack.c.h.b16 %v4199
  %v4223 = vunpack.c.l.b16 %v4200
  %v4224 = vunpack.c.h.b16 %v4200
  %v4225 = vpack.c.b16 %v4209, %v4209
  %v4226 = vpack.c.b16 %v4210, %v4210
  %v4227 = vpack.c.b16 %v4211, %v4211
  %v4228 = vpack.c.b16 %v4212, %v4212
  %v4229 = vpack.c.b16 %v4213, %v4213
  %v4230 = vpack.c.b16 %v4214, %v4214
  %v4231 = vpack.c.b16 %v4215, %v4215
  %v4232 = vpack.c.b16 %v4216, %v4216
  %v4233 = vpack.c.b16 %v4217, %v4217
  %v4234 = vpack.c.b16 %v4218, %v4218
  %v4235 = vpack.c.b16 %v4219, %v4219
  %v4236 = vpack.c.b16 %v4220, %v4220
  %v4237 = vpack.c.b16 %v4221, %v4221
  %v4238 = vpack.c.b16 %v4222, %v4222
  %v4239 = vpack.c.b16 %v4223, %v4223
  %v4240 = vpack.c.b16 %v4224, %v4224
  %vm4257 = vcmask 519168
  %4258 = vst.msk [vmem:[%s2] sm:$0xf] %vm4257, %v4225
  %4259 = vst.msk [vmem:[%s2 + $0x4] sm:$0xf] %vm4257, %v4226
  %4260 = vst.msk [vmem:[%s2 + $0x8] sm:$0xf] %vm4257, %v4227
  %4261 = vst.msk [vmem:[%s2 + $0xc] sm:$0xf] %vm4257, %v4228
  %4262 = vst.msk [vmem:[%s2 + $0x10] sm:$0xf] %vm4257, %v4229
  %4263 = vst.msk [vmem:[%s2 + $0x14] sm:$0xf] %vm4257, %v4230
  %4264 = vst.msk [vmem:[%s2 + $0x18] sm:$0xf] %vm4257, %v4231
  %4265 = vst.msk [vmem:[%s2 + $0x1c] sm:$0xf] %vm4257, %v4232
  %4266 = vst.msk [vmem:[%s2 + $0x20] sm:$0xf] %vm4257, %v4233
  %4267 = vst.msk [vmem:[%s2 + $0x24] sm:$0xf] %vm4257, %v4234
  %4268 = vst.msk [vmem:[%s2 + $0x28] sm:$0xf] %vm4257, %v4235
  %4269 = vst.msk [vmem:[%s2 + $0x2c] sm:$0xf] %vm4257, %v4236
  %4270 = vst.msk [vmem:[%s2 + $0x30] sm:$0xf] %vm4257, %v4237
  %4271 = vst.msk [vmem:[%s2 + $0x34] sm:$0xf] %vm4257, %v4238
  %4272 = vst.msk [vmem:[%s2 + $0x38] sm:$0xf] %vm4257, %v4239
  %4273 = vst.msk [vmem:[%s2 + $0x3c] sm:$0xf] %vm4257, %v4240
  // Predicated region
  $region10: #{forward.4} parent=0 // pred_check
    _
  $region11: #{forward.4} parent=0 // pred_check_branch
    %4275 = sbr.rel (0) target = $region13
  $region12: #{forward.4} parent=0 // pred_region
    _
  $region13: #{forward.4} parent=0 // pred_fallthru
    _
  // Predicated region
  $region14: #{forward.4} parent=0 // pred_check
    _
  $region15: #{forward.4} parent=0 // pred_check_branch
    %4277 = sbr.rel (0) target = $region17
  $region16: #{forward.4} parent=0 // pred_region
    _
  $region17: #{forward.4} parent=0 // pred_fallthru
    _

// kernel: forward.5
$region0: #{forward.5}
  #allocation0 [shape = 'u32[]', space=smem, size = 0x4, offset = 0x4, fixed_abs, tag = 'smem constant byte address 0x4 - core index']
  #allocation1 [shape = 'u32[144,128]{1,0:T(1,128)}', space=vmem, size = 0x12000, scoped, tag = 'internal scratch']
  %s0 = inlined_call_operand.vmem [shape: bf16[16,1728], index: 0, kind: input, shape index: {}]
  %s1 = inlined_call_operand.vmem [shape: bf16[1728,64], index: 1, kind: input, shape index: {}]
  %s2 = inlined_call_operand.vmem [shape: bf16[16,64], index: 2, kind: output, shape index: {}]
  %s3 = sld [smem:[#allocation0]]
  $region18: #{forward.5} parent=0
    _
  %s5 = ssub.s32 1, %s3
  %s6 = scalar_select 0, %s5, %s3
  // Predicated region
  $region2: #{forward.5} parent=0 // pred_check
    _
  $region3: #{forward.5} parent=0 // pred_check_branch
    %8 = sbr.rel (0) target = $region5
  $region4: #{forward.5} parent=0 // pred_region
    _
  $region5: #{forward.5} parent=0 // pred_fallthru
    _
  // Predicated region
  $region6: #{forward.5} parent=0 // pred_check
    _
  $region7: #{forward.5} parent=0 // pred_check_branch
    %10 = sbr.rel (0) target = $region9
  $region8: #{forward.5} parent=0 // pred_region
    _
  $region9: #{forward.5} parent=0 // pred_fallthru
    _
  %v12 = vld [vmem:[%s0] sm:$0xff]
  %v13 = vld [vmem:[%s0 + $0x8] sm:$0xff]
  %v14 = vld [vmem:[%s0 + $0x10] sm:$0xff]
  %v15 = vld [vmem:[%s0 + $0x18] sm:$0xff]
  %v16 = vld [vmem:[%s0 + $0x20] sm:$0xff]
  %v17 = vld [vmem:[%s0 + $0x28] sm:$0xff]
  %v18 = vld [vmem:[%s0 + $0x30] sm:$0xff]
  %v19 = vld [vmem:[%s0 + $0x38] sm:$0xff]
  %v20 = vld [vmem:[%s0 + $0x40] sm:$0xff]
  %v21 = vld [vmem:[%s0 + $0x48] sm:$0xff]
  %v22 = vld [vmem:[%s0 + $0x50] sm:$0xff]
  %v23 = vld [vmem:[%s0 + $0x58] sm:$0xff]
  %v24 = vld [vmem:[%s0 + $0x60] sm:$0xff]
  %v25 = vld [vmem:[%s0 + $0x68] sm:$0xff]
  %v26 = vld [vmem:[%s1] sm:$0xf]
  %v27 = vld [vmem:[%s1 + $0x4] sm:$0xf]
  %v28 = vld [vmem:[%s1 + $0x8] sm:$0xf]
  %v29 = vld [vmem:[%s1 + $0xc] sm:$0xf]
  %v30 = vld [vmem:[%s1 + $0x10] sm:$0xf]
  %v31 = vld [vmem:[%s1 + $0x14] sm:$0xf]
  %v32 = vld [vmem:[%s1 + $0x18] sm:$0xf]
  %v33 = vld [vmem:[%s1 + $0x1c] sm:$0xf]
  %v34 = vld [vmem:[%s1 + $0x20] sm:$0xf]
  %v35 = vld [vmem:[%s1 + $0x24] sm:$0xf]
  %v36 = vld [vmem:[%s1 + $0x28] sm:$0xf]
  %v37 = vld [vmem:[%s1 + $0x2c] sm:$0xf]
  %v38 = vld [vmem:[%s1 + $0x30] sm:$0xf]
  %v39 = vld [vmem:[%s1 + $0x34] sm:$0xf]
  %v40 = vld [vmem:[%s1 + $0x38] sm:$0xf]
  %v41 = vld [vmem:[%s1 + $0x3c] sm:$0xf]
  %v42 = vld [vmem:[%s1 + $0x40] sm:$0xf]
  %v43 = vld [vmem:[%s1 + $0x44] sm:$0xf]
  %v44 = vld [vmem:[%s1 + $0x48] sm:$0xf]
  %v45 = vld [vmem:[%s1 + $0x4c] sm:$0xf]
  %v46 = vld [vmem:[%s1 + $0x50] sm:$0xf]
  %v47 = vld [vmem:[%s1 + $0x54] sm:$0xf]
  %v48 = vld [vmem:[%s1 + $0x58] sm:$0xf]
  %v49 = vld [vmem:[%s1 + $0x5c] sm:$0xf]
  %v50 = vld [vmem:[%s1 + $0x60] sm:$0xf]
  %v51 = vld [vmem:[%s1 + $0x64] sm:$0xf]
  %v52 = vld [vmem:[%s1 + $0x68] sm:$0xf]
  %v53 = vld [vmem:[%s1 + $0x6c] sm:$0xf]
  %v54 = vld [vmem:[%s1 + $0x70] sm:$0xf]
  %v55 = vld [vmem:[%s1 + $0x74] sm:$0xf]
  %v56 = vld [vmem:[%s1 + $0x78] sm:$0xf]
  %v57 = vld [vmem:[%s1 + $0x7c] sm:$0xf]
  %v58 = vld [vmem:[%s1 + $0x80] sm:$0xf]
  %v59 = vld [vmem:[%s1 + $0x84] sm:$0xf]
  %v60 = vld [vmem:[%s1 + $0x88] sm:$0xf]
  %v61 = vld [vmem:[%s1 + $0x8c] sm:$0xf]
  %v62 = vld [vmem:[%s1 + $0x90] sm:$0xf]
  %v63 = vld [vmem:[%s1 + $0x94] sm:$0xf]
  %v64 = vld [vmem:[%s1 + $0x98] sm:$0xf]
  %v65 = vld [vmem:[%s1 + $0x9c] sm:$0xf]
  %v66 = vld [vmem:[%s1 + $0xa0] sm:$0xf]
  %v67 = vld [vmem:[%s1 + $0xa4] sm:$0xf]
  %v68 = vld [vmem:[%s1 + $0xa8] sm:$0xf]
  %v69 = vld [vmem:[%s1 + $0xac] sm:$0xf]
  %v70 = vld [vmem:[%s1 + $0xb0] sm:$0xf]
  %v71 = vld [vmem:[%s1 + $0xb4] sm:$0xf]
  %v72 = vld [vmem:[%s1 + $0xb8] sm:$0xf]
  %v73 = vld [vmem:[%s1 + $0xbc] sm:$0xf]
  %v74 = vld [vmem:[%s1 + $0xc0] sm:$0xf]
  %v75 = vld [vmem:[%s1 + $0xc4] sm:$0xf]
  %v76 = vld [vmem:[%s1 + $0xc8] sm:$0xf]
  %v77 = vld [vmem:[%s1 + $0xcc] sm:$0xf]
  %v78 = vld [vmem:[%s1 + $0xd0] sm:$0xf]
  %v79 = vld [vmem:[%s1 + $0xd4] sm:$0xf]
  %v80 = vld [vmem:[%s1 + $0xd8] sm:$0xf]
  %v81 = vld [vmem:[%s1 + $0xdc] sm:$0xf]
  %v82 = vld [vmem:[%s1 + $0xe0] sm:$0xf]
  %v83 = vld [vmem:[%s1 + $0xe4] sm:$0xf]
  %v84 = vld [vmem:[%s1 + $0xe8] sm:$0xf]
  %v85 = vld [vmem:[%s1 + $0xec] sm:$0xf]
  %v86 = vld [vmem:[%s1 + $0xf0] sm:$0xf]
  %v87 = vld [vmem:[%s1 + $0xf4] sm:$0xf]
  %v88 = vld [vmem:[%s1 + $0xf8] sm:$0xf]
  %v89 = vld [vmem:[%s1 + $0xfc] sm:$0xf]
  %v90 = vld [vmem:[%s1 + $0x100] sm:$0xf]
  %v91 = vld [vmem:[%s1 + $0x104] sm:$0xf]
  %v92 = vld [vmem:[%s1 + $0x108] sm:$0xf]
  %v93 = vld [vmem:[%s1 + $0x10c] sm:$0xf]
  %v94 = vld [vmem:[%s1 + $0x110] sm:$0xf]
  %v95 = vld [vmem:[%s1 + $0x114] sm:$0xf]
  %v96 = vld [vmem:[%s1 + $0x118] sm:$0xf]
  %v97 = vld [vmem:[%s1 + $0x11c] sm:$0xf]
  %v98 = vld [vmem:[%s1 + $0x120] sm:$0xf]
  %v99 = vld [vmem:[%s1 + $0x124] sm:$0xf]
  %v100 = vld [vmem:[%s1 + $0x128] sm:$0xf]
  %v101 = vld [vmem:[%s1 + $0x12c] sm:$0xf]
  %v102 = vld [vmem:[%s1 + $0x130] sm:$0xf]
  %v103 = vld [vmem:[%s1 + $0x134] sm:$0xf]
  %v104 = vld [vmem:[%s1 + $0x138] sm:$0xf]
  %v105 = vld [vmem:[%s1 + $0x13c] sm:$0xf]
  %v106 = vld [vmem:[%s1 + $0x140] sm:$0xf]
  %v107 = vld [vmem:[%s1 + $0x144] sm:$0xf]
  %v108 = vld [vmem:[%s1 + $0x148] sm:$0xf]
  %v109 = vld [vmem:[%s1 + $0x14c] sm:$0xf]
  %v110 = vld [vmem:[%s1 + $0x150] sm:$0xf]
  %v111 = vld [vmem:[%s1 + $0x154] sm:$0xf]
  %v112 = vld [vmem:[%s1 + $0x158] sm:$0xf]
  %v113 = vld [vmem:[%s1 + $0x15c] sm:$0xf]
  %v114 = vld [vmem:[%s1 + $0x160] sm:$0xf]
  %v115 = vld [vmem:[%s1 + $0x164] sm:$0xf]
  %v116 = vld [vmem:[%s1 + $0x168] sm:$0xf]
  %v117 = vld [vmem:[%s1 + $0x16c] sm:$0xf]
  %v118 = vld [vmem:[%s1 + $0x170] sm:$0xf]
  %v119 = vld [vmem:[%s1 + $0x174] sm:$0xf]
  %v120 = vld [vmem:[%s1 + $0x178] sm:$0xf]
  %v121 = vld [vmem:[%s1 + $0x17c] sm:$0xf]
  %v122 = vld [vmem:[%s1 + $0x180] sm:$0xf]
  %v123 = vld [vmem:[%s1 + $0x184] sm:$0xf]
  %v124 = vld [vmem:[%s1 + $0x188] sm:$0xf]
  %v125 = vld [vmem:[%s1 + $0x18c] sm:$0xf]
  %v126 = vld [vmem:[%s1 + $0x190] sm:$0xf]
  %v127 = vld [vmem:[%s1 + $0x194] sm:$0xf]
  %v128 = vld [vmem:[%s1 + $0x198] sm:$0xf]
  %v129 = vld [vmem:[%s1 + $0x19c] sm:$0xf]
  %v130 = vld [vmem:[%s1 + $0x1a0] sm:$0xf]
  %v131 = vld [vmem:[%s1 + $0x1a4] sm:$0xf]
  %v132 = vld [vmem:[%s1 + $0x1a8] sm:$0xf]
  %v133 = vld [vmem:[%s1 + $0x1ac] sm:$0xf]
  %v134 = vld [vmem:[%s1 + $0x1b0] sm:$0xf]
  %v135 = vld [vmem:[%s1 + $0x1b4] sm:$0xf]
  %v136 = vld [vmem:[%s1 + $0x1b8] sm:$0xf]
  %v137 = vld [vmem:[%s1 + $0x1bc] sm:$0xf]
  %v138 = vld [vmem:[%s1 + $0x1c0] sm:$0xf]
  %v139 = vld [vmem:[%s1 + $0x1c4] sm:$0xf]
  %v140 = vld [vmem:[%s1 + $0x1c8] sm:$0xf]
  %v141 = vld [vmem:[%s1 + $0x1cc] sm:$0xf]
  %v142 = vld [vmem:[%s1 + $0x1d0] sm:$0xf]
  %v143 = vld [vmem:[%s1 + $0x1d4] sm:$0xf]
  %v144 = vld [vmem:[%s1 + $0x1d8] sm:$0xf]
  %v145 = vld [vmem:[%s1 + $0x1dc] sm:$0xf]
  %v146 = vld [vmem:[%s1 + $0x1e0] sm:$0xf]
  %v147 = vld [vmem:[%s1 + $0x1e4] sm:$0xf]
  %v148 = vld [vmem:[%s1 + $0x1e8] sm:$0xf]
  %v149 = vld [vmem:[%s1 + $0x1ec] sm:$0xf]
  %v150 = vld [vmem:[%s1 + $0x1f0] sm:$0xf]
  %v151 = vld [vmem:[%s1 + $0x1f4] sm:$0xf]
  %v152 = vld [vmem:[%s1 + $0x1f8] sm:$0xf]
  %v153 = vld [vmem:[%s1 + $0x1fc] sm:$0xf]
  %v154 = vld [vmem:[%s1 + $0x200] sm:$0xf]
  %v155 = vld [vmem:[%s1 + $0x204] sm:$0xf]
  %v156 = vld [vmem:[%s1 + $0x208] sm:$0xf]
  %v157 = vld [vmem:[%s1 + $0x20c] sm:$0xf]
  %v158 = vld [vmem:[%s1 + $0x210] sm:$0xf]
  %v159 = vld [vmem:[%s1 + $0x214] sm:$0xf]
  %v160 = vld [vmem:[%s1 + $0x218] sm:$0xf]
  %v161 = vld [vmem:[%s1 + $0x21c] sm:$0xf]
  %v162 = vld [vmem:[%s1 + $0x220] sm:$0xf]
  %v163 = vld [vmem:[%s1 + $0x224] sm:$0xf]
  %v164 = vld [vmem:[%s1 + $0x228] sm:$0xf]
  %v165 = vld [vmem:[%s1 + $0x22c] sm:$0xf]
  %v166 = vld [vmem:[%s1 + $0x230] sm:$0xf]
  %v167 = vld [vmem:[%s1 + $0x234] sm:$0xf]
  %v168 = vld [vmem:[%s1 + $0x238] sm:$0xf]
  %v169 = vld [vmem:[%s1 + $0x23c] sm:$0xf]
  %v170 = vld [vmem:[%s1 + $0x240] sm:$0xf]
  %v171 = vld [vmem:[%s1 + $0x244] sm:$0xf]
  %v172 = vld [vmem:[%s1 + $0x248] sm:$0xf]
  %v173 = vld [vmem:[%s1 + $0x24c] sm:$0xf]
  %v174 = vld [vmem:[%s1 + $0x250] sm:$0xf]
  %v175 = vld [vmem:[%s1 + $0x254] sm:$0xf]
  %v176 = vld [vmem:[%s1 + $0x258] sm:$0xf]
  %v177 = vld [vmem:[%s1 + $0x25c] sm:$0xf]
  %v178 = vld [vmem:[%s1 + $0x260] sm:$0xf]
  %v179 = vld [vmem:[%s1 + $0x264] sm:$0xf]
  %v180 = vld [vmem:[%s1 + $0x268] sm:$0xf]
  %v181 = vld [vmem:[%s1 + $0x26c] sm:$0xf]
  %v182 = vld [vmem:[%s1 + $0x270] sm:$0xf]
  %v183 = vld [vmem:[%s1 + $0x274] sm:$0xf]
  %v184 = vld [vmem:[%s1 + $0x278] sm:$0xf]
  %v185 = vld [vmem:[%s1 + $0x27c] sm:$0xf]
  %v186 = vld [vmem:[%s1 + $0x280] sm:$0xf]
  %v187 = vld [vmem:[%s1 + $0x284] sm:$0xf]
  %v188 = vld [vmem:[%s1 + $0x288] sm:$0xf]
  %v189 = vld [vmem:[%s1 + $0x28c] sm:$0xf]
  %v190 = vld [vmem:[%s1 + $0x290] sm:$0xf]
  %v191 = vld [vmem:[%s1 + $0x294] sm:$0xf]
  %v192 = vld [vmem:[%s1 + $0x298] sm:$0xf]
  %v193 = vld [vmem:[%s1 + $0x29c] sm:$0xf]
  %v194 = vld [vmem:[%s1 + $0x2a0] sm:$0xf]
  %v195 = vld [vmem:[%s1 + $0x2a4] sm:$0xf]
  %v196 = vld [vmem:[%s1 + $0x2a8] sm:$0xf]
  %v197 = vld [vmem:[%s1 + $0x2ac] sm:$0xf]
  %v198 = vld [vmem:[%s1 + $0x2b0] sm:$0xf]
  %v199 = vld [vmem:[%s1 + $0x2b4] sm:$0xf]
  %v200 = vld [vmem:[%s1 + $0x2b8] sm:$0xf]
  %v201 = vld [vmem:[%s1 + $0x2bc] sm:$0xf]
  %v202 = vld [vmem:[%s1 + $0x2c0] sm:$0xf]
  %v203 = vld [vmem:[%s1 + $0x2c4] sm:$0xf]
  %v204 = vld [vmem:[%s1 + $0x2c8] sm:$0xf]
  %v205 = vld [vmem:[%s1 + $0x2cc] sm:$0xf]
  %v206 = vld [vmem:[%s1 + $0x2d0] sm:$0xf]
  %v207 = vld [vmem:[%s1 + $0x2d4] sm:$0xf]
  %v208 = vld [vmem:[%s1 + $0x2d8] sm:$0xf]
  %v209 = vld [vmem:[%s1 + $0x2dc] sm:$0xf]
  %v210 = vld [vmem:[%s1 + $0x2e0] sm:$0xf]
  %v211 = vld [vmem:[%s1 + $0x2e4] sm:$0xf]
  %v212 = vld [vmem:[%s1 + $0x2e8] sm:$0xf]
  %v213 = vld [vmem:[%s1 + $0x2ec] sm:$0xf]
  %v214 = vld [vmem:[%s1 + $0x2f0] sm:$0xf]
  %v215 = vld [vmem:[%s1 + $0x2f4] sm:$0xf]
  %v216 = vld [vmem:[%s1 + $0x2f8] sm:$0xf]
  %v217 = vld [vmem:[%s1 + $0x2fc] sm:$0xf]
  %v218 = vld [vmem:[%s1 + $0x300] sm:$0xf]
  %v219 = vld [vmem:[%s1 + $0x304] sm:$0xf]
  %v220 = vld [vmem:[%s1 + $0x308] sm:$0xf]
  %v221 = vld [vmem:[%s1 + $0x30c] sm:$0xf]
  %v222 = vld [vmem:[%s1 + $0x310] sm:$0xf]
  %v223 = vld [vmem:[%s1 + $0x314] sm:$0xf]
  %v224 = vld [vmem:[%s1 + $0x318] sm:$0xf]
  %v225 = vld [vmem:[%s1 + $0x31c] sm:$0xf]
  %v226 = vld [vmem:[%s1 + $0x320] sm:$0xf]
  %v227 = vld [vmem:[%s1 + $0x324] sm:$0xf]
  %v228 = vld [vmem:[%s1 + $0x328] sm:$0xf]
  %v229 = vld [vmem:[%s1 + $0x32c] sm:$0xf]
  %v230 = vld [vmem:[%s1 + $0x330] sm:$0xf]
  %v231 = vld [vmem:[%s1 + $0x334] sm:$0xf]
  %v232 = vld [vmem:[%s1 + $0x338] sm:$0xf]
  %v233 = vld [vmem:[%s1 + $0x33c] sm:$0xf]
  %v234 = vld [vmem:[%s1 + $0x340] sm:$0xf]
  %v235 = vld [vmem:[%s1 + $0x344] sm:$0xf]
  %v236 = vld [vmem:[%s1 + $0x348] sm:$0xf]
  %v237 = vld [vmem:[%s1 + $0x34c] sm:$0xf]
  %v238 = vld [vmem:[%s1 + $0x350] sm:$0xf]
  %v239 = vld [vmem:[%s1 + $0x354] sm:$0xf]
  %v240 = vld [vmem:[%s1 + $0x358] sm:$0xf]
  %v241 = vld [vmem:[%s1 + $0x35c] sm:$0xf]
  %v256 = vunpack.c.l.b16 %v12
  %v257 = vunpack.c.h.b16 %v12
  %v258 = vunpack.c.l.b16 %v13
  %v259 = vunpack.c.h.b16 %v13
  %v260 = vunpack.c.l.b16 %v14
  %v261 = vunpack.c.h.b16 %v14
  %v262 = vunpack.c.l.b16 %v15
  %v263 = vunpack.c.h.b16 %v15
  %v264 = vunpack.c.l.b16 %v16
  %v265 = vunpack.c.h.b16 %v16
  %v266 = vunpack.c.l.b16 %v17
  %v267 = vunpack.c.h.b16 %v17
  %v268 = vunpack.c.l.b16 %v18
  %v269 = vunpack.c.h.b16 %v18
  %v270 = vunpack.c.l.b16 %v19
  %v271 = vunpack.c.h.b16 %v19
  %v272 = vunpack.c.l.b16 %v20
  %v273 = vunpack.c.h.b16 %v20
  %v274 = vunpack.c.l.b16 %v21
  %v275 = vunpack.c.h.b16 %v21
  %v276 = vunpack.c.l.b16 %v22
  %v277 = vunpack.c.h.b16 %v22
  %v278 = vunpack.c.l.b16 %v23
  %v279 = vunpack.c.h.b16 %v23
  %v280 = vunpack.c.l.b16 %v24
  %v281 = vunpack.c.h.b16 %v24
  %v282 = vunpack.c.l.b16 %v25
  %v283 = vunpack.c.h.b16 %v25
  %v284 = vpack.c.b16 %v270, %v256
  %v285 = vpack.c.b16 %v271, %v257
  %v286 = vpack.c.b16 %v272, %v258
  %v287 = vpack.c.b16 %v273, %v259
  %v288 = vpack.c.b16 %v274, %v260
  %v289 = vpack.c.b16 %v275, %v261
  %v290 = vpack.c.b16 %v276, %v262
  %v291 = vpack.c.b16 %v277, %v263
  %v292 = vpack.c.b16 %v278, %v264
  %v293 = vpack.c.b16 %v279, %v265
  %v294 = vpack.c.b16 %v280, %v266
  %v295 = vpack.c.b16 %v281, %v267
  %v296 = vpack.c.b16 %v282, %v268
  %v297 = vpack.c.b16 %v283, %v269
  %v527 = vunpack.c.l.b16 %v26
  %v528 = vunpack.c.l.b16 %v27
  %v529 = vunpack.c.l.b16 %v28
  %v530 = vunpack.c.l.b16 %v29
  %v531 = vunpack.c.l.b16 %v30
  %v532 = vunpack.c.l.b16 %v31
  %v533 = vunpack.c.l.b16 %v32
  %v534 = vunpack.c.l.b16 %v33
  %v535 = vunpack.c.l.b16 %v34
  %v536 = vunpack.c.l.b16 %v35
  %v537 = vunpack.c.l.b16 %v36
  %v538 = vunpack.c.l.b16 %v37
  %v539 = vunpack.c.l.b16 %v38
  %v540 = vunpack.c.l.b16 %v39
  %v541 = vunpack.c.l.b16 %v40
  %v542 = vunpack.c.l.b16 %v41
  %v543 = vunpack.c.l.b16 %v42
  %v544 = vunpack.c.l.b16 %v43
  %v545 = vunpack.c.l.b16 %v44
  %v546 = vunpack.c.l.b16 %v45
  %v547 = vunpack.c.l.b16 %v46
  %v548 = vunpack.c.l.b16 %v47
  %v549 = vunpack.c.l.b16 %v48
  %v550 = vunpack.c.l.b16 %v49
  %v551 = vunpack.c.l.b16 %v50
  %v552 = vunpack.c.l.b16 %v51
  %v553 = vunpack.c.l.b16 %v52
  %v554 = vunpack.c.l.b16 %v53
  %v555 = vunpack.c.l.b16 %v54
  %v556 = vunpack.c.l.b16 %v55
  %v557 = vunpack.c.l.b16 %v56
  %v558 = vunpack.c.l.b16 %v57
  %v559 = vunpack.c.l.b16 %v58
  %v560 = vunpack.c.l.b16 %v59
  %v561 = vunpack.c.l.b16 %v60
  %v562 = vunpack.c.l.b16 %v61
  %v563 = vunpack.c.l.b16 %v62
  %v564 = vunpack.c.l.b16 %v63
  %v565 = vunpack.c.l.b16 %v64
  %v566 = vunpack.c.l.b16 %v65
  %v567 = vunpack.c.l.b16 %v66
  %v568 = vunpack.c.l.b16 %v67
  %v569 = vunpack.c.l.b16 %v68
  %v570 = vunpack.c.l.b16 %v69
  %v571 = vunpack.c.l.b16 %v70
  %v572 = vunpack.c.l.b16 %v71
  %v573 = vunpack.c.l.b16 %v72
  %v574 = vunpack.c.l.b16 %v73
  %v575 = vunpack.c.l.b16 %v74
  %v576 = vunpack.c.l.b16 %v75
  %v577 = vunpack.c.l.b16 %v76
  %v578 = vunpack.c.l.b16 %v77
  %v579 = vunpack.c.l.b16 %v78
  %v580 = vunpack.c.l.b16 %v79
  %v581 = vunpack.c.l.b16 %v80
  %v582 = vunpack.c.l.b16 %v81
  %v583 = vunpack.c.l.b16 %v82
  %v584 = vunpack.c.l.b16 %v83
  %v585 = vunpack.c.l.b16 %v84
  %v586 = vunpack.c.l.b16 %v85
  %v587 = vunpack.c.l.b16 %v86
  %v588 = vunpack.c.l.b16 %v87
  %v589 = vunpack.c.l.b16 %v88
  %v590 = vunpack.c.l.b16 %v89
  %v591 = vunpack.c.l.b16 %v90
  %v592 = vunpack.c.l.b16 %v91
  %v593 = vunpack.c.l.b16 %v92
  %v594 = vunpack.c.l.b16 %v93
  %v595 = vunpack.c.l.b16 %v94
  %v596 = vunpack.c.l.b16 %v95
  %v597 = vunpack.c.l.b16 %v96
  %v598 = vunpack.c.l.b16 %v97
  %v599 = vunpack.c.l.b16 %v98
  %v600 = vunpack.c.l.b16 %v99
  %v601 = vunpack.c.l.b16 %v100
  %v602 = vunpack.c.l.b16 %v101
  %v603 = vunpack.c.l.b16 %v102
  %v604 = vunpack.c.l.b16 %v103
  %v605 = vunpack.c.l.b16 %v104
  %v606 = vunpack.c.l.b16 %v105
  %v607 = vunpack.c.l.b16 %v106
  %v608 = vunpack.c.l.b16 %v107
  %v609 = vunpack.c.l.b16 %v108
  %v610 = vunpack.c.l.b16 %v109
  %v611 = vunpack.c.l.b16 %v110
  %v612 = vunpack.c.l.b16 %v111
  %v613 = vunpack.c.l.b16 %v112
  %v614 = vunpack.c.l.b16 %v113
  %v615 = vunpack.c.l.b16 %v114
  %v616 = vunpack.c.l.b16 %v115
  %v617 = vunpack.c.l.b16 %v116
  %v618 = vunpack.c.l.b16 %v117
  %v619 = vunpack.c.l.b16 %v118
  %v620 = vunpack.c.l.b16 %v119
  %v621 = vunpack.c.l.b16 %v120
  %v622 = vunpack.c.l.b16 %v121
  %v623 = vunpack.c.l.b16 %v122
  %v624 = vunpack.c.l.b16 %v123
  %v625 = vunpack.c.l.b16 %v124
  %v626 = vunpack.c.l.b16 %v125
  %v627 = vunpack.c.l.b16 %v126
  %v628 = vunpack.c.l.b16 %v127
  %v629 = vunpack.c.l.b16 %v128
  %v630 = vunpack.c.l.b16 %v129
  %v631 = vunpack.c.l.b16 %v130
  %v632 = vunpack.c.l.b16 %v131
  %v633 = vunpack.c.l.b16 %v132
  %v634 = vunpack.c.l.b16 %v133
  %v635 = vunpack.c.l.b16 %v134
  %v636 = vunpack.c.l.b16 %v135
  %v637 = vunpack.c.l.b16 %v136
  %v638 = vunpack.c.l.b16 %v137
  %v639 = vunpack.c.l.b16 %v138
  %v640 = vunpack.c.l.b16 %v139
  %v641 = vunpack.c.l.b16 %v140
  %v642 = vunpack.c.l.b16 %v141
  %v643 = vunpack.c.l.b16 %v142
  %v644 = vunpack.c.l.b16 %v143
  %v645 = vunpack.c.l.b16 %v144
  %v646 = vunpack.c.l.b16 %v145
  %v647 = vunpack.c.l.b16 %v146
  %v648 = vunpack.c.l.b16 %v147
  %v649 = vunpack.c.l.b16 %v148
  %v650 = vunpack.c.l.b16 %v149
  %v651 = vunpack.c.l.b16 %v150
  %v652 = vunpack.c.l.b16 %v151
  %v653 = vunpack.c.l.b16 %v152
  %v654 = vunpack.c.l.b16 %v153
  %v655 = vunpack.c.l.b16 %v154
  %v656 = vunpack.c.l.b16 %v155
  %v657 = vunpack.c.l.b16 %v156
  %v658 = vunpack.c.l.b16 %v157
  %v659 = vunpack.c.l.b16 %v158
  %v660 = vunpack.c.l.b16 %v159
  %v661 = vunpack.c.l.b16 %v160
  %v662 = vunpack.c.l.b16 %v161
  %v663 = vunpack.c.l.b16 %v162
  %v664 = vunpack.c.l.b16 %v163
  %v665 = vunpack.c.l.b16 %v164
  %v666 = vunpack.c.l.b16 %v165
  %v667 = vunpack.c.l.b16 %v166
  %v668 = vunpack.c.l.b16 %v167
  %v669 = vunpack.c.l.b16 %v168
  %v670 = vunpack.c.l.b16 %v169
  %v671 = vunpack.c.l.b16 %v170
  %v672 = vunpack.c.l.b16 %v171
  %v673 = vunpack.c.l.b16 %v172
  %v674 = vunpack.c.l.b16 %v173
  %v675 = vunpack.c.l.b16 %v174
  %v676 = vunpack.c.l.b16 %v175
  %v677 = vunpack.c.l.b16 %v176
  %v678 = vunpack.c.l.b16 %v177
  %v679 = vunpack.c.l.b16 %v178
  %v680 = vunpack.c.l.b16 %v179
  %v681 = vunpack.c.l.b16 %v180
  %v682 = vunpack.c.l.b16 %v181
  %v683 = vunpack.c.l.b16 %v182
  %v684 = vunpack.c.l.b16 %v183
  %v685 = vunpack.c.l.b16 %v184
  %v686 = vunpack.c.l.b16 %v185
  %v687 = vunpack.c.l.b16 %v186
  %v688 = vunpack.c.l.b16 %v187
  %v689 = vunpack.c.l.b16 %v188
  %v690 = vunpack.c.l.b16 %v189
  %v691 = vunpack.c.l.b16 %v190
  %v692 = vunpack.c.l.b16 %v191
  %v693 = vunpack.c.l.b16 %v192
  %v694 = vunpack.c.l.b16 %v193
  %v695 = vunpack.c.l.b16 %v194
  %v696 = vunpack.c.l.b16 %v195
  %v697 = vunpack.c.l.b16 %v196
  %v698 = vunpack.c.l.b16 %v197
  %v699 = vunpack.c.l.b16 %v198
  %v700 = vunpack.c.l.b16 %v199
  %v701 = vunpack.c.l.b16 %v200
  %v702 = vunpack.c.l.b16 %v201
  %v703 = vunpack.c.l.b16 %v202
  %v704 = vunpack.c.l.b16 %v203
  %v705 = vunpack.c.l.b16 %v204
  %v706 = vunpack.c.l.b16 %v205
  %v707 = vunpack.c.l.b16 %v206
  %v708 = vunpack.c.l.b16 %v207
  %v709 = vunpack.c.l.b16 %v208
  %v710 = vunpack.c.l.b16 %v209
  %v711 = vunpack.c.l.b16 %v210
  %v712 = vunpack.c.l.b16 %v211
  %v713 = vunpack.c.l.b16 %v212
  %v714 = vunpack.c.l.b16 %v213
  %v715 = vunpack.c.l.b16 %v214
  %v716 = vunpack.c.l.b16 %v215
  %v717 = vunpack.c.l.b16 %v216
  %v718 = vunpack.c.l.b16 %v217
  %v719 = vunpack.c.l.b16 %v218
  %v720 = vunpack.c.l.b16 %v219
  %v721 = vunpack.c.l.b16 %v220
  %v722 = vunpack.c.l.b16 %v221
  %v723 = vunpack.c.l.b16 %v222
  %v724 = vunpack.c.l.b16 %v223
  %v725 = vunpack.c.l.b16 %v224
  %v726 = vunpack.c.l.b16 %v225
  %v727 = vunpack.c.l.b16 %v226
  %v728 = vunpack.c.l.b16 %v227
  %v729 = vunpack.c.l.b16 %v228
  %v730 = vunpack.c.l.b16 %v229
  %v731 = vunpack.c.l.b16 %v230
  %v732 = vunpack.c.l.b16 %v231
  %v733 = vunpack.c.l.b16 %v232
  %v734 = vunpack.c.l.b16 %v233
  %v735 = vunpack.c.l.b16 %v234
  %v736 = vunpack.c.l.b16 %v235
  %v737 = vunpack.c.l.b16 %v236
  %v738 = vunpack.c.l.b16 %v237
  %v739 = vunpack.c.l.b16 %v238
  %v740 = vunpack.c.l.b16 %v239
  %v741 = vunpack.c.l.b16 %v240
  %v742 = vunpack.c.l.b16 %v241
  %v743 = vpack.c.b16 %v528, %v527
  %v744 = vpack.c.b16 %v530, %v529
  %v745 = vpack.c.b16 %v532, %v531
  %v746 = vpack.c.b16 %v534, %v533
  %v747 = vpack.c.b16 %v536, %v535
  %v748 = vpack.c.b16 %v538, %v537
  %v749 = vpack.c.b16 %v540, %v539
  %v750 = vpack.c.b16 %v542, %v541
  %v751 = vpack.c.b16 %v544, %v543
  %v752 = vpack.c.b16 %v546, %v545
  %v753 = vpack.c.b16 %v548, %v547
  %v754 = vpack.c.b16 %v550, %v549
  %v755 = vpack.c.b16 %v552, %v551
  %v756 = vpack.c.b16 %v554, %v553
  %v757 = vpack.c.b16 %v556, %v555
  %v758 = vpack.c.b16 %v558, %v557
  %v759 = vpack.c.b16 %v560, %v559
  %v760 = vpack.c.b16 %v562, %v561
  %v761 = vpack.c.b16 %v564, %v563
  %v762 = vpack.c.b16 %v566, %v565
  %v763 = vpack.c.b16 %v568, %v567
  %v764 = vpack.c.b16 %v570, %v569
  %v765 = vpack.c.b16 %v572, %v571
  %v766 = vpack.c.b16 %v574, %v573
  %v767 = vpack.c.b16 %v576, %v575
  %v768 = vpack.c.b16 %v578, %v577
  %v769 = vpack.c.b16 %v580, %v579
  %v770 = vpack.c.b16 %v582, %v581
  %v771 = vpack.c.b16 %v584, %v583
  %v772 = vpack.c.b16 %v586, %v585
  %v773 = vpack.c.b16 %v588, %v587
  %v774 = vpack.c.b16 %v590, %v589
  %v775 = vpack.c.b16 %v592, %v591
  %v776 = vpack.c.b16 %v594, %v593
  %v777 = vpack.c.b16 %v596, %v595
  %v778 = vpack.c.b16 %v598, %v597
  %v779 = vpack.c.b16 %v600, %v599
  %v780 = vpack.c.b16 %v602, %v601
  %v781 = vpack.c.b16 %v604, %v603
  %v782 = vpack.c.b16 %v606, %v605
  %v783 = vpack.c.b16 %v608, %v607
  %v784 = vpack.c.b16 %v610, %v609
  %v785 = vpack.c.b16 %v612, %v611
  %v786 = vpack.c.b16 %v614, %v613
  %v787 = vpack.c.b16 %v616, %v615
  %v788 = vpack.c.b16 %v618, %v617
  %v789 = vpack.c.b16 %v620, %v619
  %v790 = vpack.c.b16 %v622, %v621
  %v791 = vpack.c.b16 %v624, %v623
  %v792 = vpack.c.b16 %v626, %v625
  %v793 = vpack.c.b16 %v628, %v627
  %v794 = vpack.c.b16 %v630, %v629
  %v795 = vpack.c.b16 %v632, %v631
  %v796 = vpack.c.b16 %v634, %v633
  %v797 = vpack.c.b16 %v636, %v635
  %v798 = vpack.c.b16 %v638, %v637
  %v799 = vpack.c.b16 %v640, %v639
  %v800 = vpack.c.b16 %v642, %v641
  %v801 = vpack.c.b16 %v644, %v643
  %v802 = vpack.c.b16 %v646, %v645
  %v803 = vpack.c.b16 %v648, %v647
  %v804 = vpack.c.b16 %v650, %v649
  %v805 = vpack.c.b16 %v652, %v651
  %v806 = vpack.c.b16 %v654, %v653
  %v807 = vpack.c.b16 %v656, %v655
  %v808 = vpack.c.b16 %v658, %v657
  %v809 = vpack.c.b16 %v660, %v659
  %v810 = vpack.c.b16 %v662, %v661
  %v811 = vpack.c.b16 %v664, %v663
  %v812 = vpack.c.b16 %v666, %v665
  %v813 = vpack.c.b16 %v668, %v667
  %v814 = vpack.c.b16 %v670, %v669
  %v815 = vpack.c.b16 %v672, %v671
  %v816 = vpack.c.b16 %v674, %v673
  %v817 = vpack.c.b16 %v676, %v675
  %v818 = vpack.c.b16 %v678, %v677
  %v819 = vpack.c.b16 %v680, %v679
  %v820 = vpack.c.b16 %v682, %v681
  %v821 = vpack.c.b16 %v684, %v683
  %v822 = vpack.c.b16 %v686, %v685
  %v823 = vpack.c.b16 %v688, %v687
  %v824 = vpack.c.b16 %v690, %v689
  %v825 = vpack.c.b16 %v692, %v691
  %v826 = vpack.c.b16 %v694, %v693
  %v827 = vpack.c.b16 %v696, %v695
  %v828 = vpack.c.b16 %v698, %v697
  %v829 = vpack.c.b16 %v700, %v699
  %v830 = vpack.c.b16 %v702, %v701
  %v831 = vpack.c.b16 %v704, %v703
  %v832 = vpack.c.b16 %v706, %v705
  %v833 = vpack.c.b16 %v708, %v707
  %v834 = vpack.c.b16 %v710, %v709
  %v835 = vpack.c.b16 %v712, %v711
  %v836 = vpack.c.b16 %v714, %v713
  %v837 = vpack.c.b16 %v716, %v715
  %v838 = vpack.c.b16 %v718, %v717
  %v839 = vpack.c.b16 %v720, %v719
  %v840 = vpack.c.b16 %v722, %v721
  %v841 = vpack.c.b16 %v724, %v723
  %v842 = vpack.c.b16 %v726, %v725
  %v843 = vpack.c.b16 %v728, %v727
  %v844 = vpack.c.b16 %v730, %v729
  %v845 = vpack.c.b16 %v732, %v731
  %v846 = vpack.c.b16 %v734, %v733
  %v847 = vpack.c.b16 %v736, %v735
  %v848 = vpack.c.b16 %v738, %v737
  %v849 = vpack.c.b16 %v740, %v739
  %v850 = vpack.c.b16 %v742, %v741
  %vm959 = vcmask 523264
  %v961 = vsel %vm959, %v297, 0
  %963 = vmatprep.subr.bf16.mxu0 0
  %964 = vmatpush1.bf16.msra.mxu0 %v750
  %965 = vmatprep.subr.bf16.mxu0 0
  %966 = vmatpush1.bf16.msra.mxu0 %v749
  %967 = vmatprep.subr.bf16.mxu0 0
  %968 = vmatpush1.bf16.msra.mxu0 %v748
  %969 = vmatprep.subr.bf16.mxu0 0
  %970 = vmatpush1.bf16.msra.mxu0 %v747
  %971 = vmatprep.subr.bf16.mxu0 0
  %972 = vmatpush1.bf16.msra.mxu0 %v746
  %973 = vmatprep.subr.bf16.mxu0 0
  %974 = vmatpush1.bf16.msra.mxu0 %v745
  %975 = vmatprep.subr.bf16.mxu0 0
  %976 = vmatpush1.bf16.msra.mxu0 %v744
  %977 = vmatprep.subr.bf16.mxu0 0
  %978 = vmatpush1.bf16.msra.mxu0 %v743
  %979 = vmatprep.subr.bf16.mxu0 0
  %980 = vmatpush2.bf16.msra.mxu0 %v758
  %981 = vmatprep.subr.bf16.mxu0 0
  %982 = vmatpush2.bf16.msra.mxu0 %v757
  %983 = vmatprep.subr.bf16.mxu0 0
  %984 = vmatpush2.bf16.msra.mxu0 %v756
  %985 = vmatprep.subr.bf16.mxu0 0
  %986 = vmatpush2.bf16.msra.mxu0 %v755
  %987 = vmatprep.subr.bf16.mxu0 0
  %988 = vmatpush2.bf16.msra.mxu0 %v754
  %989 = vmatprep.subr.bf16.mxu0 0
  %990 = vmatpush2.bf16.msra.mxu0 %v753
  %991 = vmatprep.subr.bf16.mxu0 0
  %992 = vmatpush2.bf16.msra.mxu0 %v752
  %993 = vmatprep.subr.bf16.mxu0 0
  %994 = vmatpush2.bf16.msra.mxu0 %v751
  %995 = vmatprep.mubr.bf16.mxu0 %v285
  %996 = vmatmul.mubr.bf16.gmra.mxu0 %v284
  %v997 = vpop.f32.mrf.mxu0
  %v998 = vadd.f32 0.0, %v997
  %v999 = vpop.f32.mrf.mxu0
  %v1000 = vpop.f32.mrf.mxu0
  %v1001 = vadd.f32 0.0, %v1000
  %v1002 = vpop.f32.mrf.mxu0
  %1003 = vdwg.mxu0
  %1004 = vmatprep.subr.bf16.mxu0 0
  %1005 = vmatpush1.bf16.msra.mxu0 %v766
  %1006 = vmatprep.subr.bf16.mxu0 0
  %1007 = vmatpush1.bf16.msra.mxu0 %v765
  %1008 = vmatprep.subr.bf16.mxu0 0
  %1009 = vmatpush1.bf16.msra.mxu0 %v764
  %1010 = vmatprep.subr.bf16.mxu0 0
  %1011 = vmatpush1.bf16.msra.mxu0 %v763
  %1012 = vmatprep.subr.bf16.mxu0 0
  %1013 = vmatpush1.bf16.msra.mxu0 %v762
  %1014 = vmatprep.subr.bf16.mxu0 0
  %1015 = vmatpush1.bf16.msra.mxu0 %v761
  %1016 = vmatprep.subr.bf16.mxu0 0
  %1017 = vmatpush1.bf16.msra.mxu0 %v760
  %1018 = vmatprep.subr.bf16.mxu0 0
  %1019 = vmatpush1.bf16.msra.mxu0 %v759
  %1020 = vmatprep.subr.bf16.mxu0 0
  %1021 = vmatpush2.bf16.msra.mxu0 %v774
  %1022 = vmatprep.subr.bf16.mxu0 0
  %1023 = vmatpush2.bf16.msra.mxu0 %v773
  %1024 = vmatprep.subr.bf16.mxu0 0
  %1025 = vmatpush2.bf16.msra.mxu0 %v772
  %1026 = vmatprep.subr.bf16.mxu0 0
  %1027 = vmatpush2.bf16.msra.mxu0 %v771
  %1028 = vmatprep.subr.bf16.mxu0 0
  %1029 = vmatpush2.bf16.msra.mxu0 %v770
  %1030 = vmatprep.subr.bf16.mxu0 0
  %1031 = vmatpush2.bf16.msra.mxu0 %v769
  %1032 = vmatprep.subr.bf16.mxu0 0
  %1033 = vmatpush2.bf16.msra.mxu0 %v768
  %1034 = vmatprep.subr.bf16.mxu0 0
  %1035 = vmatpush2.bf16.msra.mxu0 %v767
  %1036 = vmatprep.mubr.bf16.mxu0 %v287
  %1037 = vmatmul.mubr.bf16.gmra.mxu0 %v286
  %v1038 = vpop.f32.mrf.mxu0
  %v1039 = vadd.f32 %v998, %v1038
  %v1040 = vpop.f32.mrf.mxu0
  %v1041 = vpop.f32.mrf.mxu0
  %v1042 = vadd.f32 %v1001, %v1041
  %v1043 = vpop.f32.mrf.mxu0
  %1044 = vdwg.mxu0
  %1045 = vmatprep.subr.bf16.mxu0 0
  %1046 = vmatpush1.bf16.msra.mxu0 %v782
  %1047 = vmatprep.subr.bf16.mxu0 0
  %1048 = vmatpush1.bf16.msra.mxu0 %v781
  %1049 = vmatprep.subr.bf16.mxu0 0
  %1050 = vmatpush1.bf16.msra.mxu0 %v780
  %1051 = vmatprep.subr.bf16.mxu0 0
  %1052 = vmatpush1.bf16.msra.mxu0 %v779
  %1053 = vmatprep.subr.bf16.mxu0 0
  %1054 = vmatpush1.bf16.msra.mxu0 %v778
  %1055 = vmatprep.subr.bf16.mxu0 0
  %1056 = vmatpush1.bf16.msra.mxu0 %v777
  %1057 = vmatprep.subr.bf16.mxu0 0
  %1058 = vmatpush1.bf16.msra.mxu0 %v776
  %1059 = vmatprep.subr.bf16.mxu0 0
  %1060 = vmatpush1.bf16.msra.mxu0 %v775
  %1061 = vmatprep.subr.bf16.mxu0 0
  %1062 = vmatpush2.bf16.msra.mxu0 %v790
  %1063 = vmatprep.subr.bf16.mxu0 0
  %1064 = vmatpush2.bf16.msra.mxu0 %v789
  %1065 = vmatprep.subr.bf16.mxu0 0
  %1066 = vmatpush2.bf16.msra.mxu0 %v788
  %1067 = vmatprep.subr.bf16.mxu0 0
  %1068 = vmatpush2.bf16.msra.mxu0 %v787
  %1069 = vmatprep.subr.bf16.mxu0 0
  %1070 = vmatpush2.bf16.msra.mxu0 %v786
  %1071 = vmatprep.subr.bf16.mxu0 0
  %1072 = vmatpush2.bf16.msra.mxu0 %v785
  %1073 = vmatprep.subr.bf16.mxu0 0
  %1074 = vmatpush2.bf16.msra.mxu0 %v784
  %1075 = vmatprep.subr.bf16.mxu0 0
  %1076 = vmatpush2.bf16.msra.mxu0 %v783
  %1077 = vmatprep.mubr.bf16.mxu0 %v289
  %1078 = vmatmul.mubr.bf16.gmra.mxu0 %v288
  %v1079 = vpop.f32.mrf.mxu0
  %v1080 = vadd.f32 %v1039, %v1079
  %v1081 = vpop.f32.mrf.mxu0
  %v1082 = vpop.f32.mrf.mxu0
  %v1083 = vadd.f32 %v1042, %v1082
  %v1084 = vpop.f32.mrf.mxu0
  %1085 = vdwg.mxu0
  %1086 = vmatprep.subr.bf16.mxu0 0
  %1087 = vmatpush1.bf16.msra.mxu0 %v798
  %1088 = vmatprep.subr.bf16.mxu0 0
  %1089 = vmatpush1.bf16.msra.mxu0 %v797
  %1090 = vmatprep.subr.bf16.mxu0 0
  %1091 = vmatpush1.bf16.msra.mxu0 %v796
  %1092 = vmatprep.subr.bf16.mxu0 0
  %1093 = vmatpush1.bf16.msra.mxu0 %v795
  %1094 = vmatprep.subr.bf16.mxu0 0
  %1095 = vmatpush1.bf16.msra.mxu0 %v794
  %1096 = vmatprep.subr.bf16.mxu0 0
  %1097 = vmatpush1.bf16.msra.mxu0 %v793
  %1098 = vmatprep.subr.bf16.mxu0 0
  %1099 = vmatpush1.bf16.msra.mxu0 %v792
  %1100 = vmatprep.subr.bf16.mxu0 0
  %1101 = vmatpush1.bf16.msra.mxu0 %v791
  %1102 = vmatprep.subr.bf16.mxu0 0
  %1103 = vmatpush2.bf16.msra.mxu0 %v806
  %1104 = vmatprep.subr.bf16.mxu0 0
  %1105 = vmatpush2.bf16.msra.mxu0 %v805
  %1106 = vmatprep.subr.bf16.mxu0 0
  %1107 = vmatpush2.bf16.msra.mxu0 %v804
  %1108 = vmatprep.subr.bf16.mxu0 0
  %1109 = vmatpush2.bf16.msra.mxu0 %v803
  %1110 = vmatprep.subr.bf16.mxu0 0
  %1111 = vmatpush2.bf16.msra.mxu0 %v802
  %1112 = vmatprep.subr.bf16.mxu0 0
  %1113 = vmatpush2.bf16.msra.mxu0 %v801
  %1114 = vmatprep.subr.bf16.mxu0 0
  %1115 = vmatpush2.bf16.msra.mxu0 %v800
  %1116 = vmatprep.subr.bf16.mxu0 0
  %1117 = vmatpush2.bf16.msra.mxu0 %v799
  %1118 = vmatprep.mubr.bf16.mxu0 %v291
  %1119 = vmatmul.mubr.bf16.gmra.mxu0 %v290
  %v1120 = vpop.f32.mrf.mxu0
  %v1121 = vadd.f32 %v1080, %v1120
  %v1122 = vpop.f32.mrf.mxu0
  %v1123 = vpop.f32.mrf.mxu0
  %v1124 = vadd.f32 %v1083, %v1123
  %v1125 = vpop.f32.mrf.mxu0
  %1126 = vdwg.mxu0
  %1127 = vmatprep.subr.bf16.mxu0 0
  %1128 = vmatpush1.bf16.msra.mxu0 %v814
  %1129 = vmatprep.subr.bf16.mxu0 0
  %1130 = vmatpush1.bf16.msra.mxu0 %v813
  %1131 = vmatprep.subr.bf16.mxu0 0
  %1132 = vmatpush1.bf16.msra.mxu0 %v812
  %1133 = vmatprep.subr.bf16.mxu0 0
  %1134 = vmatpush1.bf16.msra.mxu0 %v811
  %1135 = vmatprep.subr.bf16.mxu0 0
  %1136 = vmatpush1.bf16.msra.mxu0 %v810
  %1137 = vmatprep.subr.bf16.mxu0 0
  %1138 = vmatpush1.bf16.msra.mxu0 %v809
  %1139 = vmatprep.subr.bf16.mxu0 0
  %1140 = vmatpush1.bf16.msra.mxu0 %v808
  %1141 = vmatprep.subr.bf16.mxu0 0
  %1142 = vmatpush1.bf16.msra.mxu0 %v807
  %1143 = vmatprep.subr.bf16.mxu0 0
  %1144 = vmatpush2.bf16.msra.mxu0 %v822
  %1145 = vmatprep.subr.bf16.mxu0 0
  %1146 = vmatpush2.bf16.msra.mxu0 %v821
  %1147 = vmatprep.subr.bf16.mxu0 0
  %1148 = vmatpush2.bf16.msra.mxu0 %v820
  %1149 = vmatprep.subr.bf16.mxu0 0
  %1150 = vmatpush2.bf16.msra.mxu0 %v819
  %1151 = vmatprep.subr.bf16.mxu0 0
  %1152 = vmatpush2.bf16.msra.mxu0 %v818
  %1153 = vmatprep.subr.bf16.mxu0 0
  %1154 = vmatpush2.bf16.msra.mxu0 %v817
  %1155 = vmatprep.subr.bf16.mxu0 0
  %1156 = vmatpush2.bf16.msra.mxu0 %v816
  %1157 = vmatprep.subr.bf16.mxu0 0
  %1158 = vmatpush2.bf16.msra.mxu0 %v815
  %1159 = vmatprep.mubr.bf16.mxu0 %v293
  %1160 = vmatmul.mubr.bf16.gmra.mxu0 %v292
  %v1161 = vpop.f32.mrf.mxu0
  %v1162 = vadd.f32 %v1121, %v1161
  %v1163 = vpop.f32.mrf.mxu0
  %v1164 = vpop.f32.mrf.mxu0
  %v1165 = vadd.f32 %v1124, %v1164
  %v1166 = vpop.f32.mrf.mxu0
  %1167 = vdwg.mxu0
  %1168 = vmatprep.subr.bf16.mxu0 0
  %1169 = vmatpush1.bf16.msra.mxu0 %v830
  %1170 = vmatprep.subr.bf16.mxu0 0
  %1171 = vmatpush1.bf16.msra.mxu0 %v829
  %1172 = vmatprep.subr.bf16.mxu0 0
  %1173 = vmatpush1.bf16.msra.mxu0 %v828
  %1174 = vmatprep.subr.bf16.mxu0 0
  %1175 = vmatpush1.bf16.msra.mxu0 %v827
  %1176 = vmatprep.subr.bf16.mxu0 0
  %1177 = vmatpush1.bf16.msra.mxu0 %v826
  %1178 = vmatprep.subr.bf16.mxu0 0
  %1179 = vmatpush1.bf16.msra.mxu0 %v825
  %1180 = vmatprep.subr.bf16.mxu0 0
  %1181 = vmatpush1.bf16.msra.mxu0 %v824
  %1182 = vmatprep.subr.bf16.mxu0 0
  %1183 = vmatpush1.bf16.msra.mxu0 %v823
  %1184 = vmatprep.subr.bf16.mxu0 0
  %1185 = vmatpush2.bf16.msra.mxu0 %v838
  %1186 = vmatprep.subr.bf16.mxu0 0
  %1187 = vmatpush2.bf16.msra.mxu0 %v837
  %1188 = vmatprep.subr.bf16.mxu0 0
  %1189 = vmatpush2.bf16.msra.mxu0 %v836
  %1190 = vmatprep.subr.bf16.mxu0 0
  %1191 = vmatpush2.bf16.msra.mxu0 %v835
  %1192 = vmatprep.subr.bf16.mxu0 0
  %1193 = vmatpush2.bf16.msra.mxu0 %v834
  %1194 = vmatprep.subr.bf16.mxu0 0
  %1195 = vmatpush2.bf16.msra.mxu0 %v833
  %1196 = vmatprep.subr.bf16.mxu0 0
  %1197 = vmatpush2.bf16.msra.mxu0 %v832
  %1198 = vmatprep.subr.bf16.mxu0 0
  %1199 = vmatpush2.bf16.msra.mxu0 %v831
  %1200 = vmatprep.mubr.bf16.mxu0 %v295
  %1201 = vmatmul.mubr.bf16.gmra.mxu0 %v294
  %v1202 = vpop.f32.mrf.mxu0
  %v1203 = vadd.f32 %v1162, %v1202
  %v1204 = vpop.f32.mrf.mxu0
  %v1205 = vpop.f32.mrf.mxu0
  %v1206 = vadd.f32 %v1165, %v1205
  %v1207 = vpop.f32.mrf.mxu0
  %1208 = vdwg.mxu0
  %1209 = vmatprep.subr.bf16.mxu0 0
  %1210 = vmatpush1.bf16.msra.mxu0 %v846
  %1211 = vmatprep.subr.bf16.mxu0 0
  %1212 = vmatpush1.bf16.msra.mxu0 %v845
  %1213 = vmatprep.subr.bf16.mxu0 0
  %1214 = vmatpush1.bf16.msra.mxu0 %v844
  %1215 = vmatprep.subr.bf16.mxu0 0
  %1216 = vmatpush1.bf16.msra.mxu0 %v843
  %1217 = vmatprep.subr.bf16.mxu0 0
  %1218 = vmatpush1.bf16.msra.mxu0 %v842
  %1219 = vmatprep.subr.bf16.mxu0 0
  %1220 = vmatpush1.bf16.msra.mxu0 %v841
  %1221 = vmatprep.subr.bf16.mxu0 0
  %1222 = vmatpush1.bf16.msra.mxu0 %v840
  %1223 = vmatprep.subr.bf16.mxu0 0
  %1224 = vmatpush1.bf16.msra.mxu0 %v839
  %1225 = vmatprep.subr.bf16.mxu0 0
  %1226 = vmatpush2.bf16.msra.mxu0 0
  %1227 = vmatprep.subr.bf16.mxu0 0
  %1228 = vmatpush2.bf16.msra.mxu0 0
  %1229 = vmatprep.subr.bf16.mxu0 0
  %1230 = vmatpush2.bf16.msra.mxu0 0
  %1231 = vmatprep.subr.bf16.mxu0 0
  %1232 = vmatpush2.bf16.msra.mxu0 0
  %1233 = vmatprep.subr.bf16.mxu0 0
  %1234 = vmatpush2.bf16.msra.mxu0 %v850
  %1235 = vmatprep.subr.bf16.mxu0 0
  %1236 = vmatpush2.bf16.msra.mxu0 %v849
  %1237 = vmatprep.subr.bf16.mxu0 0
  %1238 = vmatpush2.bf16.msra.mxu0 %v848
  %1239 = vmatprep.subr.bf16.mxu0 0
  %1240 = vmatpush2.bf16.msra.mxu0 %v847
  %1241 = vmatprep.mubr.bf16.mxu0 %v961
  %1242 = vmatmul.mubr.bf16.gmra.mxu0 %v296
  %v1243 = vpop.f32.mrf.mxu0
  %v1244 = vadd.f32 %v1203, %v1243
  %v1245 = vpop.f32.mrf.mxu0
  %v1246 = vpop.f32.mrf.mxu0
  %v1247 = vadd.f32 %v1206, %v1246
  %v1248 = vpop.f32.mrf.mxu0
  %1249 = vdwg.mxu0
  %v1250 = vsel %vm959, %v1244, 0.0
  %v1251 = vsel %vm959, %v1247, 0.0
  %v1252 = vadd.f32 %v1250, %v1251
  %v1253 = vrot.slane %v1252, 4
  %v1254 = vadd.f32 %v1252, %v1253
  %v1255 = vrot.slane %v1254, 2
  %v1256 = vadd.f32 %v1254, %v1255
  %v1257 = vrot.slane %v1256, 1
  %v1258 = vadd.f32 %v1256, %v1257
  %v1259 = vmul.f32 %v1244, %v1244
  %v1260 = vmul.f32 %v1247, %v1247
  %v1261 = vsel %vm959, %v1259, 0.0
  %v1262 = vsel %vm959, %v1260, 0.0
  %v1263 = vadd.f32 %v1261, %v1262
  %v1264 = vrot.slane %v1263, 4
  %v1265 = vadd.f32 %v1263, %v1264
  %v1266 = vrot.slane %v1265, 2
  %v1267 = vadd.f32 %v1265, %v1266
  %v1268 = vrot.slane %v1267, 1
  %v1269 = vadd.f32 %v1267, %v1268
  %v1270 = vmul.f32 %v1258, 0.0625
  %v1271 = vmul.f32 %v1269, 0.0625
  %v1272 = vmul.f32 %v1270, %v1270
  %v1273 = vsub.f32 %v1271, %v1272
  %v1274 = vmax.f32 %v1273, 0.0
  %v1275 = vsub.f32 %v1244, %v1270
  %v1276 = vsub.f32 %v1247, %v1270
  %v1277 = vadd.f32 %v1274, 1e-05
  %v1278 = vrsqrt.pop %v1277
  %v1279 = vmul.f32 %v1275, %v1278
  %v1280 = vmul.f32 %v1276, %v1278
  %v1281 = vmax.f32 %v1279, 0.0
  %v1282 = vmax.f32 %v1280, 0.0
  %v1283 = vpack.c.bf16 %v1282, %v1281
  %v1285 = vunpack.c.l.b16 %v1283
  %v1286 = vunpack.c.h.b16 %v1283
  %v1287 = vpack.c.b16 %v1285, %v1285
  %v1288 = vpack.c.b16 %v1286, %v1286
  %vm1291 = vcmask 519168
  %1292 = vst.msk [vmem:[%s2] sm:$0xf] %vm1291, %v1287
  %1293 = vst.msk [vmem:[%s2 + $0x4] sm:$0xf] %vm1291, %v1288
  // Predicated region
  $region10: #{forward.5} parent=0 // pred_check
    _
  $region11: #{forward.5} parent=0 // pred_check_branch
    %1295 = sbr.rel (0) target = $region13
  $region12: #{forward.5} parent=0 // pred_region
    _
  $region13: #{forward.5} parent=0 // pred_fallthru
    _
  // Predicated region
  $region14: #{forward.5} parent=0 // pred_check
    _
  $region15: #{forward.5} parent=0 // pred_check_branch
    %1297 = sbr.rel (0) target = $region17
  $region16: #{forward.5} parent=0 // pred_region
    _
  $region17: #{forward.5} parent=0 // pred_fallthru
    _

// kernel: forward.6
$region0: #{forward.6}
  #allocation0 [shape = 'u32[]', space=smem, size = 0x4, offset = 0x4, fixed_abs, tag = 'smem constant byte address 0x4 - core index']
  #allocation1 [shape = 'u32[144,128]{1,0:T(1,128)}', space=vmem, size = 0x12000, scoped, tag = 'internal scratch']
  %s0 = inlined_call_operand.vmem [shape: bf16[16,1728], index: 0, kind: input, shape index: {}]
  %s1 = inlined_call_operand.vmem [shape: bf16[1728,64], index: 1, kind: input, shape index: {}]
  %s2 = inlined_call_operand.vmem [shape: bf16[16,64], index: 2, kind: input, shape index: {}]
  %s3 = inlined_call_operand.vmem [shape: bf16[64,64], index: 3, kind: input, shape index: {}]
  %s4 = inlined_call_operand.vmem [shape: bf16[16,64], index: 4, kind: output, shape index: {}]
  %s5 = sld [smem:[#allocation0]]
  $region26: #{forward.6} parent=0
    _
  %s7 = ssub.s32 1, %s5
  %s8 = scalar_select 0, %s7, %s5
  // Predicated region
  $region2: #{forward.6} parent=0 // pred_check
    _
  $region3: #{forward.6} parent=0 // pred_check_branch
    %10 = sbr.rel (0) target = $region5
  $region4: #{forward.6} parent=0 // pred_region
    _
  $region5: #{forward.6} parent=0 // pred_fallthru
    _
  // Predicated region
  $region6: #{forward.6} parent=0 // pred_check
    _
  $region7: #{forward.6} parent=0 // pred_check_branch
    %12 = sbr.rel (0) target = $region9
  $region8: #{forward.6} parent=0 // pred_region
    _
  $region9: #{forward.6} parent=0 // pred_fallthru
    _
  // Predicated region
  $region10: #{forward.6} parent=0 // pred_check
    _
  $region11: #{forward.6} parent=0 // pred_check_branch
    %14 = sbr.rel (0) target = $region13
  $region12: #{forward.6} parent=0 // pred_region
    _
  $region13: #{forward.6} parent=0 // pred_fallthru
    _
  // Predicated region
  $region14: #{forward.6} parent=0 // pred_check
    _
  $region15: #{forward.6} parent=0 // pred_check_branch
    %16 = sbr.rel (0) target = $region17
  $region16: #{forward.6} parent=0 // pred_region
    _
  $region17: #{forward.6} parent=0 // pred_fallthru
    _
  %v18 = vld [vmem:[%s0] sm:$0xff]
  %v19 = vld [vmem:[%s0 + $0x8] sm:$0xff]
  %v20 = vld [vmem:[%s0 + $0x10] sm:$0xff]
  %v21 = vld [vmem:[%s0 + $0x18] sm:$0xff]
  %v22 = vld [vmem:[%s0 + $0x20] sm:$0xff]
  %v23 = vld [vmem:[%s0 + $0x28] sm:$0xff]
  %v24 = vld [vmem:[%s0 + $0x30] sm:$0xff]
  %v25 = vld [vmem:[%s0 + $0x38] sm:$0xff]
  %v26 = vld [vmem:[%s0 + $0x40] sm:$0xff]
  %v27 = vld [vmem:[%s0 + $0x48] sm:$0xff]
  %v28 = vld [vmem:[%s0 + $0x50] sm:$0xff]
  %v29 = vld [vmem:[%s0 + $0x58] sm:$0xff]
  %v30 = vld [vmem:[%s0 + $0x60] sm:$0xff]
  %v31 = vld [vmem:[%s0 + $0x68] sm:$0xff]
  %v32 = vld [vmem:[%s1] sm:$0xf]
  %v33 = vld [vmem:[%s1 + $0x4] sm:$0xf]
  %v34 = vld [vmem:[%s1 + $0x8] sm:$0xf]
  %v35 = vld [vmem:[%s1 + $0xc] sm:$0xf]
  %v36 = vld [vmem:[%s1 + $0x10] sm:$0xf]
  %v37 = vld [vmem:[%s1 + $0x14] sm:$0xf]
  %v38 = vld [vmem:[%s1 + $0x18] sm:$0xf]
  %v39 = vld [vmem:[%s1 + $0x1c] sm:$0xf]
  %v40 = vld [vmem:[%s1 + $0x20] sm:$0xf]
  %v41 = vld [vmem:[%s1 + $0x24] sm:$0xf]
  %v42 = vld [vmem:[%s1 + $0x28] sm:$0xf]
  %v43 = vld [vmem:[%s1 + $0x2c] sm:$0xf]
  %v44 = vld [vmem:[%s1 + $0x30] sm:$0xf]
  %v45 = vld [vmem:[%s1 + $0x34] sm:$0xf]
  %v46 = vld [vmem:[%s1 + $0x38] sm:$0xf]
  %v47 = vld [vmem:[%s1 + $0x3c] sm:$0xf]
  %v48 = vld [vmem:[%s1 + $0x40] sm:$0xf]
  %v49 = vld [vmem:[%s1 + $0x44] sm:$0xf]
  %v50 = vld [vmem:[%s1 + $0x48] sm:$0xf]
  %v51 = vld [vmem:[%s1 + $0x4c] sm:$0xf]
  %v52 = vld [vmem:[%s1 + $0x50] sm:$0xf]
  %v53 = vld [vmem:[%s1 + $0x54] sm:$0xf]
  %v54 = vld [vmem:[%s1 + $0x58] sm:$0xf]
  %v55 = vld [vmem:[%s1 + $0x5c] sm:$0xf]
  %v56 = vld [vmem:[%s1 + $0x60] sm:$0xf]
  %v57 = vld [vmem:[%s1 + $0x64] sm:$0xf]
  %v58 = vld [vmem:[%s1 + $0x68] sm:$0xf]
  %v59 = vld [vmem:[%s1 + $0x6c] sm:$0xf]
  %v60 = vld [vmem:[%s1 + $0x70] sm:$0xf]
  %v61 = vld [vmem:[%s1 + $0x74] sm:$0xf]
  %v62 = vld [vmem:[%s1 + $0x78] sm:$0xf]
  %v63 = vld [vmem:[%s1 + $0x7c] sm:$0xf]
  %v64 = vld [vmem:[%s1 + $0x80] sm:$0xf]
  %v65 = vld [vmem:[%s1 + $0x84] sm:$0xf]
  %v66 = vld [vmem:[%s1 + $0x88] sm:$0xf]
  %v67 = vld [vmem:[%s1 + $0x8c] sm:$0xf]
  %v68 = vld [vmem:[%s1 + $0x90] sm:$0xf]
  %v69 = vld [vmem:[%s1 + $0x94] sm:$0xf]
  %v70 = vld [vmem:[%s1 + $0x98] sm:$0xf]
  %v71 = vld [vmem:[%s1 + $0x9c] sm:$0xf]
  %v72 = vld [vmem:[%s1 + $0xa0] sm:$0xf]
  %v73 = vld [vmem:[%s1 + $0xa4] sm:$0xf]
  %v74 = vld [vmem:[%s1 + $0xa8] sm:$0xf]
  %v75 = vld [vmem:[%s1 + $0xac] sm:$0xf]
  %v76 = vld [vmem:[%s1 + $0xb0] sm:$0xf]
  %v77 = vld [vmem:[%s1 + $0xb4] sm:$0xf]
  %v78 = vld [vmem:[%s1 + $0xb8] sm:$0xf]
  %v79 = vld [vmem:[%s1 + $0xbc] sm:$0xf]
  %v80 = vld [vmem:[%s1 + $0xc0] sm:$0xf]
  %v81 = vld [vmem:[%s1 + $0xc4] sm:$0xf]
  %v82 = vld [vmem:[%s1 + $0xc8] sm:$0xf]
  %v83 = vld [vmem:[%s1 + $0xcc] sm:$0xf]
  %v84 = vld [vmem:[%s1 + $0xd0] sm:$0xf]
  %v85 = vld [vmem:[%s1 + $0xd4] sm:$0xf]
  %v86 = vld [vmem:[%s1 + $0xd8] sm:$0xf]
  %v87 = vld [vmem:[%s1 + $0xdc] sm:$0xf]
  %v88 = vld [vmem:[%s1 + $0xe0] sm:$0xf]
  %v89 = vld [vmem:[%s1 + $0xe4] sm:$0xf]
  %v90 = vld [vmem:[%s1 + $0xe8] sm:$0xf]
  %v91 = vld [vmem:[%s1 + $0xec] sm:$0xf]
  %v92 = vld [vmem:[%s1 + $0xf0] sm:$0xf]
  %v93 = vld [vmem:[%s1 + $0xf4] sm:$0xf]
  %v94 = vld [vmem:[%s1 + $0xf8] sm:$0xf]
  %v95 = vld [vmem:[%s1 + $0xfc] sm:$0xf]
  %v96 = vld [vmem:[%s1 + $0x100] sm:$0xf]
  %v97 = vld [vmem:[%s1 + $0x104] sm:$0xf]
  %v98 = vld [vmem:[%s1 + $0x108] sm:$0xf]
  %v99 = vld [vmem:[%s1 + $0x10c] sm:$0xf]
  %v100 = vld [vmem:[%s1 + $0x110] sm:$0xf]
  %v101 = vld [vmem:[%s1 + $0x114] sm:$0xf]
  %v102 = vld [vmem:[%s1 + $0x118] sm:$0xf]
  %v103 = vld [vmem:[%s1 + $0x11c] sm:$0xf]
  %v104 = vld [vmem:[%s1 + $0x120] sm:$0xf]
  %v105 = vld [vmem:[%s1 + $0x124] sm:$0xf]
  %v106 = vld [vmem:[%s1 + $0x128] sm:$0xf]
  %v107 = vld [vmem:[%s1 + $0x12c] sm:$0xf]
  %v108 = vld [vmem:[%s1 + $0x130] sm:$0xf]
  %v109 = vld [vmem:[%s1 + $0x134] sm:$0xf]
  %v110 = vld [vmem:[%s1 + $0x138] sm:$0xf]
  %v111 = vld [vmem:[%s1 + $0x13c] sm:$0xf]
  %v112 = vld [vmem:[%s1 + $0x140] sm:$0xf]
  %v113 = vld [vmem:[%s1 + $0x144] sm:$0xf]
  %v114 = vld [vmem:[%s1 + $0x148] sm:$0xf]
  %v115 = vld [vmem:[%s1 + $0x14c] sm:$0xf]
  %v116 = vld [vmem:[%s1 + $0x150] sm:$0xf]
  %v117 = vld [vmem:[%s1 + $0x154] sm:$0xf]
  %v118 = vld [vmem:[%s1 + $0x158] sm:$0xf]
  %v119 = vld [vmem:[%s1 + $0x15c] sm:$0xf]
  %v120 = vld [vmem:[%s1 + $0x160] sm:$0xf]
  %v121 = vld [vmem:[%s1 + $0x164] sm:$0xf]
  %v122 = vld [vmem:[%s1 + $0x168] sm:$0xf]
  %v123 = vld [vmem:[%s1 + $0x16c] sm:$0xf]
  %v124 = vld [vmem:[%s1 + $0x170] sm:$0xf]
  %v125 = vld [vmem:[%s1 + $0x174] sm:$0xf]
  %v126 = vld [vmem:[%s1 + $0x178] sm:$0xf]
  %v127 = vld [vmem:[%s1 + $0x17c] sm:$0xf]
  %v128 = vld [vmem:[%s1 + $0x180] sm:$0xf]
  %v129 = vld [vmem:[%s1 + $0x184] sm:$0xf]
  %v130 = vld [vmem:[%s1 + $0x188] sm:$0xf]
  %v131 = vld [vmem:[%s1 + $0x18c] sm:$0xf]
  %v132 = vld [vmem:[%s1 + $0x190] sm:$0xf]
  %v133 = vld [vmem:[%s1 + $0x194] sm:$0xf]
  %v134 = vld [vmem:[%s1 + $0x198] sm:$0xf]
  %v135 = vld [vmem:[%s1 + $0x19c] sm:$0xf]
  %v136 = vld [vmem:[%s1 + $0x1a0] sm:$0xf]
  %v137 = vld [vmem:[%s1 + $0x1a4] sm:$0xf]
  %v138 = vld [vmem:[%s1 + $0x1a8] sm:$0xf]
  %v139 = vld [vmem:[%s1 + $0x1ac] sm:$0xf]
  %v140 = vld [vmem:[%s1 + $0x1b0] sm:$0xf]
  %v141 = vld [vmem:[%s1 + $0x1b4] sm:$0xf]
  %v142 = vld [vmem:[%s1 + $0x1b8] sm:$0xf]
  %v143 = vld [vmem:[%s1 + $0x1bc] sm:$0xf]
  %v144 = vld [vmem:[%s1 + $0x1c0] sm:$0xf]
  %v145 = vld [vmem:[%s1 + $0x1c4] sm:$0xf]
  %v146 = vld [vmem:[%s1 + $0x1c8] sm:$0xf]
  %v147 = vld [vmem:[%s1 + $0x1cc] sm:$0xf]
  %v148 = vld [vmem:[%s1 + $0x1d0] sm:$0xf]
  %v149 = vld [vmem:[%s1 + $0x1d4] sm:$0xf]
  %v150 = vld [vmem:[%s1 + $0x1d8] sm:$0xf]
  %v151 = vld [vmem:[%s1 + $0x1dc] sm:$0xf]
  %v152 = vld [vmem:[%s1 + $0x1e0] sm:$0xf]
  %v153 = vld [vmem:[%s1 + $0x1e4] sm:$0xf]
  %v154 = vld [vmem:[%s1 + $0x1e8] sm:$0xf]
  %v155 = vld [vmem:[%s1 + $0x1ec] sm:$0xf]
  %v156 = vld [vmem:[%s1 + $0x1f0] sm:$0xf]
  %v157 = vld [vmem:[%s1 + $0x1f4] sm:$0xf]
  %v158 = vld [vmem:[%s1 + $0x1f8] sm:$0xf]
  %v159 = vld [vmem:[%s1 + $0x1fc] sm:$0xf]
  %v160 = vld [vmem:[%s1 + $0x200] sm:$0xf]
  %v161 = vld [vmem:[%s1 + $0x204] sm:$0xf]
  %v162 = vld [vmem:[%s1 + $0x208] sm:$0xf]
  %v163 = vld [vmem:[%s1 + $0x20c] sm:$0xf]
  %v164 = vld [vmem:[%s1 + $0x210] sm:$0xf]
  %v165 = vld [vmem:[%s1 + $0x214] sm:$0xf]
  %v166 = vld [vmem:[%s1 + $0x218] sm:$0xf]
  %v167 = vld [vmem:[%s1 + $0x21c] sm:$0xf]
  %v168 = vld [vmem:[%s1 + $0x220] sm:$0xf]
  %v169 = vld [vmem:[%s1 + $0x224] sm:$0xf]
  %v170 = vld [vmem:[%s1 + $0x228] sm:$0xf]
  %v171 = vld [vmem:[%s1 + $0x22c] sm:$0xf]
  %v172 = vld [vmem:[%s1 + $0x230] sm:$0xf]
  %v173 = vld [vmem:[%s1 + $0x234] sm:$0xf]
  %v174 = vld [vmem:[%s1 + $0x238] sm:$0xf]
  %v175 = vld [vmem:[%s1 + $0x23c] sm:$0xf]
  %v176 = vld [vmem:[%s1 + $0x240] sm:$0xf]
  %v177 = vld [vmem:[%s1 + $0x244] sm:$0xf]
  %v178 = vld [vmem:[%s1 + $0x248] sm:$0xf]
  %v179 = vld [vmem:[%s1 + $0x24c] sm:$0xf]
  %v180 = vld [vmem:[%s1 + $0x250] sm:$0xf]
  %v181 = vld [vmem:[%s1 + $0x254] sm:$0xf]
  %v182 = vld [vmem:[%s1 + $0x258] sm:$0xf]
  %v183 = vld [vmem:[%s1 + $0x25c] sm:$0xf]
  %v184 = vld [vmem:[%s1 + $0x260] sm:$0xf]
  %v185 = vld [vmem:[%s1 + $0x264] sm:$0xf]
  %v186 = vld [vmem:[%s1 + $0x268] sm:$0xf]
  %v187 = vld [vmem:[%s1 + $0x26c] sm:$0xf]
  %v188 = vld [vmem:[%s1 + $0x270] sm:$0xf]
  %v189 = vld [vmem:[%s1 + $0x274] sm:$0xf]
  %v190 = vld [vmem:[%s1 + $0x278] sm:$0xf]
  %v191 = vld [vmem:[%s1 + $0x27c] sm:$0xf]
  %v192 = vld [vmem:[%s1 + $0x280] sm:$0xf]
  %v193 = vld [vmem:[%s1 + $0x284] sm:$0xf]
  %v194 = vld [vmem:[%s1 + $0x288] sm:$0xf]
  %v195 = vld [vmem:[%s1 + $0x28c] sm:$0xf]
  %v196 = vld [vmem:[%s1 + $0x290] sm:$0xf]
  %v197 = vld [vmem:[%s1 + $0x294] sm:$0xf]
  %v198 = vld [vmem:[%s1 + $0x298] sm:$0xf]
  %v199 = vld [vmem:[%s1 + $0x29c] sm:$0xf]
  %v200 = vld [vmem:[%s1 + $0x2a0] sm:$0xf]
  %v201 = vld [vmem:[%s1 + $0x2a4] sm:$0xf]
  %v202 = vld [vmem:[%s1 + $0x2a8] sm:$0xf]
  %v203 = vld [vmem:[%s1 + $0x2ac] sm:$0xf]
  %v204 = vld [vmem:[%s1 + $0x2b0] sm:$0xf]
  %v205 = vld [vmem:[%s1 + $0x2b4] sm:$0xf]
  %v206 = vld [vmem:[%s1 + $0x2b8] sm:$0xf]
  %v207 = vld [vmem:[%s1 + $0x2bc] sm:$0xf]
  %v208 = vld [vmem:[%s1 + $0x2c0] sm:$0xf]
  %v209 = vld [vmem:[%s1 + $0x2c4] sm:$0xf]
  %v210 = vld [vmem:[%s1 + $0x2c8] sm:$0xf]
  %v211 = vld [vmem:[%s1 + $0x2cc] sm:$0xf]
  %v212 = vld [vmem:[%s1 + $0x2d0] sm:$0xf]
  %v213 = vld [vmem:[%s1 + $0x2d4] sm:$0xf]
  %v214 = vld [vmem:[%s1 + $0x2d8] sm:$0xf]
  %v215 = vld [vmem:[%s1 + $0x2dc] sm:$0xf]
  %v216 = vld [vmem:[%s1 + $0x2e0] sm:$0xf]
  %v217 = vld [vmem:[%s1 + $0x2e4] sm:$0xf]
  %v218 = vld [vmem:[%s1 + $0x2e8] sm:$0xf]
  %v219 = vld [vmem:[%s1 + $0x2ec] sm:$0xf]
  %v220 = vld [vmem:[%s1 + $0x2f0] sm:$0xf]
  %v221 = vld [vmem:[%s1 + $0x2f4] sm:$0xf]
  %v222 = vld [vmem:[%s1 + $0x2f8] sm:$0xf]
  %v223 = vld [vmem:[%s1 + $0x2fc] sm:$0xf]
  %v224 = vld [vmem:[%s1 + $0x300] sm:$0xf]
  %v225 = vld [vmem:[%s1 + $0x304] sm:$0xf]
  %v226 = vld [vmem:[%s1 + $0x308] sm:$0xf]
  %v227 = vld [vmem:[%s1 + $0x30c] sm:$0xf]
  %v228 = vld [vmem:[%s1 + $0x310] sm:$0xf]
  %v229 = vld [vmem:[%s1 + $0x314] sm:$0xf]
  %v230 = vld [vmem:[%s1 + $0x318] sm:$0xf]
  %v231 = vld [vmem:[%s1 + $0x31c] sm:$0xf]
  %v232 = vld [vmem:[%s1 + $0x320] sm:$0xf]
  %v233 = vld [vmem:[%s1 + $0x324] sm:$0xf]
  %v234 = vld [vmem:[%s1 + $0x328] sm:$0xf]
  %v235 = vld [vmem:[%s1 + $0x32c] sm:$0xf]
  %v236 = vld [vmem:[%s1 + $0x330] sm:$0xf]
  %v237 = vld [vmem:[%s1 + $0x334] sm:$0xf]
  %v238 = vld [vmem:[%s1 + $0x338] sm:$0xf]
  %v239 = vld [vmem:[%s1 + $0x33c] sm:$0xf]
  %v240 = vld [vmem:[%s1 + $0x340] sm:$0xf]
  %v241 = vld [vmem:[%s1 + $0x344] sm:$0xf]
  %v242 = vld [vmem:[%s1 + $0x348] sm:$0xf]
  %v243 = vld [vmem:[%s1 + $0x34c] sm:$0xf]
  %v244 = vld [vmem:[%s1 + $0x350] sm:$0xf]
  %v245 = vld [vmem:[%s1 + $0x354] sm:$0xf]
  %v246 = vld [vmem:[%s1 + $0x358] sm:$0xf]
  %v247 = vld [vmem:[%s1 + $0x35c] sm:$0xf]
  %v262 = vunpack.c.l.b16 %v18
  %v263 = vunpack.c.h.b16 %v18
  %v264 = vunpack.c.l.b16 %v19
  %v265 = vunpack.c.h.b16 %v19
  %v266 = vunpack.c.l.b16 %v20
  %v267 = vunpack.c.h.b16 %v20
  %v268 = vunpack.c.l.b16 %v21
  %v269 = vunpack.c.h.b16 %v21
  %v270 = vunpack.c.l.b16 %v22
  %v271 = vunpack.c.h.b16 %v22
  %v272 = vunpack.c.l.b16 %v23
  %v273 = vunpack.c.h.b16 %v23
  %v274 = vunpack.c.l.b16 %v24
  %v275 = vunpack.c.h.b16 %v24
  %v276 = vunpack.c.l.b16 %v25
  %v277 = vunpack.c.h.b16 %v25
  %v278 = vunpack.c.l.b16 %v26
  %v279 = vunpack.c.h.b16 %v26
  %v280 = vunpack.c.l.b16 %v27
  %v281 = vunpack.c.h.b16 %v27
  %v282 = vunpack.c.l.b16 %v28
  %v283 = vunpack.c.h.b16 %v28
  %v284 = vunpack.c.l.b16 %v29
  %v285 = vunpack.c.h.b16 %v29
  %v286 = vunpack.c.l.b16 %v30
  %v287 = vunpack.c.h.b16 %v30
  %v288 = vunpack.c.l.b16 %v31
  %v289 = vunpack.c.h.b16 %v31
  %v290 = vpack.c.b16 %v276, %v262
  %v291 = vpack.c.b16 %v277, %v263
  %v292 = vpack.c.b16 %v278, %v264
  %v293 = vpack.c.b16 %v279, %v265
  %v294 = vpack.c.b16 %v280, %v266
  %v295 = vpack.c.b16 %v281, %v267
  %v296 = vpack.c.b16 %v282, %v268
  %v297 = vpack.c.b16 %v283, %v269
  %v298 = vpack.c.b16 %v284, %v270
  %v299 = vpack.c.b16 %v285, %v271
  %v300 = vpack.c.b16 %v286, %v272
  %v301 = vpack.c.b16 %v287, %v273
  %v302 = vpack.c.b16 %v288, %v274
  %v303 = vpack.c.b16 %v289, %v275
  %v533 = vunpack.c.l.b16 %v32
  %v534 = vunpack.c.l.b16 %v33
  %v535 = vunpack.c.l.b16 %v34
  %v536 = vunpack.c.l.b16 %v35
  %v537 = vunpack.c.l.b16 %v36
  %v538 = vunpack.c.l.b16 %v37
  %v539 = vunpack.c.l.b16 %v38
  %v540 = vunpack.c.l.b16 %v39
  %v541 = vunpack.c.l.b16 %v40
  %v542 = vunpack.c.l.b16 %v41
  %v543 = vunpack.c.l.b16 %v42
  %v544 = vunpack.c.l.b16 %v43
  %v545 = vunpack.c.l.b16 %v44
  %v546 = vunpack.c.l.b16 %v45
  %v547 = vunpack.c.l.b16 %v46
  %v548 = vunpack.c.l.b16 %v47
  %v549 = vunpack.c.l.b16 %v48
  %v550 = vunpack.c.l.b16 %v49
  %v551 = vunpack.c.l.b16 %v50
  %v552 = vunpack.c.l.b16 %v51
  %v553 = vunpack.c.l.b16 %v52
  %v554 = vunpack.c.l.b16 %v53
  %v555 = vunpack.c.l.b16 %v54
  %v556 = vunpack.c.l.b16 %v55
  %v557 = vunpack.c.l.b16 %v56
  %v558 = vunpack.c.l.b16 %v57
  %v559 = vunpack.c.l.b16 %v58
  %v560 = vunpack.c.l.b16 %v59
  %v561 = vunpack.c.l.b16 %v60
  %v562 = vunpack.c.l.b16 %v61
  %v563 = vunpack.c.l.b16 %v62
  %v564 = vunpack.c.l.b16 %v63
  %v565 = vunpack.c.l.b16 %v64
  %v566 = vunpack.c.l.b16 %v65
  %v567 = vunpack.c.l.b16 %v66
  %v568 = vunpack.c.l.b16 %v67
  %v569 = vunpack.c.l.b16 %v68
  %v570 = vunpack.c.l.b16 %v69
  %v571 = vunpack.c.l.b16 %v70
  %v572 = vunpack.c.l.b16 %v71
  %v573 = vunpack.c.l.b16 %v72
  %v574 = vunpack.c.l.b16 %v73
  %v575 = vunpack.c.l.b16 %v74
  %v576 = vunpack.c.l.b16 %v75
  %v577 = vunpack.c.l.b16 %v76
  %v578 = vunpack.c.l.b16 %v77
  %v579 = vunpack.c.l.b16 %v78
  %v580 = vunpack.c.l.b16 %v79
  %v581 = vunpack.c.l.b16 %v80
  %v582 = vunpack.c.l.b16 %v81
  %v583 = vunpack.c.l.b16 %v82
  %v584 = vunpack.c.l.b16 %v83
  %v585 = vunpack.c.l.b16 %v84
  %v586 = vunpack.c.l.b16 %v85
  %v587 = vunpack.c.l.b16 %v86
  %v588 = vunpack.c.l.b16 %v87
  %v589 = vunpack.c.l.b16 %v88
  %v590 = vunpack.c.l.b16 %v89
  %v591 = vunpack.c.l.b16 %v90
  %v592 = vunpack.c.l.b16 %v91
  %v593 = vunpack.c.l.b16 %v92
  %v594 = vunpack.c.l.b16 %v93
  %v595 = vunpack.c.l.b16 %v94
  %v596 = vunpack.c.l.b16 %v95
  %v597 = vunpack.c.l.b16 %v96
  %v598 = vunpack.c.l.b16 %v97
  %v599 = vunpack.c.l.b16 %v98
  %v600 = vunpack.c.l.b16 %v99
  %v601 = vunpack.c.l.b16 %v100
  %v602 = vunpack.c.l.b16 %v101
  %v603 = vunpack.c.l.b16 %v102
  %v604 = vunpack.c.l.b16 %v103
  %v605 = vunpack.c.l.b16 %v104
  %v606 = vunpack.c.l.b16 %v105
  %v607 = vunpack.c.l.b16 %v106
  %v608 = vunpack.c.l.b16 %v107
  %v609 = vunpack.c.l.b16 %v108
  %v610 = vunpack.c.l.b16 %v109
  %v611 = vunpack.c.l.b16 %v110
  %v612 = vunpack.c.l.b16 %v111
  %v613 = vunpack.c.l.b16 %v112
  %v614 = vunpack.c.l.b16 %v113
  %v615 = vunpack.c.l.b16 %v114
  %v616 = vunpack.c.l.b16 %v115
  %v617 = vunpack.c.l.b16 %v116
  %v618 = vunpack.c.l.b16 %v117
  %v619 = vunpack.c.l.b16 %v118
  %v620 = vunpack.c.l.b16 %v119
  %v621 = vunpack.c.l.b16 %v120
  %v622 = vunpack.c.l.b16 %v121
  %v623 = vunpack.c.l.b16 %v122
  %v624 = vunpack.c.l.b16 %v123
  %v625 = vunpack.c.l.b16 %v124
  %v626 = vunpack.c.l.b16 %v125
  %v627 = vunpack.c.l.b16 %v126
  %v628 = vunpack.c.l.b16 %v127
  %v629 = vunpack.c.l.b16 %v128
  %v630 = vunpack.c.l.b16 %v129
  %v631 = vunpack.c.l.b16 %v130
  %v632 = vunpack.c.l.b16 %v131
  %v633 = vunpack.c.l.b16 %v132
  %v634 = vunpack.c.l.b16 %v133
  %v635 = vunpack.c.l.b16 %v134
  %v636 = vunpack.c.l.b16 %v135
  %v637 = vunpack.c.l.b16 %v136
  %v638 = vunpack.c.l.b16 %v137
  %v639 = vunpack.c.l.b16 %v138
  %v640 = vunpack.c.l.b16 %v139
  %v641 = vunpack.c.l.b16 %v140
  %v642 = vunpack.c.l.b16 %v141
  %v643 = vunpack.c.l.b16 %v142
  %v644 = vunpack.c.l.b16 %v143
  %v645 = vunpack.c.l.b16 %v144
  %v646 = vunpack.c.l.b16 %v145
  %v647 = vunpack.c.l.b16 %v146
  %v648 = vunpack.c.l.b16 %v147
  %v649 = vunpack.c.l.b16 %v148
  %v650 = vunpack.c.l.b16 %v149
  %v651 = vunpack.c.l.b16 %v150
  %v652 = vunpack.c.l.b16 %v151
  %v653 = vunpack.c.l.b16 %v152
  %v654 = vunpack.c.l.b16 %v153
  %v655 = vunpack.c.l.b16 %v154
  %v656 = vunpack.c.l.b16 %v155
  %v657 = vunpack.c.l.b16 %v156
  %v658 = vunpack.c.l.b16 %v157
  %v659 = vunpack.c.l.b16 %v158
  %v660 = vunpack.c.l.b16 %v159
  %v661 = vunpack.c.l.b16 %v160
  %v662 = vunpack.c.l.b16 %v161
  %v663 = vunpack.c.l.b16 %v162
  %v664 = vunpack.c.l.b16 %v163
  %v665 = vunpack.c.l.b16 %v164
  %v666 = vunpack.c.l.b16 %v165
  %v667 = vunpack.c.l.b16 %v166
  %v668 = vunpack.c.l.b16 %v167
  %v669 = vunpack.c.l.b16 %v168
  %v670 = vunpack.c.l.b16 %v169
  %v671 = vunpack.c.l.b16 %v170
  %v672 = vunpack.c.l.b16 %v171
  %v673 = vunpack.c.l.b16 %v172
  %v674 = vunpack.c.l.b16 %v173
  %v675 = vunpack.c.l.b16 %v174
  %v676 = vunpack.c.l.b16 %v175
  %v677 = vunpack.c.l.b16 %v176
  %v678 = vunpack.c.l.b16 %v177
  %v679 = vunpack.c.l.b16 %v178
  %v680 = vunpack.c.l.b16 %v179
  %v681 = vunpack.c.l.b16 %v180
  %v682 = vunpack.c.l.b16 %v181
  %v683 = vunpack.c.l.b16 %v182
  %v684 = vunpack.c.l.b16 %v183
  %v685 = vunpack.c.l.b16 %v184
  %v686 = vunpack.c.l.b16 %v185
  %v687 = vunpack.c.l.b16 %v186
  %v688 = vunpack.c.l.b16 %v187
  %v689 = vunpack.c.l.b16 %v188
  %v690 = vunpack.c.l.b16 %v189
  %v691 = vunpack.c.l.b16 %v190
  %v692 = vunpack.c.l.b16 %v191
  %v693 = vunpack.c.l.b16 %v192
  %v694 = vunpack.c.l.b16 %v193
  %v695 = vunpack.c.l.b16 %v194
  %v696 = vunpack.c.l.b16 %v195
  %v697 = vunpack.c.l.b16 %v196
  %v698 = vunpack.c.l.b16 %v197
  %v699 = vunpack.c.l.b16 %v198
  %v700 = vunpack.c.l.b16 %v199
  %v701 = vunpack.c.l.b16 %v200
  %v702 = vunpack.c.l.b16 %v201
  %v703 = vunpack.c.l.b16 %v202
  %v704 = vunpack.c.l.b16 %v203
  %v705 = vunpack.c.l.b16 %v204
  %v706 = vunpack.c.l.b16 %v205
  %v707 = vunpack.c.l.b16 %v206
  %v708 = vunpack.c.l.b16 %v207
  %v709 = vunpack.c.l.b16 %v208
  %v710 = vunpack.c.l.b16 %v209
  %v711 = vunpack.c.l.b16 %v210
  %v712 = vunpack.c.l.b16 %v211
  %v713 = vunpack.c.l.b16 %v212
  %v714 = vunpack.c.l.b16 %v213
  %v715 = vunpack.c.l.b16 %v214
  %v716 = vunpack.c.l.b16 %v215
  %v717 = vunpack.c.l.b16 %v216
  %v718 = vunpack.c.l.b16 %v217
  %v719 = vunpack.c.l.b16 %v218
  %v720 = vunpack.c.l.b16 %v219
  %v721 = vunpack.c.l.b16 %v220
  %v722 = vunpack.c.l.b16 %v221
  %v723 = vunpack.c.l.b16 %v222
  %v724 = vunpack.c.l.b16 %v223
  %v725 = vunpack.c.l.b16 %v224
  %v726 = vunpack.c.l.b16 %v225
  %v727 = vunpack.c.l.b16 %v226
  %v728 = vunpack.c.l.b16 %v227
  %v729 = vunpack.c.l.b16 %v228
  %v730 = vunpack.c.l.b16 %v229
  %v731 = vunpack.c.l.b16 %v230
  %v732 = vunpack.c.l.b16 %v231
  %v733 = vunpack.c.l.b16 %v232
  %v734 = vunpack.c.l.b16 %v233
  %v735 = vunpack.c.l.b16 %v234
  %v736 = vunpack.c.l.b16 %v235
  %v737 = vunpack.c.l.b16 %v236
  %v738 = vunpack.c.l.b16 %v237
  %v739 = vunpack.c.l.b16 %v238
  %v740 = vunpack.c.l.b16 %v239
  %v741 = vunpack.c.l.b16 %v240
  %v742 = vunpack.c.l.b16 %v241
  %v743 = vunpack.c.l.b16 %v242
  %v744 = vunpack.c.l.b16 %v243
  %v745 = vunpack.c.l.b16 %v244
  %v746 = vunpack.c.l.b16 %v245
  %v747 = vunpack.c.l.b16 %v246
  %v748 = vunpack.c.l.b16 %v247
  %v749 = vpack.c.b16 %v534, %v533
  %v750 = vpack.c.b16 %v536, %v535
  %v751 = vpack.c.b16 %v538, %v537
  %v752 = vpack.c.b16 %v540, %v539
  %v753 = vpack.c.b16 %v542, %v541
  %v754 = vpack.c.b16 %v544, %v543
  %v755 = vpack.c.b16 %v546, %v545
  %v756 = vpack.c.b16 %v548, %v547
  %v757 = vpack.c.b16 %v550, %v549
  %v758 = vpack.c.b16 %v552, %v551
  %v759 = vpack.c.b16 %v554, %v553
  %v760 = vpack.c.b16 %v556, %v555
  %v761 = vpack.c.b16 %v558, %v557
  %v762 = vpack.c.b16 %v560, %v559
  %v763 = vpack.c.b16 %v562, %v561
  %v764 = vpack.c.b16 %v564, %v563
  %v765 = vpack.c.b16 %v566, %v565
  %v766 = vpack.c.b16 %v568, %v567
  %v767 = vpack.c.b16 %v570, %v569
  %v768 = vpack.c.b16 %v572, %v571
  %v769 = vpack.c.b16 %v574, %v573
  %v770 = vpack.c.b16 %v576, %v575
  %v771 = vpack.c.b16 %v578, %v577
  %v772 = vpack.c.b16 %v580, %v579
  %v773 = vpack.c.b16 %v582, %v581
  %v774 = vpack.c.b16 %v584, %v583
  %v775 = vpack.c.b16 %v586, %v585
  %v776 = vpack.c.b16 %v588, %v587
  %v777 = vpack.c.b16 %v590, %v589
  %v778 = vpack.c.b16 %v592, %v591
  %v779 = vpack.c.b16 %v594, %v593
  %v780 = vpack.c.b16 %v596, %v595
  %v781 = vpack.c.b16 %v598, %v597
  %v782 = vpack.c.b16 %v600, %v599
  %v783 = vpack.c.b16 %v602, %v601
  %v784 = vpack.c.b16 %v604, %v603
  %v785 = vpack.c.b16 %v606, %v605
  %v786 = vpack.c.b16 %v608, %v607
  %v787 = vpack.c.b16 %v610, %v609
  %v788 = vpack.c.b16 %v612, %v611
  %v789 = vpack.c.b16 %v614, %v613
  %v790 = vpack.c.b16 %v616, %v615
  %v791 = vpack.c.b16 %v618, %v617
  %v792 = vpack.c.b16 %v620, %v619
  %v793 = vpack.c.b16 %v622, %v621
  %v794 = vpack.c.b16 %v624, %v623
  %v795 = vpack.c.b16 %v626, %v625
  %v796 = vpack.c.b16 %v628, %v627
  %v797 = vpack.c.b16 %v630, %v629
  %v798 = vpack.c.b16 %v632, %v631
  %v799 = vpack.c.b16 %v634, %v633
  %v800 = vpack.c.b16 %v636, %v635
  %v801 = vpack.c.b16 %v638, %v637
  %v802 = vpack.c.b16 %v640, %v639
  %v803 = vpack.c.b16 %v642, %v641
  %v804 = vpack.c.b16 %v644, %v643
  %v805 = vpack.c.b16 %v646, %v645
  %v806 = vpack.c.b16 %v648, %v647
  %v807 = vpack.c.b16 %v650, %v649
  %v808 = vpack.c.b16 %v652, %v651
  %v809 = vpack.c.b16 %v654, %v653
  %v810 = vpack.c.b16 %v656, %v655
  %v811 = vpack.c.b16 %v658, %v657
  %v812 = vpack.c.b16 %v660, %v659
  %v813 = vpack.c.b16 %v662, %v661
  %v814 = vpack.c.b16 %v664, %v663
  %v815 = vpack.c.b16 %v666, %v665
  %v816 = vpack.c.b16 %v668, %v667
  %v817 = vpack.c.b16 %v670, %v669
  %v818 = vpack.c.b16 %v672, %v671
  %v819 = vpack.c.b16 %v674, %v673
  %v820 = vpack.c.b16 %v676, %v675
  %v821 = vpack.c.b16 %v678, %v677
  %v822 = vpack.c.b16 %v680, %v679
  %v823 = vpack.c.b16 %v682, %v681
  %v824 = vpack.c.b16 %v684, %v683
  %v825 = vpack.c.b16 %v686, %v685
  %v826 = vpack.c.b16 %v688, %v687
  %v827 = vpack.c.b16 %v690, %v689
  %v828 = vpack.c.b16 %v692, %v691
  %v829 = vpack.c.b16 %v694, %v693
  %v830 = vpack.c.b16 %v696, %v695
  %v831 = vpack.c.b16 %v698, %v697
  %v832 = vpack.c.b16 %v700, %v699
  %v833 = vpack.c.b16 %v702, %v701
  %v834 = vpack.c.b16 %v704, %v703
  %v835 = vpack.c.b16 %v706, %v705
  %v836 = vpack.c.b16 %v708, %v707
  %v837 = vpack.c.b16 %v710, %v709
  %v838 = vpack.c.b16 %v712, %v711
  %v839 = vpack.c.b16 %v714, %v713
  %v840 = vpack.c.b16 %v716, %v715
  %v841 = vpack.c.b16 %v718, %v717
  %v842 = vpack.c.b16 %v720, %v719
  %v843 = vpack.c.b16 %v722, %v721
  %v844 = vpack.c.b16 %v724, %v723
  %v845 = vpack.c.b16 %v726, %v725
  %v846 = vpack.c.b16 %v728, %v727
  %v847 = vpack.c.b16 %v730, %v729
  %v848 = vpack.c.b16 %v732, %v731
  %v849 = vpack.c.b16 %v734, %v733
  %v850 = vpack.c.b16 %v736, %v735
  %v851 = vpack.c.b16 %v738, %v737
  %v852 = vpack.c.b16 %v740, %v739
  %v853 = vpack.c.b16 %v742, %v741
  %v854 = vpack.c.b16 %v744, %v743
  %v855 = vpack.c.b16 %v746, %v745
  %v856 = vpack.c.b16 %v748, %v747
  %vm965 = vcmask 523264
  %v967 = vsel %vm965, %v303, 0
  %969 = vmatprep.subr.bf16.mxu0 0
  %970 = vmatpush1.bf16.msra.mxu0 %v756
  %971 = vmatprep.subr.bf16.mxu0 0
  %972 = vmatpush1.bf16.msra.mxu0 %v755
  %973 = vmatprep.subr.bf16.mxu0 0
  %974 = vmatpush1.bf16.msra.mxu0 %v754
  %975 = vmatprep.subr.bf16.mxu0 0
  %976 = vmatpush1.bf16.msra.mxu0 %v753
  %977 = vmatprep.subr.bf16.mxu0 0
  %978 = vmatpush1.bf16.msra.mxu0 %v752
  %979 = vmatprep.subr.bf16.mxu0 0
  %980 = vmatpush1.bf16.msra.mxu0 %v751
  %981 = vmatprep.subr.bf16.mxu0 0
  %982 = vmatpush1.bf16.msra.mxu0 %v750
  %983 = vmatprep.subr.bf16.mxu0 0
  %984 = vmatpush1.bf16.msra.mxu0 %v749
  %985 = vmatprep.subr.bf16.mxu0 0
  %986 = vmatpush2.bf16.msra.mxu0 %v764
  %987 = vmatprep.subr.bf16.mxu0 0
  %988 = vmatpush2.bf16.msra.mxu0 %v763
  %989 = vmatprep.subr.bf16.mxu0 0
  %990 = vmatpush2.bf16.msra.mxu0 %v762
  %991 = vmatprep.subr.bf16.mxu0 0
  %992 = vmatpush2.bf16.msra.mxu0 %v761
  %993 = vmatprep.subr.bf16.mxu0 0
  %994 = vmatpush2.bf16.msra.mxu0 %v760
  %995 = vmatprep.subr.bf16.mxu0 0
  %996 = vmatpush2.bf16.msra.mxu0 %v759
  %997 = vmatprep.subr.bf16.mxu0 0
  %998 = vmatpush2.bf16.msra.mxu0 %v758
  %999 = vmatprep.subr.bf16.mxu0 0
  %1000 = vmatpush2.bf16.msra.mxu0 %v757
  %1001 = vmatprep.mubr.bf16.mxu0 %v291
  %1002 = vmatmul.mubr.bf16.gmra.mxu0 %v290
  %v1003 = vpop.f32.mrf.mxu0
  %v1004 = vadd.f32 0.0, %v1003
  %v1005 = vpop.f32.mrf.mxu0
  %v1006 = vpop.f32.mrf.mxu0
  %v1007 = vadd.f32 0.0, %v1006
  %v1008 = vpop.f32.mrf.mxu0
  %1009 = vdwg.mxu0
  %1010 = vmatprep.subr.bf16.mxu0 0
  %1011 = vmatpush1.bf16.msra.mxu0 %v772
  %1012 = vmatprep.subr.bf16.mxu0 0
  %1013 = vmatpush1.bf16.msra.mxu0 %v771
  %1014 = vmatprep.subr.bf16.mxu0 0
  %1015 = vmatpush1.bf16.msra.mxu0 %v770
  %1016 = vmatprep.subr.bf16.mxu0 0
  %1017 = vmatpush1.bf16.msra.mxu0 %v769
  %1018 = vmatprep.subr.bf16.mxu0 0
  %1019 = vmatpush1.bf16.msra.mxu0 %v768
  %1020 = vmatprep.subr.bf16.mxu0 0
  %1021 = vmatpush1.bf16.msra.mxu0 %v767
  %1022 = vmatprep.subr.bf16.mxu0 0
  %1023 = vmatpush1.bf16.msra.mxu0 %v766
  %1024 = vmatprep.subr.bf16.mxu0 0
  %1025 = vmatpush1.bf16.msra.mxu0 %v765
  %1026 = vmatprep.subr.bf16.mxu0 0
  %1027 = vmatpush2.bf16.msra.mxu0 %v780
  %1028 = vmatprep.subr.bf16.mxu0 0
  %1029 = vmatpush2.bf16.msra.mxu0 %v779
  %1030 = vmatprep.subr.bf16.mxu0 0
  %1031 = vmatpush2.bf16.msra.mxu0 %v778
  %1032 = vmatprep.subr.bf16.mxu0 0
  %1033 = vmatpush2.bf16.msra.mxu0 %v777
  %1034 = vmatprep.subr.bf16.mxu0 0
  %1035 = vmatpush2.bf16.msra.mxu0 %v776
  %1036 = vmatprep.subr.bf16.mxu0 0
  %1037 = vmatpush2.bf16.msra.mxu0 %v775
  %1038 = vmatprep.subr.bf16.mxu0 0
  %1039 = vmatpush2.bf16.msra.mxu0 %v774
  %1040 = vmatprep.subr.bf16.mxu0 0
  %1041 = vmatpush2.bf16.msra.mxu0 %v773
  %1042 = vmatprep.mubr.bf16.mxu0 %v293
  %1043 = vmatmul.mubr.bf16.gmra.mxu0 %v292
  %v1044 = vpop.f32.mrf.mxu0
  %v1045 = vadd.f32 %v1004, %v1044
  %v1046 = vpop.f32.mrf.mxu0
  %v1047 = vpop.f32.mrf.mxu0
  %v1048 = vadd.f32 %v1007, %v1047
  %v1049 = vpop.f32.mrf.mxu0
  %1050 = vdwg.mxu0
  %1051 = vmatprep.subr.bf16.mxu0 0
  %1052 = vmatpush1.bf16.msra.mxu0 %v788
  %1053 = vmatprep.subr.bf16.mxu0 0
  %1054 = vmatpush1.bf16.msra.mxu0 %v787
  %1055 = vmatprep.subr.bf16.mxu0 0
  %1056 = vmatpush1.bf16.msra.mxu0 %v786
  %1057 = vmatprep.subr.bf16.mxu0 0
  %1058 = vmatpush1.bf16.msra.mxu0 %v785
  %1059 = vmatprep.subr.bf16.mxu0 0
  %1060 = vmatpush1.bf16.msra.mxu0 %v784
  %1061 = vmatprep.subr.bf16.mxu0 0
  %1062 = vmatpush1.bf16.msra.mxu0 %v783
  %1063 = vmatprep.subr.bf16.mxu0 0
  %1064 = vmatpush1.bf16.msra.mxu0 %v782
  %1065 = vmatprep.subr.bf16.mxu0 0
  %1066 = vmatpush1.bf16.msra.mxu0 %v781
  %1067 = vmatprep.subr.bf16.mxu0 0
  %1068 = vmatpush2.bf16.msra.mxu0 %v796
  %1069 = vmatprep.subr.bf16.mxu0 0
  %1070 = vmatpush2.bf16.msra.mxu0 %v795
  %1071 = vmatprep.subr.bf16.mxu0 0
  %1072 = vmatpush2.bf16.msra.mxu0 %v794
  %1073 = vmatprep.subr.bf16.mxu0 0
  %1074 = vmatpush2.bf16.msra.mxu0 %v793
  %1075 = vmatprep.subr.bf16.mxu0 0
  %1076 = vmatpush2.bf16.msra.mxu0 %v792
  %1077 = vmatprep.subr.bf16.mxu0 0
  %1078 = vmatpush2.bf16.msra.mxu0 %v791
  %1079 = vmatprep.subr.bf16.mxu0 0
  %1080 = vmatpush2.bf16.msra.mxu0 %v790
  %1081 = vmatprep.subr.bf16.mxu0 0
  %1082 = vmatpush2.bf16.msra.mxu0 %v789
  %1083 = vmatprep.mubr.bf16.mxu0 %v295
  %1084 = vmatmul.mubr.bf16.gmra.mxu0 %v294
  %v1085 = vpop.f32.mrf.mxu0
  %v1086 = vadd.f32 %v1045, %v1085
  %v1087 = vpop.f32.mrf.mxu0
  %v1088 = vpop.f32.mrf.mxu0
  %v1089 = vadd.f32 %v1048, %v1088
  %v1090 = vpop.f32.mrf.mxu0
  %1091 = vdwg.mxu0
  %1092 = vmatprep.subr.bf16.mxu0 0
  %1093 = vmatpush1.bf16.msra.mxu0 %v804
  %1094 = vmatprep.subr.bf16.mxu0 0
  %1095 = vmatpush1.bf16.msra.mxu0 %v803
  %1096 = vmatprep.subr.bf16.mxu0 0
  %1097 = vmatpush1.bf16.msra.mxu0 %v802
  %1098 = vmatprep.subr.bf16.mxu0 0
  %1099 = vmatpush1.bf16.msra.mxu0 %v801
  %1100 = vmatprep.subr.bf16.mxu0 0
  %1101 = vmatpush1.bf16.msra.mxu0 %v800
  %1102 = vmatprep.subr.bf16.mxu0 0
  %1103 = vmatpush1.bf16.msra.mxu0 %v799
  %1104 = vmatprep.subr.bf16.mxu0 0
  %1105 = vmatpush1.bf16.msra.mxu0 %v798
  %1106 = vmatprep.subr.bf16.mxu0 0
  %1107 = vmatpush1.bf16.msra.mxu0 %v797
  %1108 = vmatprep.subr.bf16.mxu0 0
  %1109 = vmatpush2.bf16.msra.mxu0 %v812
  %1110 = vmatprep.subr.bf16.mxu0 0
  %1111 = vmatpush2.bf16.msra.mxu0 %v811
  %1112 = vmatprep.subr.bf16.mxu0 0
  %1113 = vmatpush2.bf16.msra.mxu0 %v810
  %1114 = vmatprep.subr.bf16.mxu0 0
  %1115 = vmatpush2.bf16.msra.mxu0 %v809
  %1116 = vmatprep.subr.bf16.mxu0 0
  %1117 = vmatpush2.bf16.msra.mxu0 %v808
  %1118 = vmatprep.subr.bf16.mxu0 0
  %1119 = vmatpush2.bf16.msra.mxu0 %v807
  %1120 = vmatprep.subr.bf16.mxu0 0
  %1121 = vmatpush2.bf16.msra.mxu0 %v806
  %1122 = vmatprep.subr.bf16.mxu0 0
  %1123 = vmatpush2.bf16.msra.mxu0 %v805
  %1124 = vmatprep.mubr.bf16.mxu0 %v297
  %1125 = vmatmul.mubr.bf16.gmra.mxu0 %v296
  %v1126 = vpop.f32.mrf.mxu0
  %v1127 = vadd.f32 %v1086, %v1126
  %v1128 = vpop.f32.mrf.mxu0
  %v1129 = vpop.f32.mrf.mxu0
  %v1130 = vadd.f32 %v1089, %v1129
  %v1131 = vpop.f32.mrf.mxu0
  %1132 = vdwg.mxu0
  %1133 = vmatprep.subr.bf16.mxu0 0
  %1134 = vmatpush1.bf16.msra.mxu0 %v820
  %1135 = vmatprep.subr.bf16.mxu0 0
  %1136 = vmatpush1.bf16.msra.mxu0 %v819
  %1137 = vmatprep.subr.bf16.mxu0 0
  %1138 = vmatpush1.bf16.msra.mxu0 %v818
  %1139 = vmatprep.subr.bf16.mxu0 0
  %1140 = vmatpush1.bf16.msra.mxu0 %v817
  %1141 = vmatprep.subr.bf16.mxu0 0
  %1142 = vmatpush1.bf16.msra.mxu0 %v816
  %1143 = vmatprep.subr.bf16.mxu0 0
  %1144 = vmatpush1.bf16.msra.mxu0 %v815
  %1145 = vmatprep.subr.bf16.mxu0 0
  %1146 = vmatpush1.bf16.msra.mxu0 %v814
  %1147 = vmatprep.subr.bf16.mxu0 0
  %1148 = vmatpush1.bf16.msra.mxu0 %v813
  %1149 = vmatprep.subr.bf16.mxu0 0
  %1150 = vmatpush2.bf16.msra.mxu0 %v828
  %1151 = vmatprep.subr.bf16.mxu0 0
  %1152 = vmatpush2.bf16.msra.mxu0 %v827
  %1153 = vmatprep.subr.bf16.mxu0 0
  %1154 = vmatpush2.bf16.msra.mxu0 %v826
  %1155 = vmatprep.subr.bf16.mxu0 0
  %1156 = vmatpush2.bf16.msra.mxu0 %v825
  %1157 = vmatprep.subr.bf16.mxu0 0
  %1158 = vmatpush2.bf16.msra.mxu0 %v824
  %1159 = vmatprep.subr.bf16.mxu0 0
  %1160 = vmatpush2.bf16.msra.mxu0 %v823
  %1161 = vmatprep.subr.bf16.mxu0 0
  %1162 = vmatpush2.bf16.msra.mxu0 %v822
  %1163 = vmatprep.subr.bf16.mxu0 0
  %1164 = vmatpush2.bf16.msra.mxu0 %v821
  %1165 = vmatprep.mubr.bf16.mxu0 %v299
  %1166 = vmatmul.mubr.bf16.gmra.mxu0 %v298
  %v1167 = vpop.f32.mrf.mxu0
  %v1168 = vadd.f32 %v1127, %v1167
  %v1169 = vpop.f32.mrf.mxu0
  %v1170 = vpop.f32.mrf.mxu0
  %v1171 = vadd.f32 %v1130, %v1170
  %v1172 = vpop.f32.mrf.mxu0
  %1173 = vdwg.mxu0
  %1174 = vmatprep.subr.bf16.mxu0 0
  %1175 = vmatpush1.bf16.msra.mxu0 %v836
  %1176 = vmatprep.subr.bf16.mxu0 0
  %1177 = vmatpush1.bf16.msra.mxu0 %v835
  %1178 = vmatprep.subr.bf16.mxu0 0
  %1179 = vmatpush1.bf16.msra.mxu0 %v834
  %1180 = vmatprep.subr.bf16.mxu0 0
  %1181 = vmatpush1.bf16.msra.mxu0 %v833
  %1182 = vmatprep.subr.bf16.mxu0 0
  %1183 = vmatpush1.bf16.msra.mxu0 %v832
  %1184 = vmatprep.subr.bf16.mxu0 0
  %1185 = vmatpush1.bf16.msra.mxu0 %v831
  %1186 = vmatprep.subr.bf16.mxu0 0
  %1187 = vmatpush1.bf16.msra.mxu0 %v830
  %1188 = vmatprep.subr.bf16.mxu0 0
  %1189 = vmatpush1.bf16.msra.mxu0 %v829
  %1190 = vmatprep.subr.bf16.mxu0 0
  %1191 = vmatpush2.bf16.msra.mxu0 %v844
  %1192 = vmatprep.subr.bf16.mxu0 0
  %1193 = vmatpush2.bf16.msra.mxu0 %v843
  %1194 = vmatprep.subr.bf16.mxu0 0
  %1195 = vmatpush2.bf16.msra.mxu0 %v842
  %1196 = vmatprep.subr.bf16.mxu0 0
  %1197 = vmatpush2.bf16.msra.mxu0 %v841
  %1198 = vmatprep.subr.bf16.mxu0 0
  %1199 = vmatpush2.bf16.msra.mxu0 %v840
  %1200 = vmatprep.subr.bf16.mxu0 0
  %1201 = vmatpush2.bf16.msra.mxu0 %v839
  %1202 = vmatprep.subr.bf16.mxu0 0
  %1203 = vmatpush2.bf16.msra.mxu0 %v838
  %1204 = vmatprep.subr.bf16.mxu0 0
  %1205 = vmatpush2.bf16.msra.mxu0 %v837
  %1206 = vmatprep.mubr.bf16.mxu0 %v301
  %1207 = vmatmul.mubr.bf16.gmra.mxu0 %v300
  %v1208 = vpop.f32.mrf.mxu0
  %v1209 = vadd.f32 %v1168, %v1208
  %v1210 = vpop.f32.mrf.mxu0
  %v1211 = vpop.f32.mrf.mxu0
  %v1212 = vadd.f32 %v1171, %v1211
  %v1213 = vpop.f32.mrf.mxu0
  %1214 = vdwg.mxu0
  %1215 = vmatprep.subr.bf16.mxu0 0
  %1216 = vmatpush1.bf16.msra.mxu0 %v852
  %1217 = vmatprep.subr.bf16.mxu0 0
  %1218 = vmatpush1.bf16.msra.mxu0 %v851
  %1219 = vmatprep.subr.bf16.mxu0 0
  %1220 = vmatpush1.bf16.msra.mxu0 %v850
  %1221 = vmatprep.subr.bf16.mxu0 0
  %1222 = vmatpush1.bf16.msra.mxu0 %v849
  %1223 = vmatprep.subr.bf16.mxu0 0
  %1224 = vmatpush1.bf16.msra.mxu0 %v848
  %1225 = vmatprep.subr.bf16.mxu0 0
  %1226 = vmatpush1.bf16.msra.mxu0 %v847
  %1227 = vmatprep.subr.bf16.mxu0 0
  %1228 = vmatpush1.bf16.msra.mxu0 %v846
  %1229 = vmatprep.subr.bf16.mxu0 0
  %1230 = vmatpush1.bf16.msra.mxu0 %v845
  %1231 = vmatprep.subr.bf16.mxu0 0
  %1232 = vmatpush2.bf16.msra.mxu0 0
  %1233 = vmatprep.subr.bf16.mxu0 0
  %1234 = vmatpush2.bf16.msra.mxu0 0
  %1235 = vmatprep.subr.bf16.mxu0 0
  %1236 = vmatpush2.bf16.msra.mxu0 0
  %1237 = vmatprep.subr.bf16.mxu0 0
  %1238 = vmatpush2.bf16.msra.mxu0 0
  %1239 = vmatprep.subr.bf16.mxu0 0
  %1240 = vmatpush2.bf16.msra.mxu0 %v856
  %1241 = vmatprep.subr.bf16.mxu0 0
  %1242 = vmatpush2.bf16.msra.mxu0 %v855
  %1243 = vmatprep.subr.bf16.mxu0 0
  %1244 = vmatpush2.bf16.msra.mxu0 %v854
  %1245 = vmatprep.subr.bf16.mxu0 0
  %1246 = vmatpush2.bf16.msra.mxu0 %v853
  %1247 = vmatprep.mubr.bf16.mxu0 %v967
  %1248 = vmatmul.mubr.bf16.gmra.mxu0 %v302
  %v1249 = vpop.f32.mrf.mxu0
  %v1250 = vadd.f32 %v1209, %v1249
  %v1251 = vpop.f32.mrf.mxu0
  %v1252 = vpop.f32.mrf.mxu0
  %v1253 = vadd.f32 %v1212, %v1252
  %v1254 = vpop.f32.mrf.mxu0
  %1255 = vdwg.mxu0
  %v1256 = vsel %vm965, %v1250, 0.0
  %v1257 = vsel %vm965, %v1253, 0.0
  %v1258 = vadd.f32 %v1256, %v1257
  %v1259 = vrot.slane %v1258, 4
  %v1260 = vadd.f32 %v1258, %v1259
  %v1261 = vrot.slane %v1260, 2
  %v1262 = vadd.f32 %v1260, %v1261
  %v1263 = vrot.slane %v1262, 1
  %v1264 = vadd.f32 %v1262, %v1263
  %v1265 = vmul.f32 %v1250, %v1250
  %v1266 = vmul.f32 %v1253, %v1253
  %v1267 = vsel %vm965, %v1265, 0.0
  %v1268 = vsel %vm965, %v1266, 0.0
  %v1269 = vadd.f32 %v1267, %v1268
  %v1270 = vrot.slane %v1269, 4
  %v1271 = vadd.f32 %v1269, %v1270
  %v1272 = vrot.slane %v1271, 2
  %v1273 = vadd.f32 %v1271, %v1272
  %v1274 = vrot.slane %v1273, 1
  %v1275 = vadd.f32 %v1273, %v1274
  %v1276 = vmul.f32 %v1264, 0.0625
  %v1277 = vmul.f32 %v1275, 0.0625
  %v1278 = vmul.f32 %v1276, %v1276
  %v1279 = vsub.f32 %v1277, %v1278
  %v1280 = vmax.f32 %v1279, 0.0
  %v1281 = vsub.f32 %v1250, %v1276
  %v1282 = vsub.f32 %v1253, %v1276
  %v1283 = vadd.f32 %v1280, 1e-05
  %v1284 = vrsqrt.pop %v1283
  %v1285 = vmul.f32 %v1281, %v1284
  %v1286 = vmul.f32 %v1282, %v1284
  %v1287 = vld [vmem:[%s2] sm:$0xf]
  %v1288 = vld [vmem:[%s2 + $0x4] sm:$0xf]
  %v1289 = vld [vmem:[%s3] sm:$0xf]
  %v1290 = vld [vmem:[%s3 + $0x4] sm:$0xf]
  %v1291 = vld [vmem:[%s3 + $0x8] sm:$0xf]
  %v1292 = vld [vmem:[%s3 + $0xc] sm:$0xf]
  %v1293 = vld [vmem:[%s3 + $0x10] sm:$0xf]
  %v1294 = vld [vmem:[%s3 + $0x14] sm:$0xf]
  %v1295 = vld [vmem:[%s3 + $0x18] sm:$0xf]
  %v1296 = vld [vmem:[%s3 + $0x1c] sm:$0xf]
  %v1299 = vunpack.c.l.b16 %v1287
  %v1300 = vunpack.c.l.b16 %v1288
  %v1301 = vpack.c.b16 %v1300, %v1299
  %v1310 = vunpack.c.l.b16 %v1289
  %v1311 = vunpack.c.l.b16 %v1290
  %v1312 = vunpack.c.l.b16 %v1291
  %v1313 = vunpack.c.l.b16 %v1292
  %v1314 = vunpack.c.l.b16 %v1293
  %v1315 = vunpack.c.l.b16 %v1294
  %v1316 = vunpack.c.l.b16 %v1295
  %v1317 = vunpack.c.l.b16 %v1296
  %v1318 = vpack.c.b16 %v1311, %v1310
  %v1319 = vpack.c.b16 %v1313, %v1312
  %v1320 = vpack.c.b16 %v1315, %v1314
  %v1321 = vpack.c.b16 %v1317, %v1316
  %v1327 = vsel %vm965, %v1301, 0
  %1329 = vmatprep.subr.bf16.mxu0 0
  %1330 = vmatpush1.bf16.msra.mxu0 0
  %1331 = vmatprep.subr.bf16.mxu0 0
  %1332 = vmatpush1.bf16.msra.mxu0 0
  %1333 = vmatprep.subr.bf16.mxu0 0
  %1334 = vmatpush1.bf16.msra.mxu0 0
  %1335 = vmatprep.subr.bf16.mxu0 0
  %1336 = vmatpush1.bf16.msra.mxu0 0
  %1337 = vmatprep.subr.bf16.mxu0 0
  %1338 = vmatpush1.bf16.msra.mxu0 %v1321
  %1339 = vmatprep.subr.bf16.mxu0 0
  %1340 = vmatpush1.bf16.msra.mxu0 %v1320
  %1341 = vmatprep.subr.bf16.mxu0 0
  %1342 = vmatpush1.bf16.msra.mxu0 %v1319
  %1343 = vmatprep.subr.bf16.mxu0 0
  %1344 = vmatpush1.bf16.msra.mxu0 %v1318
  %1345 = vmatprep.subr.bf16.mxu0 0
  %1346 = vmatpush2.bf16.msra.mxu0 0
  %1347 = vmatprep.subr.bf16.mxu0 0
  %1348 = vmatpush2.bf16.msra.mxu0 0
  %1349 = vmatprep.subr.bf16.mxu0 0
  %1350 = vmatpush2.bf16.msra.mxu0 0
  %1351 = vmatprep.subr.bf16.mxu0 0
  %1352 = vmatpush2.bf16.msra.mxu0 0
  %1353 = vmatprep.subr.bf16.mxu0 0
  %1354 = vmatpush2.bf16.msra.mxu0 0
  %1355 = vmatprep.subr.bf16.mxu0 0
  %1356 = vmatpush2.bf16.msra.mxu0 0
  %1357 = vmatprep.subr.bf16.mxu0 0
  %1358 = vmatpush2.bf16.msra.mxu0 0
  %1359 = vmatprep.subr.bf16.mxu0 0
  %1360 = vmatpush2.bf16.msra.mxu0 0
  %1361 = vmatprep.mubr.bf16.mxu0 0
  %1362 = vmatmul.mubr.bf16.gmra.mxu0 %v1327
  %v1363 = vpop.f32.mrf.mxu0
  %v1364 = vadd.f32 0.0, %v1363
  %v1365 = vpop.f32.mrf.mxu0
  %v1366 = vpop.f32.mrf.mxu0
  %v1367 = vadd.f32 0.0, %v1366
  %v1368 = vpop.f32.mrf.mxu0
  %1369 = vdwg.mxu0
  %v1370 = vsel %vm965, %v1364, 0.0
  %v1371 = vsel %vm965, %v1367, 0.0
  %v1372 = vadd.f32 %v1370, %v1371
  %v1373 = vrot.slane %v1372, 4
  %v1374 = vadd.f32 %v1372, %v1373
  %v1375 = vrot.slane %v1374, 2
  %v1376 = vadd.f32 %v1374, %v1375
  %v1377 = vrot.slane %v1376, 1
  %v1378 = vadd.f32 %v1376, %v1377
  %v1379 = vmul.f32 %v1364, %v1364
  %v1380 = vmul.f32 %v1367, %v1367
  %v1381 = vsel %vm965, %v1379, 0.0
  %v1382 = vsel %vm965, %v1380, 0.0
  %v1383 = vadd.f32 %v1381, %v1382
  %v1384 = vrot.slane %v1383, 4
  %v1385 = vadd.f32 %v1383, %v1384
  %v1386 = vrot.slane %v1385, 2
  %v1387 = vadd.f32 %v1385, %v1386
  %v1388 = vrot.slane %v1387, 1
  %v1389 = vadd.f32 %v1387, %v1388
  %v1390 = vmul.f32 %v1378, 0.0625
  %v1391 = vmul.f32 %v1389, 0.0625
  %v1392 = vmul.f32 %v1390, %v1390
  %v1393 = vsub.f32 %v1391, %v1392
  %v1394 = vmax.f32 %v1393, 0.0
  %v1395 = vsub.f32 %v1364, %v1390
  %v1396 = vsub.f32 %v1367, %v1390
  %v1397 = vadd.f32 %v1394, 1e-05
  %v1398 = vrsqrt.pop %v1397
  %v1399 = vmul.f32 %v1395, %v1398
  %v1400 = vmul.f32 %v1396, %v1398
  %v1401 = vadd.f32 %v1285, %v1399
  %v1402 = vadd.f32 %v1286, %v1400
  %v1403 = vmax.f32 %v1401, 0.0
  %v1404 = vmax.f32 %v1402, 0.0
  %v1405 = vpack.c.bf16 %v1404, %v1403
  %v1407 = vunpack.c.l.b16 %v1405
  %v1408 = vunpack.c.h.b16 %v1405
  %v1409 = vpack.c.b16 %v1407, %v1407
  %v1410 = vpack.c.b16 %v1408, %v1408
  %vm1413 = vcmask 519168
  %1414 = vst.msk [vmem:[%s4] sm:$0xf] %vm1413, %v1409
  %1415 = vst.msk [vmem:[%s4 + $0x4] sm:$0xf] %vm1413, %v1410
  // Predicated region
  $region18: #{forward.6} parent=0 // pred_check
    _
  $region19: #{forward.6} parent=0 // pred_check_branch
    %1417 = sbr.rel (0) target = $region21
  $region20: #{forward.6} parent=0 // pred_region
    _
  $region21: #{forward.6} parent=0 // pred_fallthru
    _
  // Predicated region
  $region22: #{forward.6} parent=0 // pred_check
    _
  $region23: #{forward.6} parent=0 // pred_check_branch
    %1419 = sbr.rel (0) target = $region25
  $region24: #{forward.6} parent=0 // pred_region
    _
  $region25: #{forward.6} parent=0 // pred_fallthru
    _

// kernel: forward.7
$region0: #{forward.7}
  #allocation0 [shape = 'u32[]', space=smem, size = 0x4, offset = 0x4, fixed_abs, tag = 'smem constant byte address 0x4 - core index']
  #allocation1 [shape = 'u32[144,128]{1,0:T(1,128)}', space=vmem, size = 0x12000, scoped, tag = 'internal scratch']
  %s0 = inlined_call_operand.vmem [shape: bf16[2,512], index: 0, kind: input, shape index: {}]
  %s1 = inlined_call_operand.vmem [shape: bf16[512,256], index: 1, kind: input, shape index: {}]
  %s2 = inlined_call_operand.vmem [shape: bf16[128,128], index: 2, kind: input, shape index: {}]
  %s3 = inlined_call_operand.vmem [shape: bf16[128,512], index: 3, kind: input, shape index: {}]
  %s4 = inlined_call_operand.vmem [shape: bf16[256,256], index: 4, kind: input, shape index: {}]
  %s5 = inlined_call_operand.vmem [shape: bf16[256,1024], index: 5, kind: input, shape index: {}]
  %s6 = inlined_call_operand.vmem [shape: bf16[512,512], index: 6, kind: input, shape index: {}]
  %s7 = inlined_call_operand.vmem [shape: bf16[512,512], index: 7, kind: input, shape index: {}]
  %s8 = inlined_call_operand.vmem [shape: bf16[512,10], index: 8, kind: input, shape index: {}]
  %s9 = inlined_call_operand.vmem [shape: f32[1,10], index: 9, kind: input, shape index: {}]
  %s10 = inlined_call_operand.hbm [shape: f32[2,10], index: 10, kind: output, shape index: {}]
  %s11 = sld [smem:[#allocation0]]
  $region50: #{forward.7} parent=0
    _
  %s13 = ssub.s32 1, %s11
  %s14 = scalar_select 0, %s13, %s11
  $region1: #{forward.7} parent=0
    #allocation2 [shape = 'u8[1024]{0}', space=vmem, size = 0x400, scoped, tag = 'output window, operand 0, single buffered']
    #allocation3 [shape = 's32[1]{0}', space=sflag, size = 0x4, scoped, tag = 'scoped memory for forward.7']
    %15 = vsyncpa [#allocation3], 0
    // Predicated region
    $region2: #{forward.7} parent=1 // pred_check
      _
    $region3: #{forward.7} parent=1 // pred_check_branch
      %17 = sbr.rel (0) target = $region5
    $region4: #{forward.7} parent=1 // pred_region
      _
    $region5: #{forward.7} parent=1 // pred_fallthru
      _
    // Predicated region
    $region6: #{forward.7} parent=1 // pred_check
      _
    $region7: #{forward.7} parent=1 // pred_check_branch
      %19 = sbr.rel (0) target = $region9
    $region8: #{forward.7} parent=1 // pred_region
      _
    $region9: #{forward.7} parent=1 // pred_fallthru
      _
    // Predicated region
    $region10: #{forward.7} parent=1 // pred_check
      _
    $region11: #{forward.7} parent=1 // pred_check_branch
      %21 = sbr.rel (0) target = $region13
    $region12: #{forward.7} parent=1 // pred_region
      _
    $region13: #{forward.7} parent=1 // pred_fallthru
      _
    // Predicated region
    $region14: #{forward.7} parent=1 // pred_check
      _
    $region15: #{forward.7} parent=1 // pred_check_branch
      %23 = sbr.rel (0) target = $region17
    $region16: #{forward.7} parent=1 // pred_region
      _
    $region17: #{forward.7} parent=1 // pred_fallthru
      _
    // Predicated region
    $region18: #{forward.7} parent=1 // pred_check
      _
    $region19: #{forward.7} parent=1 // pred_check_branch
      %25 = sbr.rel (0) target = $region21
    $region20: #{forward.7} parent=1 // pred_region
      _
    $region21: #{forward.7} parent=1 // pred_fallthru
      _
    // Predicated region
    $region22: #{forward.7} parent=1 // pred_check
      _
    $region23: #{forward.7} parent=1 // pred_check_branch
      %27 = sbr.rel (0) target = $region25
    $region24: #{forward.7} parent=1 // pred_region
      _
    $region25: #{forward.7} parent=1 // pred_fallthru
      _
    // Predicated region
    $region26: #{forward.7} parent=1 // pred_check
      _
    $region27: #{forward.7} parent=1 // pred_check_branch
      %29 = sbr.rel (0) target = $region29
    $region28: #{forward.7} parent=1 // pred_region
      _
    $region29: #{forward.7} parent=1 // pred_fallthru
      _
    // Predicated region
    $region30: #{forward.7} parent=1 // pred_check
      _
    $region31: #{forward.7} parent=1 // pred_check_branch
      %31 = sbr.rel (0) target = $region33
    $region32: #{forward.7} parent=1 // pred_region
      _
    $region33: #{forward.7} parent=1 // pred_fallthru
      _
    // Predicated region
    $region34: #{forward.7} parent=1 // pred_check
      _
    $region35: #{forward.7} parent=1 // pred_check_branch
      %33 = sbr.rel (0) target = $region37
    $region36: #{forward.7} parent=1 // pred_region
      _
    $region37: #{forward.7} parent=1 // pred_fallthru
      _
    // Predicated region
    $region38: #{forward.7} parent=1 // pred_check
      _
    $region39: #{forward.7} parent=1 // pred_check_branch
      %35 = sbr.rel (0) target = $region41
    $region40: #{forward.7} parent=1 // pred_region
      _
    $region41: #{forward.7} parent=1 // pred_fallthru
      _
    %v37 = vld [vmem:[%s0] sm:$0xf]
    %v38 = vld [vmem:[%s1] sm:$0xff]
    %v39 = vld [vmem:[%s1 + $0x8] sm:$0xff]
    %v40 = vld [vmem:[%s1 + $0x10] sm:$0xff]
    %v41 = vld [vmem:[%s1 + $0x18] sm:$0xff]
    %v42 = vld [vmem:[%s1 + $0x20] sm:$0xff]
    %v43 = vld [vmem:[%s1 + $0x28] sm:$0xff]
    %v44 = vld [vmem:[%s1 + $0x30] sm:$0xff]
    %v45 = vld [vmem:[%s1 + $0x38] sm:$0xff]
    %v46 = vld [vmem:[%s1 + $0x40] sm:$0xff]
    %v47 = vld [vmem:[%s1 + $0x48] sm:$0xff]
    %v48 = vld [vmem:[%s1 + $0x50] sm:$0xff]
    %v49 = vld [vmem:[%s1 + $0x58] sm:$0xff]
    %v50 = vld [vmem:[%s1 + $0x60] sm:$0xff]
    %v51 = vld [vmem:[%s1 + $0x68] sm:$0xff]
    %v52 = vld [vmem:[%s1 + $0x70] sm:$0xff]
    %v53 = vld [vmem:[%s1 + $0x78] sm:$0xff]
    %v54 = vld [vmem:[%s1 + $0x80] sm:$0xff]
    %v55 = vld [vmem:[%s1 + $0x88] sm:$0xff]
    %v56 = vld [vmem:[%s1 + $0x90] sm:$0xff]
    %v57 = vld [vmem:[%s1 + $0x98] sm:$0xff]
    %v58 = vld [vmem:[%s1 + $0xa0] sm:$0xff]
    %v59 = vld [vmem:[%s1 + $0xa8] sm:$0xff]
    %v60 = vld [vmem:[%s1 + $0xb0] sm:$0xff]
    %v61 = vld [vmem:[%s1 + $0xb8] sm:$0xff]
    %v62 = vld [vmem:[%s1 + $0xc0] sm:$0xff]
    %v63 = vld [vmem:[%s1 + $0xc8] sm:$0xff]
    %v64 = vld [vmem:[%s1 + $0xd0] sm:$0xff]
    %v65 = vld [vmem:[%s1 + $0xd8] sm:$0xff]
    %v66 = vld [vmem:[%s1 + $0xe0] sm:$0xff]
    %v67 = vld [vmem:[%s1 + $0xe8] sm:$0xff]
    %v68 = vld [vmem:[%s1 + $0xf0] sm:$0xff]
    %v69 = vld [vmem:[%s1 + $0xf8] sm:$0xff]
    %v70 = vld [vmem:[%s1 + $0x100] sm:$0xff]
    %v71 = vld [vmem:[%s1 + $0x108] sm:$0xff]
    %v72 = vld [vmem:[%s1 + $0x110] sm:$0xff]
    %v73 = vld [vmem:[%s1 + $0x118] sm:$0xff]
    %v74 = vld [vmem:[%s1 + $0x120] sm:$0xff]
    %v75 = vld [vmem:[%s1 + $0x128] sm:$0xff]
    %v76 = vld [vmem:[%s1 + $0x130] sm:$0xff]
    %v77 = vld [vmem:[%s1 + $0x138] sm:$0xff]
    %v78 = vld [vmem:[%s1 + $0x140] sm:$0xff]
    %v79 = vld [vmem:[%s1 + $0x148] sm:$0xff]
    %v80 = vld [vmem:[%s1 + $0x150] sm:$0xff]
    %v81 = vld [vmem:[%s1 + $0x158] sm:$0xff]
    %v82 = vld [vmem:[%s1 + $0x160] sm:$0xff]
    %v83 = vld [vmem:[%s1 + $0x168] sm:$0xff]
    %v84 = vld [vmem:[%s1 + $0x170] sm:$0xff]
    %v85 = vld [vmem:[%s1 + $0x178] sm:$0xff]
    %v86 = vld [vmem:[%s1 + $0x180] sm:$0xff]
    %v87 = vld [vmem:[%s1 + $0x188] sm:$0xff]
    %v88 = vld [vmem:[%s1 + $0x190] sm:$0xff]
    %v89 = vld [vmem:[%s1 + $0x198] sm:$0xff]
    %v90 = vld [vmem:[%s1 + $0x1a0] sm:$0xff]
    %v91 = vld [vmem:[%s1 + $0x1a8] sm:$0xff]
    %v92 = vld [vmem:[%s1 + $0x1b0] sm:$0xff]
    %v93 = vld [vmem:[%s1 + $0x1b8] sm:$0xff]
    %v94 = vld [vmem:[%s1 + $0x1c0] sm:$0xff]
    %v95 = vld [vmem:[%s1 + $0x1c8] sm:$0xff]
    %v96 = vld [vmem:[%s1 + $0x1d0] sm:$0xff]
    %v97 = vld [vmem:[%s1 + $0x1d8] sm:$0xff]
    %v98 = vld [vmem:[%s1 + $0x1e0] sm:$0xff]
    %v99 = vld [vmem:[%s1 + $0x1e8] sm:$0xff]
    %v100 = vld [vmem:[%s1 + $0x1f0] sm:$0xff]
    %v101 = vld [vmem:[%s1 + $0x1f8] sm:$0xff]
    %v104 = vunpack.c.l.s4 1966171168
    %v105 = vunpack.c.0.s8 %v104
    %v106 = vlaneseq
    %v107 = vshrl.u32 %v106, 7
    %v108 = vsub.s32 %v105, %v107
    %v109 = vrot.slane %v37, %v108
    %v110 = vcombine.high %v109, %v109
    %v112 = vunpack.c.l.s4 1966171168
    %v113 = vunpack.c.0.s8 %v112
    %v114 = vlaneseq
    %v115 = vshrl.u32 %v114, 7
    %v116 = vsub.s32 %v113, %v115
    %v117 = vrot.slane %v109, %v116
    %v119 = vunpack.c.l.s4 1966171168
    %v120 = vunpack.c.0.s8 %v119
    %v121 = vlaneseq
    %v122 = vshrl.u32 %v121, 7
    %v123 = vsub.s32 %v120, %v122
    %v124 = vrot.slane %v110, %v123
    %v125 = vcombine.high %v117, %v117
    %v126 = vcombine.high %v124, %v124
    %v195 = vunpack.c.l.b16 %v38
    %v196 = vunpack.c.h.b16 %v38
    %v197 = vunpack.c.l.b16 %v39
    %v198 = vunpack.c.h.b16 %v39
    %v199 = vunpack.c.l.b16 %v40
    %v200 = vunpack.c.h.b16 %v40
    %v201 = vunpack.c.l.b16 %v41
    %v202 = vunpack.c.h.b16 %v41
    %v203 = vunpack.c.l.b16 %v42
    %v204 = vunpack.c.h.b16 %v42
    %v205 = vunpack.c.l.b16 %v43
    %v206 = vunpack.c.h.b16 %v43
    %v207 = vunpack.c.l.b16 %v44
    %v208 = vunpack.c.h.b16 %v44
    %v209 = vunpack.c.l.b16 %v45
    %v210 = vunpack.c.h.b16 %v45
    %v211 = vunpack.c.l.b16 %v46
    %v212 = vunpack.c.h.b16 %v46
    %v213 = vunpack.c.l.b16 %v47
    %v214 = vunpack.c.h.b16 %v47
    %v215 = vunpack.c.l.b16 %v48
    %v216 = vunpack.c.h.b16 %v48
    %v217 = vunpack.c.l.b16 %v49
    %v218 = vunpack.c.h.b16 %v49
    %v219 = vunpack.c.l.b16 %v50
    %v220 = vunpack.c.h.b16 %v50
    %v221 = vunpack.c.l.b16 %v51
    %v222 = vunpack.c.h.b16 %v51
    %v223 = vunpack.c.l.b16 %v52
    %v224 = vunpack.c.h.b16 %v52
    %v225 = vunpack.c.l.b16 %v53
    %v226 = vunpack.c.h.b16 %v53
    %v227 = vunpack.c.l.b16 %v54
    %v228 = vunpack.c.h.b16 %v54
    %v229 = vunpack.c.l.b16 %v55
    %v230 = vunpack.c.h.b16 %v55
    %v231 = vunpack.c.l.b16 %v56
    %v232 = vunpack.c.h.b16 %v56
    %v233 = vunpack.c.l.b16 %v57
    %v234 = vunpack.c.h.b16 %v57
    %v235 = vunpack.c.l.b16 %v58
    %v236 = vunpack.c.h.b16 %v58
    %v237 = vunpack.c.l.b16 %v59
    %v238 = vunpack.c.h.b16 %v59
    %v239 = vunpack.c.l.b16 %v60
    %v240 = vunpack.c.h.b16 %v60
    %v241 = vunpack.c.l.b16 %v61
    %v242 = vunpack.c.h.b16 %v61
    %v243 = vunpack.c.l.b16 %v62
    %v244 = vunpack.c.h.b16 %v62
    %v245 = vunpack.c.l.b16 %v63
    %v246 = vunpack.c.h.b16 %v63
    %v247 = vunpack.c.l.b16 %v64
    %v248 = vunpack.c.h.b16 %v64
    %v249 = vunpack.c.l.b16 %v65
    %v250 = vunpack.c.h.b16 %v65
    %v251 = vunpack.c.l.b16 %v66
    %v252 = vunpack.c.h.b16 %v66
    %v253 = vunpack.c.l.b16 %v67
    %v254 = vunpack.c.h.b16 %v67
    %v255 = vunpack.c.l.b16 %v68
    %v256 = vunpack.c.h.b16 %v68
    %v257 = vunpack.c.l.b16 %v69
    %v258 = vunpack.c.h.b16 %v69
    %v259 = vunpack.c.l.b16 %v70
    %v260 = vunpack.c.h.b16 %v70
    %v261 = vunpack.c.l.b16 %v71
    %v262 = vunpack.c.h.b16 %v71
    %v263 = vunpack.c.l.b16 %v72
    %v264 = vunpack.c.h.b16 %v72
    %v265 = vunpack.c.l.b16 %v73
    %v266 = vunpack.c.h.b16 %v73
    %v267 = vunpack.c.l.b16 %v74
    %v268 = vunpack.c.h.b16 %v74
    %v269 = vunpack.c.l.b16 %v75
    %v270 = vunpack.c.h.b16 %v75
    %v271 = vunpack.c.l.b16 %v76
    %v272 = vunpack.c.h.b16 %v76
    %v273 = vunpack.c.l.b16 %v77
    %v274 = vunpack.c.h.b16 %v77
    %v275 = vunpack.c.l.b16 %v78
    %v276 = vunpack.c.h.b16 %v78
    %v277 = vunpack.c.l.b16 %v79
    %v278 = vunpack.c.h.b16 %v79
    %v279 = vunpack.c.l.b16 %v80
    %v280 = vunpack.c.h.b16 %v80
    %v281 = vunpack.c.l.b16 %v81
    %v282 = vunpack.c.h.b16 %v81
    %v283 = vunpack.c.l.b16 %v82
    %v284 = vunpack.c.h.b16 %v82
    %v285 = vunpack.c.l.b16 %v83
    %v286 = vunpack.c.h.b16 %v83
    %v287 = vunpack.c.l.b16 %v84
    %v288 = vunpack.c.h.b16 %v84
    %v289 = vunpack.c.l.b16 %v85
    %v290 = vunpack.c.h.b16 %v85
    %v291 = vunpack.c.l.b16 %v86
    %v292 = vunpack.c.h.b16 %v86
    %v293 = vunpack.c.l.b16 %v87
    %v294 = vunpack.c.h.b16 %v87
    %v295 = vunpack.c.l.b16 %v88
    %v296 = vunpack.c.h.b16 %v88
    %v297 = vunpack.c.l.b16 %v89
    %v298 = vunpack.c.h.b16 %v89
    %v299 = vunpack.c.l.b16 %v90
    %v300 = vunpack.c.h.b16 %v90
    %v301 = vunpack.c.l.b16 %v91
    %v302 = vunpack.c.h.b16 %v91
    %v303 = vunpack.c.l.b16 %v92
    %v304 = vunpack.c.h.b16 %v92
    %v305 = vunpack.c.l.b16 %v93
    %v306 = vunpack.c.h.b16 %v93
    %v307 = vunpack.c.l.b16 %v94
    %v308 = vunpack.c.h.b16 %v94
    %v309 = vunpack.c.l.b16 %v95
    %v310 = vunpack.c.h.b16 %v95
    %v311 = vunpack.c.l.b16 %v96
    %v312 = vunpack.c.h.b16 %v96
    %v313 = vunpack.c.l.b16 %v97
    %v314 = vunpack.c.h.b16 %v97
    %v315 = vunpack.c.l.b16 %v98
    %v316 = vunpack.c.h.b16 %v98
    %v317 = vunpack.c.l.b16 %v99
    %v318 = vunpack.c.h.b16 %v99
    %v319 = vunpack.c.l.b16 %v100
    %v320 = vunpack.c.h.b16 %v100
    %v321 = vunpack.c.l.b16 %v101
    %v322 = vunpack.c.h.b16 %v101
    %v323 = vpack.c.b16 %v197, %v195
    %v324 = vpack.c.b16 %v198, %v196
    %v325 = vpack.c.b16 %v201, %v199
    %v326 = vpack.c.b16 %v202, %v200
    %v327 = vpack.c.b16 %v205, %v203
    %v328 = vpack.c.b16 %v206, %v204
    %v329 = vpack.c.b16 %v209, %v207
    %v330 = vpack.c.b16 %v210, %v208
    %v331 = vpack.c.b16 %v213, %v211
    %v332 = vpack.c.b16 %v214, %v212
    %v333 = vpack.c.b16 %v217, %v215
    %v334 = vpack.c.b16 %v218, %v216
    %v335 = vpack.c.b16 %v221, %v219
    %v336 = vpack.c.b16 %v222, %v220
    %v337 = vpack.c.b16 %v225, %v223
    %v338 = vpack.c.b16 %v226, %v224
    %v339 = vpack.c.b16 %v229, %v227
    %v340 = vpack.c.b16 %v230, %v228
    %v341 = vpack.c.b16 %v233, %v231
    %v342 = vpack.c.b16 %v234, %v232
    %v343 = vpack.c.b16 %v237, %v235
    %v344 = vpack.c.b16 %v238, %v236
    %v345 = vpack.c.b16 %v241, %v239
    %v346 = vpack.c.b16 %v242, %v240
    %v347 = vpack.c.b16 %v245, %v243
    %v348 = vpack.c.b16 %v246, %v244
    %v349 = vpack.c.b16 %v249, %v247
    %v350 = vpack.c.b16 %v250, %v248
    %v351 = vpack.c.b16 %v253, %v251
    %v352 = vpack.c.b16 %v254, %v252
    %v353 = vpack.c.b16 %v257, %v255
    %v354 = vpack.c.b16 %v258, %v256
    %v355 = vpack.c.b16 %v261, %v259
    %v356 = vpack.c.b16 %v262, %v260
    %v357 = vpack.c.b16 %v265, %v263
    %v358 = vpack.c.b16 %v266, %v264
    %v359 = vpack.c.b16 %v269, %v267
    %v360 = vpack.c.b16 %v270, %v268
    %v361 = vpack.c.b16 %v273, %v271
    %v362 = vpack.c.b16 %v274, %v272
    %v363 = vpack.c.b16 %v277, %v275
    %v364 = vpack.c.b16 %v278, %v276
    %v365 = vpack.c.b16 %v281, %v279
    %v366 = vpack.c.b16 %v282, %v280
    %v367 = vpack.c.b16 %v285, %v283
    %v368 = vpack.c.b16 %v286, %v284
    %v369 = vpack.c.b16 %v289, %v287
    %v370 = vpack.c.b16 %v290, %v288
    %v371 = vpack.c.b16 %v293, %v291
    %v372 = vpack.c.b16 %v294, %v292
    %v373 = vpack.c.b16 %v297, %v295
    %v374 = vpack.c.b16 %v298, %v296
    %v375 = vpack.c.b16 %v301, %v299
    %v376 = vpack.c.b16 %v302, %v300
    %v377 = vpack.c.b16 %v305, %v303
    %v378 = vpack.c.b16 %v306, %v304
    %v379 = vpack.c.b16 %v309, %v307
    %v380 = vpack.c.b16 %v310, %v308
    %v381 = vpack.c.b16 %v313, %v311
    %v382 = vpack.c.b16 %v314, %v312
    %v383 = vpack.c.b16 %v317, %v315
    %v384 = vpack.c.b16 %v318, %v316
    %v385 = vpack.c.b16 %v321, %v319
    %v386 = vpack.c.b16 %v322, %v320
    %451 = vmatprep.subr.bf16.mxu0 %v338
    %452 = vmatpush1.bf16.msra.mxu0 %v337
    %453 = vmatprep.subr.bf16.mxu0 %v336
    %454 = vmatpush1.bf16.msra.mxu0 %v335
    %455 = vmatprep.subr.bf16.mxu0 %v334
    %456 = vmatpush1.bf16.msra.mxu0 %v333
    %457 = vmatprep.subr.bf16.mxu0 %v332
    %458 = vmatpush1.bf16.msra.mxu0 %v331
    %459 = vmatprep.subr.bf16.mxu0 %v330
    %460 = vmatpush1.bf16.msra.mxu0 %v329
    %461 = vmatprep.subr.bf16.mxu0 %v328
    %462 = vmatpush1.bf16.msra.mxu0 %v327
    %463 = vmatprep.subr.bf16.mxu0 %v326
    %464 = vmatpush1.bf16.msra.mxu0 %v325
    %465 = vmatprep.subr.bf16.mxu0 %v324
    %466 = vmatpush1.bf16.msra.mxu0 %v323
    %467 = vmatprep.subr.bf16.mxu0 %v354
    %468 = vmatpush2.bf16.msra.mxu0 %v353
    %469 = vmatprep.subr.bf16.mxu0 %v352
    %470 = vmatpush2.bf16.msra.mxu0 %v351
    %471 = vmatprep.subr.bf16.mxu0 %v350
    %472 = vmatpush2.bf16.msra.mxu0 %v349
    %473 = vmatprep.subr.bf16.mxu0 %v348
    %474 = vmatpush2.bf16.msra.mxu0 %v347
    %475 = vmatprep.subr.bf16.mxu0 %v346
    %476 = vmatpush2.bf16.msra.mxu0 %v345
    %477 = vmatprep.subr.bf16.mxu0 %v344
    %478 = vmatpush2.bf16.msra.mxu0 %v343
    %479 = vmatprep.subr.bf16.mxu0 %v342
    %480 = vmatpush2.bf16.msra.mxu0 %v341
    %481 = vmatprep.subr.bf16.mxu0 %v340
    %482 = vmatpush2.bf16.msra.mxu0 %v339
    %483 = vmatprep.mubr.bf16.mxu0 %v124
    %484 = vmatmul.mubr.bf16.gmra.mxu0 %v117
    %v485 = vpop.f32.mrf.mxu0
    %v486 = vadd.f32 0.0, %v485
    %v487 = vpop.f32.mrf.mxu0
    %v488 = vadd.f32 0.0, %v487
    %v489 = vpop.f32.mrf.mxu0
    %v490 = vpop.f32.mrf.mxu0
    %491 = vdwg.mxu0
    %492 = vmatprep.subr.bf16.mxu0 %v370
    %493 = vmatpush1.bf16.msra.mxu0 %v369
    %494 = vmatprep.subr.bf16.mxu0 %v368
    %495 = vmatpush1.bf16.msra.mxu0 %v367
    %496 = vmatprep.subr.bf16.mxu0 %v366
    %497 = vmatpush1.bf16.msra.mxu0 %v365
    %498 = vmatprep.subr.bf16.mxu0 %v364
    %499 = vmatpush1.bf16.msra.mxu0 %v363
    %500 = vmatprep.subr.bf16.mxu0 %v362
    %501 = vmatpush1.bf16.msra.mxu0 %v361
    %502 = vmatprep.subr.bf16.mxu0 %v360
    %503 = vmatpush1.bf16.msra.mxu0 %v359
    %504 = vmatprep.subr.bf16.mxu0 %v358
    %505 = vmatpush1.bf16.msra.mxu0 %v357
    %506 = vmatprep.subr.bf16.mxu0 %v356
    %507 = vmatpush1.bf16.msra.mxu0 %v355
    %508 = vmatprep.subr.bf16.mxu0 %v386
    %509 = vmatpush2.bf16.msra.mxu0 %v385
    %510 = vmatprep.subr.bf16.mxu0 %v384
    %511 = vmatpush2.bf16.msra.mxu0 %v383
    %512 = vmatprep.subr.bf16.mxu0 %v382
    %513 = vmatpush2.bf16.msra.mxu0 %v381
    %514 = vmatprep.subr.bf16.mxu0 %v380
    %515 = vmatpush2.bf16.msra.mxu0 %v379
    %516 = vmatprep.subr.bf16.mxu0 %v378
    %517 = vmatpush2.bf16.msra.mxu0 %v377
    %518 = vmatprep.subr.bf16.mxu0 %v376
    %519 = vmatpush2.bf16.msra.mxu0 %v375
    %520 = vmatprep.subr.bf16.mxu0 %v374
    %521 = vmatpush2.bf16.msra.mxu0 %v373
    %522 = vmatprep.subr.bf16.mxu0 %v372
    %523 = vmatpush2.bf16.msra.mxu0 %v371
    %524 = vmatprep.mubr.bf16.mxu0 %v126
    %525 = vmatmul.mubr.bf16.gmra.mxu0 %v125
    %v526 = vpop.f32.mrf.mxu0
    %v527 = vadd.f32 %v486, %v526
    %v528 = vpop.f32.mrf.mxu0
    %v529 = vadd.f32 %v488, %v528
    %v530 = vpop.f32.mrf.mxu0
    %v531 = vpop.f32.mrf.mxu0
    %532 = vdwg.mxu0
    %vm533 = vcmask 1041408
    %v534 = vsel %vm533, %v527, 0.0
    %v535 = vrot.slane %v534, 4
    %v536 = vadd.f32 %v534, %v535
    %v537 = vrot.slane %v536, 2
    %v538 = vadd.f32 %v536, %v537
    %v539 = vrot.slane %v538, 1
    %v540 = vadd.f32 %v538, %v539
    %v541 = vsel %vm533, %v529, 0.0
    %v542 = vrot.slane %v541, 4
    %v543 = vadd.f32 %v541, %v542
    %v544 = vrot.slane %v543, 2
    %v545 = vadd.f32 %v543, %v544
    %v546 = vrot.slane %v545, 1
    %v547 = vadd.f32 %v545, %v546
    %v548 = vmul.f32 %v527, %v527
    %v549 = vmul.f32 %v529, %v529
    %v550 = vsel %vm533, %v548, 0.0
    %v551 = vrot.slane %v550, 4
    %v552 = vadd.f32 %v550, %v551
    %v553 = vrot.slane %v552, 2
    %v554 = vadd.f32 %v552, %v553
    %v555 = vrot.slane %v554, 1
    %v556 = vadd.f32 %v554, %v555
    %v557 = vsel %vm533, %v549, 0.0
    %v558 = vrot.slane %v557, 4
    %v559 = vadd.f32 %v557, %v558
    %v560 = vrot.slane %v559, 2
    %v561 = vadd.f32 %v559, %v560
    %v562 = vrot.slane %v561, 1
    %v563 = vadd.f32 %v561, %v562
    %v564 = vmul.f32 %v540, 0.5
    %v565 = vmul.f32 %v547, 0.5
    %v566 = vmul.f32 %v556, 0.5
    %v567 = vmul.f32 %v563, 0.5
    %v568 = vmul.f32 %v564, %v564
    %v569 = vmul.f32 %v565, %v565
    %v570 = vsub.f32 %v566, %v568
    %v571 = vsub.f32 %v567, %v569
    %v572 = vmax.f32 %v570, 0.0
    %v573 = vmax.f32 %v571, 0.0
    %v574 = vsub.f32 %v527, %v564
    %v575 = vsub.f32 %v529, %v565
    %v576 = vadd.f32 %v572, 1e-05
    %v577 = vadd.f32 %v573, 1e-05
    %v578 = vrsqrt.pop %v576
    %v579 = vrsqrt.pop %v577
    %v580 = vmul.f32 %v574, %v578
    %v581 = vmul.f32 %v575, %v579
    %v582 = vmax.f32 %v580, 0.0
    %v583 = vpack.c.bf16 %v582, %v582
    %v584 = vld [vmem:[%s2] sm:$0xf]
    %v585 = vld [vmem:[%s2 + $0x4] sm:$0xf]
    %v586 = vld [vmem:[%s2 + $0x8] sm:$0xf]
    %v587 = vld [vmem:[%s2 + $0xc] sm:$0xf]
    %v588 = vld [vmem:[%s2 + $0x10] sm:$0xf]
    %v589 = vld [vmem:[%s2 + $0x14] sm:$0xf]
    %v590 = vld [vmem:[%s2 + $0x18] sm:$0xf]
    %v591 = vld [vmem:[%s2 + $0x1c] sm:$0xf]
    %v592 = vld [vmem:[%s2 + $0x20] sm:$0xf]
    %v593 = vld [vmem:[%s2 + $0x24] sm:$0xf]
    %v594 = vld [vmem:[%s2 + $0x28] sm:$0xf]
    %v595 = vld [vmem:[%s2 + $0x2c] sm:$0xf]
    %v596 = vld [vmem:[%s2 + $0x30] sm:$0xf]
    %v597 = vld [vmem:[%s2 + $0x34] sm:$0xf]
    %v598 = vld [vmem:[%s2 + $0x38] sm:$0xf]
    %v599 = vld [vmem:[%s2 + $0x3c] sm:$0xf]
    %v616 = vunpack.c.l.b16 %v584
    %v617 = vunpack.c.l.b16 %v585
    %v618 = vunpack.c.l.b16 %v586
    %v619 = vunpack.c.l.b16 %v587
    %v620 = vunpack.c.l.b16 %v588
    %v621 = vunpack.c.l.b16 %v589
    %v622 = vunpack.c.l.b16 %v590
    %v623 = vunpack.c.l.b16 %v591
    %v624 = vunpack.c.l.b16 %v592
    %v625 = vunpack.c.l.b16 %v593
    %v626 = vunpack.c.l.b16 %v594
    %v627 = vunpack.c.l.b16 %v595
    %v628 = vunpack.c.l.b16 %v596
    %v629 = vunpack.c.l.b16 %v597
    %v630 = vunpack.c.l.b16 %v598
    %v631 = vunpack.c.l.b16 %v599
    %v632 = vpack.c.b16 %v617, %v616
    %v633 = vpack.c.b16 %v619, %v618
    %v634 = vpack.c.b16 %v621, %v620
    %v635 = vpack.c.b16 %v623, %v622
    %v636 = vpack.c.b16 %v625, %v624
    %v637 = vpack.c.b16 %v627, %v626
    %v638 = vpack.c.b16 %v629, %v628
    %v639 = vpack.c.b16 %v631, %v630
    %648 = vmatprep.subr.bf16.mxu0 0
    %649 = vmatpush1.bf16.msra.mxu0 %v639
    %650 = vmatprep.subr.bf16.mxu0 0
    %651 = vmatpush1.bf16.msra.mxu0 %v638
    %652 = vmatprep.subr.bf16.mxu0 0
    %653 = vmatpush1.bf16.msra.mxu0 %v637
    %654 = vmatprep.subr.bf16.mxu0 0
    %655 = vmatpush1.bf16.msra.mxu0 %v636
    %656 = vmatprep.subr.bf16.mxu0 0
    %657 = vmatpush1.bf16.msra.mxu0 %v635
    %658 = vmatprep.subr.bf16.mxu0 0
    %659 = vmatpush1.bf16.msra.mxu0 %v634
    %660 = vmatprep.subr.bf16.mxu0 0
    %661 = vmatpush1.bf16.msra.mxu0 %v633
    %662 = vmatprep.subr.bf16.mxu0 0
    %663 = vmatpush1.bf16.msra.mxu0 %v632
    %664 = vmatprep.subr.bf16.mxu0 0
    %665 = vmatpush2.bf16.msra.mxu0 0
    %666 = vmatprep.subr.bf16.mxu0 0
    %667 = vmatpush2.bf16.msra.mxu0 0
    %668 = vmatprep.subr.bf16.mxu0 0
    %669 = vmatpush2.bf16.msra.mxu0 0
    %670 = vmatprep.subr.bf16.mxu0 0
    %671 = vmatpush2.bf16.msra.mxu0 0
    %672 = vmatprep.subr.bf16.mxu0 0
    %673 = vmatpush2.bf16.msra.mxu0 0
    %674 = vmatprep.subr.bf16.mxu0 0
    %675 = vmatpush2.bf16.msra.mxu0 0
    %676 = vmatprep.subr.bf16.mxu0 0
    %677 = vmatpush2.bf16.msra.mxu0 0
    %678 = vmatprep.subr.bf16.mxu0 0
    %679 = vmatpush2.bf16.msra.mxu0 0
    %680 = vmatprep.mubr.bf16.mxu0 0
    %681 = vmatmul.mubr.bf16.gmra.mxu0 %v583
    %v682 = vpop.f32.mrf.mxu0
    %v683 = vadd.f32 0.0, %v682
    %v684 = vpop.f32.mrf.mxu0
    %v685 = vpop.f32.mrf.mxu0
    %v686 = vpop.f32.mrf.mxu0
    %687 = vdwg.mxu0
    %v688 = vsel %vm533, %v683, 0.0
    %v689 = vrot.slane %v688, 4
    %v690 = vadd.f32 %v688, %v689
    %v691 = vrot.slane %v690, 2
    %v692 = vadd.f32 %v690, %v691
    %v693 = vrot.slane %v692, 1
    %v694 = vadd.f32 %v692, %v693
    %v695 = vmul.f32 %v683, %v683
    %v696 = vsel %vm533, %v695, 0.0
    %v697 = vrot.slane %v696, 4
    %v698 = vadd.f32 %v696, %v697
    %v699 = vrot.slane %v698, 2
    %v700 = vadd.f32 %v698, %v699
    %v701 = vrot.slane %v700, 1
    %v702 = vadd.f32 %v700, %v701
    %v703 = vmul.f32 %v694, 0.5
    %v704 = vmul.f32 %v702, 0.5
    %v705 = vmul.f32 %v703, %v703
    %v706 = vsub.f32 %v704, %v705
    %v707 = vmax.f32 %v706, 0.0
    %v708 = vsub.f32 %v683, %v703
    %v709 = vadd.f32 %v707, 1e-05
    %v710 = vrsqrt.pop %v709
    %v711 = vmul.f32 %v708, %v710
    %v712 = vadd.f32 %v711, %v581
    %v713 = vmax.f32 %v712, 0.0
    %v714 = vpack.c.bf16 %v713, %v713
    %v715 = vld [vmem:[%s3] sm:$0xff]
    %v716 = vld [vmem:[%s3 + $0x8] sm:$0xff]
    %v717 = vld [vmem:[%s3 + $0x10] sm:$0xff]
    %v718 = vld [vmem:[%s3 + $0x18] sm:$0xff]
    %v719 = vld [vmem:[%s3 + $0x20] sm:$0xff]
    %v720 = vld [vmem:[%s3 + $0x28] sm:$0xff]
    %v721 = vld [vmem:[%s3 + $0x30] sm:$0xff]
    %v722 = vld [vmem:[%s3 + $0x38] sm:$0xff]
    %v723 = vld [vmem:[%s3 + $0x40] sm:$0xff]
    %v724 = vld [vmem:[%s3 + $0x48] sm:$0xff]
    %v725 = vld [vmem:[%s3 + $0x50] sm:$0xff]
    %v726 = vld [vmem:[%s3 + $0x58] sm:$0xff]
    %v727 = vld [vmem:[%s3 + $0x60] sm:$0xff]
    %v728 = vld [vmem:[%s3 + $0x68] sm:$0xff]
    %v729 = vld [vmem:[%s3 + $0x70] sm:$0xff]
    %v730 = vld [vmem:[%s3 + $0x78] sm:$0xff]
    %v731 = vld [vmem:[%s3 + $0x80] sm:$0xff]
    %v732 = vld [vmem:[%s3 + $0x88] sm:$0xff]
    %v733 = vld [vmem:[%s3 + $0x90] sm:$0xff]
    %v734 = vld [vmem:[%s3 + $0x98] sm:$0xff]
    %v735 = vld [vmem:[%s3 + $0xa0] sm:$0xff]
    %v736 = vld [vmem:[%s3 + $0xa8] sm:$0xff]
    %v737 = vld [vmem:[%s3 + $0xb0] sm:$0xff]
    %v738 = vld [vmem:[%s3 + $0xb8] sm:$0xff]
    %v739 = vld [vmem:[%s3 + $0xc0] sm:$0xff]
    %v740 = vld [vmem:[%s3 + $0xc8] sm:$0xff]
    %v741 = vld [vmem:[%s3 + $0xd0] sm:$0xff]
    %v742 = vld [vmem:[%s3 + $0xd8] sm:$0xff]
    %v743 = vld [vmem:[%s3 + $0xe0] sm:$0xff]
    %v744 = vld [vmem:[%s3 + $0xe8] sm:$0xff]
    %v745 = vld [vmem:[%s3 + $0xf0] sm:$0xff]
    %v746 = vld [vmem:[%s3 + $0xf8] sm:$0xff]
    %v779 = vunpack.c.l.b16 %v715
    %v780 = vunpack.c.h.b16 %v715
    %v781 = vunpack.c.l.b16 %v716
    %v782 = vunpack.c.h.b16 %v716
    %v783 = vunpack.c.l.b16 %v717
    %v784 = vunpack.c.h.b16 %v717
    %v785 = vunpack.c.l.b16 %v718
    %v786 = vunpack.c.h.b16 %v718
    %v787 = vunpack.c.l.b16 %v719
    %v788 = vunpack.c.h.b16 %v719
    %v789 = vunpack.c.l.b16 %v720
    %v790 = vunpack.c.h.b16 %v720
    %v791 = vunpack.c.l.b16 %v721
    %v792 = vunpack.c.h.b16 %v721
    %v793 = vunpack.c.l.b16 %v722
    %v794 = vunpack.c.h.b16 %v722
    %v795 = vunpack.c.l.b16 %v723
    %v796 = vunpack.c.h.b16 %v723
    %v797 = vunpack.c.l.b16 %v724
    %v798 = vunpack.c.h.b16 %v724
    %v799 = vunpack.c.l.b16 %v725
    %v800 = vunpack.c.h.b16 %v725
    %v801 = vunpack.c.l.b16 %v726
    %v802 = vunpack.c.h.b16 %v726
    %v803 = vunpack.c.l.b16 %v727
    %v804 = vunpack.c.h.b16 %v727
    %v805 = vunpack.c.l.b16 %v728
    %v806 = vunpack.c.h.b16 %v728
    %v807 = vunpack.c.l.b16 %v729
    %v808 = vunpack.c.h.b16 %v729
    %v809 = vunpack.c.l.b16 %v730
    %v810 = vunpack.c.h.b16 %v730
    %v811 = vunpack.c.l.b16 %v731
    %v812 = vunpack.c.h.b16 %v731
    %v813 = vunpack.c.l.b16 %v732
    %v814 = vunpack.c.h.b16 %v732
    %v815 = vunpack.c.l.b16 %v733
    %v816 = vunpack.c.h.b16 %v733
    %v817 = vunpack.c.l.b16 %v734
    %v818 = vunpack.c.h.b16 %v734
    %v819 = vunpack.c.l.b16 %v735
    %v820 = vunpack.c.h.b16 %v735
    %v821 = vunpack.c.l.b16 %v736
    %v822 = vunpack.c.h.b16 %v736
    %v823 = vunpack.c.l.b16 %v737
    %v824 = vunpack.c.h.b16 %v737
    %v825 = vunpack.c.l.b16 %v738
    %v826 = vunpack.c.h.b16 %v738
    %v827 = vunpack.c.l.b16 %v739
    %v828 = vunpack.c.h.b16 %v739
    %v829 = vunpack.c.l.b16 %v740
    %v830 = vunpack.c.h.b16 %v740
    %v831 = vunpack.c.l.b16 %v741
    %v832 = vunpack.c.h.b16 %v741
    %v833 = vunpack.c.l.b16 %v742
    %v834 = vunpack.c.h.b16 %v742
    %v835 = vunpack.c.l.b16 %v743
    %v836 = vunpack.c.h.b16 %v743
    %v837 = vunpack.c.l.b16 %v744
    %v838 = vunpack.c.h.b16 %v744
    %v839 = vunpack.c.l.b16 %v745
    %v840 = vunpack.c.h.b16 %v745
    %v841 = vunpack.c.l.b16 %v746
    %v842 = vunpack.c.h.b16 %v746
    %v843 = vpack.c.b16 %v783, %v779
    %v844 = vpack.c.b16 %v784, %v780
    %v845 = vpack.c.b16 %v785, %v781
    %v846 = vpack.c.b16 %v786, %v782
    %v847 = vpack.c.b16 %v791, %v787
    %v848 = vpack.c.b16 %v792, %v788
    %v849 = vpack.c.b16 %v793, %v789
    %v850 = vpack.c.b16 %v794, %v790
    %v851 = vpack.c.b16 %v799, %v795
    %v852 = vpack.c.b16 %v800, %v796
    %v853 = vpack.c.b16 %v801, %v797
    %v854 = vpack.c.b16 %v802, %v798
    %v855 = vpack.c.b16 %v807, %v803
    %v856 = vpack.c.b16 %v808, %v804
    %v857 = vpack.c.b16 %v809, %v805
    %v858 = vpack.c.b16 %v810, %v806
    %v859 = vpack.c.b16 %v815, %v811
    %v860 = vpack.c.b16 %v816, %v812
    %v861 = vpack.c.b16 %v817, %v813
    %v862 = vpack.c.b16 %v818, %v814
    %v863 = vpack.c.b16 %v823, %v819
    %v864 = vpack.c.b16 %v824, %v820
    %v865 = vpack.c.b16 %v825, %v821
    %v866 = vpack.c.b16 %v826, %v822
    %v867 = vpack.c.b16 %v831, %v827
    %v868 = vpack.c.b16 %v832, %v828
    %v869 = vpack.c.b16 %v833, %v829
    %v870 = vpack.c.b16 %v834, %v830
    %v871 = vpack.c.b16 %v839, %v835
    %v872 = vpack.c.b16 %v840, %v836
    %v873 = vpack.c.b16 %v841, %v837
    %v874 = vpack.c.b16 %v842, %v838
    %907 = vmatprep.subr.bf16.mxu0 %v872
    %908 = vmatpush1.bf16.msra.mxu0 %v871
    %909 = vmatprep.subr.bf16.mxu0 %v868
    %910 = vmatpush1.bf16.msra.mxu0 %v867
    %911 = vmatprep.subr.bf16.mxu0 %v864
    %912 = vmatpush1.bf16.msra.mxu0 %v863
    %913 = vmatprep.subr.bf16.mxu0 %v860
    %914 = vmatpush1.bf16.msra.mxu0 %v859
    %915 = vmatprep.subr.bf16.mxu0 %v856
    %916 = vmatpush1.bf16.msra.mxu0 %v855
    %917 = vmatprep.subr.bf16.mxu0 %v852
    %918 = vmatpush1.bf16.msra.mxu0 %v851
    %919 = vmatprep.subr.bf16.mxu0 %v848
    %920 = vmatpush1.bf16.msra.mxu0 %v847
    %921 = vmatprep.subr.bf16.mxu0 %v844
    %922 = vmatpush1.bf16.msra.mxu0 %v843
    %923 = vmatprep.subr.bf16.mxu0 0
    %924 = vmatpush2.bf16.msra.mxu0 0
    %925 = vmatprep.subr.bf16.mxu0 0
    %926 = vmatpush2.bf16.msra.mxu0 0
    %927 = vmatprep.subr.bf16.mxu0 0
    %928 = vmatpush2.bf16.msra.mxu0 0
    %929 = vmatprep.subr.bf16.mxu0 0
    %930 = vmatpush2.bf16.msra.mxu0 0
    %931 = vmatprep.subr.bf16.mxu0 0
    %932 = vmatpush2.bf16.msra.mxu0 0
    %933 = vmatprep.subr.bf16.mxu0 0
    %934 = vmatpush2.bf16.msra.mxu0 0
    %935 = vmatprep.subr.bf16.mxu0 0
    %936 = vmatpush2.bf16.msra.mxu0 0
    %937 = vmatprep.subr.bf16.mxu0 0
    %938 = vmatpush2.bf16.msra.mxu0 0
    %939 = vmatprep.mubr.bf16.mxu0 0
    %940 = vmatmul.mubr.bf16.gmra.mxu0 %v714
    %v941 = vpop.f32.mrf.mxu0
    %v942 = vadd.f32 0.0, %v941
    %v943 = vpop.f32.mrf.mxu0
    %v944 = vadd.f32 0.0, %v943
    %v945 = vpop.f32.mrf.mxu0
    %v946 = vpop.f32.mrf.mxu0
    %947 = vdwg.mxu0
    %948 = vmatprep.subr.bf16.mxu0 %v874
    %949 = vmatpush1.bf16.msra.mxu0 %v873
    %950 = vmatprep.subr.bf16.mxu0 %v870
    %951 = vmatpush1.bf16.msra.mxu0 %v869
    %952 = vmatprep.subr.bf16.mxu0 %v866
    %953 = vmatpush1.bf16.msra.mxu0 %v865
    %954 = vmatprep.subr.bf16.mxu0 %v862
    %955 = vmatpush1.bf16.msra.mxu0 %v861
    %956 = vmatprep.subr.bf16.mxu0 %v858
    %957 = vmatpush1.bf16.msra.mxu0 %v857
    %958 = vmatprep.subr.bf16.mxu0 %v854
    %959 = vmatpush1.bf16.msra.mxu0 %v853
    %960 = vmatprep.subr.bf16.mxu0 %v850
    %961 = vmatpush1.bf16.msra.mxu0 %v849
    %962 = vmatprep.subr.bf16.mxu0 %v846
    %963 = vmatpush1.bf16.msra.mxu0 %v845
    %964 = vmatprep.subr.bf16.mxu0 0
    %965 = vmatpush2.bf16.msra.mxu0 0
    %966 = vmatprep.subr.bf16.mxu0 0
    %967 = vmatpush2.bf16.msra.mxu0 0
    %968 = vmatprep.subr.bf16.mxu0 0
    %969 = vmatpush2.bf16.msra.mxu0 0
    %970 = vmatprep.subr.bf16.mxu0 0
    %971 = vmatpush2.bf16.msra.mxu0 0
    %972 = vmatprep.subr.bf16.mxu0 0
    %973 = vmatpush2.bf16.msra.mxu0 0
    %974 = vmatprep.subr.bf16.mxu0 0
    %975 = vmatpush2.bf16.msra.mxu0 0
    %976 = vmatprep.subr.bf16.mxu0 0
    %977 = vmatpush2.bf16.msra.mxu0 0
    %978 = vmatprep.subr.bf16.mxu0 0
    %979 = vmatpush2.bf16.msra.mxu0 0
    %980 = vmatprep.mubr.bf16.mxu0 0
    %981 = vmatmul.mubr.bf16.gmra.mxu0 %v714
    %v982 = vpop.f32.mrf.mxu0
    %v983 = vadd.f32 0.0, %v982
    %v984 = vpop.f32.mrf.mxu0
    %v985 = vadd.f32 0.0, %v984
    %v986 = vpop.f32.mrf.mxu0
    %v987 = vpop.f32.mrf.mxu0
    %988 = vdwg.mxu0
    %v989 = vsel %vm533, %v942, 0.0
    %v990 = vrot.slane %v989, 4
    %v991 = vadd.f32 %v989, %v990
    %v992 = vrot.slane %v991, 2
    %v993 = vadd.f32 %v991, %v992
    %v994 = vrot.slane %v993, 1
    %v995 = vadd.f32 %v993, %v994
    %v996 = vsel %vm533, %v944, 0.0
    %v997 = vrot.slane %v996, 4
    %v998 = vadd.f32 %v996, %v997
    %v999 = vrot.slane %v998, 2
    %v1000 = vadd.f32 %v998, %v999
    %v1001 = vrot.slane %v1000, 1
    %v1002 = vadd.f32 %v1000, %v1001
    %v1003 = vsel %vm533, %v983, 0.0
    %v1004 = vrot.slane %v1003, 4
    %v1005 = vadd.f32 %v1003, %v1004
    %v1006 = vrot.slane %v1005, 2
    %v1007 = vadd.f32 %v1005, %v1006
    %v1008 = vrot.slane %v1007, 1
    %v1009 = vadd.f32 %v1007, %v1008
    %v1010 = vsel %vm533, %v985, 0.0
    %v1011 = vrot.slane %v1010, 4
    %v1012 = vadd.f32 %v1010, %v1011
    %v1013 = vrot.slane %v1012, 2
    %v1014 = vadd.f32 %v1012, %v1013
    %v1015 = vrot.slane %v1014, 1
    %v1016 = vadd.f32 %v1014, %v1015
    %v1017 = vmul.f32 %v942, %v942
    %v1018 = vmul.f32 %v944, %v944
    %v1019 = vmul.f32 %v983, %v983
    %v1020 = vmul.f32 %v985, %v985
    %v1021 = vsel %vm533, %v1017, 0.0
    %v1022 = vrot.slane %v1021, 4
    %v1023 = vadd.f32 %v1021, %v1022
    %v1024 = vrot.slane %v1023, 2
    %v1025 = vadd.f32 %v1023, %v1024
    %v1026 = vrot.slane %v1025, 1
    %v1027 = vadd.f32 %v1025, %v1026
    %v1028 = vsel %vm533, %v1018, 0.0
    %v1029 = vrot.slane %v1028, 4
    %v1030 = vadd.f32 %v1028, %v1029
    %v1031 = vrot.slane %v1030, 2
    %v1032 = vadd.f32 %v1030, %v1031
    %v1033 = vrot.slane %v1032, 1
    %v1034 = vadd.f32 %v1032, %v1033
    %v1035 = vsel %vm533, %v1019, 0.0
    %v1036 = vrot.slane %v1035, 4
    %v1037 = vadd.f32 %v1035, %v1036
    %v1038 = vrot.slane %v1037, 2
    %v1039 = vadd.f32 %v1037, %v1038
    %v1040 = vrot.slane %v1039, 1
    %v1041 = vadd.f32 %v1039, %v1040
    %v1042 = vsel %vm533, %v1020, 0.0
    %v1043 = vrot.slane %v1042, 4
    %v1044 = vadd.f32 %v1042, %v1043
    %v1045 = vrot.slane %v1044, 2
    %v1046 = vadd.f32 %v1044, %v1045
    %v1047 = vrot.slane %v1046, 1
    %v1048 = vadd.f32 %v1046, %v1047
    %v1049 = vmul.f32 %v995, 0.5
    %v1050 = vmul.f32 %v1002, 0.5
    %v1051 = vmul.f32 %v1009, 0.5
    %v1052 = vmul.f32 %v1016, 0.5
    %v1053 = vmul.f32 %v1027, 0.5
    %v1054 = vmul.f32 %v1034, 0.5
    %v1055 = vmul.f32 %v1041, 0.5
    %v1056 = vmul.f32 %v1048, 0.5
    %v1057 = vmul.f32 %v1049, %v1049
    %v1058 = vmul.f32 %v1050, %v1050
    %v1059 = vmul.f32 %v1051, %v1051
    %v1060 = vmul.f32 %v1052, %v1052
    %v1061 = vsub.f32 %v1053, %v1057
    %v1062 = vsub.f32 %v1054, %v1058
    %v1063 = vsub.f32 %v1055, %v1059
    %v1064 = vsub.f32 %v1056, %v1060
    %v1065 = vmax.f32 %v1061, 0.0
    %v1066 = vmax.f32 %v1062, 0.0
    %v1067 = vmax.f32 %v1063, 0.0
    %v1068 = vmax.f32 %v1064, 0.0
    %v1069 = vsub.f32 %v942, %v1049
    %v1070 = vsub.f32 %v944, %v1050
    %v1071 = vsub.f32 %v983, %v1051
    %v1072 = vsub.f32 %v985, %v1052
    %v1073 = vadd.f32 %v1065, 1e-05
    %v1074 = vadd.f32 %v1066, 1e-05
    %v1075 = vadd.f32 %v1067, 1e-05
    %v1076 = vadd.f32 %v1068, 1e-05
    %v1077 = vrsqrt.pop %v1073
    %v1078 = vrsqrt.pop %v1074
    %v1079 = vrsqrt.pop %v1075
    %v1080 = vrsqrt.pop %v1076
    %v1081 = vmul.f32 %v1069, %v1077
    %v1082 = vmul.f32 %v1070, %v1078
    %v1083 = vmul.f32 %v1071, %v1079
    %v1084 = vmul.f32 %v1072, %v1080
    %v1085 = vmax.f32 %v1081, 0.0
    %v1086 = vmax.f32 %v1082, 0.0
    %v1087 = vpack.c.bf16 %v1085, %v1085
    %v1088 = vpack.c.bf16 %v1086, %v1086
    %v1089 = vld [vmem:[%s4] sm:$0xff]
    %v1090 = vld [vmem:[%s4 + $0x8] sm:$0xff]
    %v1091 = vld [vmem:[%s4 + $0x10] sm:$0xff]
    %v1092 = vld [vmem:[%s4 + $0x18] sm:$0xff]
    %v1093 = vld [vmem:[%s4 + $0x20] sm:$0xff]
    %v1094 = vld [vmem:[%s4 + $0x28] sm:$0xff]
    %v1095 = vld [vmem:[%s4 + $0x30] sm:$0xff]
    %v1096 = vld [vmem:[%s4 + $0x38] sm:$0xff]
    %v1097 = vld [vmem:[%s4 + $0x40] sm:$0xff]
    %v1098 = vld [vmem:[%s4 + $0x48] sm:$0xff]
    %v1099 = vld [vmem:[%s4 + $0x50] sm:$0xff]
    %v1100 = vld [vmem:[%s4 + $0x58] sm:$0xff]
    %v1101 = vld [vmem:[%s4 + $0x60] sm:$0xff]
    %v1102 = vld [vmem:[%s4 + $0x68] sm:$0xff]
    %v1103 = vld [vmem:[%s4 + $0x70] sm:$0xff]
    %v1104 = vld [vmem:[%s4 + $0x78] sm:$0xff]
    %v1105 = vld [vmem:[%s4 + $0x80] sm:$0xff]
    %v1106 = vld [vmem:[%s4 + $0x88] sm:$0xff]
    %v1107 = vld [vmem:[%s4 + $0x90] sm:$0xff]
    %v1108 = vld [vmem:[%s4 + $0x98] sm:$0xff]
    %v1109 = vld [vmem:[%s4 + $0xa0] sm:$0xff]
    %v1110 = vld [vmem:[%s4 + $0xa8] sm:$0xff]
    %v1111 = vld [vmem:[%s4 + $0xb0] sm:$0xff]
    %v1112 = vld [vmem:[%s4 + $0xb8] sm:$0xff]
    %v1113 = vld [vmem:[%s4 + $0xc0] sm:$0xff]
    %v1114 = vld [vmem:[%s4 + $0xc8] sm:$0xff]
    %v1115 = vld [vmem:[%s4 + $0xd0] sm:$0xff]
    %v1116 = vld [vmem:[%s4 + $0xd8] sm:$0xff]
    %v1117 = vld [vmem:[%s4 + $0xe0] sm:$0xff]
    %v1118 = vld [vmem:[%s4 + $0xe8] sm:$0xff]
    %v1119 = vld [vmem:[%s4 + $0xf0] sm:$0xff]
    %v1120 = vld [vmem:[%s4 + $0xf8] sm:$0xff]
    %v1153 = vunpack.c.l.b16 %v1089
    %v1154 = vunpack.c.h.b16 %v1089
    %v1155 = vunpack.c.l.b16 %v1090
    %v1156 = vunpack.c.h.b16 %v1090
    %v1157 = vunpack.c.l.b16 %v1091
    %v1158 = vunpack.c.h.b16 %v1091
    %v1159 = vunpack.c.l.b16 %v1092
    %v1160 = vunpack.c.h.b16 %v1092
    %v1161 = vunpack.c.l.b16 %v1093
    %v1162 = vunpack.c.h.b16 %v1093
    %v1163 = vunpack.c.l.b16 %v1094
    %v1164 = vunpack.c.h.b16 %v1094
    %v1165 = vunpack.c.l.b16 %v1095
    %v1166 = vunpack.c.h.b16 %v1095
    %v1167 = vunpack.c.l.b16 %v1096
    %v1168 = vunpack.c.h.b16 %v1096
    %v1169 = vunpack.c.l.b16 %v1097
    %v1170 = vunpack.c.h.b16 %v1097
    %v1171 = vunpack.c.l.b16 %v1098
    %v1172 = vunpack.c.h.b16 %v1098
    %v1173 = vunpack.c.l.b16 %v1099
    %v1174 = vunpack.c.h.b16 %v1099
    %v1175 = vunpack.c.l.b16 %v1100
    %v1176 = vunpack.c.h.b16 %v1100
    %v1177 = vunpack.c.l.b16 %v1101
    %v1178 = vunpack.c.h.b16 %v1101
    %v1179 = vunpack.c.l.b16 %v1102
    %v1180 = vunpack.c.h.b16 %v1102
    %v1181 = vunpack.c.l.b16 %v1103
    %v1182 = vunpack.c.h.b16 %v1103
    %v1183 = vunpack.c.l.b16 %v1104
    %v1184 = vunpack.c.h.b16 %v1104
    %v1185 = vunpack.c.l.b16 %v1105
    %v1186 = vunpack.c.h.b16 %v1105
    %v1187 = vunpack.c.l.b16 %v1106
    %v1188 = vunpack.c.h.b16 %v1106
    %v1189 = vunpack.c.l.b16 %v1107
    %v1190 = vunpack.c.h.b16 %v1107
    %v1191 = vunpack.c.l.b16 %v1108
    %v1192 = vunpack.c.h.b16 %v1108
    %v1193 = vunpack.c.l.b16 %v1109
    %v1194 = vunpack.c.h.b16 %v1109
    %v1195 = vunpack.c.l.b16 %v1110
    %v1196 = vunpack.c.h.b16 %v1110
    %v1197 = vunpack.c.l.b16 %v1111
    %v1198 = vunpack.c.h.b16 %v1111
    %v1199 = vunpack.c.l.b16 %v1112
    %v1200 = vunpack.c.h.b16 %v1112
    %v1201 = vunpack.c.l.b16 %v1113
    %v1202 = vunpack.c.h.b16 %v1113
    %v1203 = vunpack.c.l.b16 %v1114
    %v1204 = vunpack.c.h.b16 %v1114
    %v1205 = vunpack.c.l.b16 %v1115
    %v1206 = vunpack.c.h.b16 %v1115
    %v1207 = vunpack.c.l.b16 %v1116
    %v1208 = vunpack.c.h.b16 %v1116
    %v1209 = vunpack.c.l.b16 %v1117
    %v1210 = vunpack.c.h.b16 %v1117
    %v1211 = vunpack.c.l.b16 %v1118
    %v1212 = vunpack.c.h.b16 %v1118
    %v1213 = vunpack.c.l.b16 %v1119
    %v1214 = vunpack.c.h.b16 %v1119
    %v1215 = vunpack.c.l.b16 %v1120
    %v1216 = vunpack.c.h.b16 %v1120
    %v1217 = vpack.c.b16 %v1155, %v1153
    %v1218 = vpack.c.b16 %v1156, %v1154
    %v1219 = vpack.c.b16 %v1159, %v1157
    %v1220 = vpack.c.b16 %v1160, %v1158
    %v1221 = vpack.c.b16 %v1163, %v1161
    %v1222 = vpack.c.b16 %v1164, %v1162
    %v1223 = vpack.c.b16 %v1167, %v1165
    %v1224 = vpack.c.b16 %v1168, %v1166
    %v1225 = vpack.c.b16 %v1171, %v1169
    %v1226 = vpack.c.b16 %v1172, %v1170
    %v1227 = vpack.c.b16 %v1175, %v1173
    %v1228 = vpack.c.b16 %v1176, %v1174
    %v1229 = vpack.c.b16 %v1179, %v1177
    %v1230 = vpack.c.b16 %v1180, %v1178
    %v1231 = vpack.c.b16 %v1183, %v1181
    %v1232 = vpack.c.b16 %v1184, %v1182
    %v1233 = vpack.c.b16 %v1187, %v1185
    %v1234 = vpack.c.b16 %v1188, %v1186
    %v1235 = vpack.c.b16 %v1191, %v1189
    %v1236 = vpack.c.b16 %v1192, %v1190
    %v1237 = vpack.c.b16 %v1195, %v1193
    %v1238 = vpack.c.b16 %v1196, %v1194
    %v1239 = vpack.c.b16 %v1199, %v1197
    %v1240 = vpack.c.b16 %v1200, %v1198
    %v1241 = vpack.c.b16 %v1203, %v1201
    %v1242 = vpack.c.b16 %v1204, %v1202
    %v1243 = vpack.c.b16 %v1207, %v1205
    %v1244 = vpack.c.b16 %v1208, %v1206
    %v1245 = vpack.c.b16 %v1211, %v1209
    %v1246 = vpack.c.b16 %v1212, %v1210
    %v1247 = vpack.c.b16 %v1215, %v1213
    %v1248 = vpack.c.b16 %v1216, %v1214
    %1281 = vmatprep.subr.bf16.mxu0 %v1232
    %1282 = vmatpush1.bf16.msra.mxu0 %v1231
    %1283 = vmatprep.subr.bf16.mxu0 %v1230
    %1284 = vmatpush1.bf16.msra.mxu0 %v1229
    %1285 = vmatprep.subr.bf16.mxu0 %v1228
    %1286 = vmatpush1.bf16.msra.mxu0 %v1227
    %1287 = vmatprep.subr.bf16.mxu0 %v1226
    %1288 = vmatpush1.bf16.msra.mxu0 %v1225
    %1289 = vmatprep.subr.bf16.mxu0 %v1224
    %1290 = vmatpush1.bf16.msra.mxu0 %v1223
    %1291 = vmatprep.subr.bf16.mxu0 %v1222
    %1292 = vmatpush1.bf16.msra.mxu0 %v1221
    %1293 = vmatprep.subr.bf16.mxu0 %v1220
    %1294 = vmatpush1.bf16.msra.mxu0 %v1219
    %1295 = vmatprep.subr.bf16.mxu0 %v1218
    %1296 = vmatpush1.bf16.msra.mxu0 %v1217
    %1297 = vmatprep.subr.bf16.mxu0 %v1248
    %1298 = vmatpush2.bf16.msra.mxu0 %v1247
    %1299 = vmatprep.subr.bf16.mxu0 %v1246
    %1300 = vmatpush2.bf16.msra.mxu0 %v1245
    %1301 = vmatprep.subr.bf16.mxu0 %v1244
    %1302 = vmatpush2.bf16.msra.mxu0 %v1243
    %1303 = vmatprep.subr.bf16.mxu0 %v1242
    %1304 = vmatpush2.bf16.msra.mxu0 %v1241
    %1305 = vmatprep.subr.bf16.mxu0 %v1240
    %1306 = vmatpush2.bf16.msra.mxu0 %v1239
    %1307 = vmatprep.subr.bf16.mxu0 %v1238
    %1308 = vmatpush2.bf16.msra.mxu0 %v1237
    %1309 = vmatprep.subr.bf16.mxu0 %v1236
    %1310 = vmatpush2.bf16.msra.mxu0 %v1235
    %1311 = vmatprep.subr.bf16.mxu0 %v1234
    %1312 = vmatpush2.bf16.msra.mxu0 %v1233
    %1313 = vmatprep.mubr.bf16.mxu0 %v1088
    %1314 = vmatmul.mubr.bf16.gmra.mxu0 %v1087
    %v1315 = vpop.f32.mrf.mxu0
    %v1316 = vadd.f32 0.0, %v1315
    %v1317 = vpop.f32.mrf.mxu0
    %v1318 = vadd.f32 0.0, %v1317
    %v1319 = vpop.f32.mrf.mxu0
    %v1320 = vpop.f32.mrf.mxu0
    %1321 = vdwg.mxu0
    %v1322 = vsel %vm533, %v1316, 0.0
    %v1323 = vrot.slane %v1322, 4
    %v1324 = vadd.f32 %v1322, %v1323
    %v1325 = vrot.slane %v1324, 2
    %v1326 = vadd.f32 %v1324, %v1325
    %v1327 = vrot.slane %v1326, 1
    %v1328 = vadd.f32 %v1326, %v1327
    %v1329 = vsel %vm533, %v1318, 0.0
    %v1330 = vrot.slane %v1329, 4
    %v1331 = vadd.f32 %v1329, %v1330
    %v1332 = vrot.slane %v1331, 2
    %v1333 = vadd.f32 %v1331, %v1332
    %v1334 = vrot.slane %v1333, 1
    %v1335 = vadd.f32 %v1333, %v1334
    %v1336 = vmul.f32 %v1316, %v1316
    %v1337 = vmul.f32 %v1318, %v1318
    %v1338 = vsel %vm533, %v1336, 0.0
    %v1339 = vrot.slane %v1338, 4
    %v1340 = vadd.f32 %v1338, %v1339
    %v1341 = vrot.slane %v1340, 2
    %v1342 = vadd.f32 %v1340, %v1341
    %v1343 = vrot.slane %v1342, 1
    %v1344 = vadd.f32 %v1342, %v1343
    %v1345 = vsel %vm533, %v1337, 0.0
    %v1346 = vrot.slane %v1345, 4
    %v1347 = vadd.f32 %v1345, %v1346
    %v1348 = vrot.slane %v1347, 2
    %v1349 = vadd.f32 %v1347, %v1348
    %v1350 = vrot.slane %v1349, 1
    %v1351 = vadd.f32 %v1349, %v1350
    %v1352 = vmul.f32 %v1328, 0.5
    %v1353 = vmul.f32 %v1335, 0.5
    %v1354 = vmul.f32 %v1344, 0.5
    %v1355 = vmul.f32 %v1351, 0.5
    %v1356 = vmul.f32 %v1352, %v1352
    %v1357 = vmul.f32 %v1353, %v1353
    %v1358 = vsub.f32 %v1354, %v1356
    %v1359 = vsub.f32 %v1355, %v1357
    %v1360 = vmax.f32 %v1358, 0.0
    %v1361 = vmax.f32 %v1359, 0.0
    %v1362 = vsub.f32 %v1316, %v1352
    %v1363 = vsub.f32 %v1318, %v1353
    %v1364 = vadd.f32 %v1360, 1e-05
    %v1365 = vadd.f32 %v1361, 1e-05
    %v1366 = vrsqrt.pop %v1364
    %v1367 = vrsqrt.pop %v1365
    %v1368 = vmul.f32 %v1362, %v1366
    %v1369 = vmul.f32 %v1363, %v1367
    %v1370 = vadd.f32 %v1368, %v1083
    %v1371 = vadd.f32 %v1369, %v1084
    %v1372 = vmax.f32 %v1370, 0.0
    %v1373 = vmax.f32 %v1371, 0.0
    %v1374 = vpack.c.bf16 %v1372, %v1372
    %v1375 = vpack.c.bf16 %v1373, %v1373
    %v1376 = vld [vmem:[%s5] sm:$0xff]
    %v1377 = vld [vmem:[%s5 + $0x8] sm:$0xff]
    %v1378 = vld [vmem:[%s5 + $0x10] sm:$0xff]
    %v1379 = vld [vmem:[%s5 + $0x18] sm:$0xff]
    %v1380 = vld [vmem:[%s5 + $0x20] sm:$0xff]
    %v1381 = vld [vmem:[%s5 + $0x28] sm:$0xff]
    %v1382 = vld [vmem:[%s5 + $0x30] sm:$0xff]
    %v1383 = vld [vmem:[%s5 + $0x38] sm:$0xff]
    %v1384 = vld [vmem:[%s5 + $0x40] sm:$0xff]
    %v1385 = vld [vmem:[%s5 + $0x48] sm:$0xff]
    %v1386 = vld [vmem:[%s5 + $0x50] sm:$0xff]
    %v1387 = vld [vmem:[%s5 + $0x58] sm:$0xff]
    %v1388 = vld [vmem:[%s5 + $0x60] sm:$0xff]
    %v1389 = vld [vmem:[%s5 + $0x68] sm:$0xff]
    %v1390 = vld [vmem:[%s5 + $0x70] sm:$0xff]
    %v1391 = vld [vmem:[%s5 + $0x78] sm:$0xff]
    %v1392 = vld [vmem:[%s5 + $0x80] sm:$0xff]
    %v1393 = vld [vmem:[%s5 + $0x88] sm:$0xff]
    %v1394 = vld [vmem:[%s5 + $0x90] sm:$0xff]
    %v1395 = vld [vmem:[%s5 + $0x98] sm:$0xff]
    %v1396 = vld [vmem:[%s5 + $0xa0] sm:$0xff]
    %v1397 = vld [vmem:[%s5 + $0xa8] sm:$0xff]
    %v1398 = vld [vmem:[%s5 + $0xb0] sm:$0xff]
    %v1399 = vld [vmem:[%s5 + $0xb8] sm:$0xff]
    %v1400 = vld [vmem:[%s5 + $0xc0] sm:$0xff]
    %v1401 = vld [vmem:[%s5 + $0xc8] sm:$0xff]
    %v1402 = vld [vmem:[%s5 + $0xd0] sm:$0xff]
    %v1403 = vld [vmem:[%s5 + $0xd8] sm:$0xff]
    %v1404 = vld [vmem:[%s5 + $0xe0] sm:$0xff]
    %v1405 = vld [vmem:[%s5 + $0xe8] sm:$0xff]
    %v1406 = vld [vmem:[%s5 + $0xf0] sm:$0xff]
    %v1407 = vld [vmem:[%s5 + $0xf8] sm:$0xff]
    %v1408 = vld [vmem:[%s5 + $0x100] sm:$0xff]
    %v1409 = vld [vmem:[%s5 + $0x108] sm:$0xff]
    %v1410 = vld [vmem:[%s5 + $0x110] sm:$0xff]
    %v1411 = vld [vmem:[%s5 + $0x118] sm:$0xff]
    %v1412 = vld [vmem:[%s5 + $0x120] sm:$0xff]
    %v1413 = vld [vmem:[%s5 + $0x128] sm:$0xff]
    %v1414 = vld [vmem:[%s5 + $0x130] sm:$0xff]
    %v1415 = vld [vmem:[%s5 + $0x138] sm:$0xff]
    %v1416 = vld [vmem:[%s5 + $0x140] sm:$0xff]
    %v1417 = vld [vmem:[%s5 + $0x148] sm:$0xff]
    %v1418 = vld [vmem:[%s5 + $0x150] sm:$0xff]
    %v1419 = vld [vmem:[%s5 + $0x158] sm:$0xff]
    %v1420 = vld [vmem:[%s5 + $0x160] sm:$0xff]
    %v1421 = vld [vmem:[%s5 + $0x168] sm:$0xff]
    %v1422 = vld [vmem:[%s5 + $0x170] sm:$0xff]
    %v1423 = vld [vmem:[%s5 + $0x178] sm:$0xff]
    %v1424 = vld [vmem:[%s5 + $0x180] sm:$0xff]
    %v1425 = vld [vmem:[%s5 + $0x188] sm:$0xff]
    %v1426 = vld [vmem:[%s5 + $0x190] sm:$0xff]
    %v1427 = vld [vmem:[%s5 + $0x198] sm:$0xff]
    %v1428 = vld [vmem:[%s5 + $0x1a0] sm:$0xff]
    %v1429 = vld [vmem:[%s5 + $0x1a8] sm:$0xff]
    %v1430 = vld [vmem:[%s5 + $0x1b0] sm:$0xff]
    %v1431 = vld [vmem:[%s5 + $0x1b8] sm:$0xff]
    %v1432 = vld [vmem:[%s5 + $0x1c0] sm:$0xff]
    %v1433 = vld [vmem:[%s5 + $0x1c8] sm:$0xff]
    %v1434 = vld [vmem:[%s5 + $0x1d0] sm:$0xff]
    %v1435 = vld [vmem:[%s5 + $0x1d8] sm:$0xff]
    %v1436 = vld [vmem:[%s5 + $0x1e0] sm:$0xff]
    %v1437 = vld [vmem:[%s5 + $0x1e8] sm:$0xff]
    %v1438 = vld [vmem:[%s5 + $0x1f0] sm:$0xff]
    %v1439 = vld [vmem:[%s5 + $0x1f8] sm:$0xff]
    %v1440 = vld [vmem:[%s5 + $0x200] sm:$0xff]
    %v1441 = vld [vmem:[%s5 + $0x208] sm:$0xff]
    %v1442 = vld [vmem:[%s5 + $0x210] sm:$0xff]
    %v1443 = vld [vmem:[%s5 + $0x218] sm:$0xff]
    %v1444 = vld [vmem:[%s5 + $0x220] sm:$0xff]
    %v1445 = vld [vmem:[%s5 + $0x228] sm:$0xff]
    %v1446 = vld [vmem:[%s5 + $0x230] sm:$0xff]
    %v1447 = vld [vmem:[%s5 + $0x238] sm:$0xff]
    %v1448 = vld [vmem:[%s5 + $0x240] sm:$0xff]
    %v1449 = vld [vmem:[%s5 + $0x248] sm:$0xff]
    %v1450 = vld [vmem:[%s5 + $0x250] sm:$0xff]
    %v1451 = vld [vmem:[%s5 + $0x258] sm:$0xff]
    %v1452 = vld [vmem:[%s5 + $0x260] sm:$0xff]
    %v1453 = vld [vmem:[%s5 + $0x268] sm:$0xff]
    %v1454 = vld [vmem:[%s5 + $0x270] sm:$0xff]
    %v1455 = vld [vmem:[%s5 + $0x278] sm:$0xff]
    %v1456 = vld [vmem:[%s5 + $0x280] sm:$0xff]
    %v1457 = vld [vmem:[%s5 + $0x288] sm:$0xff]
    %v1458 = vld [vmem:[%s5 + $0x290] sm:$0xff]
    %v1459 = vld [vmem:[%s5 + $0x298] sm:$0xff]
    %v1460 = vld [vmem:[%s5 + $0x2a0] sm:$0xff]
    %v1461 = vld [vmem:[%s5 + $0x2a8] sm:$0xff]
    %v1462 = vld [vmem:[%s5 + $0x2b0] sm:$0xff]
    %v1463 = vld [vmem:[%s5 + $0x2b8] sm:$0xff]
    %v1464 = vld [vmem:[%s5 + $0x2c0] sm:$0xff]
    %v1465 = vld [vmem:[%s5 + $0x2c8] sm:$0xff]
    %v1466 = vld [vmem:[%s5 + $0x2d0] sm:$0xff]
    %v1467 = vld [vmem:[%s5 + $0x2d8] sm:$0xff]
    %v1468 = vld [vmem:[%s5 + $0x2e0] sm:$0xff]
    %v1469 = vld [vmem:[%s5 + $0x2e8] sm:$0xff]
    %v1470 = vld [vmem:[%s5 + $0x2f0] sm:$0xff]
    %v1471 = vld [vmem:[%s5 + $0x2f8] sm:$0xff]
    %v1472 = vld [vmem:[%s5 + $0x300] sm:$0xff]
    %v1473 = vld [vmem:[%s5 + $0x308] sm:$0xff]
    %v1474 = vld [vmem:[%s5 + $0x310] sm:$0xff]
    %v1475 = vld [vmem:[%s5 + $0x318] sm:$0xff]
    %v1476 = vld [vmem:[%s5 + $0x320] sm:$0xff]
    %v1477 = vld [vmem:[%s5 + $0x328] sm:$0xff]
    %v1478 = vld [vmem:[%s5 + $0x330] sm:$0xff]
    %v1479 = vld [vmem:[%s5 + $0x338] sm:$0xff]
    %v1480 = vld [vmem:[%s5 + $0x340] sm:$0xff]
    %v1481 = vld [vmem:[%s5 + $0x348] sm:$0xff]
    %v1482 = vld [vmem:[%s5 + $0x350] sm:$0xff]
    %v1483 = vld [vmem:[%s5 + $0x358] sm:$0xff]
    %v1484 = vld [vmem:[%s5 + $0x360] sm:$0xff]
    %v1485 = vld [vmem:[%s5 + $0x368] sm:$0xff]
    %v1486 = vld [vmem:[%s5 + $0x370] sm:$0xff]
    %v1487 = vld [vmem:[%s5 + $0x378] sm:$0xff]
    %v1488 = vld [vmem:[%s5 + $0x380] sm:$0xff]
    %v1489 = vld [vmem:[%s5 + $0x388] sm:$0xff]
    %v1490 = vld [vmem:[%s5 + $0x390] sm:$0xff]
    %v1491 = vld [vmem:[%s5 + $0x398] sm:$0xff]
    %v1492 = vld [vmem:[%s5 + $0x3a0] sm:$0xff]
    %v1493 = vld [vmem:[%s5 + $0x3a8] sm:$0xff]
    %v1494 = vld [vmem:[%s5 + $0x3b0] sm:$0xff]
    %v1495 = vld [vmem:[%s5 + $0x3b8] sm:$0xff]
    %v1496 = vld [vmem:[%s5 + $0x3c0] sm:$0xff]
    %v1497 = vld [vmem:[%s5 + $0x3c8] sm:$0xff]
    %v1498 = vld [vmem:[%s5 + $0x3d0] sm:$0xff]
    %v1499 = vld [vmem:[%s5 + $0x3d8] sm:$0xff]
    %v1500 = vld [vmem:[%s5 + $0x3e0] sm:$0xff]
    %v1501 = vld [vmem:[%s5 + $0x3e8] sm:$0xff]
    %v1502 = vld [vmem:[%s5 + $0x3f0] sm:$0xff]
    %v1503 = vld [vmem:[%s5 + $0x3f8] sm:$0xff]
    %v1632 = vunpack.c.l.b16 %v1376
    %v1633 = vunpack.c.h.b16 %v1376
    %v1634 = vunpack.c.l.b16 %v1377
    %v1635 = vunpack.c.h.b16 %v1377
    %v1636 = vunpack.c.l.b16 %v1378
    %v1637 = vunpack.c.h.b16 %v1378
    %v1638 = vunpack.c.l.b16 %v1379
    %v1639 = vunpack.c.h.b16 %v1379
    %v1640 = vunpack.c.l.b16 %v1380
    %v1641 = vunpack.c.h.b16 %v1380
    %v1642 = vunpack.c.l.b16 %v1381
    %v1643 = vunpack.c.h.b16 %v1381
    %v1644 = vunpack.c.l.b16 %v1382
    %v1645 = vunpack.c.h.b16 %v1382
    %v1646 = vunpack.c.l.b16 %v1383
    %v1647 = vunpack.c.h.b16 %v1383
    %v1648 = vunpack.c.l.b16 %v1384
    %v1649 = vunpack.c.h.b16 %v1384
    %v1650 = vunpack.c.l.b16 %v1385
    %v1651 = vunpack.c.h.b16 %v1385
    %v1652 = vunpack.c.l.b16 %v1386
    %v1653 = vunpack.c.h.b16 %v1386
    %v1654 = vunpack.c.l.b16 %v1387
    %v1655 = vunpack.c.h.b16 %v1387
    %v1656 = vunpack.c.l.b16 %v1388
    %v1657 = vunpack.c.h.b16 %v1388
    %v1658 = vunpack.c.l.b16 %v1389
    %v1659 = vunpack.c.h.b16 %v1389
    %v1660 = vunpack.c.l.b16 %v1390
    %v1661 = vunpack.c.h.b16 %v1390
    %v1662 = vunpack.c.l.b16 %v1391
    %v1663 = vunpack.c.h.b16 %v1391
    %v1664 = vunpack.c.l.b16 %v1392
    %v1665 = vunpack.c.h.b16 %v1392
    %v1666 = vunpack.c.l.b16 %v1393
    %v1667 = vunpack.c.h.b16 %v1393
    %v1668 = vunpack.c.l.b16 %v1394
    %v1669 = vunpack.c.h.b16 %v1394
    %v1670 = vunpack.c.l.b16 %v1395
    %v1671 = vunpack.c.h.b16 %v1395
    %v1672 = vunpack.c.l.b16 %v1396
    %v1673 = vunpack.c.h.b16 %v1396
    %v1674 = vunpack.c.l.b16 %v1397
    %v1675 = vunpack.c.h.b16 %v1397
    %v1676 = vunpack.c.l.b16 %v1398
    %v1677 = vunpack.c.h.b16 %v1398
    %v1678 = vunpack.c.l.b16 %v1399
    %v1679 = vunpack.c.h.b16 %v1399
    %v1680 = vunpack.c.l.b16 %v1400
    %v1681 = vunpack.c.h.b16 %v1400
    %v1682 = vunpack.c.l.b16 %v1401
    %v1683 = vunpack.c.h.b16 %v1401
    %v1684 = vunpack.c.l.b16 %v1402
    %v1685 = vunpack.c.h.b16 %v1402
    %v1686 = vunpack.c.l.b16 %v1403
    %v1687 = vunpack.c.h.b16 %v1403
    %v1688 = vunpack.c.l.b16 %v1404
    %v1689 = vunpack.c.h.b16 %v1404
    %v1690 = vunpack.c.l.b16 %v1405
    %v1691 = vunpack.c.h.b16 %v1405
    %v1692 = vunpack.c.l.b16 %v1406
    %v1693 = vunpack.c.h.b16 %v1406
    %v1694 = vunpack.c.l.b16 %v1407
    %v1695 = vunpack.c.h.b16 %v1407
    %v1696 = vunpack.c.l.b16 %v1408
    %v1697 = vunpack.c.h.b16 %v1408
    %v1698 = vunpack.c.l.b16 %v1409
    %v1699 = vunpack.c.h.b16 %v1409
    %v1700 = vunpack.c.l.b16 %v1410
    %v1701 = vunpack.c.h.b16 %v1410
    %v1702 = vunpack.c.l.b16 %v1411
    %v1703 = vunpack.c.h.b16 %v1411
    %v1704 = vunpack.c.l.b16 %v1412
    %v1705 = vunpack.c.h.b16 %v1412
    %v1706 = vunpack.c.l.b16 %v1413
    %v1707 = vunpack.c.h.b16 %v1413
    %v1708 = vunpack.c.l.b16 %v1414
    %v1709 = vunpack.c.h.b16 %v1414
    %v1710 = vunpack.c.l.b16 %v1415
    %v1711 = vunpack.c.h.b16 %v1415
    %v1712 = vunpack.c.l.b16 %v1416
    %v1713 = vunpack.c.h.b16 %v1416
    %v1714 = vunpack.c.l.b16 %v1417
    %v1715 = vunpack.c.h.b16 %v1417
    %v1716 = vunpack.c.l.b16 %v1418
    %v1717 = vunpack.c.h.b16 %v1418
    %v1718 = vunpack.c.l.b16 %v1419
    %v1719 = vunpack.c.h.b16 %v1419
    %v1720 = vunpack.c.l.b16 %v1420
    %v1721 = vunpack.c.h.b16 %v1420
    %v1722 = vunpack.c.l.b16 %v1421
    %v1723 = vunpack.c.h.b16 %v1421
    %v1724 = vunpack.c.l.b16 %v1422
    %v1725 = vunpack.c.h.b16 %v1422
    %v1726 = vunpack.c.l.b16 %v1423
    %v1727 = vunpack.c.h.b16 %v1423
    %v1728 = vunpack.c.l.b16 %v1424
    %v1729 = vunpack.c.h.b16 %v1424
    %v1730 = vunpack.c.l.b16 %v1425
    %v1731 = vunpack.c.h.b16 %v1425
    %v1732 = vunpack.c.l.b16 %v1426
    %v1733 = vunpack.c.h.b16 %v1426
    %v1734 = vunpack.c.l.b16 %v1427
    %v1735 = vunpack.c.h.b16 %v1427
    %v1736 = vunpack.c.l.b16 %v1428
    %v1737 = vunpack.c.h.b16 %v1428
    %v1738 = vunpack.c.l.b16 %v1429
    %v1739 = vunpack.c.h.b16 %v1429
    %v1740 = vunpack.c.l.b16 %v1430
    %v1741 = vunpack.c.h.b16 %v1430
    %v1742 = vunpack.c.l.b16 %v1431
    %v1743 = vunpack.c.h.b16 %v1431
    %v1744 = vunpack.c.l.b16 %v1432
    %v1745 = vunpack.c.h.b16 %v1432
    %v1746 = vunpack.c.l.b16 %v1433
    %v1747 = vunpack.c.h.b16 %v1433
    %v1748 = vunpack.c.l.b16 %v1434
    %v1749 = vunpack.c.h.b16 %v1434
    %v1750 = vunpack.c.l.b16 %v1435
    %v1751 = vunpack.c.h.b16 %v1435
    %v1752 = vunpack.c.l.b16 %v1436
    %v1753 = vunpack.c.h.b16 %v1436
    %v1754 = vunpack.c.l.b16 %v1437
    %v1755 = vunpack.c.h.b16 %v1437
    %v1756 = vunpack.c.l.b16 %v1438
    %v1757 = vunpack.c.h.b16 %v1438
    %v1758 = vunpack.c.l.b16 %v1439
    %v1759 = vunpack.c.h.b16 %v1439
    %v1760 = vunpack.c.l.b16 %v1440
    %v1761 = vunpack.c.h.b16 %v1440
    %v1762 = vunpack.c.l.b16 %v1441
    %v1763 = vunpack.c.h.b16 %v1441
    %v1764 = vunpack.c.l.b16 %v1442
    %v1765 = vunpack.c.h.b16 %v1442
    %v1766 = vunpack.c.l.b16 %v1443
    %v1767 = vunpack.c.h.b16 %v1443
    %v1768 = vunpack.c.l.b16 %v1444
    %v1769 = vunpack.c.h.b16 %v1444
    %v1770 = vunpack.c.l.b16 %v1445
    %v1771 = vunpack.c.h.b16 %v1445
    %v1772 = vunpack.c.l.b16 %v1446
    %v1773 = vunpack.c.h.b16 %v1446
    %v1774 = vunpack.c.l.b16 %v1447
    %v1775 = vunpack.c.h.b16 %v1447
    %v1776 = vunpack.c.l.b16 %v1448
    %v1777 = vunpack.c.h.b16 %v1448
    %v1778 = vunpack.c.l.b16 %v1449
    %v1779 = vunpack.c.h.b16 %v1449
    %v1780 = vunpack.c.l.b16 %v1450
    %v1781 = vunpack.c.h.b16 %v1450
    %v1782 = vunpack.c.l.b16 %v1451
    %v1783 = vunpack.c.h.b16 %v1451
    %v1784 = vunpack.c.l.b16 %v1452
    %v1785 = vunpack.c.h.b16 %v1452
    %v1786 = vunpack.c.l.b16 %v1453
    %v1787 = vunpack.c.h.b16 %v1453
    %v1788 = vunpack.c.l.b16 %v1454
    %v1789 = vunpack.c.h.b16 %v1454
    %v1790 = vunpack.c.l.b16 %v1455
    %v1791 = vunpack.c.h.b16 %v1455
    %v1792 = vunpack.c.l.b16 %v1456
    %v1793 = vunpack.c.h.b16 %v1456
    %v1794 = vunpack.c.l.b16 %v1457
    %v1795 = vunpack.c.h.b16 %v1457
    %v1796 = vunpack.c.l.b16 %v1458
    %v1797 = vunpack.c.h.b16 %v1458
    %v1798 = vunpack.c.l.b16 %v1459
    %v1799 = vunpack.c.h.b16 %v1459
    %v1800 = vunpack.c.l.b16 %v1460
    %v1801 = vunpack.c.h.b16 %v1460
    %v1802 = vunpack.c.l.b16 %v1461
    %v1803 = vunpack.c.h.b16 %v1461
    %v1804 = vunpack.c.l.b16 %v1462
    %v1805 = vunpack.c.h.b16 %v1462
    %v1806 = vunpack.c.l.b16 %v1463
    %v1807 = vunpack.c.h.b16 %v1463
    %v1808 = vunpack.c.l.b16 %v1464
    %v1809 = vunpack.c.h.b16 %v1464
    %v1810 = vunpack.c.l.b16 %v1465
    %v1811 = vunpack.c.h.b16 %v1465
    %v1812 = vunpack.c.l.b16 %v1466
    %v1813 = vunpack.c.h.b16 %v1466
    %v1814 = vunpack.c.l.b16 %v1467
    %v1815 = vunpack.c.h.b16 %v1467
    %v1816 = vunpack.c.l.b16 %v1468
    %v1817 = vunpack.c.h.b16 %v1468
    %v1818 = vunpack.c.l.b16 %v1469
    %v1819 = vunpack.c.h.b16 %v1469
    %v1820 = vunpack.c.l.b16 %v1470
    %v1821 = vunpack.c.h.b16 %v1470
    %v1822 = vunpack.c.l.b16 %v1471
    %v1823 = vunpack.c.h.b16 %v1471
    %v1824 = vunpack.c.l.b16 %v1472
    %v1825 = vunpack.c.h.b16 %v1472
    %v1826 = vunpack.c.l.b16 %v1473
    %v1827 = vunpack.c.h.b16 %v1473
    %v1828 = vunpack.c.l.b16 %v1474
    %v1829 = vunpack.c.h.b16 %v1474
    %v1830 = vunpack.c.l.b16 %v1475
    %v1831 = vunpack.c.h.b16 %v1475
    %v1832 = vunpack.c.l.b16 %v1476
    %v1833 = vunpack.c.h.b16 %v1476
    %v1834 = vunpack.c.l.b16 %v1477
    %v1835 = vunpack.c.h.b16 %v1477
    %v1836 = vunpack.c.l.b16 %v1478
    %v1837 = vunpack.c.h.b16 %v1478
    %v1838 = vunpack.c.l.b16 %v1479
    %v1839 = vunpack.c.h.b16 %v1479
    %v1840 = vunpack.c.l.b16 %v1480
    %v1841 = vunpack.c.h.b16 %v1480
    %v1842 = vunpack.c.l.b16 %v1481
    %v1843 = vunpack.c.h.b16 %v1481
    %v1844 = vunpack.c.l.b16 %v1482
    %v1845 = vunpack.c.h.b16 %v1482
    %v1846 = vunpack.c.l.b16 %v1483
    %v1847 = vunpack.c.h.b16 %v1483
    %v1848 = vunpack.c.l.b16 %v1484
    %v1849 = vunpack.c.h.b16 %v1484
    %v1850 = vunpack.c.l.b16 %v1485
    %v1851 = vunpack.c.h.b16 %v1485
    %v1852 = vunpack.c.l.b16 %v1486
    %v1853 = vunpack.c.h.b16 %v1486
    %v1854 = vunpack.c.l.b16 %v1487
    %v1855 = vunpack.c.h.b16 %v1487
    %v1856 = vunpack.c.l.b16 %v1488
    %v1857 = vunpack.c.h.b16 %v1488
    %v1858 = vunpack.c.l.b16 %v1489
    %v1859 = vunpack.c.h.b16 %v1489
    %v1860 = vunpack.c.l.b16 %v1490
    %v1861 = vunpack.c.h.b16 %v1490
    %v1862 = vunpack.c.l.b16 %v1491
    %v1863 = vunpack.c.h.b16 %v1491
    %v1864 = vunpack.c.l.b16 %v1492
    %v1865 = vunpack.c.h.b16 %v1492
    %v1866 = vunpack.c.l.b16 %v1493
    %v1867 = vunpack.c.h.b16 %v1493
    %v1868 = vunpack.c.l.b16 %v1494
    %v1869 = vunpack.c.h.b16 %v1494
    %v1870 = vunpack.c.l.b16 %v1495
    %v1871 = vunpack.c.h.b16 %v1495
    %v1872 = vunpack.c.l.b16 %v1496
    %v1873 = vunpack.c.h.b16 %v1496
    %v1874 = vunpack.c.l.b16 %v1497
    %v1875 = vunpack.c.h.b16 %v1497
    %v1876 = vunpack.c.l.b16 %v1498
    %v1877 = vunpack.c.h.b16 %v1498
    %v1878 = vunpack.c.l.b16 %v1499
    %v1879 = vunpack.c.h.b16 %v1499
    %v1880 = vunpack.c.l.b16 %v1500
    %v1881 = vunpack.c.h.b16 %v1500
    %v1882 = vunpack.c.l.b16 %v1501
    %v1883 = vunpack.c.h.b16 %v1501
    %v1884 = vunpack.c.l.b16 %v1502
    %v1885 = vunpack.c.h.b16 %v1502
    %v1886 = vunpack.c.l.b16 %v1503
    %v1887 = vunpack.c.h.b16 %v1503
    %v1888 = vpack.c.b16 %v1640, %v1632
    %v1889 = vpack.c.b16 %v1641, %v1633
    %v1890 = vpack.c.b16 %v1642, %v1634
    %v1891 = vpack.c.b16 %v1643, %v1635
    %v1892 = vpack.c.b16 %v1644, %v1636
    %v1893 = vpack.c.b16 %v1645, %v1637
    %v1894 = vpack.c.b16 %v1646, %v1638
    %v1895 = vpack.c.b16 %v1647, %v1639
    %v1896 = vpack.c.b16 %v1656, %v1648
    %v1897 = vpack.c.b16 %v1657, %v1649
    %v1898 = vpack.c.b16 %v1658, %v1650
    %v1899 = vpack.c.b16 %v1659, %v1651
    %v1900 = vpack.c.b16 %v1660, %v1652
    %v1901 = vpack.c.b16 %v1661, %v1653
    %v1902 = vpack.c.b16 %v1662, %v1654
    %v1903 = vpack.c.b16 %v1663, %v1655
    %v1904 = vpack.c.b16 %v1672, %v1664
    %v1905 = vpack.c.b16 %v1673, %v1665
    %v1906 = vpack.c.b16 %v1674, %v1666
    %v1907 = vpack.c.b16 %v1675, %v1667
    %v1908 = vpack.c.b16 %v1676, %v1668
    %v1909 = vpack.c.b16 %v1677, %v1669
    %v1910 = vpack.c.b16 %v1678, %v1670
    %v1911 = vpack.c.b16 %v1679, %v1671
    %v1912 = vpack.c.b16 %v1688, %v1680
    %v1913 = vpack.c.b16 %v1689, %v1681
    %v1914 = vpack.c.b16 %v1690, %v1682
    %v1915 = vpack.c.b16 %v1691, %v1683
    %v1916 = vpack.c.b16 %v1692, %v1684
    %v1917 = vpack.c.b16 %v1693, %v1685
    %v1918 = vpack.c.b16 %v1694, %v1686
    %v1919 = vpack.c.b16 %v1695, %v1687
    %v1920 = vpack.c.b16 %v1704, %v1696
    %v1921 = vpack.c.b16 %v1705, %v1697
    %v1922 = vpack.c.b16 %v1706, %v1698
    %v1923 = vpack.c.b16 %v1707, %v1699
    %v1924 = vpack.c.b16 %v1708, %v1700
    %v1925 = vpack.c.b16 %v1709, %v1701
    %v1926 = vpack.c.b16 %v1710, %v1702
    %v1927 = vpack.c.b16 %v1711, %v1703
    %v1928 = vpack.c.b16 %v1720, %v1712
    %v1929 = vpack.c.b16 %v1721, %v1713
    %v1930 = vpack.c.b16 %v1722, %v1714
    %v1931 = vpack.c.b16 %v1723, %v1715
    %v1932 = vpack.c.b16 %v1724, %v1716
    %v1933 = vpack.c.b16 %v1725, %v1717
    %v1934 = vpack.c.b16 %v1726, %v1718
    %v1935 = vpack.c.b16 %v1727, %v1719
    %v1936 = vpack.c.b16 %v1736, %v1728
    %v1937 = vpack.c.b16 %v1737, %v1729
    %v1938 = vpack.c.b16 %v1738, %v1730
    %v1939 = vpack.c.b16 %v1739, %v1731
    %v1940 = vpack.c.b16 %v1740, %v1732
    %v1941 = vpack.c.b16 %v1741, %v1733
    %v1942 = vpack.c.b16 %v1742, %v1734
    %v1943 = vpack.c.b16 %v1743, %v1735
    %v1944 = vpack.c.b16 %v1752, %v1744
    %v1945 = vpack.c.b16 %v1753, %v1745
    %v1946 = vpack.c.b16 %v1754, %v1746
    %v1947 = vpack.c.b16 %v1755, %v1747
    %v1948 = vpack.c.b16 %v1756, %v1748
    %v1949 = vpack.c.b16 %v1757, %v1749
    %v1950 = vpack.c.b16 %v1758, %v1750
    %v1951 = vpack.c.b16 %v1759, %v1751
    %v1952 = vpack.c.b16 %v1768, %v1760
    %v1953 = vpack.c.b16 %v1769, %v1761
    %v1954 = vpack.c.b16 %v1770, %v1762
    %v1955 = vpack.c.b16 %v1771, %v1763
    %v1956 = vpack.c.b16 %v1772, %v1764
    %v1957 = vpack.c.b16 %v1773, %v1765
    %v1958 = vpack.c.b16 %v1774, %v1766
    %v1959 = vpack.c.b16 %v1775, %v1767
    %v1960 = vpack.c.b16 %v1784, %v1776
    %v1961 = vpack.c.b16 %v1785, %v1777
    %v1962 = vpack.c.b16 %v1786, %v1778
    %v1963 = vpack.c.b16 %v1787, %v1779
    %v1964 = vpack.c.b16 %v1788, %v1780
    %v1965 = vpack.c.b16 %v1789, %v1781
    %v1966 = vpack.c.b16 %v1790, %v1782
    %v1967 = vpack.c.b16 %v1791, %v1783
    %v1968 = vpack.c.b16 %v1800, %v1792
    %v1969 = vpack.c.b16 %v1801, %v1793
    %v1970 = vpack.c.b16 %v1802, %v1794
    %v1971 = vpack.c.b16 %v1803, %v1795
    %v1972 = vpack.c.b16 %v1804, %v1796
    %v1973 = vpack.c.b16 %v1805, %v1797
    %v1974 = vpack.c.b16 %v1806, %v1798
    %v1975 = vpack.c.b16 %v1807, %v1799
    %v1976 = vpack.c.b16 %v1816, %v1808
    %v1977 = vpack.c.b16 %v1817, %v1809
    %v1978 = vpack.c.b16 %v1818, %v1810
    %v1979 = vpack.c.b16 %v1819, %v1811
    %v1980 = vpack.c.b16 %v1820, %v1812
    %v1981 = vpack.c.b16 %v1821, %v1813
    %v1982 = vpack.c.b16 %v1822, %v1814
    %v1983 = vpack.c.b16 %v1823, %v1815
    %v1984 = vpack.c.b16 %v1832, %v1824
    %v1985 = vpack.c.b16 %v1833, %v1825
    %v1986 = vpack.c.b16 %v1834, %v1826
    %v1987 = vpack.c.b16 %v1835, %v1827
    %v1988 = vpack.c.b16 %v1836, %v1828
    %v1989 = vpack.c.b16 %v1837, %v1829
    %v1990 = vpack.c.b16 %v1838, %v1830
    %v1991 = vpack.c.b16 %v1839, %v1831
    %v1992 = vpack.c.b16 %v1848, %v1840
    %v1993 = vpack.c.b16 %v1849, %v1841
    %v1994 = vpack.c.b16 %v1850, %v1842
    %v1995 = vpack.c.b16 %v1851, %v1843
    %v1996 = vpack.c.b16 %v1852, %v1844
    %v1997 = vpack.c.b16 %v1853, %v1845
    %v1998 = vpack.c.b16 %v1854, %v1846
    %v1999 = vpack.c.b16 %v1855, %v1847
    %v2000 = vpack.c.b16 %v1864, %v1856
    %v2001 = vpack.c.b16 %v1865, %v1857
    %v2002 = vpack.c.b16 %v1866, %v1858
    %v2003 = vpack.c.b16 %v1867, %v1859
    %v2004 = vpack.c.b16 %v1868, %v1860
    %v2005 = vpack.c.b16 %v1869, %v1861
    %v2006 = vpack.c.b16 %v1870, %v1862
    %v2007 = vpack.c.b16 %v1871, %v1863
    %v2008 = vpack.c.b16 %v1880, %v1872
    %v2009 = vpack.c.b16 %v1881, %v1873
    %v2010 = vpack.c.b16 %v1882, %v1874
    %v2011 = vpack.c.b16 %v1883, %v1875
    %v2012 = vpack.c.b16 %v1884, %v1876
    %v2013 = vpack.c.b16 %v1885, %v1877
    %v2014 = vpack.c.b16 %v1886, %v1878
    %v2015 = vpack.c.b16 %v1887, %v1879
    %2144 = vmatprep.subr.bf16.mxu0 %v1945
    %2145 = vmatpush1.bf16.msra.mxu0 %v1944
    %2146 = vmatprep.subr.bf16.mxu0 %v1937
    %2147 = vmatpush1.bf16.msra.mxu0 %v1936
    %2148 = vmatprep.subr.bf16.mxu0 %v1929
    %2149 = vmatpush1.bf16.msra.mxu0 %v1928
    %2150 = vmatprep.subr.bf16.mxu0 %v1921
    %2151 = vmatpush1.bf16.msra.mxu0 %v1920
    %2152 = vmatprep.subr.bf16.mxu0 %v1913
    %2153 = vmatpush1.bf16.msra.mxu0 %v1912
    %2154 = vmatprep.subr.bf16.mxu0 %v1905
    %2155 = vmatpush1.bf16.msra.mxu0 %v1904
    %2156 = vmatprep.subr.bf16.mxu0 %v1897
    %2157 = vmatpush1.bf16.msra.mxu0 %v1896
    %2158 = vmatprep.subr.bf16.mxu0 %v1889
    %2159 = vmatpush1.bf16.msra.mxu0 %v1888
    %2160 = vmatprep.subr.bf16.mxu0 %v2009
    %2161 = vmatpush2.bf16.msra.mxu0 %v2008
    %2162 = vmatprep.subr.bf16.mxu0 %v2001
    %2163 = vmatpush2.bf16.msra.mxu0 %v2000
    %2164 = vmatprep.subr.bf16.mxu0 %v1993
    %2165 = vmatpush2.bf16.msra.mxu0 %v1992
    %2166 = vmatprep.subr.bf16.mxu0 %v1985
    %2167 = vmatpush2.bf16.msra.mxu0 %v1984
    %2168 = vmatprep.subr.bf16.mxu0 %v1977
    %2169 = vmatpush2.bf16.msra.mxu0 %v1976
    %2170 = vmatprep.subr.bf16.mxu0 %v1969
    %2171 = vmatpush2.bf16.msra.mxu0 %v1968
    %2172 = vmatprep.subr.bf16.mxu0 %v1961
    %2173 = vmatpush2.bf16.msra.mxu0 %v1960
    %2174 = vmatprep.subr.bf16.mxu0 %v1953
    %2175 = vmatpush2.bf16.msra.mxu0 %v1952
    %2176 = vmatprep.mubr.bf16.mxu0 %v1375
    %2177 = vmatmul.mubr.bf16.gmra.mxu0 %v1374
    %v2178 = vpop.f32.mrf.mxu0
    %v2179 = vadd.f32 0.0, %v2178
    %v2180 = vpop.f32.mrf.mxu0
    %v2181 = vadd.f32 0.0, %v2180
    %v2182 = vpop.f32.mrf.mxu0
    %v2183 = vpop.f32.mrf.mxu0
    %2184 = vdwg.mxu0
    %2185 = vmatprep.subr.bf16.mxu0 %v1947
    %2186 = vmatpush1.bf16.msra.mxu0 %v1946
    %2187 = vmatprep.subr.bf16.mxu0 %v1939
    %2188 = vmatpush1.bf16.msra.mxu0 %v1938
    %2189 = vmatprep.subr.bf16.mxu0 %v1931
    %2190 = vmatpush1.bf16.msra.mxu0 %v1930
    %2191 = vmatprep.subr.bf16.mxu0 %v1923
    %2192 = vmatpush1.bf16.msra.mxu0 %v1922
    %2193 = vmatprep.subr.bf16.mxu0 %v1915
    %2194 = vmatpush1.bf16.msra.mxu0 %v1914
    %2195 = vmatprep.subr.bf16.mxu0 %v1907
    %2196 = vmatpush1.bf16.msra.mxu0 %v1906
    %2197 = vmatprep.subr.bf16.mxu0 %v1899
    %2198 = vmatpush1.bf16.msra.mxu0 %v1898
    %2199 = vmatprep.subr.bf16.mxu0 %v1891
    %2200 = vmatpush1.bf16.msra.mxu0 %v1890
    %2201 = vmatprep.subr.bf16.mxu0 %v2011
    %2202 = vmatpush2.bf16.msra.mxu0 %v2010
    %2203 = vmatprep.subr.bf16.mxu0 %v2003
    %2204 = vmatpush2.bf16.msra.mxu0 %v2002
    %2205 = vmatprep.subr.bf16.mxu0 %v1995
    %2206 = vmatpush2.bf16.msra.mxu0 %v1994
    %2207 = vmatprep.subr.bf16.mxu0 %v1987
    %2208 = vmatpush2.bf16.msra.mxu0 %v1986
    %2209 = vmatprep.subr.bf16.mxu0 %v1979
    %2210 = vmatpush2.bf16.msra.mxu0 %v1978
    %2211 = vmatprep.subr.bf16.mxu0 %v1971
    %2212 = vmatpush2.bf16.msra.mxu0 %v1970
    %2213 = vmatprep.subr.bf16.mxu0 %v1963
    %2214 = vmatpush2.bf16.msra.mxu0 %v1962
    %2215 = vmatprep.subr.bf16.mxu0 %v1955
    %2216 = vmatpush2.bf16.msra.mxu0 %v1954
    %2217 = vmatprep.mubr.bf16.mxu0 %v1375
    %2218 = vmatmul.mubr.bf16.gmra.mxu0 %v1374
    %v2219 = vpop.f32.mrf.mxu0
    %v2220 = vadd.f32 0.0, %v2219
    %v2221 = vpop.f32.mrf.mxu0
    %v2222 = vadd.f32 0.0, %v2221
    %v2223 = vpop.f32.mrf.mxu0
    %v2224 = vpop.f32.mrf.mxu0
    %2225 = vdwg.mxu0
    %2226 = vmatprep.subr.bf16.mxu0 %v1949
    %2227 = vmatpush1.bf16.msra.mxu0 %v1948
    %2228 = vmatprep.subr.bf16.mxu0 %v1941
    %2229 = vmatpush1.bf16.msra.mxu0 %v1940
    %2230 = vmatprep.subr.bf16.mxu0 %v1933
    %2231 = vmatpush1.bf16.msra.mxu0 %v1932
    %2232 = vmatprep.subr.bf16.mxu0 %v1925
    %2233 = vmatpush1.bf16.msra.mxu0 %v1924
    %2234 = vmatprep.subr.bf16.mxu0 %v1917
    %2235 = vmatpush1.bf16.msra.mxu0 %v1916
    %2236 = vmatprep.subr.bf16.mxu0 %v1909
    %2237 = vmatpush1.bf16.msra.mxu0 %v1908
    %2238 = vmatprep.subr.bf16.mxu0 %v1901
    %2239 = vmatpush1.bf16.msra.mxu0 %v1900
    %2240 = vmatprep.subr.bf16.mxu0 %v1893
    %2241 = vmatpush1.bf16.msra.mxu0 %v1892
    %2242 = vmatprep.subr.bf16.mxu0 %v2013
    %2243 = vmatpush2.bf16.msra.mxu0 %v2012
    %2244 = vmatprep.subr.bf16.mxu0 %v2005
    %2245 = vmatpush2.bf16.msra.mxu0 %v2004
    %2246 = vmatprep.subr.bf16.mxu0 %v1997
    %2247 = vmatpush2.bf16.msra.mxu0 %v1996
    %2248 = vmatprep.subr.bf16.mxu0 %v1989
    %2249 = vmatpush2.bf16.msra.mxu0 %v1988
    %2250 = vmatprep.subr.bf16.mxu0 %v1981
    %2251 = vmatpush2.bf16.msra.mxu0 %v1980
    %2252 = vmatprep.subr.bf16.mxu0 %v1973
    %2253 = vmatpush2.bf16.msra.mxu0 %v1972
    %2254 = vmatprep.subr.bf16.mxu0 %v1965
    %2255 = vmatpush2.bf16.msra.mxu0 %v1964
    %2256 = vmatprep.subr.bf16.mxu0 %v1957
    %2257 = vmatpush2.bf16.msra.mxu0 %v1956
    %2258 = vmatprep.mubr.bf16.mxu0 %v1375
    %2259 = vmatmul.mubr.bf16.gmra.mxu0 %v1374
    %v2260 = vpop.f32.mrf.mxu0
    %v2261 = vadd.f32 0.0, %v2260
    %v2262 = vpop.f32.mrf.mxu0
    %v2263 = vadd.f32 0.0, %v2262
    %v2264 = vpop.f32.mrf.mxu0
    %v2265 = vpop.f32.mrf.mxu0
    %2266 = vdwg.mxu0
    %2267 = vmatprep.subr.bf16.mxu0 %v1951
    %2268 = vmatpush1.bf16.msra.mxu0 %v1950
    %2269 = vmatprep.subr.bf16.mxu0 %v1943
    %2270 = vmatpush1.bf16.msra.mxu0 %v1942
    %2271 = vmatprep.subr.bf16.mxu0 %v1935
    %2272 = vmatpush1.bf16.msra.mxu0 %v1934
    %2273 = vmatprep.subr.bf16.mxu0 %v1927
    %2274 = vmatpush1.bf16.msra.mxu0 %v1926
    %2275 = vmatprep.subr.bf16.mxu0 %v1919
    %2276 = vmatpush1.bf16.msra.mxu0 %v1918
    %2277 = vmatprep.subr.bf16.mxu0 %v1911
    %2278 = vmatpush1.bf16.msra.mxu0 %v1910
    %2279 = vmatprep.subr.bf16.mxu0 %v1903
    %2280 = vmatpush1.bf16.msra.mxu0 %v1902
    %2281 = vmatprep.subr.bf16.mxu0 %v1895
    %2282 = vmatpush1.bf16.msra.mxu0 %v1894
    %2283 = vmatprep.subr.bf16.mxu0 %v2015
    %2284 = vmatpush2.bf16.msra.mxu0 %v2014
    %2285 = vmatprep.subr.bf16.mxu0 %v2007
    %2286 = vmatpush2.bf16.msra.mxu0 %v2006
    %2287 = vmatprep.subr.bf16.mxu0 %v1999
    %2288 = vmatpush2.bf16.msra.mxu0 %v1998
    %2289 = vmatprep.subr.bf16.mxu0 %v1991
    %2290 = vmatpush2.bf16.msra.mxu0 %v1990
    %2291 = vmatprep.subr.bf16.mxu0 %v1983
    %2292 = vmatpush2.bf16.msra.mxu0 %v1982
    %2293 = vmatprep.subr.bf16.mxu0 %v1975
    %2294 = vmatpush2.bf16.msra.mxu0 %v1974
    %2295 = vmatprep.subr.bf16.mxu0 %v1967
    %2296 = vmatpush2.bf16.msra.mxu0 %v1966
    %2297 = vmatprep.subr.bf16.mxu0 %v1959
    %2298 = vmatpush2.bf16.msra.mxu0 %v1958
    %2299 = vmatprep.mubr.bf16.mxu0 %v1375
    %2300 = vmatmul.mubr.bf16.gmra.mxu0 %v1374
    %v2301 = vpop.f32.mrf.mxu0
    %v2302 = vadd.f32 0.0, %v2301
    %v2303 = vpop.f32.mrf.mxu0
    %v2304 = vadd.f32 0.0, %v2303
    %v2305 = vpop.f32.mrf.mxu0
    %v2306 = vpop.f32.mrf.mxu0
    %2307 = vdwg.mxu0
    %v2308 = vsel %vm533, %v2179, 0.0
    %v2309 = vrot.slane %v2308, 4
    %v2310 = vadd.f32 %v2308, %v2309
    %v2311 = vrot.slane %v2310, 2
    %v2312 = vadd.f32 %v2310, %v2311
    %v2313 = vrot.slane %v2312, 1
    %v2314 = vadd.f32 %v2312, %v2313
    %v2315 = vsel %vm533, %v2181, 0.0
    %v2316 = vrot.slane %v2315, 4
    %v2317 = vadd.f32 %v2315, %v2316
    %v2318 = vrot.slane %v2317, 2
    %v2319 = vadd.f32 %v2317, %v2318
    %v2320 = vrot.slane %v2319, 1
    %v2321 = vadd.f32 %v2319, %v2320
    %v2322 = vsel %vm533, %v2220, 0.0
    %v2323 = vrot.slane %v2322, 4
    %v2324 = vadd.f32 %v2322, %v2323
    %v2325 = vrot.slane %v2324, 2
    %v2326 = vadd.f32 %v2324, %v2325
    %v2327 = vrot.slane %v2326, 1
    %v2328 = vadd.f32 %v2326, %v2327
    %v2329 = vsel %vm533, %v2222, 0.0
    %v2330 = vrot.slane %v2329, 4
    %v2331 = vadd.f32 %v2329, %v2330
    %v2332 = vrot.slane %v2331, 2
    %v2333 = vadd.f32 %v2331, %v2332
    %v2334 = vrot.slane %v2333, 1
    %v2335 = vadd.f32 %v2333, %v2334
    %v2336 = vsel %vm533, %v2261, 0.0
    %v2337 = vrot.slane %v2336, 4
    %v2338 = vadd.f32 %v2336, %v2337
    %v2339 = vrot.slane %v2338, 2
    %v2340 = vadd.f32 %v2338, %v2339
    %v2341 = vrot.slane %v2340, 1
    %v2342 = vadd.f32 %v2340, %v2341
    %v2343 = vsel %vm533, %v2263, 0.0
    %v2344 = vrot.slane %v2343, 4
    %v2345 = vadd.f32 %v2343, %v2344
    %v2346 = vrot.slane %v2345, 2
    %v2347 = vadd.f32 %v2345, %v2346
    %v2348 = vrot.slane %v2347, 1
    %v2349 = vadd.f32 %v2347, %v2348
    %v2350 = vsel %vm533, %v2302, 0.0
    %v2351 = vrot.slane %v2350, 4
    %v2352 = vadd.f32 %v2350, %v2351
    %v2353 = vrot.slane %v2352, 2
    %v2354 = vadd.f32 %v2352, %v2353
    %v2355 = vrot.slane %v2354, 1
    %v2356 = vadd.f32 %v2354, %v2355
    %v2357 = vsel %vm533, %v2304, 0.0
    %v2358 = vrot.slane %v2357, 4
    %v2359 = vadd.f32 %v2357, %v2358
    %v2360 = vrot.slane %v2359, 2
    %v2361 = vadd.f32 %v2359, %v2360
    %v2362 = vrot.slane %v2361, 1
    %v2363 = vadd.f32 %v2361, %v2362
    %v2364 = vmul.f32 %v2179, %v2179
    %v2365 = vmul.f32 %v2181, %v2181
    %v2366 = vmul.f32 %v2220, %v2220
    %v2367 = vmul.f32 %v2222, %v2222
    %v2368 = vmul.f32 %v2261, %v2261
    %v2369 = vmul.f32 %v2263, %v2263
    %v2370 = vmul.f32 %v2302, %v2302
    %v2371 = vmul.f32 %v2304, %v2304
    %v2372 = vsel %vm533, %v2364, 0.0
    %v2373 = vrot.slane %v2372, 4
    %v2374 = vadd.f32 %v2372, %v2373
    %v2375 = vrot.slane %v2374, 2
    %v2376 = vadd.f32 %v2374, %v2375
    %v2377 = vrot.slane %v2376, 1
    %v2378 = vadd.f32 %v2376, %v2377
    %v2379 = vsel %vm533, %v2365, 0.0
    %v2380 = vrot.slane %v2379, 4
    %v2381 = vadd.f32 %v2379, %v2380
    %v2382 = vrot.slane %v2381, 2
    %v2383 = vadd.f32 %v2381, %v2382
    %v2384 = vrot.slane %v2383, 1
    %v2385 = vadd.f32 %v2383, %v2384
    %v2386 = vsel %vm533, %v2366, 0.0
    %v2387 = vrot.slane %v2386, 4
    %v2388 = vadd.f32 %v2386, %v2387
    %v2389 = vrot.slane %v2388, 2
    %v2390 = vadd.f32 %v2388, %v2389
    %v2391 = vrot.slane %v2390, 1
    %v2392 = vadd.f32 %v2390, %v2391
    %v2393 = vsel %vm533, %v2367, 0.0
    %v2394 = vrot.slane %v2393, 4
    %v2395 = vadd.f32 %v2393, %v2394
    %v2396 = vrot.slane %v2395, 2
    %v2397 = vadd.f32 %v2395, %v2396
    %v2398 = vrot.slane %v2397, 1
    %v2399 = vadd.f32 %v2397, %v2398
    %v2400 = vsel %vm533, %v2368, 0.0
    %v2401 = vrot.slane %v2400, 4
    %v2402 = vadd.f32 %v2400, %v2401
    %v2403 = vrot.slane %v2402, 2
    %v2404 = vadd.f32 %v2402, %v2403
    %v2405 = vrot.slane %v2404, 1
    %v2406 = vadd.f32 %v2404, %v2405
    %v2407 = vsel %vm533, %v2369, 0.0
    %v2408 = vrot.slane %v2407, 4
    %v2409 = vadd.f32 %v2407, %v2408
    %v2410 = vrot.slane %v2409, 2
    %v2411 = vadd.f32 %v2409, %v2410
    %v2412 = vrot.slane %v2411, 1
    %v2413 = vadd.f32 %v2411, %v2412
    %v2414 = vsel %vm533, %v2370, 0.0
    %v2415 = vrot.slane %v2414, 4
    %v2416 = vadd.f32 %v2414, %v2415
    %v2417 = vrot.slane %v2416, 2
    %v2418 = vadd.f32 %v2416, %v2417
    %v2419 = vrot.slane %v2418, 1
    %v2420 = vadd.f32 %v2418, %v2419
    %v2421 = vsel %vm533, %v2371, 0.0
    %v2422 = vrot.slane %v2421, 4
    %v2423 = vadd.f32 %v2421, %v2422
    %v2424 = vrot.slane %v2423, 2
    %v2425 = vadd.f32 %v2423, %v2424
    %v2426 = vrot.slane %v2425, 1
    %v2427 = vadd.f32 %v2425, %v2426
    %v2428 = vmul.f32 %v2314, 0.5
    %v2429 = vmul.f32 %v2321, 0.5
    %v2430 = vmul.f32 %v2328, 0.5
    %v2431 = vmul.f32 %v2335, 0.5
    %v2432 = vmul.f32 %v2342, 0.5
    %v2433 = vmul.f32 %v2349, 0.5
    %v2434 = vmul.f32 %v2356, 0.5
    %v2435 = vmul.f32 %v2363, 0.5
    %v2436 = vmul.f32 %v2378, 0.5
    %v2437 = vmul.f32 %v2385, 0.5
    %v2438 = vmul.f32 %v2392, 0.5
    %v2439 = vmul.f32 %v2399, 0.5
    %v2440 = vmul.f32 %v2406, 0.5
    %v2441 = vmul.f32 %v2413, 0.5
    %v2442 = vmul.f32 %v2420, 0.5
    %v2443 = vmul.f32 %v2427, 0.5
    %v2444 = vmul.f32 %v2428, %v2428
    %v2445 = vmul.f32 %v2429, %v2429
    %v2446 = vmul.f32 %v2430, %v2430
    %v2447 = vmul.f32 %v2431, %v2431
    %v2448 = vmul.f32 %v2432, %v2432
    %v2449 = vmul.f32 %v2433, %v2433
    %v2450 = vmul.f32 %v2434, %v2434
    %v2451 = vmul.f32 %v2435, %v2435
    %v2452 = vsub.f32 %v2436, %v2444
    %v2453 = vsub.f32 %v2437, %v2445
    %v2454 = vsub.f32 %v2438, %v2446
    %v2455 = vsub.f32 %v2439, %v2447
    %v2456 = vsub.f32 %v2440, %v2448
    %v2457 = vsub.f32 %v2441, %v2449
    %v2458 = vsub.f32 %v2442, %v2450
    %v2459 = vsub.f32 %v2443, %v2451
    %v2460 = vmax.f32 %v2452, 0.0
    %v2461 = vmax.f32 %v2453, 0.0
    %v2462 = vmax.f32 %v2454, 0.0
    %v2463 = vmax.f32 %v2455, 0.0
    %v2464 = vmax.f32 %v2456, 0.0
    %v2465 = vmax.f32 %v2457, 0.0
    %v2466 = vmax.f32 %v2458, 0.0
    %v2467 = vmax.f32 %v2459, 0.0
    %v2468 = vsub.f32 %v2179, %v2428
    %v2469 = vsub.f32 %v2181, %v2429
    %v2470 = vsub.f32 %v2220, %v2430
    %v2471 = vsub.f32 %v2222, %v2431
    %v2472 = vsub.f32 %v2261, %v2432
    %v2473 = vsub.f32 %v2263, %v2433
    %v2474 = vsub.f32 %v2302, %v2434
    %v2475 = vsub.f32 %v2304, %v2435
    %v2476 = vadd.f32 %v2460, 1e-05
    %v2477 = vadd.f32 %v2461, 1e-05
    %v2478 = vadd.f32 %v2462, 1e-05
    %v2479 = vadd.f32 %v2463, 1e-05
    %v2480 = vadd.f32 %v2464, 1e-05
    %v2481 = vadd.f32 %v2465, 1e-05
    %v2482 = vadd.f32 %v2466, 1e-05
    %v2483 = vadd.f32 %v2467, 1e-05
    %v2484 = vrsqrt.pop %v2476
    %v2485 = vrsqrt.pop %v2477
    %v2486 = vrsqrt.pop %v2478
    %v2487 = vrsqrt.pop %v2479
    %v2488 = vrsqrt.pop %v2480
    %v2489 = vrsqrt.pop %v2481
    %v2490 = vrsqrt.pop %v2482
    %v2491 = vrsqrt.pop %v2483
    %v2492 = vmul.f32 %v2468, %v2484
    %v2493 = vmul.f32 %v2469, %v2485
    %v2494 = vmul.f32 %v2470, %v2486
    %v2495 = vmul.f32 %v2471, %v2487
    %v2496 = vmul.f32 %v2472, %v2488
    %v2497 = vmul.f32 %v2473, %v2489
    %v2498 = vmul.f32 %v2474, %v2490
    %v2499 = vmul.f32 %v2475, %v2491
    %v2500 = vmax.f32 %v2492, 0.0
    %v2501 = vmax.f32 %v2493, 0.0
    %v2502 = vmax.f32 %v2494, 0.0
    %v2503 = vmax.f32 %v2495, 0.0
    %v2504 = vpack.c.bf16 %v2500, %v2500
    %v2505 = vpack.c.bf16 %v2501, %v2501
    %v2506 = vpack.c.bf16 %v2502, %v2502
    %v2507 = vpack.c.bf16 %v2503, %v2503
    %v2508 = vld [vmem:[%s6] sm:$0xff]
    %v2509 = vld [vmem:[%s6 + $0x8] sm:$0xff]
    %v2510 = vld [vmem:[%s6 + $0x10] sm:$0xff]
    %v2511 = vld [vmem:[%s6 + $0x18] sm:$0xff]
    %v2512 = vld [vmem:[%s6 + $0x20] sm:$0xff]
    %v2513 = vld [vmem:[%s6 + $0x28] sm:$0xff]
    %v2514 = vld [vmem:[%s6 + $0x30] sm:$0xff]
    %v2515 = vld [vmem:[%s6 + $0x38] sm:$0xff]
    %v2516 = vld [vmem:[%s6 + $0x40] sm:$0xff]
    %v2517 = vld [vmem:[%s6 + $0x48] sm:$0xff]
    %v2518 = vld [vmem:[%s6 + $0x50] sm:$0xff]
    %v2519 = vld [vmem:[%s6 + $0x58] sm:$0xff]
    %v2520 = vld [vmem:[%s6 + $0x60] sm:$0xff]
    %v2521 = vld [vmem:[%s6 + $0x68] sm:$0xff]
    %v2522 = vld [vmem:[%s6 + $0x70] sm:$0xff]
    %v2523 = vld [vmem:[%s6 + $0x78] sm:$0xff]
    %v2524 = vld [vmem:[%s6 + $0x80] sm:$0xff]
    %v2525 = vld [vmem:[%s6 + $0x88] sm:$0xff]
    %v2526 = vld [vmem:[%s6 + $0x90] sm:$0xff]
    %v2527 = vld [vmem:[%s6 + $0x98] sm:$0xff]
    %v2528 = vld [vmem:[%s6 + $0xa0] sm:$0xff]
    %v2529 = vld [vmem:[%s6 + $0xa8] sm:$0xff]
    %v2530 = vld [vmem:[%s6 + $0xb0] sm:$0xff]
    %v2531 = vld [vmem:[%s6 + $0xb8] sm:$0xff]
    %v2532 = vld [vmem:[%s6 + $0xc0] sm:$0xff]
    %v2533 = vld [vmem:[%s6 + $0xc8] sm:$0xff]
    %v2534 = vld [vmem:[%s6 + $0xd0] sm:$0xff]
    %v2535 = vld [vmem:[%s6 + $0xd8] sm:$0xff]
    %v2536 = vld [vmem:[%s6 + $0xe0] sm:$0xff]
    %v2537 = vld [vmem:[%s6 + $0xe8] sm:$0xff]
    %v2538 = vld [vmem:[%s6 + $0xf0] sm:$0xff]
    %v2539 = vld [vmem:[%s6 + $0xf8] sm:$0xff]
    %v2540 = vld [vmem:[%s6 + $0x100] sm:$0xff]
    %v2541 = vld [vmem:[%s6 + $0x108] sm:$0xff]
    %v2542 = vld [vmem:[%s6 + $0x110] sm:$0xff]
    %v2543 = vld [vmem:[%s6 + $0x118] sm:$0xff]
    %v2544 = vld [vmem:[%s6 + $0x120] sm:$0xff]
    %v2545 = vld [vmem:[%s6 + $0x128] sm:$0xff]
    %v2546 = vld [vmem:[%s6 + $0x130] sm:$0xff]
    %v2547 = vld [vmem:[%s6 + $0x138] sm:$0xff]
    %v2548 = vld [vmem:[%s6 + $0x140] sm:$0xff]
    %v2549 = vld [vmem:[%s6 + $0x148] sm:$0xff]
    %v2550 = vld [vmem:[%s6 + $0x150] sm:$0xff]
    %v2551 = vld [vmem:[%s6 + $0x158] sm:$0xff]
    %v2552 = vld [vmem:[%s6 + $0x160] sm:$0xff]
    %v2553 = vld [vmem:[%s6 + $0x168] sm:$0xff]
    %v2554 = vld [vmem:[%s6 + $0x170] sm:$0xff]
    %v2555 = vld [vmem:[%s6 + $0x178] sm:$0xff]
    %v2556 = vld [vmem:[%s6 + $0x180] sm:$0xff]
    %v2557 = vld [vmem:[%s6 + $0x188] sm:$0xff]
    %v2558 = vld [vmem:[%s6 + $0x190] sm:$0xff]
    %v2559 = vld [vmem:[%s6 + $0x198] sm:$0xff]
    %v2560 = vld [vmem:[%s6 + $0x1a0] sm:$0xff]
    %v2561 = vld [vmem:[%s6 + $0x1a8] sm:$0xff]
    %v2562 = vld [vmem:[%s6 + $0x1b0] sm:$0xff]
    %v2563 = vld [vmem:[%s6 + $0x1b8] sm:$0xff]
    %v2564 = vld [vmem:[%s6 + $0x1c0] sm:$0xff]
    %v2565 = vld [vmem:[%s6 + $0x1c8] sm:$0xff]
    %v2566 = vld [vmem:[%s6 + $0x1d0] sm:$0xff]
    %v2567 = vld [vmem:[%s6 + $0x1d8] sm:$0xff]
    %v2568 = vld [vmem:[%s6 + $0x1e0] sm:$0xff]
    %v2569 = vld [vmem:[%s6 + $0x1e8] sm:$0xff]
    %v2570 = vld [vmem:[%s6 + $0x1f0] sm:$0xff]
    %v2571 = vld [vmem:[%s6 + $0x1f8] sm:$0xff]
    %v2572 = vld [vmem:[%s6 + $0x200] sm:$0xff]
    %v2573 = vld [vmem:[%s6 + $0x208] sm:$0xff]
    %v2574 = vld [vmem:[%s6 + $0x210] sm:$0xff]
    %v2575 = vld [vmem:[%s6 + $0x218] sm:$0xff]
    %v2576 = vld [vmem:[%s6 + $0x220] sm:$0xff]
    %v2577 = vld [vmem:[%s6 + $0x228] sm:$0xff]
    %v2578 = vld [vmem:[%s6 + $0x230] sm:$0xff]
    %v2579 = vld [vmem:[%s6 + $0x238] sm:$0xff]
    %v2580 = vld [vmem:[%s6 + $0x240] sm:$0xff]
    %v2581 = vld [vmem:[%s6 + $0x248] sm:$0xff]
    %v2582 = vld [vmem:[%s6 + $0x250] sm:$0xff]
    %v2583 = vld [vmem:[%s6 + $0x258] sm:$0xff]
    %v2584 = vld [vmem:[%s6 + $0x260] sm:$0xff]
    %v2585 = vld [vmem:[%s6 + $0x268] sm:$0xff]
    %v2586 = vld [vmem:[%s6 + $0x270] sm:$0xff]
    %v2587 = vld [vmem:[%s6 + $0x278] sm:$0xff]
    %v2588 = vld [vmem:[%s6 + $0x280] sm:$0xff]
    %v2589 = vld [vmem:[%s6 + $0x288] sm:$0xff]
    %v2590 = vld [vmem:[%s6 + $0x290] sm:$0xff]
    %v2591 = vld [vmem:[%s6 + $0x298] sm:$0xff]
    %v2592 = vld [vmem:[%s6 + $0x2a0] sm:$0xff]
    %v2593 = vld [vmem:[%s6 + $0x2a8] sm:$0xff]
    %v2594 = vld [vmem:[%s6 + $0x2b0] sm:$0xff]
    %v2595 = vld [vmem:[%s6 + $0x2b8] sm:$0xff]
    %v2596 = vld [vmem:[%s6 + $0x2c0] sm:$0xff]
    %v2597 = vld [vmem:[%s6 + $0x2c8] sm:$0xff]
    %v2598 = vld [vmem:[%s6 + $0x2d0] sm:$0xff]
    %v2599 = vld [vmem:[%s6 + $0x2d8] sm:$0xff]
    %v2600 = vld [vmem:[%s6 + $0x2e0] sm:$0xff]
    %v2601 = vld [vmem:[%s6 + $0x2e8] sm:$0xff]
    %v2602 = vld [vmem:[%s6 + $0x2f0] sm:$0xff]
    %v2603 = vld [vmem:[%s6 + $0x2f8] sm:$0xff]
    %v2604 = vld [vmem:[%s6 + $0x300] sm:$0xff]
    %v2605 = vld [vmem:[%s6 + $0x308] sm:$0xff]
    %v2606 = vld [vmem:[%s6 + $0x310] sm:$0xff]
    %v2607 = vld [vmem:[%s6 + $0x318] sm:$0xff]
    %v2608 = vld [vmem:[%s6 + $0x320] sm:$0xff]
    %v2609 = vld [vmem:[%s6 + $0x328] sm:$0xff]
    %v2610 = vld [vmem:[%s6 + $0x330] sm:$0xff]
    %v2611 = vld [vmem:[%s6 + $0x338] sm:$0xff]
    %v2612 = vld [vmem:[%s6 + $0x340] sm:$0xff]
    %v2613 = vld [vmem:[%s6 + $0x348] sm:$0xff]
    %v2614 = vld [vmem:[%s6 + $0x350] sm:$0xff]
    %v2615 = vld [vmem:[%s6 + $0x358] sm:$0xff]
    %v2616 = vld [vmem:[%s6 + $0x360] sm:$0xff]
    %v2617 = vld [vmem:[%s6 + $0x368] sm:$0xff]
    %v2618 = vld [vmem:[%s6 + $0x370] sm:$0xff]
    %v2619 = vld [vmem:[%s6 + $0x378] sm:$0xff]
    %v2620 = vld [vmem:[%s6 + $0x380] sm:$0xff]
    %v2621 = vld [vmem:[%s6 + $0x388] sm:$0xff]
    %v2622 = vld [vmem:[%s6 + $0x390] sm:$0xff]
    %v2623 = vld [vmem:[%s6 + $0x398] sm:$0xff]
    %v2624 = vld [vmem:[%s6 + $0x3a0] sm:$0xff]
    %v2625 = vld [vmem:[%s6 + $0x3a8] sm:$0xff]
    %v2626 = vld [vmem:[%s6 + $0x3b0] sm:$0xff]
    %v2627 = vld [vmem:[%s6 + $0x3b8] sm:$0xff]
    %v2628 = vld [vmem:[%s6 + $0x3c0] sm:$0xff]
    %v2629 = vld [vmem:[%s6 + $0x3c8] sm:$0xff]
    %v2630 = vld [vmem:[%s6 + $0x3d0] sm:$0xff]
    %v2631 = vld [vmem:[%s6 + $0x3d8] sm:$0xff]
    %v2632 = vld [vmem:[%s6 + $0x3e0] sm:$0xff]
    %v2633 = vld [vmem:[%s6 + $0x3e8] sm:$0xff]
    %v2634 = vld [vmem:[%s6 + $0x3f0] sm:$0xff]
    %v2635 = vld [vmem:[%s6 + $0x3f8] sm:$0xff]
    %v2764 = vunpack.c.l.b16 %v2508
    %v2765 = vunpack.c.h.b16 %v2508
    %v2766 = vunpack.c.l.b16 %v2509
    %v2767 = vunpack.c.h.b16 %v2509
    %v2768 = vunpack.c.l.b16 %v2510
    %v2769 = vunpack.c.h.b16 %v2510
    %v2770 = vunpack.c.l.b16 %v2511
    %v2771 = vunpack.c.h.b16 %v2511
    %v2772 = vunpack.c.l.b16 %v2512
    %v2773 = vunpack.c.h.b16 %v2512
    %v2774 = vunpack.c.l.b16 %v2513
    %v2775 = vunpack.c.h.b16 %v2513
    %v2776 = vunpack.c.l.b16 %v2514
    %v2777 = vunpack.c.h.b16 %v2514
    %v2778 = vunpack.c.l.b16 %v2515
    %v2779 = vunpack.c.h.b16 %v2515
    %v2780 = vunpack.c.l.b16 %v2516
    %v2781 = vunpack.c.h.b16 %v2516
    %v2782 = vunpack.c.l.b16 %v2517
    %v2783 = vunpack.c.h.b16 %v2517
    %v2784 = vunpack.c.l.b16 %v2518
    %v2785 = vunpack.c.h.b16 %v2518
    %v2786 = vunpack.c.l.b16 %v2519
    %v2787 = vunpack.c.h.b16 %v2519
    %v2788 = vunpack.c.l.b16 %v2520
    %v2789 = vunpack.c.h.b16 %v2520
    %v2790 = vunpack.c.l.b16 %v2521
    %v2791 = vunpack.c.h.b16 %v2521
    %v2792 = vunpack.c.l.b16 %v2522
    %v2793 = vunpack.c.h.b16 %v2522
    %v2794 = vunpack.c.l.b16 %v2523
    %v2795 = vunpack.c.h.b16 %v2523
    %v2796 = vunpack.c.l.b16 %v2524
    %v2797 = vunpack.c.h.b16 %v2524
    %v2798 = vunpack.c.l.b16 %v2525
    %v2799 = vunpack.c.h.b16 %v2525
    %v2800 = vunpack.c.l.b16 %v2526
    %v2801 = vunpack.c.h.b16 %v2526
    %v2802 = vunpack.c.l.b16 %v2527
    %v2803 = vunpack.c.h.b16 %v2527
    %v2804 = vunpack.c.l.b16 %v2528
    %v2805 = vunpack.c.h.b16 %v2528
    %v2806 = vunpack.c.l.b16 %v2529
    %v2807 = vunpack.c.h.b16 %v2529
    %v2808 = vunpack.c.l.b16 %v2530
    %v2809 = vunpack.c.h.b16 %v2530
    %v2810 = vunpack.c.l.b16 %v2531
    %v2811 = vunpack.c.h.b16 %v2531
    %v2812 = vunpack.c.l.b16 %v2532
    %v2813 = vunpack.c.h.b16 %v2532
    %v2814 = vunpack.c.l.b16 %v2533
    %v2815 = vunpack.c.h.b16 %v2533
    %v2816 = vunpack.c.l.b16 %v2534
    %v2817 = vunpack.c.h.b16 %v2534
    %v2818 = vunpack.c.l.b16 %v2535
    %v2819 = vunpack.c.h.b16 %v2535
    %v2820 = vunpack.c.l.b16 %v2536
    %v2821 = vunpack.c.h.b16 %v2536
    %v2822 = vunpack.c.l.b16 %v2537
    %v2823 = vunpack.c.h.b16 %v2537
    %v2824 = vunpack.c.l.b16 %v2538
    %v2825 = vunpack.c.h.b16 %v2538
    %v2826 = vunpack.c.l.b16 %v2539
    %v2827 = vunpack.c.h.b16 %v2539
    %v2828 = vunpack.c.l.b16 %v2540
    %v2829 = vunpack.c.h.b16 %v2540
    %v2830 = vunpack.c.l.b16 %v2541
    %v2831 = vunpack.c.h.b16 %v2541
    %v2832 = vunpack.c.l.b16 %v2542
    %v2833 = vunpack.c.h.b16 %v2542
    %v2834 = vunpack.c.l.b16 %v2543
    %v2835 = vunpack.c.h.b16 %v2543
    %v2836 = vunpack.c.l.b16 %v2544
    %v2837 = vunpack.c.h.b16 %v2544
    %v2838 = vunpack.c.l.b16 %v2545
    %v2839 = vunpack.c.h.b16 %v2545
    %v2840 = vunpack.c.l.b16 %v2546
    %v2841 = vunpack.c.h.b16 %v2546
    %v2842 = vunpack.c.l.b16 %v2547
    %v2843 = vunpack.c.h.b16 %v2547
    %v2844 = vunpack.c.l.b16 %v2548
    %v2845 = vunpack.c.h.b16 %v2548
    %v2846 = vunpack.c.l.b16 %v2549
    %v2847 = vunpack.c.h.b16 %v2549
    %v2848 = vunpack.c.l.b16 %v2550
    %v2849 = vunpack.c.h.b16 %v2550
    %v2850 = vunpack.c.l.b16 %v2551
    %v2851 = vunpack.c.h.b16 %v2551
    %v2852 = vunpack.c.l.b16 %v2552
    %v2853 = vunpack.c.h.b16 %v2552
    %v2854 = vunpack.c.l.b16 %v2553
    %v2855 = vunpack.c.h.b16 %v2553
    %v2856 = vunpack.c.l.b16 %v2554
    %v2857 = vunpack.c.h.b16 %v2554
    %v2858 = vunpack.c.l.b16 %v2555
    %v2859 = vunpack.c.h.b16 %v2555
    %v2860 = vunpack.c.l.b16 %v2556
    %v2861 = vunpack.c.h.b16 %v2556
    %v2862 = vunpack.c.l.b16 %v2557
    %v2863 = vunpack.c.h.b16 %v2557
    %v2864 = vunpack.c.l.b16 %v2558
    %v2865 = vunpack.c.h.b16 %v2558
    %v2866 = vunpack.c.l.b16 %v2559
    %v2867 = vunpack.c.h.b16 %v2559
    %v2868 = vunpack.c.l.b16 %v2560
    %v2869 = vunpack.c.h.b16 %v2560
    %v2870 = vunpack.c.l.b16 %v2561
    %v2871 = vunpack.c.h.b16 %v2561
    %v2872 = vunpack.c.l.b16 %v2562
    %v2873 = vunpack.c.h.b16 %v2562
    %v2874 = vunpack.c.l.b16 %v2563
    %v2875 = vunpack.c.h.b16 %v2563
    %v2876 = vunpack.c.l.b16 %v2564
    %v2877 = vunpack.c.h.b16 %v2564
    %v2878 = vunpack.c.l.b16 %v2565
    %v2879 = vunpack.c.h.b16 %v2565
    %v2880 = vunpack.c.l.b16 %v2566
    %v2881 = vunpack.c.h.b16 %v2566
    %v2882 = vunpack.c.l.b16 %v2567
    %v2883 = vunpack.c.h.b16 %v2567
    %v2884 = vunpack.c.l.b16 %v2568
    %v2885 = vunpack.c.h.b16 %v2568
    %v2886 = vunpack.c.l.b16 %v2569
    %v2887 = vunpack.c.h.b16 %v2569
    %v2888 = vunpack.c.l.b16 %v2570
    %v2889 = vunpack.c.h.b16 %v2570
    %v2890 = vunpack.c.l.b16 %v2571
    %v2891 = vunpack.c.h.b16 %v2571
    %v2892 = vunpack.c.l.b16 %v2572
    %v2893 = vunpack.c.h.b16 %v2572
    %v2894 = vunpack.c.l.b16 %v2573
    %v2895 = vunpack.c.h.b16 %v2573
    %v2896 = vunpack.c.l.b16 %v2574
    %v2897 = vunpack.c.h.b16 %v2574
    %v2898 = vunpack.c.l.b16 %v2575
    %v2899 = vunpack.c.h.b16 %v2575
    %v2900 = vunpack.c.l.b16 %v2576
    %v2901 = vunpack.c.h.b16 %v2576
    %v2902 = vunpack.c.l.b16 %v2577
    %v2903 = vunpack.c.h.b16 %v2577
    %v2904 = vunpack.c.l.b16 %v2578
    %v2905 = vunpack.c.h.b16 %v2578
    %v2906 = vunpack.c.l.b16 %v2579
    %v2907 = vunpack.c.h.b16 %v2579
    %v2908 = vunpack.c.l.b16 %v2580
    %v2909 = vunpack.c.h.b16 %v2580
    %v2910 = vunpack.c.l.b16 %v2581
    %v2911 = vunpack.c.h.b16 %v2581
    %v2912 = vunpack.c.l.b16 %v2582
    %v2913 = vunpack.c.h.b16 %v2582
    %v2914 = vunpack.c.l.b16 %v2583
    %v2915 = vunpack.c.h.b16 %v2583
    %v2916 = vunpack.c.l.b16 %v2584
    %v2917 = vunpack.c.h.b16 %v2584
    %v2918 = vunpack.c.l.b16 %v2585
    %v2919 = vunpack.c.h.b16 %v2585
    %v2920 = vunpack.c.l.b16 %v2586
    %v2921 = vunpack.c.h.b16 %v2586
    %v2922 = vunpack.c.l.b16 %v2587
    %v2923 = vunpack.c.h.b16 %v2587
    %v2924 = vunpack.c.l.b16 %v2588
    %v2925 = vunpack.c.h.b16 %v2588
    %v2926 = vunpack.c.l.b16 %v2589
    %v2927 = vunpack.c.h.b16 %v2589
    %v2928 = vunpack.c.l.b16 %v2590
    %v2929 = vunpack.c.h.b16 %v2590
    %v2930 = vunpack.c.l.b16 %v2591
    %v2931 = vunpack.c.h.b16 %v2591
    %v2932 = vunpack.c.l.b16 %v2592
    %v2933 = vunpack.c.h.b16 %v2592
    %v2934 = vunpack.c.l.b16 %v2593
    %v2935 = vunpack.c.h.b16 %v2593
    %v2936 = vunpack.c.l.b16 %v2594
    %v2937 = vunpack.c.h.b16 %v2594
    %v2938 = vunpack.c.l.b16 %v2595
    %v2939 = vunpack.c.h.b16 %v2595
    %v2940 = vunpack.c.l.b16 %v2596
    %v2941 = vunpack.c.h.b16 %v2596
    %v2942 = vunpack.c.l.b16 %v2597
    %v2943 = vunpack.c.h.b16 %v2597
    %v2944 = vunpack.c.l.b16 %v2598
    %v2945 = vunpack.c.h.b16 %v2598
    %v2946 = vunpack.c.l.b16 %v2599
    %v2947 = vunpack.c.h.b16 %v2599
    %v2948 = vunpack.c.l.b16 %v2600
    %v2949 = vunpack.c.h.b16 %v2600
    %v2950 = vunpack.c.l.b16 %v2601
    %v2951 = vunpack.c.h.b16 %v2601
    %v2952 = vunpack.c.l.b16 %v2602
    %v2953 = vunpack.c.h.b16 %v2602
    %v2954 = vunpack.c.l.b16 %v2603
    %v2955 = vunpack.c.h.b16 %v2603
    %v2956 = vunpack.c.l.b16 %v2604
    %v2957 = vunpack.c.h.b16 %v2604
    %v2958 = vunpack.c.l.b16 %v2605
    %v2959 = vunpack.c.h.b16 %v2605
    %v2960 = vunpack.c.l.b16 %v2606
    %v2961 = vunpack.c.h.b16 %v2606
    %v2962 = vunpack.c.l.b16 %v2607
    %v2963 = vunpack.c.h.b16 %v2607
    %v2964 = vunpack.c.l.b16 %v2608
    %v2965 = vunpack.c.h.b16 %v2608
    %v2966 = vunpack.c.l.b16 %v2609
    %v2967 = vunpack.c.h.b16 %v2609
    %v2968 = vunpack.c.l.b16 %v2610
    %v2969 = vunpack.c.h.b16 %v2610
    %v2970 = vunpack.c.l.b16 %v2611
    %v2971 = vunpack.c.h.b16 %v2611
    %v2972 = vunpack.c.l.b16 %v2612
    %v2973 = vunpack.c.h.b16 %v2612
    %v2974 = vunpack.c.l.b16 %v2613
    %v2975 = vunpack.c.h.b16 %v2613
    %v2976 = vunpack.c.l.b16 %v2614
    %v2977 = vunpack.c.h.b16 %v2614
    %v2978 = vunpack.c.l.b16 %v2615
    %v2979 = vunpack.c.h.b16 %v2615
    %v2980 = vunpack.c.l.b16 %v2616
    %v2981 = vunpack.c.h.b16 %v2616
    %v2982 = vunpack.c.l.b16 %v2617
    %v2983 = vunpack.c.h.b16 %v2617
    %v2984 = vunpack.c.l.b16 %v2618
    %v2985 = vunpack.c.h.b16 %v2618
    %v2986 = vunpack.c.l.b16 %v2619
    %v2987 = vunpack.c.h.b16 %v2619
    %v2988 = vunpack.c.l.b16 %v2620
    %v2989 = vunpack.c.h.b16 %v2620
    %v2990 = vunpack.c.l.b16 %v2621
    %v2991 = vunpack.c.h.b16 %v2621
    %v2992 = vunpack.c.l.b16 %v2622
    %v2993 = vunpack.c.h.b16 %v2622
    %v2994 = vunpack.c.l.b16 %v2623
    %v2995 = vunpack.c.h.b16 %v2623
    %v2996 = vunpack.c.l.b16 %v2624
    %v2997 = vunpack.c.h.b16 %v2624
    %v2998 = vunpack.c.l.b16 %v2625
    %v2999 = vunpack.c.h.b16 %v2625
    %v3000 = vunpack.c.l.b16 %v2626
    %v3001 = vunpack.c.h.b16 %v2626
    %v3002 = vunpack.c.l.b16 %v2627
    %v3003 = vunpack.c.h.b16 %v2627
    %v3004 = vunpack.c.l.b16 %v2628
    %v3005 = vunpack.c.h.b16 %v2628
    %v3006 = vunpack.c.l.b16 %v2629
    %v3007 = vunpack.c.h.b16 %v2629
    %v3008 = vunpack.c.l.b16 %v2630
    %v3009 = vunpack.c.h.b16 %v2630
    %v3010 = vunpack.c.l.b16 %v2631
    %v3011 = vunpack.c.h.b16 %v2631
    %v3012 = vunpack.c.l.b16 %v2632
    %v3013 = vunpack.c.h.b16 %v2632
    %v3014 = vunpack.c.l.b16 %v2633
    %v3015 = vunpack.c.h.b16 %v2633
    %v3016 = vunpack.c.l.b16 %v2634
    %v3017 = vunpack.c.h.b16 %v2634
    %v3018 = vunpack.c.l.b16 %v2635
    %v3019 = vunpack.c.h.b16 %v2635
    %v3020 = vpack.c.b16 %v2768, %v2764
    %v3021 = vpack.c.b16 %v2769, %v2765
    %v3022 = vpack.c.b16 %v2770, %v2766
    %v3023 = vpack.c.b16 %v2771, %v2767
    %v3024 = vpack.c.b16 %v2776, %v2772
    %v3025 = vpack.c.b16 %v2777, %v2773
    %v3026 = vpack.c.b16 %v2778, %v2774
    %v3027 = vpack.c.b16 %v2779, %v2775
    %v3028 = vpack.c.b16 %v2784, %v2780
    %v3029 = vpack.c.b16 %v2785, %v2781
    %v3030 = vpack.c.b16 %v2786, %v2782
    %v3031 = vpack.c.b16 %v2787, %v2783
    %v3032 = vpack.c.b16 %v2792, %v2788
    %v3033 = vpack.c.b16 %v2793, %v2789
    %v3034 = vpack.c.b16 %v2794, %v2790
    %v3035 = vpack.c.b16 %v2795, %v2791
    %v3036 = vpack.c.b16 %v2800, %v2796
    %v3037 = vpack.c.b16 %v2801, %v2797
    %v3038 = vpack.c.b16 %v2802, %v2798
    %v3039 = vpack.c.b16 %v2803, %v2799
    %v3040 = vpack.c.b16 %v2808, %v2804
    %v3041 = vpack.c.b16 %v2809, %v2805
    %v3042 = vpack.c.b16 %v2810, %v2806
    %v3043 = vpack.c.b16 %v2811, %v2807
    %v3044 = vpack.c.b16 %v2816, %v2812
    %v3045 = vpack.c.b16 %v2817, %v2813
    %v3046 = vpack.c.b16 %v2818, %v2814
    %v3047 = vpack.c.b16 %v2819, %v2815
    %v3048 = vpack.c.b16 %v2824, %v2820
    %v3049 = vpack.c.b16 %v2825, %v2821
    %v3050 = vpack.c.b16 %v2826, %v2822
    %v3051 = vpack.c.b16 %v2827, %v2823
    %v3052 = vpack.c.b16 %v2832, %v2828
    %v3053 = vpack.c.b16 %v2833, %v2829
    %v3054 = vpack.c.b16 %v2834, %v2830
    %v3055 = vpack.c.b16 %v2835, %v2831
    %v3056 = vpack.c.b16 %v2840, %v2836
    %v3057 = vpack.c.b16 %v2841, %v2837
    %v3058 = vpack.c.b16 %v2842, %v2838
    %v3059 = vpack.c.b16 %v2843, %v2839
    %v3060 = vpack.c.b16 %v2848, %v2844
    %v3061 = vpack.c.b16 %v2849, %v2845
    %v3062 = vpack.c.b16 %v2850, %v2846
    %v3063 = vpack.c.b16 %v2851, %v2847
    %v3064 = vpack.c.b16 %v2856, %v2852
    %v3065 = vpack.c.b16 %v2857, %v2853
    %v3066 = vpack.c.b16 %v2858, %v2854
    %v3067 = vpack.c.b16 %v2859, %v2855
    %v3068 = vpack.c.b16 %v2864, %v2860
    %v3069 = vpack.c.b16 %v2865, %v2861
    %v3070 = vpack.c.b16 %v2866, %v2862
    %v3071 = vpack.c.b16 %v2867, %v2863
    %v3072 = vpack.c.b16 %v2872, %v2868
    %v3073 = vpack.c.b16 %v2873, %v2869
    %v3074 = vpack.c.b16 %v2874, %v2870
    %v3075 = vpack.c.b16 %v2875, %v2871
    %v3076 = vpack.c.b16 %v2880, %v2876
    %v3077 = vpack.c.b16 %v2881, %v2877
    %v3078 = vpack.c.b16 %v2882, %v2878
    %v3079 = vpack.c.b16 %v2883, %v2879
    %v3080 = vpack.c.b16 %v2888, %v2884
    %v3081 = vpack.c.b16 %v2889, %v2885
    %v3082 = vpack.c.b16 %v2890, %v2886
    %v3083 = vpack.c.b16 %v2891, %v2887
    %v3084 = vpack.c.b16 %v2896, %v2892
    %v3085 = vpack.c.b16 %v2897, %v2893
    %v3086 = vpack.c.b16 %v2898, %v2894
    %v3087 = vpack.c.b16 %v2899, %v2895
    %v3088 = vpack.c.b16 %v2904, %v2900
    %v3089 = vpack.c.b16 %v2905, %v2901
    %v3090 = vpack.c.b16 %v2906, %v2902
    %v3091 = vpack.c.b16 %v2907, %v2903
    %v3092 = vpack.c.b16 %v2912, %v2908
    %v3093 = vpack.c.b16 %v2913, %v2909
    %v3094 = vpack.c.b16 %v2914, %v2910
    %v3095 = vpack.c.b16 %v2915, %v2911
    %v3096 = vpack.c.b16 %v2920, %v2916
    %v3097 = vpack.c.b16 %v2921, %v2917
    %v3098 = vpack.c.b16 %v2922, %v2918
    %v3099 = vpack.c.b16 %v2923, %v2919
    %v3100 = vpack.c.b16 %v2928, %v2924
    %v3101 = vpack.c.b16 %v2929, %v2925
    %v3102 = vpack.c.b16 %v2930, %v2926
    %v3103 = vpack.c.b16 %v2931, %v2927
    %v3104 = vpack.c.b16 %v2936, %v2932
    %v3105 = vpack.c.b16 %v2937, %v2933
    %v3106 = vpack.c.b16 %v2938, %v2934
    %v3107 = vpack.c.b16 %v2939, %v2935
    %v3108 = vpack.c.b16 %v2944, %v2940
    %v3109 = vpack.c.b16 %v2945, %v2941
    %v3110 = vpack.c.b16 %v2946, %v2942
    %v3111 = vpack.c.b16 %v2947, %v2943
    %v3112 = vpack.c.b16 %v2952, %v2948
    %v3113 = vpack.c.b16 %v2953, %v2949
    %v3114 = vpack.c.b16 %v2954, %v2950
    %v3115 = vpack.c.b16 %v2955, %v2951
    %v3116 = vpack.c.b16 %v2960, %v2956
    %v3117 = vpack.c.b16 %v2961, %v2957
    %v3118 = vpack.c.b16 %v2962, %v2958
    %v3119 = vpack.c.b16 %v2963, %v2959
    %v3120 = vpack.c.b16 %v2968, %v2964
    %v3121 = vpack.c.b16 %v2969, %v2965
    %v3122 = vpack.c.b16 %v2970, %v2966
    %v3123 = vpack.c.b16 %v2971, %v2967
    %v3124 = vpack.c.b16 %v2976, %v2972
    %v3125 = vpack.c.b16 %v2977, %v2973
    %v3126 = vpack.c.b16 %v2978, %v2974
    %v3127 = vpack.c.b16 %v2979, %v2975
    %v3128 = vpack.c.b16 %v2984, %v2980
    %v3129 = vpack.c.b16 %v2985, %v2981
    %v3130 = vpack.c.b16 %v2986, %v2982
    %v3131 = vpack.c.b16 %v2987, %v2983
    %v3132 = vpack.c.b16 %v2992, %v2988
    %v3133 = vpack.c.b16 %v2993, %v2989
    %v3134 = vpack.c.b16 %v2994, %v2990
    %v3135 = vpack.c.b16 %v2995, %v2991
    %v3136 = vpack.c.b16 %v3000, %v2996
    %v3137 = vpack.c.b16 %v3001, %v2997
    %v3138 = vpack.c.b16 %v3002, %v2998
    %v3139 = vpack.c.b16 %v3003, %v2999
    %v3140 = vpack.c.b16 %v3008, %v3004
    %v3141 = vpack.c.b16 %v3009, %v3005
    %v3142 = vpack.c.b16 %v3010, %v3006
    %v3143 = vpack.c.b16 %v3011, %v3007
    %v3144 = vpack.c.b16 %v3016, %v3012
    %v3145 = vpack.c.b16 %v3017, %v3013
    %v3146 = vpack.c.b16 %v3018, %v3014
    %v3147 = vpack.c.b16 %v3019, %v3015
    %3276 = vmatprep.subr.bf16.mxu0 %v3049
    %3277 = vmatpush1.bf16.msra.mxu0 %v3048
    %3278 = vmatprep.subr.bf16.mxu0 %v3045
    %3279 = vmatpush1.bf16.msra.mxu0 %v3044
    %3280 = vmatprep.subr.bf16.mxu0 %v3041
    %3281 = vmatpush1.bf16.msra.mxu0 %v3040
    %3282 = vmatprep.subr.bf16.mxu0 %v3037
    %3283 = vmatpush1.bf16.msra.mxu0 %v3036
    %3284 = vmatprep.subr.bf16.mxu0 %v3033
    %3285 = vmatpush1.bf16.msra.mxu0 %v3032
    %3286 = vmatprep.subr.bf16.mxu0 %v3029
    %3287 = vmatpush1.bf16.msra.mxu0 %v3028
    %3288 = vmatprep.subr.bf16.mxu0 %v3025
    %3289 = vmatpush1.bf16.msra.mxu0 %v3024
    %3290 = vmatprep.subr.bf16.mxu0 %v3021
    %3291 = vmatpush1.bf16.msra.mxu0 %v3020
    %3292 = vmatprep.subr.bf16.mxu0 %v3081
    %3293 = vmatpush2.bf16.msra.mxu0 %v3080
    %3294 = vmatprep.subr.bf16.mxu0 %v3077
    %3295 = vmatpush2.bf16.msra.mxu0 %v3076
    %3296 = vmatprep.subr.bf16.mxu0 %v3073
    %3297 = vmatpush2.bf16.msra.mxu0 %v3072
    %3298 = vmatprep.subr.bf16.mxu0 %v3069
    %3299 = vmatpush2.bf16.msra.mxu0 %v3068
    %3300 = vmatprep.subr.bf16.mxu0 %v3065
    %3301 = vmatpush2.bf16.msra.mxu0 %v3064
    %3302 = vmatprep.subr.bf16.mxu0 %v3061
    %3303 = vmatpush2.bf16.msra.mxu0 %v3060
    %3304 = vmatprep.subr.bf16.mxu0 %v3057
    %3305 = vmatpush2.bf16.msra.mxu0 %v3056
    %3306 = vmatprep.subr.bf16.mxu0 %v3053
    %3307 = vmatpush2.bf16.msra.mxu0 %v3052
    %3308 = vmatprep.mubr.bf16.mxu0 %v2505
    %3309 = vmatmul.mubr.bf16.gmra.mxu0 %v2504
    %v3310 = vpop.f32.mrf.mxu0
    %v3311 = vadd.f32 0.0, %v3310
    %v3312 = vpop.f32.mrf.mxu0
    %v3313 = vadd.f32 0.0, %v3312
    %v3314 = vpop.f32.mrf.mxu0
    %v3315 = vpop.f32.mrf.mxu0
    %3316 = vdwg.mxu0
    %3317 = vmatprep.subr.bf16.mxu0 %v3113
    %3318 = vmatpush1.bf16.msra.mxu0 %v3112
    %3319 = vmatprep.subr.bf16.mxu0 %v3109
    %3320 = vmatpush1.bf16.msra.mxu0 %v3108
    %3321 = vmatprep.subr.bf16.mxu0 %v3105
    %3322 = vmatpush1.bf16.msra.mxu0 %v3104
    %3323 = vmatprep.subr.bf16.mxu0 %v3101
    %3324 = vmatpush1.bf16.msra.mxu0 %v3100
    %3325 = vmatprep.subr.bf16.mxu0 %v3097
    %3326 = vmatpush1.bf16.msra.mxu0 %v3096
    %3327 = vmatprep.subr.bf16.mxu0 %v3093
    %3328 = vmatpush1.bf16.msra.mxu0 %v3092
    %3329 = vmatprep.subr.bf16.mxu0 %v3089
    %3330 = vmatpush1.bf16.msra.mxu0 %v3088
    %3331 = vmatprep.subr.bf16.mxu0 %v3085
    %3332 = vmatpush1.bf16.msra.mxu0 %v3084
    %3333 = vmatprep.subr.bf16.mxu0 %v3145
    %3334 = vmatpush2.bf16.msra.mxu0 %v3144
    %3335 = vmatprep.subr.bf16.mxu0 %v3141
    %3336 = vmatpush2.bf16.msra.mxu0 %v3140
    %3337 = vmatprep.subr.bf16.mxu0 %v3137
    %3338 = vmatpush2.bf16.msra.mxu0 %v3136
    %3339 = vmatprep.subr.bf16.mxu0 %v3133
    %3340 = vmatpush2.bf16.msra.mxu0 %v3132
    %3341 = vmatprep.subr.bf16.mxu0 %v3129
    %3342 = vmatpush2.bf16.msra.mxu0 %v3128
    %3343 = vmatprep.subr.bf16.mxu0 %v3125
    %3344 = vmatpush2.bf16.msra.mxu0 %v3124
    %3345 = vmatprep.subr.bf16.mxu0 %v3121
    %3346 = vmatpush2.bf16.msra.mxu0 %v3120
    %3347 = vmatprep.subr.bf16.mxu0 %v3117
    %3348 = vmatpush2.bf16.msra.mxu0 %v3116
    %3349 = vmatprep.mubr.bf16.mxu0 %v2507
    %3350 = vmatmul.mubr.bf16.gmra.mxu0 %v2506
    %v3351 = vpop.f32.mrf.mxu0
    %v3352 = vadd.f32 %v3311, %v3351
    %v3353 = vpop.f32.mrf.mxu0
    %v3354 = vadd.f32 %v3313, %v3353
    %v3355 = vpop.f32.mrf.mxu0
    %v3356 = vpop.f32.mrf.mxu0
    %3357 = vdwg.mxu0
    %3358 = vmatprep.subr.bf16.mxu0 %v3051
    %3359 = vmatpush1.bf16.msra.mxu0 %v3050
    %3360 = vmatprep.subr.bf16.mxu0 %v3047
    %3361 = vmatpush1.bf16.msra.mxu0 %v3046
    %3362 = vmatprep.subr.bf16.mxu0 %v3043
    %3363 = vmatpush1.bf16.msra.mxu0 %v3042
    %3364 = vmatprep.subr.bf16.mxu0 %v3039
    %3365 = vmatpush1.bf16.msra.mxu0 %v3038
    %3366 = vmatprep.subr.bf16.mxu0 %v3035
    %3367 = vmatpush1.bf16.msra.mxu0 %v3034
    %3368 = vmatprep.subr.bf16.mxu0 %v3031
    %3369 = vmatpush1.bf16.msra.mxu0 %v3030
    %3370 = vmatprep.subr.bf16.mxu0 %v3027
    %3371 = vmatpush1.bf16.msra.mxu0 %v3026
    %3372 = vmatprep.subr.bf16.mxu0 %v3023
    %3373 = vmatpush1.bf16.msra.mxu0 %v3022
    %3374 = vmatprep.subr.bf16.mxu0 %v3083
    %3375 = vmatpush2.bf16.msra.mxu0 %v3082
    %3376 = vmatprep.subr.bf16.mxu0 %v3079
    %3377 = vmatpush2.bf16.msra.mxu0 %v3078
    %3378 = vmatprep.subr.bf16.mxu0 %v3075
    %3379 = vmatpush2.bf16.msra.mxu0 %v3074
    %3380 = vmatprep.subr.bf16.mxu0 %v3071
    %3381 = vmatpush2.bf16.msra.mxu0 %v3070
    %3382 = vmatprep.subr.bf16.mxu0 %v3067
    %3383 = vmatpush2.bf16.msra.mxu0 %v3066
    %3384 = vmatprep.subr.bf16.mxu0 %v3063
    %3385 = vmatpush2.bf16.msra.mxu0 %v3062
    %3386 = vmatprep.subr.bf16.mxu0 %v3059
    %3387 = vmatpush2.bf16.msra.mxu0 %v3058
    %3388 = vmatprep.subr.bf16.mxu0 %v3055
    %3389 = vmatpush2.bf16.msra.mxu0 %v3054
    %3390 = vmatprep.mubr.bf16.mxu0 %v2505
    %3391 = vmatmul.mubr.bf16.gmra.mxu0 %v2504
    %v3392 = vpop.f32.mrf.mxu0
    %v3393 = vadd.f32 0.0, %v3392
    %v3394 = vpop.f32.mrf.mxu0
    %v3395 = vadd.f32 0.0, %v3394
    %v3396 = vpop.f32.mrf.mxu0
    %v3397 = vpop.f32.mrf.mxu0
    %3398 = vdwg.mxu0
    %3399 = vmatprep.subr.bf16.mxu0 %v3115
    %3400 = vmatpush1.bf16.msra.mxu0 %v3114
    %3401 = vmatprep.subr.bf16.mxu0 %v3111
    %3402 = vmatpush1.bf16.msra.mxu0 %v3110
    %3403 = vmatprep.subr.bf16.mxu0 %v3107
    %3404 = vmatpush1.bf16.msra.mxu0 %v3106
    %3405 = vmatprep.subr.bf16.mxu0 %v3103
    %3406 = vmatpush1.bf16.msra.mxu0 %v3102
    %3407 = vmatprep.subr.bf16.mxu0 %v3099
    %3408 = vmatpush1.bf16.msra.mxu0 %v3098
    %3409 = vmatprep.subr.bf16.mxu0 %v3095
    %3410 = vmatpush1.bf16.msra.mxu0 %v3094
    %3411 = vmatprep.subr.bf16.mxu0 %v3091
    %3412 = vmatpush1.bf16.msra.mxu0 %v3090
    %3413 = vmatprep.subr.bf16.mxu0 %v3087
    %3414 = vmatpush1.bf16.msra.mxu0 %v3086
    %3415 = vmatprep.subr.bf16.mxu0 %v3147
    %3416 = vmatpush2.bf16.msra.mxu0 %v3146
    %3417 = vmatprep.subr.bf16.mxu0 %v3143
    %3418 = vmatpush2.bf16.msra.mxu0 %v3142
    %3419 = vmatprep.subr.bf16.mxu0 %v3139
    %3420 = vmatpush2.bf16.msra.mxu0 %v3138
    %3421 = vmatprep.subr.bf16.mxu0 %v3135
    %3422 = vmatpush2.bf16.msra.mxu0 %v3134
    %3423 = vmatprep.subr.bf16.mxu0 %v3131
    %3424 = vmatpush2.bf16.msra.mxu0 %v3130
    %3425 = vmatprep.subr.bf16.mxu0 %v3127
    %3426 = vmatpush2.bf16.msra.mxu0 %v3126
    %3427 = vmatprep.subr.bf16.mxu0 %v3123
    %3428 = vmatpush2.bf16.msra.mxu0 %v3122
    %3429 = vmatprep.subr.bf16.mxu0 %v3119
    %3430 = vmatpush2.bf16.msra.mxu0 %v3118
    %3431 = vmatprep.mubr.bf16.mxu0 %v2507
    %3432 = vmatmul.mubr.bf16.gmra.mxu0 %v2506
    %v3433 = vpop.f32.mrf.mxu0
    %v3434 = vadd.f32 %v3393, %v3433
    %v3435 = vpop.f32.mrf.mxu0
    %v3436 = vadd.f32 %v3395, %v3435
    %v3437 = vpop.f32.mrf.mxu0
    %v3438 = vpop.f32.mrf.mxu0
    %3439 = vdwg.mxu0
    %v3440 = vsel %vm533, %v3352, 0.0
    %v3441 = vrot.slane %v3440, 4
    %v3442 = vadd.f32 %v3440, %v3441
    %v3443 = vrot.slane %v3442, 2
    %v3444 = vadd.f32 %v3442, %v3443
    %v3445 = vrot.slane %v3444, 1
    %v3446 = vadd.f32 %v3444, %v3445
    %v3447 = vsel %vm533, %v3354, 0.0
    %v3448 = vrot.slane %v3447, 4
    %v3449 = vadd.f32 %v3447, %v3448
    %v3450 = vrot.slane %v3449, 2
    %v3451 = vadd.f32 %v3449, %v3450
    %v3452 = vrot.slane %v3451, 1
    %v3453 = vadd.f32 %v3451, %v3452
    %v3454 = vsel %vm533, %v3434, 0.0
    %v3455 = vrot.slane %v3454, 4
    %v3456 = vadd.f32 %v3454, %v3455
    %v3457 = vrot.slane %v3456, 2
    %v3458 = vadd.f32 %v3456, %v3457
    %v3459 = vrot.slane %v3458, 1
    %v3460 = vadd.f32 %v3458, %v3459
    %v3461 = vsel %vm533, %v3436, 0.0
    %v3462 = vrot.slane %v3461, 4
    %v3463 = vadd.f32 %v3461, %v3462
    %v3464 = vrot.slane %v3463, 2
    %v3465 = vadd.f32 %v3463, %v3464
    %v3466 = vrot.slane %v3465, 1
    %v3467 = vadd.f32 %v3465, %v3466
    %v3468 = vmul.f32 %v3352, %v3352
    %v3469 = vmul.f32 %v3354, %v3354
    %v3470 = vmul.f32 %v3434, %v3434
    %v3471 = vmul.f32 %v3436, %v3436
    %v3472 = vsel %vm533, %v3468, 0.0
    %v3473 = vrot.slane %v3472, 4
    %v3474 = vadd.f32 %v3472, %v3473
    %v3475 = vrot.slane %v3474, 2
    %v3476 = vadd.f32 %v3474, %v3475
    %v3477 = vrot.slane %v3476, 1
    %v3478 = vadd.f32 %v3476, %v3477
    %v3479 = vsel %vm533, %v3469, 0.0
    %v3480 = vrot.slane %v3479, 4
    %v3481 = vadd.f32 %v3479, %v3480
    %v3482 = vrot.slane %v3481, 2
    %v3483 = vadd.f32 %v3481, %v3482
    %v3484 = vrot.slane %v3483, 1
    %v3485 = vadd.f32 %v3483, %v3484
    %v3486 = vsel %vm533, %v3470, 0.0
    %v3487 = vrot.slane %v3486, 4
    %v3488 = vadd.f32 %v3486, %v3487
    %v3489 = vrot.slane %v3488, 2
    %v3490 = vadd.f32 %v3488, %v3489
    %v3491 = vrot.slane %v3490, 1
    %v3492 = vadd.f32 %v3490, %v3491
    %v3493 = vsel %vm533, %v3471, 0.0
    %v3494 = vrot.slane %v3493, 4
    %v3495 = vadd.f32 %v3493, %v3494
    %v3496 = vrot.slane %v3495, 2
    %v3497 = vadd.f32 %v3495, %v3496
    %v3498 = vrot.slane %v3497, 1
    %v3499 = vadd.f32 %v3497, %v3498
    %v3500 = vmul.f32 %v3446, 0.5
    %v3501 = vmul.f32 %v3453, 0.5
    %v3502 = vmul.f32 %v3460, 0.5
    %v3503 = vmul.f32 %v3467, 0.5
    %v3504 = vmul.f32 %v3478, 0.5
    %v3505 = vmul.f32 %v3485, 0.5
    %v3506 = vmul.f32 %v3492, 0.5
    %v3507 = vmul.f32 %v3499, 0.5
    %v3508 = vmul.f32 %v3500, %v3500
    %v3509 = vmul.f32 %v3501, %v3501
    %v3510 = vmul.f32 %v3502, %v3502
    %v3511 = vmul.f32 %v3503, %v3503
    %v3512 = vsub.f32 %v3504, %v3508
    %v3513 = vsub.f32 %v3505, %v3509
    %v3514 = vsub.f32 %v3506, %v3510
    %v3515 = vsub.f32 %v3507, %v3511
    %v3516 = vmax.f32 %v3512, 0.0
    %v3517 = vmax.f32 %v3513, 0.0
    %v3518 = vmax.f32 %v3514, 0.0
    %v3519 = vmax.f32 %v3515, 0.0
    %v3520 = vsub.f32 %v3352, %v3500
    %v3521 = vsub.f32 %v3354, %v3501
    %v3522 = vsub.f32 %v3434, %v3502
    %v3523 = vsub.f32 %v3436, %v3503
    %v3524 = vadd.f32 %v3516, 1e-05
    %v3525 = vadd.f32 %v3517, 1e-05
    %v3526 = vadd.f32 %v3518, 1e-05
    %v3527 = vadd.f32 %v3519, 1e-05
    %v3528 = vrsqrt.pop %v3524
    %v3529 = vrsqrt.pop %v3525
    %v3530 = vrsqrt.pop %v3526
    %v3531 = vrsqrt.pop %v3527
    %v3532 = vmul.f32 %v3520, %v3528
    %v3533 = vmul.f32 %v3521, %v3529
    %v3534 = vmul.f32 %v3522, %v3530
    %v3535 = vmul.f32 %v3523, %v3531
    %v3536 = vadd.f32 %v3532, %v2496
    %v3537 = vadd.f32 %v3533, %v2497
    %v3538 = vadd.f32 %v3534, %v2498
    %v3539 = vadd.f32 %v3535, %v2499
    %v3540 = vmax.f32 %v3536, 0.0
    %v3541 = vmax.f32 %v3537, 0.0
    %v3542 = vmax.f32 %v3538, 0.0
    %v3543 = vmax.f32 %v3539, 0.0
    %v3544 = vpack.c.bf16 %v3540, %v3540
    %v3545 = vpack.c.bf16 %v3541, %v3541
    %v3546 = vpack.c.bf16 %v3542, %v3542
    %v3547 = vpack.c.bf16 %v3543, %v3543
    %v3548 = vld [vmem:[%s7] sm:$0xff]
    %v3549 = vld [vmem:[%s7 + $0x8] sm:$0xff]
    %v3550 = vld [vmem:[%s7 + $0x10] sm:$0xff]
    %v3551 = vld [vmem:[%s7 + $0x18] sm:$0xff]
    %v3552 = vld [vmem:[%s7 + $0x20] sm:$0xff]
    %v3553 = vld [vmem:[%s7 + $0x28] sm:$0xff]
    %v3554 = vld [vmem:[%s7 + $0x30] sm:$0xff]
    %v3555 = vld [vmem:[%s7 + $0x38] sm:$0xff]
    %v3556 = vld [vmem:[%s7 + $0x40] sm:$0xff]
    %v3557 = vld [vmem:[%s7 + $0x48] sm:$0xff]
    %v3558 = vld [vmem:[%s7 + $0x50] sm:$0xff]
    %v3559 = vld [vmem:[%s7 + $0x58] sm:$0xff]
    %v3560 = vld [vmem:[%s7 + $0x60] sm:$0xff]
    %v3561 = vld [vmem:[%s7 + $0x68] sm:$0xff]
    %v3562 = vld [vmem:[%s7 + $0x70] sm:$0xff]
    %v3563 = vld [vmem:[%s7 + $0x78] sm:$0xff]
    %v3564 = vld [vmem:[%s7 + $0x80] sm:$0xff]
    %v3565 = vld [vmem:[%s7 + $0x88] sm:$0xff]
    %v3566 = vld [vmem:[%s7 + $0x90] sm:$0xff]
    %v3567 = vld [vmem:[%s7 + $0x98] sm:$0xff]
    %v3568 = vld [vmem:[%s7 + $0xa0] sm:$0xff]
    %v3569 = vld [vmem:[%s7 + $0xa8] sm:$0xff]
    %v3570 = vld [vmem:[%s7 + $0xb0] sm:$0xff]
    %v3571 = vld [vmem:[%s7 + $0xb8] sm:$0xff]
    %v3572 = vld [vmem:[%s7 + $0xc0] sm:$0xff]
    %v3573 = vld [vmem:[%s7 + $0xc8] sm:$0xff]
    %v3574 = vld [vmem:[%s7 + $0xd0] sm:$0xff]
    %v3575 = vld [vmem:[%s7 + $0xd8] sm:$0xff]
    %v3576 = vld [vmem:[%s7 + $0xe0] sm:$0xff]
    %v3577 = vld [vmem:[%s7 + $0xe8] sm:$0xff]
    %v3578 = vld [vmem:[%s7 + $0xf0] sm:$0xff]
    %v3579 = vld [vmem:[%s7 + $0xf8] sm:$0xff]
    %v3580 = vld [vmem:[%s7 + $0x100] sm:$0xff]
    %v3581 = vld [vmem:[%s7 + $0x108] sm:$0xff]
    %v3582 = vld [vmem:[%s7 + $0x110] sm:$0xff]
    %v3583 = vld [vmem:[%s7 + $0x118] sm:$0xff]
    %v3584 = vld [vmem:[%s7 + $0x120] sm:$0xff]
    %v3585 = vld [vmem:[%s7 + $0x128] sm:$0xff]
    %v3586 = vld [vmem:[%s7 + $0x130] sm:$0xff]
    %v3587 = vld [vmem:[%s7 + $0x138] sm:$0xff]
    %v3588 = vld [vmem:[%s7 + $0x140] sm:$0xff]
    %v3589 = vld [vmem:[%s7 + $0x148] sm:$0xff]
    %v3590 = vld [vmem:[%s7 + $0x150] sm:$0xff]
    %v3591 = vld [vmem:[%s7 + $0x158] sm:$0xff]
    %v3592 = vld [vmem:[%s7 + $0x160] sm:$0xff]
    %v3593 = vld [vmem:[%s7 + $0x168] sm:$0xff]
    %v3594 = vld [vmem:[%s7 + $0x170] sm:$0xff]
    %v3595 = vld [vmem:[%s7 + $0x178] sm:$0xff]
    %v3596 = vld [vmem:[%s7 + $0x180] sm:$0xff]
    %v3597 = vld [vmem:[%s7 + $0x188] sm:$0xff]
    %v3598 = vld [vmem:[%s7 + $0x190] sm:$0xff]
    %v3599 = vld [vmem:[%s7 + $0x198] sm:$0xff]
    %v3600 = vld [vmem:[%s7 + $0x1a0] sm:$0xff]
    %v3601 = vld [vmem:[%s7 + $0x1a8] sm:$0xff]
    %v3602 = vld [vmem:[%s7 + $0x1b0] sm:$0xff]
    %v3603 = vld [vmem:[%s7 + $0x1b8] sm:$0xff]
    %v3604 = vld [vmem:[%s7 + $0x1c0] sm:$0xff]
    %v3605 = vld [vmem:[%s7 + $0x1c8] sm:$0xff]
    %v3606 = vld [vmem:[%s7 + $0x1d0] sm:$0xff]
    %v3607 = vld [vmem:[%s7 + $0x1d8] sm:$0xff]
    %v3608 = vld [vmem:[%s7 + $0x1e0] sm:$0xff]
    %v3609 = vld [vmem:[%s7 + $0x1e8] sm:$0xff]
    %v3610 = vld [vmem:[%s7 + $0x1f0] sm:$0xff]
    %v3611 = vld [vmem:[%s7 + $0x1f8] sm:$0xff]
    %v3612 = vld [vmem:[%s7 + $0x200] sm:$0xff]
    %v3613 = vld [vmem:[%s7 + $0x208] sm:$0xff]
    %v3614 = vld [vmem:[%s7 + $0x210] sm:$0xff]
    %v3615 = vld [vmem:[%s7 + $0x218] sm:$0xff]
    %v3616 = vld [vmem:[%s7 + $0x220] sm:$0xff]
    %v3617 = vld [vmem:[%s7 + $0x228] sm:$0xff]
    %v3618 = vld [vmem:[%s7 + $0x230] sm:$0xff]
    %v3619 = vld [vmem:[%s7 + $0x238] sm:$0xff]
    %v3620 = vld [vmem:[%s7 + $0x240] sm:$0xff]
    %v3621 = vld [vmem:[%s7 + $0x248] sm:$0xff]
    %v3622 = vld [vmem:[%s7 + $0x250] sm:$0xff]
    %v3623 = vld [vmem:[%s7 + $0x258] sm:$0xff]
    %v3624 = vld [vmem:[%s7 + $0x260] sm:$0xff]
    %v3625 = vld [vmem:[%s7 + $0x268] sm:$0xff]
    %v3626 = vld [vmem:[%s7 + $0x270] sm:$0xff]
    %v3627 = vld [vmem:[%s7 + $0x278] sm:$0xff]
    %v3628 = vld [vmem:[%s7 + $0x280] sm:$0xff]
    %v3629 = vld [vmem:[%s7 + $0x288] sm:$0xff]
    %v3630 = vld [vmem:[%s7 + $0x290] sm:$0xff]
    %v3631 = vld [vmem:[%s7 + $0x298] sm:$0xff]
    %v3632 = vld [vmem:[%s7 + $0x2a0] sm:$0xff]
    %v3633 = vld [vmem:[%s7 + $0x2a8] sm:$0xff]
    %v3634 = vld [vmem:[%s7 + $0x2b0] sm:$0xff]
    %v3635 = vld [vmem:[%s7 + $0x2b8] sm:$0xff]
    %v3636 = vld [vmem:[%s7 + $0x2c0] sm:$0xff]
    %v3637 = vld [vmem:[%s7 + $0x2c8] sm:$0xff]
    %v3638 = vld [vmem:[%s7 + $0x2d0] sm:$0xff]
    %v3639 = vld [vmem:[%s7 + $0x2d8] sm:$0xff]
    %v3640 = vld [vmem:[%s7 + $0x2e0] sm:$0xff]
    %v3641 = vld [vmem:[%s7 + $0x2e8] sm:$0xff]
    %v3642 = vld [vmem:[%s7 + $0x2f0] sm:$0xff]
    %v3643 = vld [vmem:[%s7 + $0x2f8] sm:$0xff]
    %v3644 = vld [vmem:[%s7 + $0x300] sm:$0xff]
    %v3645 = vld [vmem:[%s7 + $0x308] sm:$0xff]
    %v3646 = vld [vmem:[%s7 + $0x310] sm:$0xff]
    %v3647 = vld [vmem:[%s7 + $0x318] sm:$0xff]
    %v3648 = vld [vmem:[%s7 + $0x320] sm:$0xff]
    %v3649 = vld [vmem:[%s7 + $0x328] sm:$0xff]
    %v3650 = vld [vmem:[%s7 + $0x330] sm:$0xff]
    %v3651 = vld [vmem:[%s7 + $0x338] sm:$0xff]
    %v3652 = vld [vmem:[%s7 + $0x340] sm:$0xff]
    %v3653 = vld [vmem:[%s7 + $0x348] sm:$0xff]
    %v3654 = vld [vmem:[%s7 + $0x350] sm:$0xff]
    %v3655 = vld [vmem:[%s7 + $0x358] sm:$0xff]
    %v3656 = vld [vmem:[%s7 + $0x360] sm:$0xff]
    %v3657 = vld [vmem:[%s7 + $0x368] sm:$0xff]
    %v3658 = vld [vmem:[%s7 + $0x370] sm:$0xff]
    %v3659 = vld [vmem:[%s7 + $0x378] sm:$0xff]
    %v3660 = vld [vmem:[%s7 + $0x380] sm:$0xff]
    %v3661 = vld [vmem:[%s7 + $0x388] sm:$0xff]
    %v3662 = vld [vmem:[%s7 + $0x390] sm:$0xff]
    %v3663 = vld [vmem:[%s7 + $0x398] sm:$0xff]
    %v3664 = vld [vmem:[%s7 + $0x3a0] sm:$0xff]
    %v3665 = vld [vmem:[%s7 + $0x3a8] sm:$0xff]
    %v3666 = vld [vmem:[%s7 + $0x3b0] sm:$0xff]
    %v3667 = vld [vmem:[%s7 + $0x3b8] sm:$0xff]
    %v3668 = vld [vmem:[%s7 + $0x3c0] sm:$0xff]
    %v3669 = vld [vmem:[%s7 + $0x3c8] sm:$0xff]
    %v3670 = vld [vmem:[%s7 + $0x3d0] sm:$0xff]
    %v3671 = vld [vmem:[%s7 + $0x3d8] sm:$0xff]
    %v3672 = vld [vmem:[%s7 + $0x3e0] sm:$0xff]
    %v3673 = vld [vmem:[%s7 + $0x3e8] sm:$0xff]
    %v3674 = vld [vmem:[%s7 + $0x3f0] sm:$0xff]
    %v3675 = vld [vmem:[%s7 + $0x3f8] sm:$0xff]
    %v3804 = vunpack.c.l.b16 %v3548
    %v3805 = vunpack.c.h.b16 %v3548
    %v3806 = vunpack.c.l.b16 %v3549
    %v3807 = vunpack.c.h.b16 %v3549
    %v3808 = vunpack.c.l.b16 %v3550
    %v3809 = vunpack.c.h.b16 %v3550
    %v3810 = vunpack.c.l.b16 %v3551
    %v3811 = vunpack.c.h.b16 %v3551
    %v3812 = vunpack.c.l.b16 %v3552
    %v3813 = vunpack.c.h.b16 %v3552
    %v3814 = vunpack.c.l.b16 %v3553
    %v3815 = vunpack.c.h.b16 %v3553
    %v3816 = vunpack.c.l.b16 %v3554
    %v3817 = vunpack.c.h.b16 %v3554
    %v3818 = vunpack.c.l.b16 %v3555
    %v3819 = vunpack.c.h.b16 %v3555
    %v3820 = vunpack.c.l.b16 %v3556
    %v3821 = vunpack.c.h.b16 %v3556
    %v3822 = vunpack.c.l.b16 %v3557
    %v3823 = vunpack.c.h.b16 %v3557
    %v3824 = vunpack.c.l.b16 %v3558
    %v3825 = vunpack.c.h.b16 %v3558
    %v3826 = vunpack.c.l.b16 %v3559
    %v3827 = vunpack.c.h.b16 %v3559
    %v3828 = vunpack.c.l.b16 %v3560
    %v3829 = vunpack.c.h.b16 %v3560
    %v3830 = vunpack.c.l.b16 %v3561
    %v3831 = vunpack.c.h.b16 %v3561
    %v3832 = vunpack.c.l.b16 %v3562
    %v3833 = vunpack.c.h.b16 %v3562
    %v3834 = vunpack.c.l.b16 %v3563
    %v3835 = vunpack.c.h.b16 %v3563
    %v3836 = vunpack.c.l.b16 %v3564
    %v3837 = vunpack.c.h.b16 %v3564
    %v3838 = vunpack.c.l.b16 %v3565
    %v3839 = vunpack.c.h.b16 %v3565
    %v3840 = vunpack.c.l.b16 %v3566
    %v3841 = vunpack.c.h.b16 %v3566
    %v3842 = vunpack.c.l.b16 %v3567
    %v3843 = vunpack.c.h.b16 %v3567
    %v3844 = vunpack.c.l.b16 %v3568
    %v3845 = vunpack.c.h.b16 %v3568
    %v3846 = vunpack.c.l.b16 %v3569
    %v3847 = vunpack.c.h.b16 %v3569
    %v3848 = vunpack.c.l.b16 %v3570
    %v3849 = vunpack.c.h.b16 %v3570
    %v3850 = vunpack.c.l.b16 %v3571
    %v3851 = vunpack.c.h.b16 %v3571
    %v3852 = vunpack.c.l.b16 %v3572
    %v3853 = vunpack.c.h.b16 %v3572
    %v3854 = vunpack.c.l.b16 %v3573
    %v3855 = vunpack.c.h.b16 %v3573
    %v3856 = vunpack.c.l.b16 %v3574
    %v3857 = vunpack.c.h.b16 %v3574
    %v3858 = vunpack.c.l.b16 %v3575
    %v3859 = vunpack.c.h.b16 %v3575
    %v3860 = vunpack.c.l.b16 %v3576
    %v3861 = vunpack.c.h.b16 %v3576
    %v3862 = vunpack.c.l.b16 %v3577
    %v3863 = vunpack.c.h.b16 %v3577
    %v3864 = vunpack.c.l.b16 %v3578
    %v3865 = vunpack.c.h.b16 %v3578
    %v3866 = vunpack.c.l.b16 %v3579
    %v3867 = vunpack.c.h.b16 %v3579
    %v3868 = vunpack.c.l.b16 %v3580
    %v3869 = vunpack.c.h.b16 %v3580
    %v3870 = vunpack.c.l.b16 %v3581
    %v3871 = vunpack.c.h.b16 %v3581
    %v3872 = vunpack.c.l.b16 %v3582
    %v3873 = vunpack.c.h.b16 %v3582
    %v3874 = vunpack.c.l.b16 %v3583
    %v3875 = vunpack.c.h.b16 %v3583
    %v3876 = vunpack.c.l.b16 %v3584
    %v3877 = vunpack.c.h.b16 %v3584
    %v3878 = vunpack.c.l.b16 %v3585
    %v3879 = vunpack.c.h.b16 %v3585
    %v3880 = vunpack.c.l.b16 %v3586
    %v3881 = vunpack.c.h.b16 %v3586
    %v3882 = vunpack.c.l.b16 %v3587
    %v3883 = vunpack.c.h.b16 %v3587
    %v3884 = vunpack.c.l.b16 %v3588
    %v3885 = vunpack.c.h.b16 %v3588
    %v3886 = vunpack.c.l.b16 %v3589
    %v3887 = vunpack.c.h.b16 %v3589
    %v3888 = vunpack.c.l.b16 %v3590
    %v3889 = vunpack.c.h.b16 %v3590
    %v3890 = vunpack.c.l.b16 %v3591
    %v3891 = vunpack.c.h.b16 %v3591
    %v3892 = vunpack.c.l.b16 %v3592
    %v3893 = vunpack.c.h.b16 %v3592
    %v3894 = vunpack.c.l.b16 %v3593
    %v3895 = vunpack.c.h.b16 %v3593
    %v3896 = vunpack.c.l.b16 %v3594
    %v3897 = vunpack.c.h.b16 %v3594
    %v3898 = vunpack.c.l.b16 %v3595
    %v3899 = vunpack.c.h.b16 %v3595
    %v3900 = vunpack.c.l.b16 %v3596
    %v3901 = vunpack.c.h.b16 %v3596
    %v3902 = vunpack.c.l.b16 %v3597
    %v3903 = vunpack.c.h.b16 %v3597
    %v3904 = vunpack.c.l.b16 %v3598
    %v3905 = vunpack.c.h.b16 %v3598
    %v3906 = vunpack.c.l.b16 %v3599
    %v3907 = vunpack.c.h.b16 %v3599
    %v3908 = vunpack.c.l.b16 %v3600
    %v3909 = vunpack.c.h.b16 %v3600
    %v3910 = vunpack.c.l.b16 %v3601
    %v3911 = vunpack.c.h.b16 %v3601
    %v3912 = vunpack.c.l.b16 %v3602
    %v3913 = vunpack.c.h.b16 %v3602
    %v3914 = vunpack.c.l.b16 %v3603
    %v3915 = vunpack.c.h.b16 %v3603
    %v3916 = vunpack.c.l.b16 %v3604
    %v3917 = vunpack.c.h.b16 %v3604
    %v3918 = vunpack.c.l.b16 %v3605
    %v3919 = vunpack.c.h.b16 %v3605
    %v3920 = vunpack.c.l.b16 %v3606
    %v3921 = vunpack.c.h.b16 %v3606
    %v3922 = vunpack.c.l.b16 %v3607
    %v3923 = vunpack.c.h.b16 %v3607
    %v3924 = vunpack.c.l.b16 %v3608
    %v3925 = vunpack.c.h.b16 %v3608
    %v3926 = vunpack.c.l.b16 %v3609
    %v3927 = vunpack.c.h.b16 %v3609
    %v3928 = vunpack.c.l.b16 %v3610
    %v3929 = vunpack.c.h.b16 %v3610
    %v3930 = vunpack.c.l.b16 %v3611
    %v3931 = vunpack.c.h.b16 %v3611
    %v3932 = vunpack.c.l.b16 %v3612
    %v3933 = vunpack.c.h.b16 %v3612
    %v3934 = vunpack.c.l.b16 %v3613
    %v3935 = vunpack.c.h.b16 %v3613
    %v3936 = vunpack.c.l.b16 %v3614
    %v3937 = vunpack.c.h.b16 %v3614
    %v3938 = vunpack.c.l.b16 %v3615
    %v3939 = vunpack.c.h.b16 %v3615
    %v3940 = vunpack.c.l.b16 %v3616
    %v3941 = vunpack.c.h.b16 %v3616
    %v3942 = vunpack.c.l.b16 %v3617
    %v3943 = vunpack.c.h.b16 %v3617
    %v3944 = vunpack.c.l.b16 %v3618
    %v3945 = vunpack.c.h.b16 %v3618
    %v3946 = vunpack.c.l.b16 %v3619
    %v3947 = vunpack.c.h.b16 %v3619
    %v3948 = vunpack.c.l.b16 %v3620
    %v3949 = vunpack.c.h.b16 %v3620
    %v3950 = vunpack.c.l.b16 %v3621
    %v3951 = vunpack.c.h.b16 %v3621
    %v3952 = vunpack.c.l.b16 %v3622
    %v3953 = vunpack.c.h.b16 %v3622
    %v3954 = vunpack.c.l.b16 %v3623
    %v3955 = vunpack.c.h.b16 %v3623
    %v3956 = vunpack.c.l.b16 %v3624
    %v3957 = vunpack.c.h.b16 %v3624
    %v3958 = vunpack.c.l.b16 %v3625
    %v3959 = vunpack.c.h.b16 %v3625
    %v3960 = vunpack.c.l.b16 %v3626
    %v3961 = vunpack.c.h.b16 %v3626
    %v3962 = vunpack.c.l.b16 %v3627
    %v3963 = vunpack.c.h.b16 %v3627
    %v3964 = vunpack.c.l.b16 %v3628
    %v3965 = vunpack.c.h.b16 %v3628
    %v3966 = vunpack.c.l.b16 %v3629
    %v3967 = vunpack.c.h.b16 %v3629
    %v3968 = vunpack.c.l.b16 %v3630
    %v3969 = vunpack.c.h.b16 %v3630
    %v3970 = vunpack.c.l.b16 %v3631
    %v3971 = vunpack.c.h.b16 %v3631
    %v3972 = vunpack.c.l.b16 %v3632
    %v3973 = vunpack.c.h.b16 %v3632
    %v3974 = vunpack.c.l.b16 %v3633
    %v3975 = vunpack.c.h.b16 %v3633
    %v3976 = vunpack.c.l.b16 %v3634
    %v3977 = vunpack.c.h.b16 %v3634
    %v3978 = vunpack.c.l.b16 %v3635
    %v3979 = vunpack.c.h.b16 %v3635
    %v3980 = vunpack.c.l.b16 %v3636
    %v3981 = vunpack.c.h.b16 %v3636
    %v3982 = vunpack.c.l.b16 %v3637
    %v3983 = vunpack.c.h.b16 %v3637
    %v3984 = vunpack.c.l.b16 %v3638
    %v3985 = vunpack.c.h.b16 %v3638
    %v3986 = vunpack.c.l.b16 %v3639
    %v3987 = vunpack.c.h.b16 %v3639
    %v3988 = vunpack.c.l.b16 %v3640
    %v3989 = vunpack.c.h.b16 %v3640
    %v3990 = vunpack.c.l.b16 %v3641
    %v3991 = vunpack.c.h.b16 %v3641
    %v3992 = vunpack.c.l.b16 %v3642
    %v3993 = vunpack.c.h.b16 %v3642
    %v3994 = vunpack.c.l.b16 %v3643
    %v3995 = vunpack.c.h.b16 %v3643
    %v3996 = vunpack.c.l.b16 %v3644
    %v3997 = vunpack.c.h.b16 %v3644
    %v3998 = vunpack.c.l.b16 %v3645
    %v3999 = vunpack.c.h.b16 %v3645
    %v4000 = vunpack.c.l.b16 %v3646
    %v4001 = vunpack.c.h.b16 %v3646
    %v4002 = vunpack.c.l.b16 %v3647
    %v4003 = vunpack.c.h.b16 %v3647
    %v4004 = vunpack.c.l.b16 %v3648
    %v4005 = vunpack.c.h.b16 %v3648
    %v4006 = vunpack.c.l.b16 %v3649
    %v4007 = vunpack.c.h.b16 %v3649
    %v4008 = vunpack.c.l.b16 %v3650
    %v4009 = vunpack.c.h.b16 %v3650
    %v4010 = vunpack.c.l.b16 %v3651
    %v4011 = vunpack.c.h.b16 %v3651
    %v4012 = vunpack.c.l.b16 %v3652
    %v4013 = vunpack.c.h.b16 %v3652
    %v4014 = vunpack.c.l.b16 %v3653
    %v4015 = vunpack.c.h.b16 %v3653
    %v4016 = vunpack.c.l.b16 %v3654
    %v4017 = vunpack.c.h.b16 %v3654
    %v4018 = vunpack.c.l.b16 %v3655
    %v4019 = vunpack.c.h.b16 %v3655
    %v4020 = vunpack.c.l.b16 %v3656
    %v4021 = vunpack.c.h.b16 %v3656
    %v4022 = vunpack.c.l.b16 %v3657
    %v4023 = vunpack.c.h.b16 %v3657
    %v4024 = vunpack.c.l.b16 %v3658
    %v4025 = vunpack.c.h.b16 %v3658
    %v4026 = vunpack.c.l.b16 %v3659
    %v4027 = vunpack.c.h.b16 %v3659
    %v4028 = vunpack.c.l.b16 %v3660
    %v4029 = vunpack.c.h.b16 %v3660
    %v4030 = vunpack.c.l.b16 %v3661
    %v4031 = vunpack.c.h.b16 %v3661
    %v4032 = vunpack.c.l.b16 %v3662
    %v4033 = vunpack.c.h.b16 %v3662
    %v4034 = vunpack.c.l.b16 %v3663
    %v4035 = vunpack.c.h.b16 %v3663
    %v4036 = vunpack.c.l.b16 %v3664
    %v4037 = vunpack.c.h.b16 %v3664
    %v4038 = vunpack.c.l.b16 %v3665
    %v4039 = vunpack.c.h.b16 %v3665
    %v4040 = vunpack.c.l.b16 %v3666
    %v4041 = vunpack.c.h.b16 %v3666
    %v4042 = vunpack.c.l.b16 %v3667
    %v4043 = vunpack.c.h.b16 %v3667
    %v4044 = vunpack.c.l.b16 %v3668
    %v4045 = vunpack.c.h.b16 %v3668
    %v4046 = vunpack.c.l.b16 %v3669
    %v4047 = vunpack.c.h.b16 %v3669
    %v4048 = vunpack.c.l.b16 %v3670
    %v4049 = vunpack.c.h.b16 %v3670
    %v4050 = vunpack.c.l.b16 %v3671
    %v4051 = vunpack.c.h.b16 %v3671
    %v4052 = vunpack.c.l.b16 %v3672
    %v4053 = vunpack.c.h.b16 %v3672
    %v4054 = vunpack.c.l.b16 %v3673
    %v4055 = vunpack.c.h.b16 %v3673
    %v4056 = vunpack.c.l.b16 %v3674
    %v4057 = vunpack.c.h.b16 %v3674
    %v4058 = vunpack.c.l.b16 %v3675
    %v4059 = vunpack.c.h.b16 %v3675
    %v4060 = vpack.c.b16 %v3808, %v3804
    %v4061 = vpack.c.b16 %v3809, %v3805
    %v4062 = vpack.c.b16 %v3810, %v3806
    %v4063 = vpack.c.b16 %v3811, %v3807
    %v4064 = vpack.c.b16 %v3816, %v3812
    %v4065 = vpack.c.b16 %v3817, %v3813
    %v4066 = vpack.c.b16 %v3818, %v3814
    %v4067 = vpack.c.b16 %v3819, %v3815
    %v4068 = vpack.c.b16 %v3824, %v3820
    %v4069 = vpack.c.b16 %v3825, %v3821
    %v4070 = vpack.c.b16 %v3826, %v3822
    %v4071 = vpack.c.b16 %v3827, %v3823
    %v4072 = vpack.c.b16 %v3832, %v3828
    %v4073 = vpack.c.b16 %v3833, %v3829
    %v4074 = vpack.c.b16 %v3834, %v3830
    %v4075 = vpack.c.b16 %v3835, %v3831
    %v4076 = vpack.c.b16 %v3840, %v3836
    %v4077 = vpack.c.b16 %v3841, %v3837
    %v4078 = vpack.c.b16 %v3842, %v3838
    %v4079 = vpack.c.b16 %v3843, %v3839
    %v4080 = vpack.c.b16 %v3848, %v3844
    %v4081 = vpack.c.b16 %v3849, %v3845
    %v4082 = vpack.c.b16 %v3850, %v3846
    %v4083 = vpack.c.b16 %v3851, %v3847
    %v4084 = vpack.c.b16 %v3856, %v3852
    %v4085 = vpack.c.b16 %v3857, %v3853
    %v4086 = vpack.c.b16 %v3858, %v3854
    %v4087 = vpack.c.b16 %v3859, %v3855
    %v4088 = vpack.c.b16 %v3864, %v3860
    %v4089 = vpack.c.b16 %v3865, %v3861
    %v4090 = vpack.c.b16 %v3866, %v3862
    %v4091 = vpack.c.b16 %v3867, %v3863
    %v4092 = vpack.c.b16 %v3872, %v3868
    %v4093 = vpack.c.b16 %v3873, %v3869
    %v4094 = vpack.c.b16 %v3874, %v3870
    %v4095 = vpack.c.b16 %v3875, %v3871
    %v4096 = vpack.c.b16 %v3880, %v3876
    %v4097 = vpack.c.b16 %v3881, %v3877
    %v4098 = vpack.c.b16 %v3882, %v3878
    %v4099 = vpack.c.b16 %v3883, %v3879
    %v4100 = vpack.c.b16 %v3888, %v3884
    %v4101 = vpack.c.b16 %v3889, %v3885
    %v4102 = vpack.c.b16 %v3890, %v3886
    %v4103 = vpack.c.b16 %v3891, %v3887
    %v4104 = vpack.c.b16 %v3896, %v3892
    %v4105 = vpack.c.b16 %v3897, %v3893
    %v4106 = vpack.c.b16 %v3898, %v3894
    %v4107 = vpack.c.b16 %v3899, %v3895
    %v4108 = vpack.c.b16 %v3904, %v3900
    %v4109 = vpack.c.b16 %v3905, %v3901
    %v4110 = vpack.c.b16 %v3906, %v3902
    %v4111 = vpack.c.b16 %v3907, %v3903
    %v4112 = vpack.c.b16 %v3912, %v3908
    %v4113 = vpack.c.b16 %v3913, %v3909
    %v4114 = vpack.c.b16 %v3914, %v3910
    %v4115 = vpack.c.b16 %v3915, %v3911
    %v4116 = vpack.c.b16 %v3920, %v3916
    %v4117 = vpack.c.b16 %v3921, %v3917
    %v4118 = vpack.c.b16 %v3922, %v3918
    %v4119 = vpack.c.b16 %v3923, %v3919
    %v4120 = vpack.c.b16 %v3928, %v3924
    %v4121 = vpack.c.b16 %v3929, %v3925
    %v4122 = vpack.c.b16 %v3930, %v3926
    %v4123 = vpack.c.b16 %v3931, %v3927
    %v4124 = vpack.c.b16 %v3936, %v3932
    %v4125 = vpack.c.b16 %v3937, %v3933
    %v4126 = vpack.c.b16 %v3938, %v3934
    %v4127 = vpack.c.b16 %v3939, %v3935
    %v4128 = vpack.c.b16 %v3944, %v3940
    %v4129 = vpack.c.b16 %v3945, %v3941
    %v4130 = vpack.c.b16 %v3946, %v3942
    %v4131 = vpack.c.b16 %v3947, %v3943
    %v4132 = vpack.c.b16 %v3952, %v3948
    %v4133 = vpack.c.b16 %v3953, %v3949
    %v4134 = vpack.c.b16 %v3954, %v3950
    %v4135 = vpack.c.b16 %v3955, %v3951
    %v4136 = vpack.c.b16 %v3960, %v3956
    %v4137 = vpack.c.b16 %v3961, %v3957
    %v4138 = vpack.c.b16 %v3962, %v3958
    %v4139 = vpack.c.b16 %v3963, %v3959
    %v4140 = vpack.c.b16 %v3968, %v3964
    %v4141 = vpack.c.b16 %v3969, %v3965
    %v4142 = vpack.c.b16 %v3970, %v3966
    %v4143 = vpack.c.b16 %v3971, %v3967
    %v4144 = vpack.c.b16 %v3976, %v3972
    %v4145 = vpack.c.b16 %v3977, %v3973
    %v4146 = vpack.c.b16 %v3978, %v3974
    %v4147 = vpack.c.b16 %v3979, %v3975
    %v4148 = vpack.c.b16 %v3984, %v3980
    %v4149 = vpack.c.b16 %v3985, %v3981
    %v4150 = vpack.c.b16 %v3986, %v3982
    %v4151 = vpack.c.b16 %v3987, %v3983
    %v4152 = vpack.c.b16 %v3992, %v3988
    %v4153 = vpack.c.b16 %v3993, %v3989
    %v4154 = vpack.c.b16 %v3994, %v3990
    %v4155 = vpack.c.b16 %v3995, %v3991
    %v4156 = vpack.c.b16 %v4000, %v3996
    %v4157 = vpack.c.b16 %v4001, %v3997
    %v4158 = vpack.c.b16 %v4002, %v3998
    %v4159 = vpack.c.b16 %v4003, %v3999
    %v4160 = vpack.c.b16 %v4008, %v4004
    %v4161 = vpack.c.b16 %v4009, %v4005
    %v4162 = vpack.c.b16 %v4010, %v4006
    %v4163 = vpack.c.b16 %v4011, %v4007
    %v4164 = vpack.c.b16 %v4016, %v4012
    %v4165 = vpack.c.b16 %v4017, %v4013
    %v4166 = vpack.c.b16 %v4018, %v4014
    %v4167 = vpack.c.b16 %v4019, %v4015
    %v4168 = vpack.c.b16 %v4024, %v4020
    %v4169 = vpack.c.b16 %v4025, %v4021
    %v4170 = vpack.c.b16 %v4026, %v4022
    %v4171 = vpack.c.b16 %v4027, %v4023
    %v4172 = vpack.c.b16 %v4032, %v4028
    %v4173 = vpack.c.b16 %v4033, %v4029
    %v4174 = vpack.c.b16 %v4034, %v4030
    %v4175 = vpack.c.b16 %v4035, %v4031
    %v4176 = vpack.c.b16 %v4040, %v4036
    %v4177 = vpack.c.b16 %v4041, %v4037
    %v4178 = vpack.c.b16 %v4042, %v4038
    %v4179 = vpack.c.b16 %v4043, %v4039
    %v4180 = vpack.c.b16 %v4048, %v4044
    %v4181 = vpack.c.b16 %v4049, %v4045
    %v4182 = vpack.c.b16 %v4050, %v4046
    %v4183 = vpack.c.b16 %v4051, %v4047
    %v4184 = vpack.c.b16 %v4056, %v4052
    %v4185 = vpack.c.b16 %v4057, %v4053
    %v4186 = vpack.c.b16 %v4058, %v4054
    %v4187 = vpack.c.b16 %v4059, %v4055
    %4316 = vmatprep.subr.bf16.mxu0 %v4089
    %4317 = vmatpush1.bf16.msra.mxu0 %v4088
    %4318 = vmatprep.subr.bf16.mxu0 %v4085
    %4319 = vmatpush1.bf16.msra.mxu0 %v4084
    %4320 = vmatprep.subr.bf16.mxu0 %v4081
    %4321 = vmatpush1.bf16.msra.mxu0 %v4080
    %4322 = vmatprep.subr.bf16.mxu0 %v4077
    %4323 = vmatpush1.bf16.msra.mxu0 %v4076
    %4324 = vmatprep.subr.bf16.mxu0 %v4073
    %4325 = vmatpush1.bf16.msra.mxu0 %v4072
    %4326 = vmatprep.subr.bf16.mxu0 %v4069
    %4327 = vmatpush1.bf16.msra.mxu0 %v4068
    %4328 = vmatprep.subr.bf16.mxu0 %v4065
    %4329 = vmatpush1.bf16.msra.mxu0 %v4064
    %4330 = vmatprep.subr.bf16.mxu0 %v4061
    %4331 = vmatpush1.bf16.msra.mxu0 %v4060
    %4332 = vmatprep.subr.bf16.mxu0 %v4121
    %4333 = vmatpush2.bf16.msra.mxu0 %v4120
    %4334 = vmatprep.subr.bf16.mxu0 %v4117
    %4335 = vmatpush2.bf16.msra.mxu0 %v4116
    %4336 = vmatprep.subr.bf16.mxu0 %v4113
    %4337 = vmatpush2.bf16.msra.mxu0 %v4112
    %4338 = vmatprep.subr.bf16.mxu0 %v4109
    %4339 = vmatpush2.bf16.msra.mxu0 %v4108
    %4340 = vmatprep.subr.bf16.mxu0 %v4105
    %4341 = vmatpush2.bf16.msra.mxu0 %v4104
    %4342 = vmatprep.subr.bf16.mxu0 %v4101
    %4343 = vmatpush2.bf16.msra.mxu0 %v4100
    %4344 = vmatprep.subr.bf16.mxu0 %v4097
    %4345 = vmatpush2.bf16.msra.mxu0 %v4096
    %4346 = vmatprep.subr.bf16.mxu0 %v4093
    %4347 = vmatpush2.bf16.msra.mxu0 %v4092
    %4348 = vmatprep.mubr.bf16.mxu0 %v3545
    %4349 = vmatmul.mubr.bf16.gmra.mxu0 %v3544
    %v4350 = vpop.f32.mrf.mxu0
    %v4351 = vadd.f32 0.0, %v4350
    %v4352 = vpop.f32.mrf.mxu0
    %v4353 = vadd.f32 0.0, %v4352
    %v4354 = vpop.f32.mrf.mxu0
    %v4355 = vpop.f32.mrf.mxu0
    %4356 = vdwg.mxu0
    %4357 = vmatprep.subr.bf16.mxu0 %v4153
    %4358 = vmatpush1.bf16.msra.mxu0 %v4152
    %4359 = vmatprep.subr.bf16.mxu0 %v4149
    %4360 = vmatpush1.bf16.msra.mxu0 %v4148
    %4361 = vmatprep.subr.bf16.mxu0 %v4145
    %4362 = vmatpush1.bf16.msra.mxu0 %v4144
    %4363 = vmatprep.subr.bf16.mxu0 %v4141
    %4364 = vmatpush1.bf16.msra.mxu0 %v4140
    %4365 = vmatprep.subr.bf16.mxu0 %v4137
    %4366 = vmatpush1.bf16.msra.mxu0 %v4136
    %4367 = vmatprep.subr.bf16.mxu0 %v4133
    %4368 = vmatpush1.bf16.msra.mxu0 %v4132
    %4369 = vmatprep.subr.bf16.mxu0 %v4129
    %4370 = vmatpush1.bf16.msra.mxu0 %v4128
    %4371 = vmatprep.subr.bf16.mxu0 %v4125
    %4372 = vmatpush1.bf16.msra.mxu0 %v4124
    %4373 = vmatprep.subr.bf16.mxu0 %v4185
    %4374 = vmatpush2.bf16.msra.mxu0 %v4184
    %4375 = vmatprep.subr.bf16.mxu0 %v4181
    %4376 = vmatpush2.bf16.msra.mxu0 %v4180
    %4377 = vmatprep.subr.bf16.mxu0 %v4177
    %4378 = vmatpush2.bf16.msra.mxu0 %v4176
    %4379 = vmatprep.subr.bf16.mxu0 %v4173
    %4380 = vmatpush2.bf16.msra.mxu0 %v4172
    %4381 = vmatprep.subr.bf16.mxu0 %v4169
    %4382 = vmatpush2.bf16.msra.mxu0 %v4168
    %4383 = vmatprep.subr.bf16.mxu0 %v4165
    %4384 = vmatpush2.bf16.msra.mxu0 %v4164
    %4385 = vmatprep.subr.bf16.mxu0 %v4161
    %4386 = vmatpush2.bf16.msra.mxu0 %v4160
    %4387 = vmatprep.subr.bf16.mxu0 %v4157
    %4388 = vmatpush2.bf16.msra.mxu0 %v4156
    %4389 = vmatprep.mubr.bf16.mxu0 %v3547
    %4390 = vmatmul.mubr.bf16.gmra.mxu0 %v3546
    %v4391 = vpop.f32.mrf.mxu0
    %v4392 = vadd.f32 %v4351, %v4391
    %v4393 = vpop.f32.mrf.mxu0
    %v4394 = vadd.f32 %v4353, %v4393
    %v4395 = vpop.f32.mrf.mxu0
    %v4396 = vpop.f32.mrf.mxu0
    %4397 = vdwg.mxu0
    %4398 = vmatprep.subr.bf16.mxu0 %v4091
    %4399 = vmatpush1.bf16.msra.mxu0 %v4090
    %4400 = vmatprep.subr.bf16.mxu0 %v4087
    %4401 = vmatpush1.bf16.msra.mxu0 %v4086
    %4402 = vmatprep.subr.bf16.mxu0 %v4083
    %4403 = vmatpush1.bf16.msra.mxu0 %v4082
    %4404 = vmatprep.subr.bf16.mxu0 %v4079
    %4405 = vmatpush1.bf16.msra.mxu0 %v4078
    %4406 = vmatprep.subr.bf16.mxu0 %v4075
    %4407 = vmatpush1.bf16.msra.mxu0 %v4074
    %4408 = vmatprep.subr.bf16.mxu0 %v4071
    %4409 = vmatpush1.bf16.msra.mxu0 %v4070
    %4410 = vmatprep.subr.bf16.mxu0 %v4067
    %4411 = vmatpush1.bf16.msra.mxu0 %v4066
    %4412 = vmatprep.subr.bf16.mxu0 %v4063
    %4413 = vmatpush1.bf16.msra.mxu0 %v4062
    %4414 = vmatprep.subr.bf16.mxu0 %v4123
    %4415 = vmatpush2.bf16.msra.mxu0 %v4122
    %4416 = vmatprep.subr.bf16.mxu0 %v4119
    %4417 = vmatpush2.bf16.msra.mxu0 %v4118
    %4418 = vmatprep.subr.bf16.mxu0 %v4115
    %4419 = vmatpush2.bf16.msra.mxu0 %v4114
    %4420 = vmatprep.subr.bf16.mxu0 %v4111
    %4421 = vmatpush2.bf16.msra.mxu0 %v4110
    %4422 = vmatprep.subr.bf16.mxu0 %v4107
    %4423 = vmatpush2.bf16.msra.mxu0 %v4106
    %4424 = vmatprep.subr.bf16.mxu0 %v4103
    %4425 = vmatpush2.bf16.msra.mxu0 %v4102
    %4426 = vmatprep.subr.bf16.mxu0 %v4099
    %4427 = vmatpush2.bf16.msra.mxu0 %v4098
    %4428 = vmatprep.subr.bf16.mxu0 %v4095
    %4429 = vmatpush2.bf16.msra.mxu0 %v4094
    %4430 = vmatprep.mubr.bf16.mxu0 %v3545
    %4431 = vmatmul.mubr.bf16.gmra.mxu0 %v3544
    %v4432 = vpop.f32.mrf.mxu0
    %v4433 = vadd.f32 0.0, %v4432
    %v4434 = vpop.f32.mrf.mxu0
    %v4435 = vadd.f32 0.0, %v4434
    %v4436 = vpop.f32.mrf.mxu0
    %v4437 = vpop.f32.mrf.mxu0
    %4438 = vdwg.mxu0
    %4439 = vmatprep.subr.bf16.mxu0 %v4155
    %4440 = vmatpush1.bf16.msra.mxu0 %v4154
    %4441 = vmatprep.subr.bf16.mxu0 %v4151
    %4442 = vmatpush1.bf16.msra.mxu0 %v4150
    %4443 = vmatprep.subr.bf16.mxu0 %v4147
    %4444 = vmatpush1.bf16.msra.mxu0 %v4146
    %4445 = vmatprep.subr.bf16.mxu0 %v4143
    %4446 = vmatpush1.bf16.msra.mxu0 %v4142
    %4447 = vmatprep.subr.bf16.mxu0 %v4139
    %4448 = vmatpush1.bf16.msra.mxu0 %v4138
    %4449 = vmatprep.subr.bf16.mxu0 %v4135
    %4450 = vmatpush1.bf16.msra.mxu0 %v4134
    %4451 = vmatprep.subr.bf16.mxu0 %v4131
    %4452 = vmatpush1.bf16.msra.mxu0 %v4130
    %4453 = vmatprep.subr.bf16.mxu0 %v4127
    %4454 = vmatpush1.bf16.msra.mxu0 %v4126
    %4455 = vmatprep.subr.bf16.mxu0 %v4187
    %4456 = vmatpush2.bf16.msra.mxu0 %v4186
    %4457 = vmatprep.subr.bf16.mxu0 %v4183
    %4458 = vmatpush2.bf16.msra.mxu0 %v4182
    %4459 = vmatprep.subr.bf16.mxu0 %v4179
    %4460 = vmatpush2.bf16.msra.mxu0 %v4178
    %4461 = vmatprep.subr.bf16.mxu0 %v4175
    %4462 = vmatpush2.bf16.msra.mxu0 %v4174
    %4463 = vmatprep.subr.bf16.mxu0 %v4171
    %4464 = vmatpush2.bf16.msra.mxu0 %v4170
    %4465 = vmatprep.subr.bf16.mxu0 %v4167
    %4466 = vmatpush2.bf16.msra.mxu0 %v4166
    %4467 = vmatprep.subr.bf16.mxu0 %v4163
    %4468 = vmatpush2.bf16.msra.mxu0 %v4162
    %4469 = vmatprep.subr.bf16.mxu0 %v4159
    %4470 = vmatpush2.bf16.msra.mxu0 %v4158
    %4471 = vmatprep.mubr.bf16.mxu0 %v3547
    %4472 = vmatmul.mubr.bf16.gmra.mxu0 %v3546
    %v4473 = vpop.f32.mrf.mxu0
    %v4474 = vadd.f32 %v4433, %v4473
    %v4475 = vpop.f32.mrf.mxu0
    %v4476 = vadd.f32 %v4435, %v4475
    %v4477 = vpop.f32.mrf.mxu0
    %v4478 = vpop.f32.mrf.mxu0
    %4479 = vdwg.mxu0
    %v4480 = vsel %vm533, %v4392, 0.0
    %v4481 = vrot.slane %v4480, 4
    %v4482 = vadd.f32 %v4480, %v4481
    %v4483 = vrot.slane %v4482, 2
    %v4484 = vadd.f32 %v4482, %v4483
    %v4485 = vrot.slane %v4484, 1
    %v4486 = vadd.f32 %v4484, %v4485
    %v4487 = vsel %vm533, %v4394, 0.0
    %v4488 = vrot.slane %v4487, 4
    %v4489 = vadd.f32 %v4487, %v4488
    %v4490 = vrot.slane %v4489, 2
    %v4491 = vadd.f32 %v4489, %v4490
    %v4492 = vrot.slane %v4491, 1
    %v4493 = vadd.f32 %v4491, %v4492
    %v4494 = vsel %vm533, %v4474, 0.0
    %v4495 = vrot.slane %v4494, 4
    %v4496 = vadd.f32 %v4494, %v4495
    %v4497 = vrot.slane %v4496, 2
    %v4498 = vadd.f32 %v4496, %v4497
    %v4499 = vrot.slane %v4498, 1
    %v4500 = vadd.f32 %v4498, %v4499
    %v4501 = vsel %vm533, %v4476, 0.0
    %v4502 = vrot.slane %v4501, 4
    %v4503 = vadd.f32 %v4501, %v4502
    %v4504 = vrot.slane %v4503, 2
    %v4505 = vadd.f32 %v4503, %v4504
    %v4506 = vrot.slane %v4505, 1
    %v4507 = vadd.f32 %v4505, %v4506
    %v4508 = vmul.f32 %v4392, %v4392
    %v4509 = vmul.f32 %v4394, %v4394
    %v4510 = vmul.f32 %v4474, %v4474
    %v4511 = vmul.f32 %v4476, %v4476
    %v4512 = vsel %vm533, %v4508, 0.0
    %v4513 = vrot.slane %v4512, 4
    %v4514 = vadd.f32 %v4512, %v4513
    %v4515 = vrot.slane %v4514, 2
    %v4516 = vadd.f32 %v4514, %v4515
    %v4517 = vrot.slane %v4516, 1
    %v4518 = vadd.f32 %v4516, %v4517
    %v4519 = vsel %vm533, %v4509, 0.0
    %v4520 = vrot.slane %v4519, 4
    %v4521 = vadd.f32 %v4519, %v4520
    %v4522 = vrot.slane %v4521, 2
    %v4523 = vadd.f32 %v4521, %v4522
    %v4524 = vrot.slane %v4523, 1
    %v4525 = vadd.f32 %v4523, %v4524
    %v4526 = vsel %vm533, %v4510, 0.0
    %v4527 = vrot.slane %v4526, 4
    %v4528 = vadd.f32 %v4526, %v4527
    %v4529 = vrot.slane %v4528, 2
    %v4530 = vadd.f32 %v4528, %v4529
    %v4531 = vrot.slane %v4530, 1
    %v4532 = vadd.f32 %v4530, %v4531
    %v4533 = vsel %vm533, %v4511, 0.0
    %v4534 = vrot.slane %v4533, 4
    %v4535 = vadd.f32 %v4533, %v4534
    %v4536 = vrot.slane %v4535, 2
    %v4537 = vadd.f32 %v4535, %v4536
    %v4538 = vrot.slane %v4537, 1
    %v4539 = vadd.f32 %v4537, %v4538
    %v4540 = vmul.f32 %v4486, 0.5
    %v4541 = vmul.f32 %v4493, 0.5
    %v4542 = vmul.f32 %v4500, 0.5
    %v4543 = vmul.f32 %v4507, 0.5
    %v4544 = vmul.f32 %v4518, 0.5
    %v4545 = vmul.f32 %v4525, 0.5
    %v4546 = vmul.f32 %v4532, 0.5
    %v4547 = vmul.f32 %v4539, 0.5
    %v4548 = vmul.f32 %v4540, %v4540
    %v4549 = vmul.f32 %v4541, %v4541
    %v4550 = vmul.f32 %v4542, %v4542
    %v4551 = vmul.f32 %v4543, %v4543
    %v4552 = vsub.f32 %v4544, %v4548
    %v4553 = vsub.f32 %v4545, %v4549
    %v4554 = vsub.f32 %v4546, %v4550
    %v4555 = vsub.f32 %v4547, %v4551
    %v4556 = vmax.f32 %v4552, 0.0
    %v4557 = vmax.f32 %v4553, 0.0
    %v4558 = vmax.f32 %v4554, 0.0
    %v4559 = vmax.f32 %v4555, 0.0
    %v4560 = vsub.f32 %v4392, %v4540
    %v4561 = vsub.f32 %v4394, %v4541
    %v4562 = vsub.f32 %v4474, %v4542
    %v4563 = vsub.f32 %v4476, %v4543
    %v4564 = vadd.f32 %v4556, 1e-05
    %v4565 = vadd.f32 %v4557, 1e-05
    %v4566 = vadd.f32 %v4558, 1e-05
    %v4567 = vadd.f32 %v4559, 1e-05
    %v4568 = vrsqrt.pop %v4564
    %v4569 = vrsqrt.pop %v4565
    %v4570 = vrsqrt.pop %v4566
    %v4571 = vrsqrt.pop %v4567
    %v4572 = vmul.f32 %v4560, %v4568
    %v4573 = vmul.f32 %v4561, %v4569
    %v4574 = vmul.f32 %v4562, %v4570
    %v4575 = vmul.f32 %v4563, %v4571
    %v4576 = vmax.f32 %v4572, 0.0
    %v4577 = vmax.f32 %v4573, 0.0
    %v4578 = vmax.f32 %v4574, 0.0
    %v4579 = vmax.f32 %v4575, 0.0
    %v4580 = vpack.c.bf16 %v4576, %v4576
    %v4581 = vpack.c.bf16 %v4577, %v4577
    %v4582 = vpack.c.bf16 %v4578, %v4578
    %v4583 = vpack.c.bf16 %v4579, %v4579
    %v4584 = vld [vmem:[%s8] sm:$0xf]
    %v4585 = vld [vmem:[%s8 + $0x4] sm:$0xf]
    %v4586 = vld [vmem:[%s8 + $0x8] sm:$0xf]
    %v4587 = vld [vmem:[%s8 + $0xc] sm:$0xf]
    %v4588 = vld [vmem:[%s8 + $0x10] sm:$0xf]
    %v4589 = vld [vmem:[%s8 + $0x14] sm:$0xf]
    %v4590 = vld [vmem:[%s8 + $0x18] sm:$0xf]
    %v4591 = vld [vmem:[%s8 + $0x1c] sm:$0xf]
    %v4592 = vld [vmem:[%s8 + $0x20] sm:$0xf]
    %v4593 = vld [vmem:[%s8 + $0x24] sm:$0xf]
    %v4594 = vld [vmem:[%s8 + $0x28] sm:$0xf]
    %v4595 = vld [vmem:[%s8 + $0x2c] sm:$0xf]
    %v4596 = vld [vmem:[%s8 + $0x30] sm:$0xf]
    %v4597 = vld [vmem:[%s8 + $0x34] sm:$0xf]
    %v4598 = vld [vmem:[%s8 + $0x38] sm:$0xf]
    %v4599 = vld [vmem:[%s8 + $0x3c] sm:$0xf]
    %v4600 = vld [vmem:[%s8 + $0x40] sm:$0xf]
    %v4601 = vld [vmem:[%s8 + $0x44] sm:$0xf]
    %v4602 = vld [vmem:[%s8 + $0x48] sm:$0xf]
    %v4603 = vld [vmem:[%s8 + $0x4c] sm:$0xf]
    %v4604 = vld [vmem:[%s8 + $0x50] sm:$0xf]
    %v4605 = vld [vmem:[%s8 + $0x54] sm:$0xf]
    %v4606 = vld [vmem:[%s8 + $0x58] sm:$0xf]
    %v4607 = vld [vmem:[%s8 + $0x5c] sm:$0xf]
    %v4608 = vld [vmem:[%s8 + $0x60] sm:$0xf]
    %v4609 = vld [vmem:[%s8 + $0x64] sm:$0xf]
    %v4610 = vld [vmem:[%s8 + $0x68] sm:$0xf]
    %v4611 = vld [vmem:[%s8 + $0x6c] sm:$0xf]
    %v4612 = vld [vmem:[%s8 + $0x70] sm:$0xf]
    %v4613 = vld [vmem:[%s8 + $0x74] sm:$0xf]
    %v4614 = vld [vmem:[%s8 + $0x78] sm:$0xf]
    %v4615 = vld [vmem:[%s8 + $0x7c] sm:$0xf]
    %v4616 = vld [vmem:[%s8 + $0x80] sm:$0xf]
    %v4617 = vld [vmem:[%s8 + $0x84] sm:$0xf]
    %v4618 = vld [vmem:[%s8 + $0x88] sm:$0xf]
    %v4619 = vld [vmem:[%s8 + $0x8c] sm:$0xf]
    %v4620 = vld [vmem:[%s8 + $0x90] sm:$0xf]
    %v4621 = vld [vmem:[%s8 + $0x94] sm:$0xf]
    %v4622 = vld [vmem:[%s8 + $0x98] sm:$0xf]
    %v4623 = vld [vmem:[%s8 + $0x9c] sm:$0xf]
    %v4624 = vld [vmem:[%s8 + $0xa0] sm:$0xf]
    %v4625 = vld [vmem:[%s8 + $0xa4] sm:$0xf]
    %v4626 = vld [vmem:[%s8 + $0xa8] sm:$0xf]
    %v4627 = vld [vmem:[%s8 + $0xac] sm:$0xf]
    %v4628 = vld [vmem:[%s8 + $0xb0] sm:$0xf]
    %v4629 = vld [vmem:[%s8 + $0xb4] sm:$0xf]
    %v4630 = vld [vmem:[%s8 + $0xb8] sm:$0xf]
    %v4631 = vld [vmem:[%s8 + $0xbc] sm:$0xf]
    %v4632 = vld [vmem:[%s8 + $0xc0] sm:$0xf]
    %v4633 = vld [vmem:[%s8 + $0xc4] sm:$0xf]
    %v4634 = vld [vmem:[%s8 + $0xc8] sm:$0xf]
    %v4635 = vld [vmem:[%s8 + $0xcc] sm:$0xf]
    %v4636 = vld [vmem:[%s8 + $0xd0] sm:$0xf]
    %v4637 = vld [vmem:[%s8 + $0xd4] sm:$0xf]
    %v4638 = vld [vmem:[%s8 + $0xd8] sm:$0xf]
    %v4639 = vld [vmem:[%s8 + $0xdc] sm:$0xf]
    %v4640 = vld [vmem:[%s8 + $0xe0] sm:$0xf]
    %v4641 = vld [vmem:[%s8 + $0xe4] sm:$0xf]
    %v4642 = vld [vmem:[%s8 + $0xe8] sm:$0xf]
    %v4643 = vld [vmem:[%s8 + $0xec] sm:$0xf]
    %v4644 = vld [vmem:[%s8 + $0xf0] sm:$0xf]
    %v4645 = vld [vmem:[%s8 + $0xf4] sm:$0xf]
    %v4646 = vld [vmem:[%s8 + $0xf8] sm:$0xf]
    %v4647 = vld [vmem:[%s8 + $0xfc] sm:$0xf]
    %v4648 = vld [vmem:[%s9] sm:$0x1]
    %v4650 = vlaneseq
    %v4651 = vshrl.u32 %v4650, 7
    %v4652 = vsub.s32 0, %v4651
    %v4653 = vrot.slane %v4648, %v4652
    %v4719 = vunpack.c.l.b16 %v4584
    %v4720 = vunpack.c.l.b16 %v4585
    %v4721 = vunpack.c.l.b16 %v4586
    %v4722 = vunpack.c.l.b16 %v4587
    %v4723 = vunpack.c.l.b16 %v4588
    %v4724 = vunpack.c.l.b16 %v4589
    %v4725 = vunpack.c.l.b16 %v4590
    %v4726 = vunpack.c.l.b16 %v4591
    %v4727 = vunpack.c.l.b16 %v4592
    %v4728 = vunpack.c.l.b16 %v4593
    %v4729 = vunpack.c.l.b16 %v4594
    %v4730 = vunpack.c.l.b16 %v4595
    %v4731 = vunpack.c.l.b16 %v4596
    %v4732 = vunpack.c.l.b16 %v4597
    %v4733 = vunpack.c.l.b16 %v4598
    %v4734 = vunpack.c.l.b16 %v4599
    %v4735 = vunpack.c.l.b16 %v4600
    %v4736 = vunpack.c.l.b16 %v4601
    %v4737 = vunpack.c.l.b16 %v4602
    %v4738 = vunpack.c.l.b16 %v4603
    %v4739 = vunpack.c.l.b16 %v4604
    %v4740 = vunpack.c.l.b16 %v4605
    %v4741 = vunpack.c.l.b16 %v4606
    %v4742 = vunpack.c.l.b16 %v4607
    %v4743 = vunpack.c.l.b16 %v4608
    %v4744 = vunpack.c.l.b16 %v4609
    %v4745 = vunpack.c.l.b16 %v4610
    %v4746 = vunpack.c.l.b16 %v4611
    %v4747 = vunpack.c.l.b16 %v4612
    %v4748 = vunpack.c.l.b16 %v4613
    %v4749 = vunpack.c.l.b16 %v4614
    %v4750 = vunpack.c.l.b16 %v4615
    %v4751 = vunpack.c.l.b16 %v4616
    %v4752 = vunpack.c.l.b16 %v4617
    %v4753 = vunpack.c.l.b16 %v4618
    %v4754 = vunpack.c.l.b16 %v4619
    %v4755 = vunpack.c.l.b16 %v4620
    %v4756 = vunpack.c.l.b16 %v4621
    %v4757 = vunpack.c.l.b16 %v4622
    %v4758 = vunpack.c.l.b16 %v4623
    %v4759 = vunpack.c.l.b16 %v4624
    %v4760 = vunpack.c.l.b16 %v4625
    %v4761 = vunpack.c.l.b16 %v4626
    %v4762 = vunpack.c.l.b16 %v4627
    %v4763 = vunpack.c.l.b16 %v4628
    %v4764 = vunpack.c.l.b16 %v4629
    %v4765 = vunpack.c.l.b16 %v4630
    %v4766 = vunpack.c.l.b16 %v4631
    %v4767 = vunpack.c.l.b16 %v4632
    %v4768 = vunpack.c.l.b16 %v4633
    %v4769 = vunpack.c.l.b16 %v4634
    %v4770 = vunpack.c.l.b16 %v4635
    %v4771 = vunpack.c.l.b16 %v4636
    %v4772 = vunpack.c.l.b16 %v4637
    %v4773 = vunpack.c.l.b16 %v4638
    %v4774 = vunpack.c.l.b16 %v4639
    %v4775 = vunpack.c.l.b16 %v4640
    %v4776 = vunpack.c.l.b16 %v4641
    %v4777 = vunpack.c.l.b16 %v4642
    %v4778 = vunpack.c.l.b16 %v4643
    %v4779 = vunpack.c.l.b16 %v4644
    %v4780 = vunpack.c.l.b16 %v4645
    %v4781 = vunpack.c.l.b16 %v4646
    %v4782 = vunpack.c.l.b16 %v4647
    %v4783 = vpack.c.b16 %v4720, %v4719
    %v4784 = vpack.c.b16 %v4722, %v4721
    %v4785 = vpack.c.b16 %v4724, %v4723
    %v4786 = vpack.c.b16 %v4726, %v4725
    %v4787 = vpack.c.b16 %v4728, %v4727
    %v4788 = vpack.c.b16 %v4730, %v4729
    %v4789 = vpack.c.b16 %v4732, %v4731
    %v4790 = vpack.c.b16 %v4734, %v4733
    %v4791 = vpack.c.b16 %v4736, %v4735
    %v4792 = vpack.c.b16 %v4738, %v4737
    %v4793 = vpack.c.b16 %v4740, %v4739
    %v4794 = vpack.c.b16 %v4742, %v4741
    %v4795 = vpack.c.b16 %v4744, %v4743
    %v4796 = vpack.c.b16 %v4746, %v4745
    %v4797 = vpack.c.b16 %v4748, %v4747
    %v4798 = vpack.c.b16 %v4750, %v4749
    %v4799 = vpack.c.b16 %v4752, %v4751
    %v4800 = vpack.c.b16 %v4754, %v4753
    %v4801 = vpack.c.b16 %v4756, %v4755
    %v4802 = vpack.c.b16 %v4758, %v4757
    %v4803 = vpack.c.b16 %v4760, %v4759
    %v4804 = vpack.c.b16 %v4762, %v4761
    %v4805 = vpack.c.b16 %v4764, %v4763
    %v4806 = vpack.c.b16 %v4766, %v4765
    %v4807 = vpack.c.b16 %v4768, %v4767
    %v4808 = vpack.c.b16 %v4770, %v4769
    %v4809 = vpack.c.b16 %v4772, %v4771
    %v4810 = vpack.c.b16 %v4774, %v4773
    %v4811 = vpack.c.b16 %v4776, %v4775
    %v4812 = vpack.c.b16 %v4778, %v4777
    %v4813 = vpack.c.b16 %v4780, %v4779
    %v4814 = vpack.c.b16 %v4782, %v4781
    %4847 = vmatprep.subr.bf16.mxu0 0
    %4848 = vmatpush1.bf16.msra.mxu0 %v4790
    %4849 = vmatprep.subr.bf16.mxu0 0
    %4850 = vmatpush1.bf16.msra.mxu0 %v4789
    %4851 = vmatprep.subr.bf16.mxu0 0
    %4852 = vmatpush1.bf16.msra.mxu0 %v4788
    %4853 = vmatprep.subr.bf16.mxu0 0
    %4854 = vmatpush1.bf16.msra.mxu0 %v4787
    %4855 = vmatprep.subr.bf16.mxu0 0
    %4856 = vmatpush1.bf16.msra.mxu0 %v4786
    %4857 = vmatprep.subr.bf16.mxu0 0
    %4858 = vmatpush1.bf16.msra.mxu0 %v4785
    %4859 = vmatprep.subr.bf16.mxu0 0
    %4860 = vmatpush1.bf16.msra.mxu0 %v4784
    %4861 = vmatprep.subr.bf16.mxu0 0
    %4862 = vmatpush1.bf16.msra.mxu0 %v4783
    %4863 = vmatprep.subr.bf16.mxu0 0
    %4864 = vmatpush2.bf16.msra.mxu0 %v4798
    %4865 = vmatprep.subr.bf16.mxu0 0
    %4866 = vmatpush2.bf16.msra.mxu0 %v4797
    %4867 = vmatprep.subr.bf16.mxu0 0
    %4868 = vmatpush2.bf16.msra.mxu0 %v4796
    %4869 = vmatprep.subr.bf16.mxu0 0
    %4870 = vmatpush2.bf16.msra.mxu0 %v4795
    %4871 = vmatprep.subr.bf16.mxu0 0
    %4872 = vmatpush2.bf16.msra.mxu0 %v4794
    %4873 = vmatprep.subr.bf16.mxu0 0
    %4874 = vmatpush2.bf16.msra.mxu0 %v4793
    %4875 = vmatprep.subr.bf16.mxu0 0
    %4876 = vmatpush2.bf16.msra.mxu0 %v4792
    %4877 = vmatprep.subr.bf16.mxu0 0
    %4878 = vmatpush2.bf16.msra.mxu0 %v4791
    %4879 = vmatprep.mubr.bf16.mxu0 %v4581
    %4880 = vmatmul.mubr.bf16.gmra.mxu0 %v4580
    %v4881 = vpop.f32.mrf.mxu0
    %v4882 = vadd.f32 %v4653, %v4881
    %v4883 = vpop.f32.mrf.mxu0
    %v4884 = vpop.f32.mrf.mxu0
    %v4885 = vpop.f32.mrf.mxu0
    %4886 = vdwg.mxu0
    %4887 = vmatprep.subr.bf16.mxu0 0
    %4888 = vmatpush1.bf16.msra.mxu0 %v4806
    %4889 = vmatprep.subr.bf16.mxu0 0
    %4890 = vmatpush1.bf16.msra.mxu0 %v4805
    %4891 = vmatprep.subr.bf16.mxu0 0
    %4892 = vmatpush1.bf16.msra.mxu0 %v4804
    %4893 = vmatprep.subr.bf16.mxu0 0
    %4894 = vmatpush1.bf16.msra.mxu0 %v4803
    %4895 = vmatprep.subr.bf16.mxu0 0
    %4896 = vmatpush1.bf16.msra.mxu0 %v4802
    %4897 = vmatprep.subr.bf16.mxu0 0
    %4898 = vmatpush1.bf16.msra.mxu0 %v4801
    %4899 = vmatprep.subr.bf16.mxu0 0
    %4900 = vmatpush1.bf16.msra.mxu0 %v4800
    %4901 = vmatprep.subr.bf16.mxu0 0
    %4902 = vmatpush1.bf16.msra.mxu0 %v4799
    %4903 = vmatprep.subr.bf16.mxu0 0
    %4904 = vmatpush2.bf16.msra.mxu0 %v4814
    %4905 = vmatprep.subr.bf16.mxu0 0
    %4906 = vmatpush2.bf16.msra.mxu0 %v4813
    %4907 = vmatprep.subr.bf16.mxu0 0
    %4908 = vmatpush2.bf16.msra.mxu0 %v4812
    %4909 = vmatprep.subr.bf16.mxu0 0
    %4910 = vmatpush2.bf16.msra.mxu0 %v4811
    %4911 = vmatprep.subr.bf16.mxu0 0
    %4912 = vmatpush2.bf16.msra.mxu0 %v4810
    %4913 = vmatprep.subr.bf16.mxu0 0
    %4914 = vmatpush2.bf16.msra.mxu0 %v4809
    %4915 = vmatprep.subr.bf16.mxu0 0
    %4916 = vmatpush2.bf16.msra.mxu0 %v4808
    %4917 = vmatprep.subr.bf16.mxu0 0
    %4918 = vmatpush2.bf16.msra.mxu0 %v4807
    %4919 = vmatprep.mubr.bf16.mxu0 %v4583
    %4920 = vmatmul.mubr.bf16.gmra.mxu0 %v4582
    %v4921 = vpop.f32.mrf.mxu0
    %v4922 = vadd.f32 %v4882, %v4921
    %v4923 = vpop.f32.mrf.mxu0
    %v4924 = vpop.f32.mrf.mxu0
    %v4925 = vpop.f32.mrf.mxu0
    %4926 = vdwg.mxu0
    %vm4927 = vcmask 74752
    %4928 = vst.msk [vmem:[#allocation2] sm:$0x3] %vm4927, %v4922
    // Predicated region
    $region42: #{forward.7} parent=1 // pred_check
      _
    $region43: #{forward.7} parent=1 // pred_check_branch
      %4930 = sbr.rel (0) target = $region45
    $region44: #{forward.7} parent=1 // pred_region
      %s4932 = ssub.s32 32, 32
      %4933 = vsyncadd [#allocation3], %s4932
      %s4935 = sshll.u32 [#allocation2], 4
      %s4936 = int_to_ptr.vmem [resolvable:$true] %s4935
      %4938 = dma.vmem_to_hbm [thread:$0]  %s4936, 32, %s10, [#allocation3]
    $region45: #{forward.7} parent=1 // pred_fallthru
      _
    // Predicated region
    $region46: #{forward.7} parent=1 // pred_check
      _
    $region47: #{forward.7} parent=1 // pred_check_branch
      %4940 = sbr.rel (0) target = $region49
    $region48: #{forward.7} parent=1 // pred_region
      %4941 = dma.done [#allocation3], 32
    $region49: #{forward.7} parent=1 // pred_fallthru
      _
    %4942 = vsyncpa [#allocation3], 1

</llo_original>
